<compile_context>
chip_gen: v6e
topology: v6e:2x2x1
jax: 0.10.0
libtpu: 0.0.40
codegen_flags: <defaults>
</compile_context>

<pallas_src>
import functools

import numpy as np
import jax
import jax.numpy as jnp
from jax.experimental import pallas as pl
from jax.experimental.pallas import tpu as pltpu

_OFFL = 128  # aligned lane offset of the slab interior (halo loads are unaligned, not stores)


# -----------------------------------------------------------------------------
# Static geometry (all Python ints, shared by wrapper and kernel)
# -----------------------------------------------------------------------------
def _geom(H, W):
    Wg = W + 2                      # padded row stride of the "grid" layout
    R = H * Wg                      # grid length; columns j in {W, W+1} are garbage
    H2 = (H - 3) // 2 + 1           # ESA conv2 (3x3, stride 2, pad 0) output
    W2 = (W - 3) // 2 + 1
    P2 = H2 * W2
    Hp = (H2 - 7) // 3 + 1          # 7x7 / stride-3 max-pool output
    Wp = (W2 - 7) // 3 + 1
    Wpg = Wp + 2
    Rm = Hp * Wpg                   # mini-grid length for the pooled-map convs
    MSLAB = (Hp + 3) * Wpg          # mini zero-halo slab length
    Rc = 2 * (H2 - 1) * Wg + 2 * (W2 - 1) + 1   # dense range needed by conv2 taps
    max_base = 3 * ((Hp - 1) * W2 + (Wp - 1))
    Lpw = max_base + 1              # pooled-window base range
    Lc = max_base + 6 * W2 + 1      # column-max intermediate length
    CSLAB = _OFFL + R + W + 3       # conv-output slab (zero halo both sides)
    return dict(Wg=Wg, R=R, H2=H2, W2=W2, P2=P2, Hp=Hp, Wp=Wp, Wpg=Wpg, Rm=Rm,
                MSLAB=MSLAB, Rc=Rc, Lpw=Lpw, Lc=Lc, CSLAB=CSLAB)


def _spatial_constants(H, W):
    """Constant matrices: column mask, stride-2 subsample, pooled-slab embeds,
    bilinear (align_corners=False) upsample.  Built once at trace time."""
    g = _geom(H, W)
    Wg, R, H2, W2, P2 = g["Wg"], g["R"], g["H2"], g["W2"], g["P2"]
    Hp, Wp, Wpg, Rm, MSLAB, Rc, Lpw = (g["Hp"], g["Wp"], g["Wpg"], g["Rm"],
                                       g["MSLAB"], g["Rc"], g["Lpw"])

    colmask = (np.arange(R) % Wg < W).astype(np.float32).reshape(1, R)

    s0 = np.zeros((Rc, P2), np.float32)          # stride-2 position selector
    for i2 in range(H2):
        for j2 in range(W2):
            s0[2 * i2 * Wg + 2 * j2, i2 * W2 + j2] = 1.0

    eppool = np.zeros((Lpw, MSLAB), np.float32)  # pooled-window bases -> mini slab
    vem = np.zeros((Rm, MSLAB), np.float32)      # mini grid (valid cols) -> mini slab
    for pi in range(Hp):
        for pj in range(Wp):
            dst = (pi + 1) * Wpg + (pj + 1)
            eppool[3 * (pi * W2 + pj), dst] = 1.0
            vem[pi * Wpg + pj, dst] = 1.0

    um = np.zeros((Rm, R), np.float32)           # bilinear upsample, align_corners=False

    def src(o, n_in, n_out):
        s = max((o + 0.5) * n_in / n_out - 0.5, 0.0)
        i0 = min(int(np.floor(s)), n_in - 1)
        return i0, min(i0 + 1, n_in - 1), s - i0

    for y in range(H):
        y0, y1, fy = src(y, Hp, H)
        for x in range(W):
            x0, x1, fx = src(x, Wp, W)
            rf = y * Wg + x
            um[y0 * Wpg + x0, rf] += (1.0 - fy) * (1.0 - fx)
            um[y0 * Wpg + x1, rf] += (1.0 - fy) * fx
            um[y1 * Wpg + x0, rf] += fy * (1.0 - fx)
            um[y1 * Wpg + x1, rf] += fy * fx

    return colmask, s0, eppool, vem, um


# -----------------------------------------------------------------------------
# In-kernel math helpers
# -----------------------------------------------------------------------------
def _gelu_erf(x):
    # Exact-erf GELU (matches nn.GELU()) via Abramowitz-Stegun 7.1.26
    # (|err| < 1.5e-7); reciprocal + exp go to the EUP so VALU cost is the poly.
    a1, a2, a3, a4, a5 = 0.254829592, -0.284496736, 1.421413741, -1.453152027, 1.061405429
    p = 0.3275911
    u = x * 0.7071067811865476
    sign = jnp.where(u >= 0.0, 1.0, -1.0)
    z = jnp.abs(u)
    t = pl.reciprocal(1.0 + p * z, approx=True)
    poly = ((((a5 * t + a4) * t + a3) * t + a2) * t + a1) * t
    erf = sign * (1.0 - poly * jnp.exp(-z * z))
    return 0.5 * x * (1.0 + erf)


# -----------------------------------------------------------------------------
# The fused kernel (one image per grid step)
# -----------------------------------------------------------------------------
def _bsb_kernel(x9_ref, mask_ref,
                wc_ref, bc_ref, wdw_ref, bdw_ref, w1_ref, b1_ref, w2_ref, b2_ref,
                we1_ref, be1_ref, we2_ref, be2_ref, s0_ref,
                wem_ref, bem_ref, we3_ref, be3_ref, we3b_ref, be3b_ref,
                eppool_ref, vem_ref, um_ref,
                wef_ref, bef_ref, we4_ref, be4_ref,
                wd1_ref, bd1_ref, wd2_ref, bd2_ref,
                o_ref,
                cslab, c1s, o2s, cms, mss,
                *, H, W):
    g = _geom(H, W)
    Wg, R, W2 = g["Wg"], g["R"], g["W2"]
    Rc, Lpw, Lc, Rm, Wpg, CSLAB = g["Rc"], g["Lpw"], g["Lc"], g["Rm"], g["Wpg"], g["CSLAB"]
    C = bc_ref.shape[0]
    f32, bf16 = jnp.float32, jnp.bfloat16

    def mm(w, x):                                          # MXU matmul, f32 accumulate
        return jnp.dot(w, x, preferred_element_type=f32)

    mask = mask_ref[...]                                   # (1, R) valid-column mask

    # ---- blueprint 3x3 conv: ONE K=9*Cin matmul on the wrapper-stacked tap slab
    conv = mm(wc_ref[...], x9_ref[0]) + bc_ref[...]        # (C, R) f32 == Blocks shortcut

    # ---- refresh only the halo windows (~4 vregs), then stage conv into the slab.
    cslab[:, 0:_OFFL] = jnp.zeros((C, _OFFL), f32)
    cslab[:, _OFFL + R:] = jnp.zeros((C, CSLAB - _OFFL - R), f32)
    cslab[:, _OFFL:_OFFL + R] = conv * mask                # garbage columns zeroed

    # ---- depthwise 3x3 (pad 1, groups=C): 9 lane-shifted taps, pure VPU
    base = _OFFL - (W + 3)
    acc = None
    for dh in range(3):
        for dw in range(3):
            k = dh * 3 + dw
            tap = cslab[:, base + dh * Wg + dw: base + dh * Wg + dw + R]
            term = tap * wdw_ref[:, k:k + 1]
            acc = term if acc is None else acc + term
    t = acc + bdw_ref[...]

    # ---- 1x1 expand -> GELU -> 1x1 project -> residual (4C activation never leaves VMEM)
    # TODO(synk): for large H*W, chunk the lane axis here so the (4C, R) f32
    # intermediate stays within v7x's smaller VMEM.
    h = _gelu_erf(mm(w1_ref[...], t.astype(bf16)) + b1_ref[...])         # (4C, R)
    xb = conv + mm(w2_ref[...], h.astype(bf16)) + b2_ref[...]            # (C, R)

    # ---- ESA conv1 (1x1, C -> f)
    c1 = mm(we1_ref[...], xb.astype(bf16)) + be1_ref[...]                # (f, R)
    c1s[...] = c1

    # ---- ESA conv2 (3x3, stride 2, pad 0): dense lane-window taps + constant subsample
    d = None
    for dh in range(3):
        for dw in range(3):
            k = dh * 3 + dw
            term = mm(we2_ref[k], c1s[:, dh * Wg + dw: dh * Wg + dw + Rc])
            d = term if d is None else d + term
    o2s[...] = mm(d, s0_ref[...]) + be2_ref[...]                         # (f, P2) dense

    # ---- 7x7 / stride-3 max-pool (separable shift-max along lanes)
    cm = None
    for db in range(7):
        s = o2s[:, db:db + Lc]
        cm = s if cm is None else jnp.maximum(cm, s)
    cms[...] = cm
    pw = None
    for da in range(7):
        s = cms[:, da * W2: da * W2 + Lpw]
        pw = s if pw is None else jnp.maximum(pw, s)
    mss[...] = mm(pw, eppool_ref[...])           # pooled values in a zero-halo mini slab

    # ---- conv_max / conv3 / conv3_ (3x3, pad 1) on the pooled map
    def mini_conv(w_ref, b_ref):
        a = None
        for dh in range(3):
            for dw in range(3):
                k = dh * 3 + dw
                term = mm(w_ref[k], mss[:, dh * Wpg + dw: dh * Wpg + dw + Rm])
                a = term if a is None else a + term
        return a + b_ref[...]

    gmid = jnp.maximum(mini_conv(wem_ref, bem_ref), 0.0)
    mss[...] = mm(gmid, vem_ref[...])
    gmid = jnp.maximum(mini_conv(we3_ref, be3_ref), 0.0)
    mss[...] = mm(gmid, vem_ref[...])
    c3m = mini_conv(we3b_ref, be3b_ref)                                  # (f, Rm)

    # ---- bilinear (align_corners=False) upsample via constant interpolation matmul
    c3 = mm(c3m, um_ref[...])                                            # (f, R)

    # ---- ESA tail: conv_f + add + conv4 + sigmoid spatial gate
    cf = mm(wef_ref[...], c1.astype(bf16)) + bef_ref[...]
    c4 = mm(we4_ref[...], (c3 + cf).astype(bf16)) + be4_ref[...]
    xe = xb * jax.nn.sigmoid(c4)                                         # ESA output

    # ---- CCA: masked biased-std + mean (lane reductions), squeeze/excite on the VPU
    inv_hw = 1.0 / float(H * W)
    mean = jnp.sum(xe * mask, axis=1, keepdims=True) * inv_hw            # (C, 1)
    diff = (xe - mean) * mask
    var = jnp.sum(diff * diff, axis=1, keepdims=True) * inv_hw
    y = jnp.sqrt(var) + mean                                             # (C, 1)
    z = jnp.maximum(jnp.sum(wd1_ref[...] * y, axis=0, keepdims=True) + bd1_ref[...], 0.0)
    gate = jax.nn.sigmoid(jnp.sum(wd2_ref[...] * z, axis=1, keepdims=True) + bd2_ref[...])
    o_ref[0] = xe * gate


# -----------------------------------------------------------------------------
# Wrapper: layout prep (im2col stack / padding) in XLA, one pallas_call, crop
# -----------------------------------------------------------------------------
def blueprint_shortcut_block(x_nchw, p):
    N, Cin, H, W = x_nchw.shape
    C = p["conv_b"].shape[0]
    f = p["e1_b"].shape[0]
    g = _geom(H, W)
    Wg, R = g["Wg"], g["R"]
    assert W + 3 <= _OFFL, "kernel assumes W <= 125"
    assert g["H2"] >= 7 and g["W2"] >= 7, "ESA 7x7 max-pool needs H, W >= 15"

    colmask, s0, eppool, vem, um = _spatial_constants(H, W)

    # Input staging (tiny, XLA): spatial pad=1, flatten to padded-row "grid" layout
    # and stack the 9 shifted taps -> blueprint conv becomes one K=9*Cin matmul.
    xpad = jnp.pad(x_nchw.astype(jnp.float32), ((0, 0), (0, 0), (1, 1), (1, 1)))
    xflat = jnp.pad(xpad.reshape(N, Cin, (H + 2) * Wg), ((0, 0), (0, 0), (0, 2)))
    taps = [xflat[:, :, dh * Wg + dw: dh * Wg + dw + R]
            for dh in range(3) for dw in range(3)]
    x9 = jnp.stack(taps, axis=1).reshape(N, 9 * Cin, R).astype(jnp.bfloat16)

    bf = lambda a: a.astype(jnp.bfloat16)        # pre-cast MXU-bound weights once
    inputs = (
        x9, jnp.asarray(colmask),
        bf(p["conv_w"]), p["conv_b"], p["dw_w"], p["dw_b"],
        bf(p["r1_w"]), p["r1_b"], bf(p["r2_w"]), p["r2_b"],
        bf(p["e1_w"]), p["e1_b"], p["e2_w"], p["e2_b"], jnp.asarray(s0),
        p["em_w"], p["em_b"], p["e3_w"], p["e3_b"], p["e3b_w"], p["e3b_b"],
        jnp.asarray(eppool), jnp.asarray(vem), jnp.asarray(um),
        bf(p["ef_w"]), p["ef_b"], bf(p["e4_w"]), p["e4_b"],
        p["du1_w"], p["du1_b"], p["du2_w"], p["du2_b"],
    )

    def _rep(a):
        nd = a.ndim
        return pl.BlockSpec(a.shape, lambda n, _nd=nd: (0,) * _nd)

    in_specs = [pl.BlockSpec((1, 9 * Cin, R), lambda n: (n, 0, 0))]
    in_specs += [_rep(a) for a in inputs[1:]]

    flops = 2 * N * R * (C * 9 * Cin + 9 * C + 8 * C * C + f * C + f * f
                         + C * f + f * g["Rm"]) \
        + 2 * N * g["Rc"] * (9 * f * f + f * g["P2"])
    cost = pl.CostEstimate(
        flops=int(flops),
        transcendentals=int(N * R * 6 * C),
        bytes_accessed=int(N * R * (9 * Cin * 2 + C * 4)
                           + 4 * (g["Rc"] * g["P2"] + g["Rm"] * R)))

    # TODO(synk): if N can be 1 on v7x, add a second parallel grid axis (front/tail
    # lane-tiles) so both TensorCores stay busy; with N>=2 the batch axis suffices.
    out = pl.pallas_call(
        functools.partial(_bsb_kernel, H=H, W=W),
        grid=(N,),
        in_specs=in_specs,
        out_specs=pl.BlockSpec((1, C, R), lambda n: (n, 0, 0)),
        out_shape=jax.ShapeDtypeStruct((N, C, R), jnp.float32),
        scratch_shapes=[pltpu.VMEM((C, g["CSLAB"]), jnp.float32),
                        pltpu.VMEM((f, R), jnp.float32),
                        pltpu.VMEM((f, g["P2"]), jnp.float32),
                        pltpu.VMEM((f, g["Lc"]), jnp.float32),
                        pltpu.VMEM((f, g["MSLAB"]), jnp.float32)],
        compiler_params=pltpu.CompilerParams(
            dimension_semantics=("parallel",),
            vmem_limit_bytes=32 * 1024 * 1024),
        cost_estimate=cost,
    )(*inputs)

    # Kernel output is lane-dense (N, C, H*(W+2)); drop padded columns in XLA.
    return out.reshape(N, C, H, Wg)[:, :, :, :W]


# -----------------------------------------------------------------------------
# Deterministic synthetic parameters (kernel-native layouts; PyTorch mapping noted)
# -----------------------------------------------------------------------------
def init_params(key, cin, cout):
    f = cout // 4
    red = max(cout // 16, 1)
    keys = iter(jax.random.split(key, 40))

    def w(shape, scale=0.1):
        return jax.random.normal(next(keys), shape, jnp.float32) * scale

    # conv_w (C, 9*Cin): [co, (kh*3+kw)*Cin + ci] == torch conv.weight[co, ci, kh, kw]
    # dw_w   (C, 9)    : [c, kh*3+kw]             == torch depthwise.weight[c, 0, kh, kw]
    # 1x1 convs (Cout, Cin) == torch weight[:, :, 0, 0]
    # e2/em/e3/e3b_w (9, f, f): [kh*3+kw, co, ci] == torch weight[co, ci, kh, kw]
    # du1_w (C, red) == torch conv_du[0].weight[:, :, 0, 0].T; du2_w (C, red) == conv_du[2].weight[:, :, 0, 0]
    p = {}
    p["conv_w"], p["conv_b"] = w((cout, 9 * cin)), w((cout, 1), 0.01)
    p["dw_w"], p["dw_b"] = w((cout, 9)), w((cout, 1), 0.01)
    p["r1_w"], p["r1_b"] = w((4 * cout, cout)), w((4 * cout, 1), 0.01)
    p["r2_w"], p["r2_b"] = w((cout, 4 * cout)), w((cout, 1), 0.01)
    p["e1_w"], p["e1_b"] = w((f, cout)), w((f, 1), 0.01)
    p["e2_w"], p["e2_b"] = w((9, f, f)), w((f, 1), 0.01)
    p["em_w"], p["em_b"] = w((9, f, f)), w((f, 1), 0.01)
    p["e3_w"], p["e3_b"] = w((9, f, f)), w((f, 1), 0.01)
    p["e3b_w"], p["e3b_b"] = w((9, f, f)), w((f, 1), 0.01)
    p["ef_w"], p["ef_b"] = w((f, f)), w((f, 1), 0.01)
    p["e4_w"], p["e4_b"] = w((cout, f)), w((cout, 1), 0.01)
    p["du1_w"], p["du1_b"] = w((cout, red)), w((1, red), 0.01)
    p["du2_w"], p["du2_b"] = w((cout, red)), w((cout, 1), 0.01)
    return p


if __name__ == "__main__":
    key = jax.random.PRNGKey(0)
    kp, kx = jax.random.split(key)

    in_channels, out_channels = 4, 16
    N, H, W = 2, 24, 24

    params = init_params(kp, in_channels, out_channels)
    x = jax.random.normal(kx, (N, in_channels, H, W), jnp.float32)

    fwd = jax.jit(blueprint_shortcut_block)
    out = jax.block_until_ready(fwd(x, params))

    assert out.shape == (N, out_channels, H, W)
    assert bool(jnp.all(jnp.isfinite(out)))
    print("KERNEL_OK")
</pallas_src>

<mosaic_0001>
module attributes {stable_mosaic.version = 11 : i64} {
  func.func @_bsb_kernel(%arg0: i32, %arg1: memref<1x36x624xbf16, #tpu.memory_space<vmem>>, %arg2: memref<1x624xf32, #tpu.memory_space<vmem>>, %arg3: memref<16x36xbf16, #tpu.memory_space<vmem>>, %arg4: memref<16x1xf32, #tpu.memory_space<vmem>>, %arg5: memref<16x9xf32, #tpu.memory_space<vmem>>, %arg6: memref<16x1xf32, #tpu.memory_space<vmem>>, %arg7: memref<64x16xbf16, #tpu.memory_space<vmem>>, %arg8: memref<64x1xf32, #tpu.memory_space<vmem>>, %arg9: memref<16x64xbf16, #tpu.memory_space<vmem>>, %arg10: memref<16x1xf32, #tpu.memory_space<vmem>>, %arg11: memref<4x16xbf16, #tpu.memory_space<vmem>>, %arg12: memref<4x1xf32, #tpu.memory_space<vmem>>, %arg13: memref<9x4x4xf32, #tpu.memory_space<vmem>>, %arg14: memref<4x1xf32, #tpu.memory_space<vmem>>, %arg15: memref<541x121xf32, #tpu.memory_space<vmem>>, %arg16: memref<9x4x4xf32, #tpu.memory_space<vmem>>, %arg17: memref<4x1xf32, #tpu.memory_space<vmem>>, %arg18: memref<9x4x4xf32, #tpu.memory_space<vmem>>, %arg19: memref<4x1xf32, #tpu.memory_space<vmem>>, %arg20: memref<9x4x4xf32, #tpu.memory_space<vmem>>, %arg21: memref<4x1xf32, #tpu.memory_space<vmem>>, %arg22: memref<37x20xf32, #tpu.memory_space<vmem>>, %arg23: memref<8x20xf32, #tpu.memory_space<vmem>>, %arg24: memref<8x624xf32, #tpu.memory_space<vmem>>, %arg25: memref<4x4xbf16, #tpu.memory_space<vmem>>, %arg26: memref<4x1xf32, #tpu.memory_space<vmem>>, %arg27: memref<16x4xbf16, #tpu.memory_space<vmem>>, %arg28: memref<16x1xf32, #tpu.memory_space<vmem>>, %arg29: memref<16x1xf32, #tpu.memory_space<vmem>>, %arg30: memref<1x1xf32, #tpu.memory_space<vmem>>, %arg31: memref<16x1xf32, #tpu.memory_space<vmem>>, %arg32: memref<16x1xf32, #tpu.memory_space<vmem>>, %arg33: memref<1x16x624xf32, #tpu.memory_space<vmem>>, %arg34: memref<16x779xf32, #tpu.memory_space<vmem>>, %arg35: memref<4x624xf32, #tpu.memory_space<vmem>>, %arg36: memref<4x121xf32, #tpu.memory_space<vmem>>, %arg37: memref<4x103xf32, #tpu.memory_space<vmem>>, %arg38: memref<4x20xf32, #tpu.memory_space<vmem>>) attributes {dimension_semantics = [#tpu.dimension_semantics<parallel>], iteration_bounds = array<i64: 2>, scalar_prefetch = 0 : i64, scratch_operands = 5 : i64, tpu.core_type = #tpu.core_type<tc>, window_params = [{transform_indices = @transform_0, window_bounds = array<i64: 1, 36, 624>}, {pipeline_mode = #tpu.pipeline_mode<synchronous>, transform_indices = @transform_1, window_bounds = array<i64: 1, 624>}, {pipeline_mode = #tpu.pipeline_mode<synchronous>, transform_indices = @transform_2, window_bounds = array<i64: 16, 36>}, {pipeline_mode = #tpu.pipeline_mode<synchronous>, transform_indices = @transform_3, window_bounds = array<i64: 16, 1>}, {pipeline_mode = #tpu.pipeline_mode<synchronous>, transform_indices = @transform_4, window_bounds = array<i64: 16, 9>}, {pipeline_mode = #tpu.pipeline_mode<synchronous>, transform_indices = @transform_5, window_bounds = array<i64: 16, 1>}, {pipeline_mode = #tpu.pipeline_mode<synchronous>, transform_indices = @transform_6, window_bounds = array<i64: 64, 16>}, {pipeline_mode = #tpu.pipeline_mode<synchronous>, transform_indices = @transform_7, window_bounds = array<i64: 64, 1>}, {pipeline_mode = #tpu.pipeline_mode<synchronous>, transform_indices = @transform_8, window_bounds = array<i64: 16, 64>}, {pipeline_mode = #tpu.pipeline_mode<synchronous>, transform_indices = @transform_9, window_bounds = array<i64: 16, 1>}, {pipeline_mode = #tpu.pipeline_mode<synchronous>, transform_indices = @transform_10, window_bounds = array<i64: 4, 16>}, {pipeline_mode = #tpu.pipeline_mode<synchronous>, transform_indices = @transform_11, window_bounds = array<i64: 4, 1>}, {pipeline_mode = #tpu.pipeline_mode<synchronous>, transform_indices = @transform_12, window_bounds = array<i64: 9, 4, 4>}, {pipeline_mode = #tpu.pipeline_mode<synchronous>, transform_indices = @transform_13, window_bounds = array<i64: 4, 1>}, {pipeline_mode = #tpu.pipeline_mode<synchronous>, transform_indices = @transform_14, window_bounds = array<i64: 541, 121>}, {pipeline_mode = #tpu.pipeline_mode<synchronous>, transform_indices = @transform_15, window_bounds = array<i64: 9, 4, 4>}, {pipeline_mode = #tpu.pipeline_mode<synchronous>, transform_indices = @transform_16, window_bounds = array<i64: 4, 1>}, {pipeline_mode = #tpu.pipeline_mode<synchronous>, transform_indices = @transform_17, window_bounds = array<i64: 9, 4, 4>}, {pipeline_mode = #tpu.pipeline_mode<synchronous>, transform_indices = @transform_18, window_bounds = array<i64: 4, 1>}, {pipeline_mode = #tpu.pipeline_mode<synchronous>, transform_indices = @transform_19, window_bounds = array<i64: 9, 4, 4>}, {pipeline_mode = #tpu.pipeline_mode<synchronous>, transform_indices = @transform_20, window_bounds = array<i64: 4, 1>}, {pipeline_mode = #tpu.pipeline_mode<synchronous>, transform_indices = @transform_21, window_bounds = array<i64: 37, 20>}, {pipeline_mode = #tpu.pipeline_mode<synchronous>, transform_indices = @transform_22, window_bounds = array<i64: 8, 20>}, {pipeline_mode = #tpu.pipeline_mode<synchronous>, transform_indices = @transform_23, window_bounds = array<i64: 8, 624>}, {pipeline_mode = #tpu.pipeline_mode<synchronous>, transform_indices = @transform_24, window_bounds = array<i64: 4, 4>}, {pipeline_mode = #tpu.pipeline_mode<synchronous>, transform_indices = @transform_25, window_bounds = array<i64: 4, 1>}, {pipeline_mode = #tpu.pipeline_mode<synchronous>, transform_indices = @transform_26, window_bounds = array<i64: 16, 4>}, {pipeline_mode = #tpu.pipeline_mode<synchronous>, transform_indices = @transform_27, window_bounds = array<i64: 16, 1>}, {pipeline_mode = #tpu.pipeline_mode<synchronous>, transform_indices = @transform_28, window_bounds = array<i64: 16, 1>}, {pipeline_mode = #tpu.pipeline_mode<synchronous>, transform_indices = @transform_29, window_bounds = array<i64: 1, 1>}, {pipeline_mode = #tpu.pipeline_mode<synchronous>, transform_indices = @transform_30, window_bounds = array<i64: 16, 1>}, {pipeline_mode = #tpu.pipeline_mode<synchronous>, transform_indices = @transform_31, window_bounds = array<i64: 16, 1>}, {transform_indices = @transform_32, window_bounds = array<i64: 1, 16, 624>}]} {
    %c0 = arith.constant 0 : index
    %c0_0 = arith.constant 0 : index
    %0 = vector.load %arg2[%c0, %c0_0] : memref<1x624xf32, #tpu.memory_space<vmem>>, vector<1x624xf32>
    %c0_1 = arith.constant 0 : index
    %c0_2 = arith.constant 0 : index
    %1 = vector.load %arg3[%c0_1, %c0_2] : memref<16x36xbf16, #tpu.memory_space<vmem>>, vector<16x36xbf16>
    %c0_3 = arith.constant 0 : index
    %c0_4 = arith.constant 0 : index
    %c0_5 = arith.constant 0 : index
    %2 = vector.load %arg1[%c0_3, %c0_4, %c0_5] : memref<1x36x624xbf16, #tpu.memory_space<vmem>>, vector<1x36x624xbf16>
    %3 = vector.shape_cast %2 : vector<1x36x624xbf16> to vector<36x624xbf16>
    %cst = arith.constant dense<0.000000e+00> : vector<16x624xf32>
    %4 = tpu.matmul %1, %3, %cst {dimension_numbers = #tpu.dot_dimension_numbers<[1], [0], [0], [1], [0, 0, 1, 1], [], []>} : vector<16x36xbf16>, vector<36x624xbf16>, vector<16x624xf32> -> vector<16x624xf32>
    %c0_6 = arith.constant 0 : index
    %c0_7 = arith.constant 0 : index
    %5 = vector.load %arg4[%c0_6, %c0_7] : memref<16x1xf32, #tpu.memory_space<vmem>>, vector<16x1xf32>
    %6 = vector.broadcast %5 : vector<16x1xf32> to vector<16x624xf32>
    %7 = arith.addf %4, %6 : vector<16x624xf32>
    %cst_8 = arith.constant 0.000000e+00 : f32
    %8 = vector.broadcast %cst_8 : f32 to vector<16x128xf32>
    %c0_9 = arith.constant 0 : index
    %c0_10 = arith.constant 0 : index
    %9 = vector.load %arg34[%c0_9, %c0_10] : memref<16x779xf32, #tpu.memory_space<vmem>>, vector<16x128xf32>
    tpu.vector_store %arg34[%c0_9, %c0_10], %8 {strides = array<i32>} : memref<16x779xf32, #tpu.memory_space<vmem>>, vector<16x128xf32>,
    %cst_11 = arith.constant 0.000000e+00 : f32
    %10 = vector.broadcast %cst_11 : f32 to vector<16x27xf32>
    %c0_12 = arith.constant 0 : index
    %c752 = arith.constant 752 : index
    %11 = vector.load %arg34[%c0_12, %c752] : memref<16x779xf32, #tpu.memory_space<vmem>>, vector<16x27xf32>
    tpu.vector_store %arg34[%c0_12, %c752], %10 {strides = array<i32>} : memref<16x779xf32, #tpu.memory_space<vmem>>, vector<16x27xf32>,
    %12 = vector.broadcast %0 : vector<1x624xf32> to vector<16x624xf32>
    %13 = arith.mulf %7, %12 : vector<16x624xf32>
    %c0_13 = arith.constant 0 : index
    %c128 = arith.constant 128 : index
    %14 = vector.load %arg34[%c0_13, %c128] : memref<16x779xf32, #tpu.memory_space<vmem>>, vector<16x624xf32>
    tpu.vector_store %arg34[%c0_13, %c128], %13 {strides = array<i32>} : memref<16x779xf32, #tpu.memory_space<vmem>>, vector<16x624xf32>,
    %c0_14 = arith.constant 0 : index
    %c101 = arith.constant 101 : index
    %15 = vector.load %arg34[%c0_14, %c101] : memref<16x779xf32, #tpu.memory_space<vmem>>, vector<16x624xf32>
    %c0_15 = arith.constant 0 : index
    %c0_16 = arith.constant 0 : index
    %16 = vector.load %arg5[%c0_15, %c0_16] : memref<16x9xf32, #tpu.memory_space<vmem>>, vector<16x1xf32>
    %17 = vector.broadcast %16 : vector<16x1xf32> to vector<16x624xf32>
    %18 = arith.mulf %15, %17 : vector<16x624xf32>
    %c0_17 = arith.constant 0 : index
    %c102 = arith.constant 102 : index
    %19 = vector.load %arg34[%c0_17, %c102] : memref<16x779xf32, #tpu.memory_space<vmem>>, vector<16x624xf32>
    %c0_18 = arith.constant 0 : index
    %c1 = arith.constant 1 : index
    %20 = vector.load %arg5[%c0_18, %c1] : memref<16x9xf32, #tpu.memory_space<vmem>>, vector<16x1xf32>
    %21 = vector.broadcast %20 : vector<16x1xf32> to vector<16x624xf32>
    %22 = arith.mulf %19, %21 : vector<16x624xf32>
    %23 = arith.addf %18, %22 : vector<16x624xf32>
    %c0_19 = arith.constant 0 : index
    %c103 = arith.constant 103 : index
    %24 = vector.load %arg34[%c0_19, %c103] : memref<16x779xf32, #tpu.memory_space<vmem>>, vector<16x624xf32>
    %c0_20 = arith.constant 0 : index
    %c2 = arith.constant 2 : index
    %25 = vector.load %arg5[%c0_20, %c2] : memref<16x9xf32, #tpu.memory_space<vmem>>, vector<16x1xf32>
    %26 = vector.broadcast %25 : vector<16x1xf32> to vector<16x624xf32>
    %27 = arith.mulf %24, %26 : vector<16x624xf32>
    %28 = arith.addf %23, %27 : vector<16x624xf32>
    %c0_21 = arith.constant 0 : index
    %c127 = arith.constant 127 : index
    %29 = vector.load %arg34[%c0_21, %c127] : memref<16x779xf32, #tpu.memory_space<vmem>>, vector<16x624xf32>
    %c0_22 = arith.constant 0 : index
    %c3 = arith.constant 3 : index
    %30 = vector.load %arg5[%c0_22, %c3] : memref<16x9xf32, #tpu.memory_space<vmem>>, vector<16x1xf32>
    %31 = vector.broadcast %30 : vector<16x1xf32> to vector<16x624xf32>
    %32 = arith.mulf %29, %31 : vector<16x624xf32>
    %33 = arith.addf %28, %32 : vector<16x624xf32>
    %c0_23 = arith.constant 0 : index
    %c128_24 = arith.constant 128 : index
    %34 = vector.load %arg34[%c0_23, %c128_24] : memref<16x779xf32, #tpu.memory_space<vmem>>, vector<16x624xf32>
    %c0_25 = arith.constant 0 : index
    %c4 = arith.constant 4 : index
    %35 = vector.load %arg5[%c0_25, %c4] : memref<16x9xf32, #tpu.memory_space<vmem>>, vector<16x1xf32>
    %36 = vector.broadcast %35 : vector<16x1xf32> to vector<16x624xf32>
    %37 = arith.mulf %34, %36 : vector<16x624xf32>
    %38 = arith.addf %33, %37 : vector<16x624xf32>
    %c0_26 = arith.constant 0 : index
    %c129 = arith.constant 129 : index
    %39 = vector.load %arg34[%c0_26, %c129] : memref<16x779xf32, #tpu.memory_space<vmem>>, vector<16x624xf32>
    %c0_27 = arith.constant 0 : index
    %c5 = arith.constant 5 : index
    %40 = vector.load %arg5[%c0_27, %c5] : memref<16x9xf32, #tpu.memory_space<vmem>>, vector<16x1xf32>
    %41 = vector.broadcast %40 : vector<16x1xf32> to vector<16x624xf32>
    %42 = arith.mulf %39, %41 : vector<16x624xf32>
    %43 = arith.addf %38, %42 : vector<16x624xf32>
    %c0_28 = arith.constant 0 : index
    %c153 = arith.constant 153 : index
    %44 = vector.load %arg34[%c0_28, %c153] : memref<16x779xf32, #tpu.memory_space<vmem>>, vector<16x624xf32>
    %c0_29 = arith.constant 0 : index
    %c6 = arith.constant 6 : index
    %45 = vector.load %arg5[%c0_29, %c6] : memref<16x9xf32, #tpu.memory_space<vmem>>, vector<16x1xf32>
    %46 = vector.broadcast %45 : vector<16x1xf32> to vector<16x624xf32>
    %47 = arith.mulf %44, %46 : vector<16x624xf32>
    %48 = arith.addf %43, %47 : vector<16x624xf32>
    %c0_30 = arith.constant 0 : index
    %c154 = arith.constant 154 : index
    %49 = vector.load %arg34[%c0_30, %c154] : memref<16x779xf32, #tpu.memory_space<vmem>>, vector<16x624xf32>
    %c0_31 = arith.constant 0 : index
    %c7 = arith.constant 7 : index
    %50 = vector.load %arg5[%c0_31, %c7] : memref<16x9xf32, #tpu.memory_space<vmem>>, vector<16x1xf32>
    %51 = vector.broadcast %50 : vector<16x1xf32> to vector<16x624xf32>
    %52 = arith.mulf %49, %51 : vector<16x624xf32>
    %53 = arith.addf %48, %52 : vector<16x624xf32>
    %c0_32 = arith.constant 0 : index
    %c155 = arith.constant 155 : index
    %54 = vector.load %arg34[%c0_32, %c155] : memref<16x779xf32, #tpu.memory_space<vmem>>, vector<16x624xf32>
    %c0_33 = arith.constant 0 : index
    %c8 = arith.constant 8 : index
    %55 = vector.load %arg5[%c0_33, %c8] : memref<16x9xf32, #tpu.memory_space<vmem>>, vector<16x1xf32>
    %56 = vector.broadcast %55 : vector<16x1xf32> to vector<16x624xf32>
    %57 = arith.mulf %54, %56 : vector<16x624xf32>
    %58 = arith.addf %53, %57 : vector<16x624xf32>
    %c0_34 = arith.constant 0 : index
    %c0_35 = arith.constant 0 : index
    %59 = vector.load %arg6[%c0_34, %c0_35] : memref<16x1xf32, #tpu.memory_space<vmem>>, vector<16x1xf32>
    %60 = vector.broadcast %59 : vector<16x1xf32> to vector<16x624xf32>
    %61 = arith.addf %58, %60 : vector<16x624xf32>
    %c0_36 = arith.constant 0 : index
    %c0_37 = arith.constant 0 : index
    %62 = vector.load %arg7[%c0_36, %c0_37] : memref<64x16xbf16, #tpu.memory_space<vmem>>, vector<64x16xbf16>
    %63 = arith.truncf %61 : vector<16x624xf32> to vector<16x624xbf16>
    %cst_38 = arith.constant dense<0.000000e+00> : vector<64x624xf32>
    %64 = tpu.matmul %62, %63, %cst_38 {dimension_numbers = #tpu.dot_dimension_numbers<[1], [0], [0], [1], [0, 0, 1, 1], [], []>} : vector<64x16xbf16>, vector<16x624xbf16>, vector<64x624xf32> -> vector<64x624xf32>
    %c0_39 = arith.constant 0 : index
    %c0_40 = arith.constant 0 : index
    %65 = vector.load %arg8[%c0_39, %c0_40] : memref<64x1xf32, #tpu.memory_space<vmem>>, vector<64x1xf32>
    %66 = vector.broadcast %65 : vector<64x1xf32> to vector<64x624xf32>
    %67 = arith.addf %64, %66 : vector<64x624xf32>
    %cst_41 = arith.constant 0.707106769 : f32
    %68 = vector.broadcast %cst_41 : f32 to vector<64x624xf32>
    %69 = arith.mulf %67, %68 : vector<64x624xf32>
    %cst_42 = arith.constant 0.000000e+00 : f32
    %70 = vector.broadcast %cst_42 : f32 to vector<64x624xf32>
    %71 = arith.cmpf oge, %69, %70 : vector<64x624xf32>
    %cst_43 = arith.constant 1.000000e+00 : f32
    %cst_44 = arith.constant -1.000000e+00 : f32
    %72 = vector.broadcast %cst_43 : f32 to vector<64x624xf32>
    %73 = vector.broadcast %cst_44 : f32 to vector<64x624xf32>
    %74 = arith.select %71, %72, %73 : vector<64x624xi1>, vector<64x624xf32>
    %75 = math.absf %69 : vector<64x624xf32>
    %cst_45 = arith.constant 0.327591091 : f32
    %76 = vector.broadcast %cst_45 : f32 to vector<64x624xf32>
    %77 = arith.mulf %76, %75 : vector<64x624xf32>
    %cst_46 = arith.constant 1.000000e+00 : f32
    %78 = vector.broadcast %cst_46 : f32 to vector<64x624xf32>
    %79 = arith.addf %78, %77 : vector<64x624xf32>
    %80 = tpu.reciprocal %79 {approx = true} : vector<64x624xf32> -> vector<64x624xf32>
    %cst_47 = arith.constant 1.06140542 : f32
    %81 = vector.broadcast %cst_47 : f32 to vector<64x624xf32>
    %82 = arith.mulf %81, %80 : vector<64x624xf32>
    %cst_48 = arith.constant -1.45315206 : f32
    %83 = vector.broadcast %cst_48 : f32 to vector<64x624xf32>
    %84 = arith.addf %82, %83 : vector<64x624xf32>
    %85 = arith.mulf %84, %80 : vector<64x624xf32>
    %cst_49 = arith.constant 1.42141378 : f32
    %86 = vector.broadcast %cst_49 : f32 to vector<64x624xf32>
    %87 = arith.addf %85, %86 : vector<64x624xf32>
    %88 = arith.mulf %87, %80 : vector<64x624xf32>
    %cst_50 = arith.constant -0.284496725 : f32
    %89 = vector.broadcast %cst_50 : f32 to vector<64x624xf32>
    %90 = arith.addf %88, %89 : vector<64x624xf32>
    %91 = arith.mulf %90, %80 : vector<64x624xf32>
    %cst_51 = arith.constant 0.254829586 : f32
    %92 = vector.broadcast %cst_51 : f32 to vector<64x624xf32>
    %93 = arith.addf %91, %92 : vector<64x624xf32>
    %94 = arith.mulf %93, %80 : vector<64x624xf32>
    %cst_52 = arith.constant 0.000000e+00 : f32
    %95 = vector.broadcast %cst_52 : f32 to vector<64x624xf32>
    %96 = arith.subf %95, %75 : vector<64x624xf32>
    %97 = arith.mulf %96, %75 : vector<64x624xf32>
    %98 = math.exp %97 : vector<64x624xf32>
    %99 = arith.mulf %94, %98 : vector<64x624xf32>
    %cst_53 = arith.constant 1.000000e+00 : f32
    %100 = vector.broadcast %cst_53 : f32 to vector<64x624xf32>
    %101 = arith.subf %100, %99 : vector<64x624xf32>
    %102 = arith.mulf %74, %101 : vector<64x624xf32>
    %cst_54 = arith.constant 5.000000e-01 : f32
    %103 = vector.broadcast %cst_54 : f32 to vector<64x624xf32>
    %104 = arith.mulf %103, %67 : vector<64x624xf32>
    %cst_55 = arith.constant 1.000000e+00 : f32
    %105 = vector.broadcast %cst_55 : f32 to vector<64x624xf32>
    %106 = arith.addf %105, %102 : vector<64x624xf32>
    %107 = arith.mulf %104, %106 : vector<64x624xf32>
    %c0_56 = arith.constant 0 : index
    %c0_57 = arith.constant 0 : index
    %108 = vector.load %arg9[%c0_56, %c0_57] : memref<16x64xbf16, #tpu.memory_space<vmem>>, vector<16x64xbf16>
    %109 = arith.truncf %107 : vector<64x624xf32> to vector<64x624xbf16>
    %cst_58 = arith.constant dense<0.000000e+00> : vector<16x624xf32>
    %110 = tpu.matmul %108, %109, %cst_58 {dimension_numbers = #tpu.dot_dimension_numbers<[1], [0], [0], [1], [0, 0, 1, 1], [], []>} : vector<16x64xbf16>, vector<64x624xbf16>, vector<16x624xf32> -> vector<16x624xf32>
    %111 = arith.addf %7, %110 : vector<16x624xf32>
    %c0_59 = arith.constant 0 : index
    %c0_60 = arith.constant 0 : index
    %112 = vector.load %arg10[%c0_59, %c0_60] : memref<16x1xf32, #tpu.memory_space<vmem>>, vector<16x1xf32>
    %113 = vector.broadcast %112 : vector<16x1xf32> to vector<16x624xf32>
    %114 = arith.addf %111, %113 : vector<16x624xf32>
    %c0_61 = arith.constant 0 : index
    %c0_62 = arith.constant 0 : index
    %115 = vector.load %arg11[%c0_61, %c0_62] : memref<4x16xbf16, #tpu.memory_space<vmem>>, vector<4x16xbf16>
    %116 = arith.truncf %114 : vector<16x624xf32> to vector<16x624xbf16>
    %cst_63 = arith.constant dense<0.000000e+00> : vector<4x624xf32>
    %117 = tpu.matmul %115, %116, %cst_63 {dimension_numbers = #tpu.dot_dimension_numbers<[1], [0], [0], [1], [0, 0, 1, 1], [], []>} : vector<4x16xbf16>, vector<16x624xbf16>, vector<4x624xf32> -> vector<4x624xf32>
    %c0_64 = arith.constant 0 : index
    %c0_65 = arith.constant 0 : index
    %118 = vector.load %arg12[%c0_64, %c0_65] : memref<4x1xf32, #tpu.memory_space<vmem>>, vector<4x1xf32>
    %119 = vector.broadcast %118 : vector<4x1xf32> to vector<4x624xf32>
    %120 = arith.addf %117, %119 : vector<4x624xf32>
    %c0_66 = arith.constant 0 : index
    %c0_67 = arith.constant 0 : index
    %121 = vector.load %arg35[%c0_66, %c0_67] : memref<4x624xf32, #tpu.memory_space<vmem>>, vector<4x624xf32>
    tpu.vector_store %arg35[%c0_66, %c0_67], %120 {strides = array<i32>} : memref<4x624xf32, #tpu.memory_space<vmem>>, vector<4x624xf32>,
    %c0_68 = arith.constant 0 : index
    %c0_69 = arith.constant 0 : index
    %c0_70 = arith.constant 0 : index
    %122 = vector.load %arg13[%c0_68, %c0_69, %c0_70] : memref<9x4x4xf32, #tpu.memory_space<vmem>>, vector<1x4x4xf32>
    %123 = vector.shape_cast %122 : vector<1x4x4xf32> to vector<4x4xf32>
    %c0_71 = arith.constant 0 : index
    %c0_72 = arith.constant 0 : index
    %124 = vector.load %arg35[%c0_71, %c0_72] : memref<4x624xf32, #tpu.memory_space<vmem>>, vector<4x541xf32>
    %cst_73 = arith.constant dense<0.000000e+00> : vector<4x541xf32>
    %125 = tpu.matmul %123, %124, %cst_73 {dimension_numbers = #tpu.dot_dimension_numbers<[1], [0], [0], [1], [0, 0, 1, 1], [], []>} : vector<4x4xf32>, vector<4x541xf32>, vector<4x541xf32> -> vector<4x541xf32>
    %c1_74 = arith.constant 1 : index
    %c0_75 = arith.constant 0 : index
    %c0_76 = arith.constant 0 : index
    %126 = vector.load %arg13[%c1_74, %c0_75, %c0_76] : memref<9x4x4xf32, #tpu.memory_space<vmem>>, vector<1x4x4xf32>
    %127 = vector.shape_cast %126 : vector<1x4x4xf32> to vector<4x4xf32>
    %c0_77 = arith.constant 0 : index
    %c1_78 = arith.constant 1 : index
    %128 = vector.load %arg35[%c0_77, %c1_78] : memref<4x624xf32, #tpu.memory_space<vmem>>, vector<4x541xf32>
    %cst_79 = arith.constant dense<0.000000e+00> : vector<4x541xf32>
    %129 = tpu.matmul %127, %128, %cst_79 {dimension_numbers = #tpu.dot_dimension_numbers<[1], [0], [0], [1], [0, 0, 1, 1], [], []>} : vector<4x4xf32>, vector<4x541xf32>, vector<4x541xf32> -> vector<4x541xf32>
    %130 = arith.addf %125, %129 : vector<4x541xf32>
    %c2_80 = arith.constant 2 : index
    %c0_81 = arith.constant 0 : index
    %c0_82 = arith.constant 0 : index
    %131 = vector.load %arg13[%c2_80, %c0_81, %c0_82] : memref<9x4x4xf32, #tpu.memory_space<vmem>>, vector<1x4x4xf32>
    %132 = vector.shape_cast %131 : vector<1x4x4xf32> to vector<4x4xf32>
    %c0_83 = arith.constant 0 : index
    %c2_84 = arith.constant 2 : index
    %133 = vector.load %arg35[%c0_83, %c2_84] : memref<4x624xf32, #tpu.memory_space<vmem>>, vector<4x541xf32>
    %cst_85 = arith.constant dense<0.000000e+00> : vector<4x541xf32>
    %134 = tpu.matmul %132, %133, %cst_85 {dimension_numbers = #tpu.dot_dimension_numbers<[1], [0], [0], [1], [0, 0, 1, 1], [], []>} : vector<4x4xf32>, vector<4x541xf32>, vector<4x541xf32> -> vector<4x541xf32>
    %135 = arith.addf %130, %134 : vector<4x541xf32>
    %c3_86 = arith.constant 3 : index
    %c0_87 = arith.constant 0 : index
    %c0_88 = arith.constant 0 : index
    %136 = vector.load %arg13[%c3_86, %c0_87, %c0_88] : memref<9x4x4xf32, #tpu.memory_space<vmem>>, vector<1x4x4xf32>
    %137 = vector.shape_cast %136 : vector<1x4x4xf32> to vector<4x4xf32>
    %c0_89 = arith.constant 0 : index
    %c26 = arith.constant 26 : index
    %138 = vector.load %arg35[%c0_89, %c26] : memref<4x624xf32, #tpu.memory_space<vmem>>, vector<4x541xf32>
    %cst_90 = arith.constant dense<0.000000e+00> : vector<4x541xf32>
    %139 = tpu.matmul %137, %138, %cst_90 {dimension_numbers = #tpu.dot_dimension_numbers<[1], [0], [0], [1], [0, 0, 1, 1], [], []>} : vector<4x4xf32>, vector<4x541xf32>, vector<4x541xf32> -> vector<4x541xf32>
    %140 = arith.addf %135, %139 : vector<4x541xf32>
    %c4_91 = arith.constant 4 : index
    %c0_92 = arith.constant 0 : index
    %c0_93 = arith.constant 0 : index
    %141 = vector.load %arg13[%c4_91, %c0_92, %c0_93] : memref<9x4x4xf32, #tpu.memory_space<vmem>>, vector<1x4x4xf32>
    %142 = vector.shape_cast %141 : vector<1x4x4xf32> to vector<4x4xf32>
    %c0_94 = arith.constant 0 : index
    %c27 = arith.constant 27 : index
    %143 = vector.load %arg35[%c0_94, %c27] : memref<4x624xf32, #tpu.memory_space<vmem>>, vector<4x541xf32>
    %cst_95 = arith.constant dense<0.000000e+00> : vector<4x541xf32>
    %144 = tpu.matmul %142, %143, %cst_95 {dimension_numbers = #tpu.dot_dimension_numbers<[1], [0], [0], [1], [0, 0, 1, 1], [], []>} : vector<4x4xf32>, vector<4x541xf32>, vector<4x541xf32> -> vector<4x541xf32>
    %145 = arith.addf %140, %144 : vector<4x541xf32>
    %c5_96 = arith.constant 5 : index
    %c0_97 = arith.constant 0 : index
    %c0_98 = arith.constant 0 : index
    %146 = vector.load %arg13[%c5_96, %c0_97, %c0_98] : memref<9x4x4xf32, #tpu.memory_space<vmem>>, vector<1x4x4xf32>
    %147 = vector.shape_cast %146 : vector<1x4x4xf32> to vector<4x4xf32>
    %c0_99 = arith.constant 0 : index
    %c28 = arith.constant 28 : index
    %148 = vector.load %arg35[%c0_99, %c28] : memref<4x624xf32, #tpu.memory_space<vmem>>, vector<4x541xf32>
    %cst_100 = arith.constant dense<0.000000e+00> : vector<4x541xf32>
    %149 = tpu.matmul %147, %148, %cst_100 {dimension_numbers = #tpu.dot_dimension_numbers<[1], [0], [0], [1], [0, 0, 1, 1], [], []>} : vector<4x4xf32>, vector<4x541xf32>, vector<4x541xf32> -> vector<4x541xf32>
    %150 = arith.addf %145, %149 : vector<4x541xf32>
    %c6_101 = arith.constant 6 : index
    %c0_102 = arith.constant 0 : index
    %c0_103 = arith.constant 0 : index
    %151 = vector.load %arg13[%c6_101, %c0_102, %c0_103] : memref<9x4x4xf32, #tpu.memory_space<vmem>>, vector<1x4x4xf32>
    %152 = vector.shape_cast %151 : vector<1x4x4xf32> to vector<4x4xf32>
    %c0_104 = arith.constant 0 : index
    %c52 = arith.constant 52 : index
    %153 = vector.load %arg35[%c0_104, %c52] : memref<4x624xf32, #tpu.memory_space<vmem>>, vector<4x541xf32>
    %cst_105 = arith.constant dense<0.000000e+00> : vector<4x541xf32>
    %154 = tpu.matmul %152, %153, %cst_105 {dimension_numbers = #tpu.dot_dimension_numbers<[1], [0], [0], [1], [0, 0, 1, 1], [], []>} : vector<4x4xf32>, vector<4x541xf32>, vector<4x541xf32> -> vector<4x541xf32>
    %155 = arith.addf %150, %154 : vector<4x541xf32>
    %c7_106 = arith.constant 7 : index
    %c0_107 = arith.constant 0 : index
    %c0_108 = arith.constant 0 : index
    %156 = vector.load %arg13[%c7_106, %c0_107, %c0_108] : memref<9x4x4xf32, #tpu.memory_space<vmem>>, vector<1x4x4xf32>
    %157 = vector.shape_cast %156 : vector<1x4x4xf32> to vector<4x4xf32>
    %c0_109 = arith.constant 0 : index
    %c53 = arith.constant 53 : index
    %158 = vector.load %arg35[%c0_109, %c53] : memref<4x624xf32, #tpu.memory_space<vmem>>, vector<4x541xf32>
    %cst_110 = arith.constant dense<0.000000e+00> : vector<4x541xf32>
    %159 = tpu.matmul %157, %158, %cst_110 {dimension_numbers = #tpu.dot_dimension_numbers<[1], [0], [0], [1], [0, 0, 1, 1], [], []>} : vector<4x4xf32>, vector<4x541xf32>, vector<4x541xf32> -> vector<4x541xf32>
    %160 = arith.addf %155, %159 : vector<4x541xf32>
    %c8_111 = arith.constant 8 : index
    %c0_112 = arith.constant 0 : index
    %c0_113 = arith.constant 0 : index
    %161 = vector.load %arg13[%c8_111, %c0_112, %c0_113] : memref<9x4x4xf32, #tpu.memory_space<vmem>>, vector<1x4x4xf32>
    %162 = vector.shape_cast %161 : vector<1x4x4xf32> to vector<4x4xf32>
    %c0_114 = arith.constant 0 : index
    %c54 = arith.constant 54 : index
    %163 = vector.load %arg35[%c0_114, %c54] : memref<4x624xf32, #tpu.memory_space<vmem>>, vector<4x541xf32>
    %cst_115 = arith.constant dense<0.000000e+00> : vector<4x541xf32>
    %164 = tpu.matmul %162, %163, %cst_115 {dimension_numbers = #tpu.dot_dimension_numbers<[1], [0], [0], [1], [0, 0, 1, 1], [], []>} : vector<4x4xf32>, vector<4x541xf32>, vector<4x541xf32> -> vector<4x541xf32>
    %165 = arith.addf %160, %164 : vector<4x541xf32>
    %c0_116 = arith.constant 0 : index
    %c0_117 = arith.constant 0 : index
    %166 = vector.load %arg15[%c0_116, %c0_117] : memref<541x121xf32, #tpu.memory_space<vmem>>, vector<541x121xf32>
    %cst_118 = arith.constant dense<0.000000e+00> : vector<4x121xf32>
    %167 = tpu.matmul %165, %166, %cst_118 {dimension_numbers = #tpu.dot_dimension_numbers<[1], [0], [0], [1], [0, 0, 1, 1], [], []>} : vector<4x541xf32>, vector<541x121xf32>, vector<4x121xf32> -> vector<4x121xf32>
    %c0_119 = arith.constant 0 : index
    %c0_120 = arith.constant 0 : index
    %168 = vector.load %arg14[%c0_119, %c0_120] : memref<4x1xf32, #tpu.memory_space<vmem>>, vector<4x1xf32>
    %169 = vector.broadcast %168 : vector<4x1xf32> to vector<4x121xf32>
    %170 = arith.addf %167, %169 : vector<4x121xf32>
    %c0_121 = arith.constant 0 : index
    %c0_122 = arith.constant 0 : index
    %171 = vector.load %arg36[%c0_121, %c0_122] : memref<4x121xf32, #tpu.memory_space<vmem>>, vector<4x121xf32>
    tpu.vector_store %arg36[%c0_121, %c0_122], %170 {strides = array<i32>} : memref<4x121xf32, #tpu.memory_space<vmem>>, vector<4x121xf32>,
    %c0_123 = arith.constant 0 : index
    %c0_124 = arith.constant 0 : index
    %172 = vector.load %arg36[%c0_123, %c0_124] : memref<4x121xf32, #tpu.memory_space<vmem>>, vector<4x103xf32>
    %c0_125 = arith.constant 0 : index
    %c1_126 = arith.constant 1 : index
    %173 = vector.load %arg36[%c0_125, %c1_126] : memref<4x121xf32, #tpu.memory_space<vmem>>, vector<4x103xf32>
    %174 = arith.maximumf %172, %173 : vector<4x103xf32>
    %c0_127 = arith.constant 0 : index
    %c2_128 = arith.constant 2 : index
    %175 = vector.load %arg36[%c0_127, %c2_128] : memref<4x121xf32, #tpu.memory_space<vmem>>, vector<4x103xf32>
    %176 = arith.maximumf %174, %175 : vector<4x103xf32>
    %c0_129 = arith.constant 0 : index
    %c3_130 = arith.constant 3 : index
    %177 = vector.load %arg36[%c0_129, %c3_130] : memref<4x121xf32, #tpu.memory_space<vmem>>, vector<4x103xf32>
    %178 = arith.maximumf %176, %177 : vector<4x103xf32>
    %c0_131 = arith.constant 0 : index
    %c4_132 = arith.constant 4 : index
    %179 = vector.load %arg36[%c0_131, %c4_132] : memref<4x121xf32, #tpu.memory_space<vmem>>, vector<4x103xf32>
    %180 = arith.maximumf %178, %179 : vector<4x103xf32>
    %c0_133 = arith.constant 0 : index
    %c5_134 = arith.constant 5 : index
    %181 = vector.load %arg36[%c0_133, %c5_134] : memref<4x121xf32, #tpu.memory_space<vmem>>, vector<4x103xf32>
    %182 = arith.maximumf %180, %181 : vector<4x103xf32>
    %c0_135 = arith.constant 0 : index
    %c6_136 = arith.constant 6 : index
    %183 = vector.load %arg36[%c0_135, %c6_136] : memref<4x121xf32, #tpu.memory_space<vmem>>, vector<4x103xf32>
    %184 = arith.maximumf %182, %183 : vector<4x103xf32>
    %c0_137 = arith.constant 0 : index
    %c0_138 = arith.constant 0 : index
    %185 = vector.load %arg37[%c0_137, %c0_138] : memref<4x103xf32, #tpu.memory_space<vmem>>, vector<4x103xf32>
    tpu.vector_store %arg37[%c0_137, %c0_138], %184 {strides = array<i32>} : memref<4x103xf32, #tpu.memory_space<vmem>>, vector<4x103xf32>,
    %c0_139 = arith.constant 0 : index
    %c0_140 = arith.constant 0 : index
    %186 = vector.load %arg37[%c0_139, %c0_140] : memref<4x103xf32, #tpu.memory_space<vmem>>, vector<4x37xf32>
    %c0_141 = arith.constant 0 : index
    %c11 = arith.constant 11 : index
    %187 = vector.load %arg37[%c0_141, %c11] : memref<4x103xf32, #tpu.memory_space<vmem>>, vector<4x37xf32>
    %188 = arith.maximumf %186, %187 : vector<4x37xf32>
    %c0_142 = arith.constant 0 : index
    %c22 = arith.constant 22 : index
    %189 = vector.load %arg37[%c0_142, %c22] : memref<4x103xf32, #tpu.memory_space<vmem>>, vector<4x37xf32>
    %190 = arith.maximumf %188, %189 : vector<4x37xf32>
    %c0_143 = arith.constant 0 : index
    %c33 = arith.constant 33 : index
    %191 = vector.load %arg37[%c0_143, %c33] : memref<4x103xf32, #tpu.memory_space<vmem>>, vector<4x37xf32>
    %192 = arith.maximumf %190, %191 : vector<4x37xf32>
    %c0_144 = arith.constant 0 : index
    %c44 = arith.constant 44 : index
    %193 = vector.load %arg37[%c0_144, %c44] : memref<4x103xf32, #tpu.memory_space<vmem>>, vector<4x37xf32>
    %194 = arith.maximumf %192, %193 : vector<4x37xf32>
    %c0_145 = arith.constant 0 : index
    %c55 = arith.constant 55 : index
    %195 = vector.load %arg37[%c0_145, %c55] : memref<4x103xf32, #tpu.memory_space<vmem>>, vector<4x37xf32>
    %196 = arith.maximumf %194, %195 : vector<4x37xf32>
    %c0_146 = arith.constant 0 : index
    %c66 = arith.constant 66 : index
    %197 = vector.load %arg37[%c0_146, %c66] : memref<4x103xf32, #tpu.memory_space<vmem>>, vector<4x37xf32>
    %198 = arith.maximumf %196, %197 : vector<4x37xf32>
    %c0_147 = arith.constant 0 : index
    %c0_148 = arith.constant 0 : index
    %199 = vector.load %arg22[%c0_147, %c0_148] : memref<37x20xf32, #tpu.memory_space<vmem>>, vector<37x20xf32>
    %cst_149 = arith.constant dense<0.000000e+00> : vector<4x20xf32>
    %200 = tpu.matmul %198, %199, %cst_149 {dimension_numbers = #tpu.dot_dimension_numbers<[1], [0], [0], [1], [0, 0, 1, 1], [], []>} : vector<4x37xf32>, vector<37x20xf32>, vector<4x20xf32> -> vector<4x20xf32>
    %c0_150 = arith.constant 0 : index
    %c0_151 = arith.constant 0 : index
    %201 = vector.load %arg38[%c0_150, %c0_151] : memref<4x20xf32, #tpu.memory_space<vmem>>, vector<4x20xf32>
    tpu.vector_store %arg38[%c0_150, %c0_151], %200 {strides = array<i32>} : memref<4x20xf32, #tpu.memory_space<vmem>>, vector<4x20xf32>,
    %c0_152 = arith.constant 0 : index
    %c0_153 = arith.constant 0 : index
    %c0_154 = arith.constant 0 : index
    %202 = vector.load %arg16[%c0_152, %c0_153, %c0_154] : memref<9x4x4xf32, #tpu.memory_space<vmem>>, vector<1x4x4xf32>
    %203 = vector.shape_cast %202 : vector<1x4x4xf32> to vector<4x4xf32>
    %c0_155 = arith.constant 0 : index
    %c0_156 = arith.constant 0 : index
    %204 = vector.load %arg38[%c0_155, %c0_156] : memref<4x20xf32, #tpu.memory_space<vmem>>, vector<4x8xf32>
    %cst_157 = arith.constant dense<0.000000e+00> : vector<4x8xf32>
    %205 = tpu.matmul %203, %204, %cst_157 {dimension_numbers = #tpu.dot_dimension_numbers<[1], [0], [0], [1], [0, 0, 1, 1], [], []>} : vector<4x4xf32>, vector<4x8xf32>, vector<4x8xf32> -> vector<4x8xf32>
    %c1_158 = arith.constant 1 : index
    %c0_159 = arith.constant 0 : index
    %c0_160 = arith.constant 0 : index
    %206 = vector.load %arg16[%c1_158, %c0_159, %c0_160] : memref<9x4x4xf32, #tpu.memory_space<vmem>>, vector<1x4x4xf32>
    %207 = vector.shape_cast %206 : vector<1x4x4xf32> to vector<4x4xf32>
    %c0_161 = arith.constant 0 : index
    %c1_162 = arith.constant 1 : index
    %208 = vector.load %arg38[%c0_161, %c1_162] : memref<4x20xf32, #tpu.memory_space<vmem>>, vector<4x8xf32>
    %cst_163 = arith.constant dense<0.000000e+00> : vector<4x8xf32>
    %209 = tpu.matmul %207, %208, %cst_163 {dimension_numbers = #tpu.dot_dimension_numbers<[1], [0], [0], [1], [0, 0, 1, 1], [], []>} : vector<4x4xf32>, vector<4x8xf32>, vector<4x8xf32> -> vector<4x8xf32>
    %210 = arith.addf %205, %209 : vector<4x8xf32>
    %c2_164 = arith.constant 2 : index
    %c0_165 = arith.constant 0 : index
    %c0_166 = arith.constant 0 : index
    %211 = vector.load %arg16[%c2_164, %c0_165, %c0_166] : memref<9x4x4xf32, #tpu.memory_space<vmem>>, vector<1x4x4xf32>
    %212 = vector.shape_cast %211 : vector<1x4x4xf32> to vector<4x4xf32>
    %c0_167 = arith.constant 0 : index
    %c2_168 = arith.constant 2 : index
    %213 = vector.load %arg38[%c0_167, %c2_168] : memref<4x20xf32, #tpu.memory_space<vmem>>, vector<4x8xf32>
    %cst_169 = arith.constant dense<0.000000e+00> : vector<4x8xf32>
    %214 = tpu.matmul %212, %213, %cst_169 {dimension_numbers = #tpu.dot_dimension_numbers<[1], [0], [0], [1], [0, 0, 1, 1], [], []>} : vector<4x4xf32>, vector<4x8xf32>, vector<4x8xf32> -> vector<4x8xf32>
    %215 = arith.addf %210, %214 : vector<4x8xf32>
    %c3_170 = arith.constant 3 : index
    %c0_171 = arith.constant 0 : index
    %c0_172 = arith.constant 0 : index
    %216 = vector.load %arg16[%c3_170, %c0_171, %c0_172] : memref<9x4x4xf32, #tpu.memory_space<vmem>>, vector<1x4x4xf32>
    %217 = vector.shape_cast %216 : vector<1x4x4xf32> to vector<4x4xf32>
    %c0_173 = arith.constant 0 : index
    %c4_174 = arith.constant 4 : index
    %218 = vector.load %arg38[%c0_173, %c4_174] : memref<4x20xf32, #tpu.memory_space<vmem>>, vector<4x8xf32>
    %cst_175 = arith.constant dense<0.000000e+00> : vector<4x8xf32>
    %219 = tpu.matmul %217, %218, %cst_175 {dimension_numbers = #tpu.dot_dimension_numbers<[1], [0], [0], [1], [0, 0, 1, 1], [], []>} : vector<4x4xf32>, vector<4x8xf32>, vector<4x8xf32> -> vector<4x8xf32>
    %220 = arith.addf %215, %219 : vector<4x8xf32>
    %c4_176 = arith.constant 4 : index
    %c0_177 = arith.constant 0 : index
    %c0_178 = arith.constant 0 : index
    %221 = vector.load %arg16[%c4_176, %c0_177, %c0_178] : memref<9x4x4xf32, #tpu.memory_space<vmem>>, vector<1x4x4xf32>
    %222 = vector.shape_cast %221 : vector<1x4x4xf32> to vector<4x4xf32>
    %c0_179 = arith.constant 0 : index
    %c5_180 = arith.constant 5 : index
    %223 = vector.load %arg38[%c0_179, %c5_180] : memref<4x20xf32, #tpu.memory_space<vmem>>, vector<4x8xf32>
    %cst_181 = arith.constant dense<0.000000e+00> : vector<4x8xf32>
    %224 = tpu.matmul %222, %223, %cst_181 {dimension_numbers = #tpu.dot_dimension_numbers<[1], [0], [0], [1], [0, 0, 1, 1], [], []>} : vector<4x4xf32>, vector<4x8xf32>, vector<4x8xf32> -> vector<4x8xf32>
    %225 = arith.addf %220, %224 : vector<4x8xf32>
    %c5_182 = arith.constant 5 : index
    %c0_183 = arith.constant 0 : index
    %c0_184 = arith.constant 0 : index
    %226 = vector.load %arg16[%c5_182, %c0_183, %c0_184] : memref<9x4x4xf32, #tpu.memory_space<vmem>>, vector<1x4x4xf32>
    %227 = vector.shape_cast %226 : vector<1x4x4xf32> to vector<4x4xf32>
    %c0_185 = arith.constant 0 : index
    %c6_186 = arith.constant 6 : index
    %228 = vector.load %arg38[%c0_185, %c6_186] : memref<4x20xf32, #tpu.memory_space<vmem>>, vector<4x8xf32>
    %cst_187 = arith.constant dense<0.000000e+00> : vector<4x8xf32>
    %229 = tpu.matmul %227, %228, %cst_187 {dimension_numbers = #tpu.dot_dimension_numbers<[1], [0], [0], [1], [0, 0, 1, 1], [], []>} : vector<4x4xf32>, vector<4x8xf32>, vector<4x8xf32> -> vector<4x8xf32>
    %230 = arith.addf %225, %229 : vector<4x8xf32>
    %c6_188 = arith.constant 6 : index
    %c0_189 = arith.constant 0 : index
    %c0_190 = arith.constant 0 : index
    %231 = vector.load %arg16[%c6_188, %c0_189, %c0_190] : memref<9x4x4xf32, #tpu.memory_space<vmem>>, vector<1x4x4xf32>
    %232 = vector.shape_cast %231 : vector<1x4x4xf32> to vector<4x4xf32>
    %c0_191 = arith.constant 0 : index
    %c8_192 = arith.constant 8 : index
    %233 = vector.load %arg38[%c0_191, %c8_192] : memref<4x20xf32, #tpu.memory_space<vmem>>, vector<4x8xf32>
    %cst_193 = arith.constant dense<0.000000e+00> : vector<4x8xf32>
    %234 = tpu.matmul %232, %233, %cst_193 {dimension_numbers = #tpu.dot_dimension_numbers<[1], [0], [0], [1], [0, 0, 1, 1], [], []>} : vector<4x4xf32>, vector<4x8xf32>, vector<4x8xf32> -> vector<4x8xf32>
    %235 = arith.addf %230, %234 : vector<4x8xf32>
    %c7_194 = arith.constant 7 : index
    %c0_195 = arith.constant 0 : index
    %c0_196 = arith.constant 0 : index
    %236 = vector.load %arg16[%c7_194, %c0_195, %c0_196] : memref<9x4x4xf32, #tpu.memory_space<vmem>>, vector<1x4x4xf32>
    %237 = vector.shape_cast %236 : vector<1x4x4xf32> to vector<4x4xf32>
    %c0_197 = arith.constant 0 : index
    %c9 = arith.constant 9 : index
    %238 = vector.load %arg38[%c0_197, %c9] : memref<4x20xf32, #tpu.memory_space<vmem>>, vector<4x8xf32>
    %cst_198 = arith.constant dense<0.000000e+00> : vector<4x8xf32>
    %239 = tpu.matmul %237, %238, %cst_198 {dimension_numbers = #tpu.dot_dimension_numbers<[1], [0], [0], [1], [0, 0, 1, 1], [], []>} : vector<4x4xf32>, vector<4x8xf32>, vector<4x8xf32> -> vector<4x8xf32>
    %240 = arith.addf %235, %239 : vector<4x8xf32>
    %c8_199 = arith.constant 8 : index
    %c0_200 = arith.constant 0 : index
    %c0_201 = arith.constant 0 : index
    %241 = vector.load %arg16[%c8_199, %c0_200, %c0_201] : memref<9x4x4xf32, #tpu.memory_space<vmem>>, vector<1x4x4xf32>
    %242 = vector.shape_cast %241 : vector<1x4x4xf32> to vector<4x4xf32>
    %c0_202 = arith.constant 0 : index
    %c10 = arith.constant 10 : index
    %243 = vector.load %arg38[%c0_202, %c10] : memref<4x20xf32, #tpu.memory_space<vmem>>, vector<4x8xf32>
    %cst_203 = arith.constant dense<0.000000e+00> : vector<4x8xf32>
    %244 = tpu.matmul %242, %243, %cst_203 {dimension_numbers = #tpu.dot_dimension_numbers<[1], [0], [0], [1], [0, 0, 1, 1], [], []>} : vector<4x4xf32>, vector<4x8xf32>, vector<4x8xf32> -> vector<4x8xf32>
    %245 = arith.addf %240, %244 : vector<4x8xf32>
    %c0_204 = arith.constant 0 : index
    %c0_205 = arith.constant 0 : index
    %246 = vector.load %arg17[%c0_204, %c0_205] : memref<4x1xf32, #tpu.memory_space<vmem>>, vector<4x1xf32>
    %247 = vector.broadcast %246 : vector<4x1xf32> to vector<4x8xf32>
    %248 = arith.addf %245, %247 : vector<4x8xf32>
    %cst_206 = arith.constant 0.000000e+00 : f32
    %249 = vector.broadcast %cst_206 : f32 to vector<4x8xf32>
    %250 = arith.maximumf %248, %249 : vector<4x8xf32>
    %c0_207 = arith.constant 0 : index
    %c0_208 = arith.constant 0 : index
    %251 = vector.load %arg23[%c0_207, %c0_208] : memref<8x20xf32, #tpu.memory_space<vmem>>, vector<8x20xf32>
    %cst_209 = arith.constant dense<0.000000e+00> : vector<4x20xf32>
    %252 = tpu.matmul %250, %251, %cst_209 {dimension_numbers = #tpu.dot_dimension_numbers<[1], [0], [0], [1], [0, 0, 1, 1], [], []>} : vector<4x8xf32>, vector<8x20xf32>, vector<4x20xf32> -> vector<4x20xf32>
    %c0_210 = arith.constant 0 : index
    %c0_211 = arith.constant 0 : index
    %253 = vector.load %arg38[%c0_210, %c0_211] : memref<4x20xf32, #tpu.memory_space<vmem>>, vector<4x20xf32>
    tpu.vector_store %arg38[%c0_210, %c0_211], %252 {strides = array<i32>} : memref<4x20xf32, #tpu.memory_space<vmem>>, vector<4x20xf32>,
    %c0_212 = arith.constant 0 : index
    %c0_213 = arith.constant 0 : index
    %c0_214 = arith.constant 0 : index
    %254 = vector.load %arg18[%c0_212, %c0_213, %c0_214] : memref<9x4x4xf32, #tpu.memory_space<vmem>>, vector<1x4x4xf32>
    %255 = vector.shape_cast %254 : vector<1x4x4xf32> to vector<4x4xf32>
    %c0_215 = arith.constant 0 : index
    %c0_216 = arith.constant 0 : index
    %256 = vector.load %arg38[%c0_215, %c0_216] : memref<4x20xf32, #tpu.memory_space<vmem>>, vector<4x8xf32>
    %cst_217 = arith.constant dense<0.000000e+00> : vector<4x8xf32>
    %257 = tpu.matmul %255, %256, %cst_217 {dimension_numbers = #tpu.dot_dimension_numbers<[1], [0], [0], [1], [0, 0, 1, 1], [], []>} : vector<4x4xf32>, vector<4x8xf32>, vector<4x8xf32> -> vector<4x8xf32>
    %c1_218 = arith.constant 1 : index
    %c0_219 = arith.constant 0 : index
    %c0_220 = arith.constant 0 : index
    %258 = vector.load %arg18[%c1_218, %c0_219, %c0_220] : memref<9x4x4xf32, #tpu.memory_space<vmem>>, vector<1x4x4xf32>
    %259 = vector.shape_cast %258 : vector<1x4x4xf32> to vector<4x4xf32>
    %c0_221 = arith.constant 0 : index
    %c1_222 = arith.constant 1 : index
    %260 = vector.load %arg38[%c0_221, %c1_222] : memref<4x20xf32, #tpu.memory_space<vmem>>, vector<4x8xf32>
    %cst_223 = arith.constant dense<0.000000e+00> : vector<4x8xf32>
    %261 = tpu.matmul %259, %260, %cst_223 {dimension_numbers = #tpu.dot_dimension_numbers<[1], [0], [0], [1], [0, 0, 1, 1], [], []>} : vector<4x4xf32>, vector<4x8xf32>, vector<4x8xf32> -> vector<4x8xf32>
    %262 = arith.addf %257, %261 : vector<4x8xf32>
    %c2_224 = arith.constant 2 : index
    %c0_225 = arith.constant 0 : index
    %c0_226 = arith.constant 0 : index
    %263 = vector.load %arg18[%c2_224, %c0_225, %c0_226] : memref<9x4x4xf32, #tpu.memory_space<vmem>>, vector<1x4x4xf32>
    %264 = vector.shape_cast %263 : vector<1x4x4xf32> to vector<4x4xf32>
    %c0_227 = arith.constant 0 : index
    %c2_228 = arith.constant 2 : index
    %265 = vector.load %arg38[%c0_227, %c2_228] : memref<4x20xf32, #tpu.memory_space<vmem>>, vector<4x8xf32>
    %cst_229 = arith.constant dense<0.000000e+00> : vector<4x8xf32>
    %266 = tpu.matmul %264, %265, %cst_229 {dimension_numbers = #tpu.dot_dimension_numbers<[1], [0], [0], [1], [0, 0, 1, 1], [], []>} : vector<4x4xf32>, vector<4x8xf32>, vector<4x8xf32> -> vector<4x8xf32>
    %267 = arith.addf %262, %266 : vector<4x8xf32>
    %c3_230 = arith.constant 3 : index
    %c0_231 = arith.constant 0 : index
    %c0_232 = arith.constant 0 : index
    %268 = vector.load %arg18[%c3_230, %c0_231, %c0_232] : memref<9x4x4xf32, #tpu.memory_space<vmem>>, vector<1x4x4xf32>
    %269 = vector.shape_cast %268 : vector<1x4x4xf32> to vector<4x4xf32>
    %c0_233 = arith.constant 0 : index
    %c4_234 = arith.constant 4 : index
    %270 = vector.load %arg38[%c0_233, %c4_234] : memref<4x20xf32, #tpu.memory_space<vmem>>, vector<4x8xf32>
    %cst_235 = arith.constant dense<0.000000e+00> : vector<4x8xf32>
    %271 = tpu.matmul %269, %270, %cst_235 {dimension_numbers = #tpu.dot_dimension_numbers<[1], [0], [0], [1], [0, 0, 1, 1], [], []>} : vector<4x4xf32>, vector<4x8xf32>, vector<4x8xf32> -> vector<4x8xf32>
    %272 = arith.addf %267, %271 : vector<4x8xf32>
    %c4_236 = arith.constant 4 : index
    %c0_237 = arith.constant 0 : index
    %c0_238 = arith.constant 0 : index
    %273 = vector.load %arg18[%c4_236, %c0_237, %c0_238] : memref<9x4x4xf32, #tpu.memory_space<vmem>>, vector<1x4x4xf32>
    %274 = vector.shape_cast %273 : vector<1x4x4xf32> to vector<4x4xf32>
    %c0_239 = arith.constant 0 : index
    %c5_240 = arith.constant 5 : index
    %275 = vector.load %arg38[%c0_239, %c5_240] : memref<4x20xf32, #tpu.memory_space<vmem>>, vector<4x8xf32>
    %cst_241 = arith.constant dense<0.000000e+00> : vector<4x8xf32>
    %276 = tpu.matmul %274, %275, %cst_241 {dimension_numbers = #tpu.dot_dimension_numbers<[1], [0], [0], [1], [0, 0, 1, 1], [], []>} : vector<4x4xf32>, vector<4x8xf32>, vector<4x8xf32> -> vector<4x8xf32>
    %277 = arith.addf %272, %276 : vector<4x8xf32>
    %c5_242 = arith.constant 5 : index
    %c0_243 = arith.constant 0 : index
    %c0_244 = arith.constant 0 : index
    %278 = vector.load %arg18[%c5_242, %c0_243, %c0_244] : memref<9x4x4xf32, #tpu.memory_space<vmem>>, vector<1x4x4xf32>
    %279 = vector.shape_cast %278 : vector<1x4x4xf32> to vector<4x4xf32>
    %c0_245 = arith.constant 0 : index
    %c6_246 = arith.constant 6 : index
    %280 = vector.load %arg38[%c0_245, %c6_246] : memref<4x20xf32, #tpu.memory_space<vmem>>, vector<4x8xf32>
    %cst_247 = arith.constant dense<0.000000e+00> : vector<4x8xf32>
    %281 = tpu.matmul %279, %280, %cst_247 {dimension_numbers = #tpu.dot_dimension_numbers<[1], [0], [0], [1], [0, 0, 1, 1], [], []>} : vector<4x4xf32>, vector<4x8xf32>, vector<4x8xf32> -> vector<4x8xf32>
    %282 = arith.addf %277, %281 : vector<4x8xf32>
    %c6_248 = arith.constant 6 : index
    %c0_249 = arith.constant 0 : index
    %c0_250 = arith.constant 0 : index
    %283 = vector.load %arg18[%c6_248, %c0_249, %c0_250] : memref<9x4x4xf32, #tpu.memory_space<vmem>>, vector<1x4x4xf32>
    %284 = vector.shape_cast %283 : vector<1x4x4xf32> to vector<4x4xf32>
    %c0_251 = arith.constant 0 : index
    %c8_252 = arith.constant 8 : index
    %285 = vector.load %arg38[%c0_251, %c8_252] : memref<4x20xf32, #tpu.memory_space<vmem>>, vector<4x8xf32>
    %cst_253 = arith.constant dense<0.000000e+00> : vector<4x8xf32>
    %286 = tpu.matmul %284, %285, %cst_253 {dimension_numbers = #tpu.dot_dimension_numbers<[1], [0], [0], [1], [0, 0, 1, 1], [], []>} : vector<4x4xf32>, vector<4x8xf32>, vector<4x8xf32> -> vector<4x8xf32>
    %287 = arith.addf %282, %286 : vector<4x8xf32>
    %c7_254 = arith.constant 7 : index
    %c0_255 = arith.constant 0 : index
    %c0_256 = arith.constant 0 : index
    %288 = vector.load %arg18[%c7_254, %c0_255, %c0_256] : memref<9x4x4xf32, #tpu.memory_space<vmem>>, vector<1x4x4xf32>
    %289 = vector.shape_cast %288 : vector<1x4x4xf32> to vector<4x4xf32>
    %c0_257 = arith.constant 0 : index
    %c9_258 = arith.constant 9 : index
    %290 = vector.load %arg38[%c0_257, %c9_258] : memref<4x20xf32, #tpu.memory_space<vmem>>, vector<4x8xf32>
    %cst_259 = arith.constant dense<0.000000e+00> : vector<4x8xf32>
    %291 = tpu.matmul %289, %290, %cst_259 {dimension_numbers = #tpu.dot_dimension_numbers<[1], [0], [0], [1], [0, 0, 1, 1], [], []>} : vector<4x4xf32>, vector<4x8xf32>, vector<4x8xf32> -> vector<4x8xf32>
    %292 = arith.addf %287, %291 : vector<4x8xf32>
    %c8_260 = arith.constant 8 : index
    %c0_261 = arith.constant 0 : index
    %c0_262 = arith.constant 0 : index
    %293 = vector.load %arg18[%c8_260, %c0_261, %c0_262] : memref<9x4x4xf32, #tpu.memory_space<vmem>>, vector<1x4x4xf32>
    %294 = vector.shape_cast %293 : vector<1x4x4xf32> to vector<4x4xf32>
    %c0_263 = arith.constant 0 : index
    %c10_264 = arith.constant 10 : index
    %295 = vector.load %arg38[%c0_263, %c10_264] : memref<4x20xf32, #tpu.memory_space<vmem>>, vector<4x8xf32>
    %cst_265 = arith.constant dense<0.000000e+00> : vector<4x8xf32>
    %296 = tpu.matmul %294, %295, %cst_265 {dimension_numbers = #tpu.dot_dimension_numbers<[1], [0], [0], [1], [0, 0, 1, 1], [], []>} : vector<4x4xf32>, vector<4x8xf32>, vector<4x8xf32> -> vector<4x8xf32>
    %297 = arith.addf %292, %296 : vector<4x8xf32>
    %c0_266 = arith.constant 0 : index
    %c0_267 = arith.constant 0 : index
    %298 = vector.load %arg19[%c0_266, %c0_267] : memref<4x1xf32, #tpu.memory_space<vmem>>, vector<4x1xf32>
    %299 = vector.broadcast %298 : vector<4x1xf32> to vector<4x8xf32>
    %300 = arith.addf %297, %299 : vector<4x8xf32>
    %cst_268 = arith.constant 0.000000e+00 : f32
    %301 = vector.broadcast %cst_268 : f32 to vector<4x8xf32>
    %302 = arith.maximumf %300, %301 : vector<4x8xf32>
    %c0_269 = arith.constant 0 : index
    %c0_270 = arith.constant 0 : index
    %303 = vector.load %arg23[%c0_269, %c0_270] : memref<8x20xf32, #tpu.memory_space<vmem>>, vector<8x20xf32>
    %cst_271 = arith.constant dense<0.000000e+00> : vector<4x20xf32>
    %304 = tpu.matmul %302, %303, %cst_271 {dimension_numbers = #tpu.dot_dimension_numbers<[1], [0], [0], [1], [0, 0, 1, 1], [], []>} : vector<4x8xf32>, vector<8x20xf32>, vector<4x20xf32> -> vector<4x20xf32>
    %c0_272 = arith.constant 0 : index
    %c0_273 = arith.constant 0 : index
    %305 = vector.load %arg38[%c0_272, %c0_273] : memref<4x20xf32, #tpu.memory_space<vmem>>, vector<4x20xf32>
    tpu.vector_store %arg38[%c0_272, %c0_273], %304 {strides = array<i32>} : memref<4x20xf32, #tpu.memory_space<vmem>>, vector<4x20xf32>,
    %c0_274 = arith.constant 0 : index
    %c0_275 = arith.constant 0 : index
    %c0_276 = arith.constant 0 : index
    %306 = vector.load %arg20[%c0_274, %c0_275, %c0_276] : memref<9x4x4xf32, #tpu.memory_space<vmem>>, vector<1x4x4xf32>
    %307 = vector.shape_cast %306 : vector<1x4x4xf32> to vector<4x4xf32>
    %c0_277 = arith.constant 0 : index
    %c0_278 = arith.constant 0 : index
    %308 = vector.load %arg38[%c0_277, %c0_278] : memref<4x20xf32, #tpu.memory_space<vmem>>, vector<4x8xf32>
    %cst_279 = arith.constant dense<0.000000e+00> : vector<4x8xf32>
    %309 = tpu.matmul %307, %308, %cst_279 {dimension_numbers = #tpu.dot_dimension_numbers<[1], [0], [0], [1], [0, 0, 1, 1], [], []>} : vector<4x4xf32>, vector<4x8xf32>, vector<4x8xf32> -> vector<4x8xf32>
    %c1_280 = arith.constant 1 : index
    %c0_281 = arith.constant 0 : index
    %c0_282 = arith.constant 0 : index
    %310 = vector.load %arg20[%c1_280, %c0_281, %c0_282] : memref<9x4x4xf32, #tpu.memory_space<vmem>>, vector<1x4x4xf32>
    %311 = vector.shape_cast %310 : vector<1x4x4xf32> to vector<4x4xf32>
    %c0_283 = arith.constant 0 : index
    %c1_284 = arith.constant 1 : index
    %312 = vector.load %arg38[%c0_283, %c1_284] : memref<4x20xf32, #tpu.memory_space<vmem>>, vector<4x8xf32>
    %cst_285 = arith.constant dense<0.000000e+00> : vector<4x8xf32>
    %313 = tpu.matmul %311, %312, %cst_285 {dimension_numbers = #tpu.dot_dimension_numbers<[1], [0], [0], [1], [0, 0, 1, 1], [], []>} : vector<4x4xf32>, vector<4x8xf32>, vector<4x8xf32> -> vector<4x8xf32>
    %314 = arith.addf %309, %313 : vector<4x8xf32>
    %c2_286 = arith.constant 2 : index
    %c0_287 = arith.constant 0 : index
    %c0_288 = arith.constant 0 : index
    %315 = vector.load %arg20[%c2_286, %c0_287, %c0_288] : memref<9x4x4xf32, #tpu.memory_space<vmem>>, vector<1x4x4xf32>
    %316 = vector.shape_cast %315 : vector<1x4x4xf32> to vector<4x4xf32>
    %c0_289 = arith.constant 0 : index
    %c2_290 = arith.constant 2 : index
    %317 = vector.load %arg38[%c0_289, %c2_290] : memref<4x20xf32, #tpu.memory_space<vmem>>, vector<4x8xf32>
    %cst_291 = arith.constant dense<0.000000e+00> : vector<4x8xf32>
    %318 = tpu.matmul %316, %317, %cst_291 {dimension_numbers = #tpu.dot_dimension_numbers<[1], [0], [0], [1], [0, 0, 1, 1], [], []>} : vector<4x4xf32>, vector<4x8xf32>, vector<4x8xf32> -> vector<4x8xf32>
    %319 = arith.addf %314, %318 : vector<4x8xf32>
    %c3_292 = arith.constant 3 : index
    %c0_293 = arith.constant 0 : index
    %c0_294 = arith.constant 0 : index
    %320 = vector.load %arg20[%c3_292, %c0_293, %c0_294] : memref<9x4x4xf32, #tpu.memory_space<vmem>>, vector<1x4x4xf32>
    %321 = vector.shape_cast %320 : vector<1x4x4xf32> to vector<4x4xf32>
    %c0_295 = arith.constant 0 : index
    %c4_296 = arith.constant 4 : index
    %322 = vector.load %arg38[%c0_295, %c4_296] : memref<4x20xf32, #tpu.memory_space<vmem>>, vector<4x8xf32>
    %cst_297 = arith.constant dense<0.000000e+00> : vector<4x8xf32>
    %323 = tpu.matmul %321, %322, %cst_297 {dimension_numbers = #tpu.dot_dimension_numbers<[1], [0], [0], [1], [0, 0, 1, 1], [], []>} : vector<4x4xf32>, vector<4x8xf32>, vector<4x8xf32> -> vector<4x8xf32>
    %324 = arith.addf %319, %323 : vector<4x8xf32>
    %c4_298 = arith.constant 4 : index
    %c0_299 = arith.constant 0 : index
    %c0_300 = arith.constant 0 : index
    %325 = vector.load %arg20[%c4_298, %c0_299, %c0_300] : memref<9x4x4xf32, #tpu.memory_space<vmem>>, vector<1x4x4xf32>
    %326 = vector.shape_cast %325 : vector<1x4x4xf32> to vector<4x4xf32>
    %c0_301 = arith.constant 0 : index
    %c5_302 = arith.constant 5 : index
    %327 = vector.load %arg38[%c0_301, %c5_302] : memref<4x20xf32, #tpu.memory_space<vmem>>, vector<4x8xf32>
    %cst_303 = arith.constant dense<0.000000e+00> : vector<4x8xf32>
    %328 = tpu.matmul %326, %327, %cst_303 {dimension_numbers = #tpu.dot_dimension_numbers<[1], [0], [0], [1], [0, 0, 1, 1], [], []>} : vector<4x4xf32>, vector<4x8xf32>, vector<4x8xf32> -> vector<4x8xf32>
    %329 = arith.addf %324, %328 : vector<4x8xf32>
    %c5_304 = arith.constant 5 : index
    %c0_305 = arith.constant 0 : index
    %c0_306 = arith.constant 0 : index
    %330 = vector.load %arg20[%c5_304, %c0_305, %c0_306] : memref<9x4x4xf32, #tpu.memory_space<vmem>>, vector<1x4x4xf32>
    %331 = vector.shape_cast %330 : vector<1x4x4xf32> to vector<4x4xf32>
    %c0_307 = arith.constant 0 : index
    %c6_308 = arith.constant 6 : index
    %332 = vector.load %arg38[%c0_307, %c6_308] : memref<4x20xf32, #tpu.memory_space<vmem>>, vector<4x8xf32>
    %cst_309 = arith.constant dense<0.000000e+00> : vector<4x8xf32>
    %333 = tpu.matmul %331, %332, %cst_309 {dimension_numbers = #tpu.dot_dimension_numbers<[1], [0], [0], [1], [0, 0, 1, 1], [], []>} : vector<4x4xf32>, vector<4x8xf32>, vector<4x8xf32> -> vector<4x8xf32>
    %334 = arith.addf %329, %333 : vector<4x8xf32>
    %c6_310 = arith.constant 6 : index
    %c0_311 = arith.constant 0 : index
    %c0_312 = arith.constant 0 : index
    %335 = vector.load %arg20[%c6_310, %c0_311, %c0_312] : memref<9x4x4xf32, #tpu.memory_space<vmem>>, vector<1x4x4xf32>
    %336 = vector.shape_cast %335 : vector<1x4x4xf32> to vector<4x4xf32>
    %c0_313 = arith.constant 0 : index
    %c8_314 = arith.constant 8 : index
    %337 = vector.load %arg38[%c0_313, %c8_314] : memref<4x20xf32, #tpu.memory_space<vmem>>, vector<4x8xf32>
    %cst_315 = arith.constant dense<0.000000e+00> : vector<4x8xf32>
    %338 = tpu.matmul %336, %337, %cst_315 {dimension_numbers = #tpu.dot_dimension_numbers<[1], [0], [0], [1], [0, 0, 1, 1], [], []>} : vector<4x4xf32>, vector<4x8xf32>, vector<4x8xf32> -> vector<4x8xf32>
    %339 = arith.addf %334, %338 : vector<4x8xf32>
    %c7_316 = arith.constant 7 : index
    %c0_317 = arith.constant 0 : index
    %c0_318 = arith.constant 0 : index
    %340 = vector.load %arg20[%c7_316, %c0_317, %c0_318] : memref<9x4x4xf32, #tpu.memory_space<vmem>>, vector<1x4x4xf32>
    %341 = vector.shape_cast %340 : vector<1x4x4xf32> to vector<4x4xf32>
    %c0_319 = arith.constant 0 : index
    %c9_320 = arith.constant 9 : index
    %342 = vector.load %arg38[%c0_319, %c9_320] : memref<4x20xf32, #tpu.memory_space<vmem>>, vector<4x8xf32>
    %cst_321 = arith.constant dense<0.000000e+00> : vector<4x8xf32>
    %343 = tpu.matmul %341, %342, %cst_321 {dimension_numbers = #tpu.dot_dimension_numbers<[1], [0], [0], [1], [0, 0, 1, 1], [], []>} : vector<4x4xf32>, vector<4x8xf32>, vector<4x8xf32> -> vector<4x8xf32>
    %344 = arith.addf %339, %343 : vector<4x8xf32>
    %c8_322 = arith.constant 8 : index
    %c0_323 = arith.constant 0 : index
    %c0_324 = arith.constant 0 : index
    %345 = vector.load %arg20[%c8_322, %c0_323, %c0_324] : memref<9x4x4xf32, #tpu.memory_space<vmem>>, vector<1x4x4xf32>
    %346 = vector.shape_cast %345 : vector<1x4x4xf32> to vector<4x4xf32>
    %c0_325 = arith.constant 0 : index
    %c10_326 = arith.constant 10 : index
    %347 = vector.load %arg38[%c0_325, %c10_326] : memref<4x20xf32, #tpu.memory_space<vmem>>, vector<4x8xf32>
    %cst_327 = arith.constant dense<0.000000e+00> : vector<4x8xf32>
    %348 = tpu.matmul %346, %347, %cst_327 {dimension_numbers = #tpu.dot_dimension_numbers<[1], [0], [0], [1], [0, 0, 1, 1], [], []>} : vector<4x4xf32>, vector<4x8xf32>, vector<4x8xf32> -> vector<4x8xf32>
    %349 = arith.addf %344, %348 : vector<4x8xf32>
    %c0_328 = arith.constant 0 : index
    %c0_329 = arith.constant 0 : index
    %350 = vector.load %arg21[%c0_328, %c0_329] : memref<4x1xf32, #tpu.memory_space<vmem>>, vector<4x1xf32>
    %351 = vector.broadcast %350 : vector<4x1xf32> to vector<4x8xf32>
    %352 = arith.addf %349, %351 : vector<4x8xf32>
    %c0_330 = arith.constant 0 : index
    %c0_331 = arith.constant 0 : index
    %353 = vector.load %arg24[%c0_330, %c0_331] : memref<8x624xf32, #tpu.memory_space<vmem>>, vector<8x624xf32>
    %cst_332 = arith.constant dense<0.000000e+00> : vector<4x624xf32>
    %354 = tpu.matmul %352, %353, %cst_332 {dimension_numbers = #tpu.dot_dimension_numbers<[1], [0], [0], [1], [0, 0, 1, 1], [], []>} : vector<4x8xf32>, vector<8x624xf32>, vector<4x624xf32> -> vector<4x624xf32>
    %c0_333 = arith.constant 0 : index
    %c0_334 = arith.constant 0 : index
    %355 = vector.load %arg25[%c0_333, %c0_334] : memref<4x4xbf16, #tpu.memory_space<vmem>>, vector<4x4xbf16>
    %356 = arith.truncf %120 : vector<4x624xf32> to vector<4x624xbf16>
    %cst_335 = arith.constant dense<0.000000e+00> : vector<4x624xf32>
    %357 = tpu.matmul %355, %356, %cst_335 {dimension_numbers = #tpu.dot_dimension_numbers<[1], [0], [0], [1], [0, 0, 1, 1], [], []>} : vector<4x4xbf16>, vector<4x624xbf16>, vector<4x624xf32> -> vector<4x624xf32>
    %c0_336 = arith.constant 0 : index
    %c0_337 = arith.constant 0 : index
    %358 = vector.load %arg26[%c0_336, %c0_337] : memref<4x1xf32, #tpu.memory_space<vmem>>, vector<4x1xf32>
    %359 = vector.broadcast %358 : vector<4x1xf32> to vector<4x624xf32>
    %360 = arith.addf %357, %359 : vector<4x624xf32>
    %c0_338 = arith.constant 0 : index
    %c0_339 = arith.constant 0 : index
    %361 = vector.load %arg27[%c0_338, %c0_339] : memref<16x4xbf16, #tpu.memory_space<vmem>>, vector<16x4xbf16>
    %362 = arith.addf %354, %360 : vector<4x624xf32>
    %363 = arith.truncf %362 : vector<4x624xf32> to vector<4x624xbf16>
    %cst_340 = arith.constant dense<0.000000e+00> : vector<16x624xf32>
    %364 = tpu.matmul %361, %363, %cst_340 {dimension_numbers = #tpu.dot_dimension_numbers<[1], [0], [0], [1], [0, 0, 1, 1], [], []>} : vector<16x4xbf16>, vector<4x624xbf16>, vector<16x624xf32> -> vector<16x624xf32>
    %c0_341 = arith.constant 0 : index
    %c0_342 = arith.constant 0 : index
    %365 = vector.load %arg28[%c0_341, %c0_342] : memref<16x1xf32, #tpu.memory_space<vmem>>, vector<16x1xf32>
    %366 = vector.broadcast %365 : vector<16x1xf32> to vector<16x624xf32>
    %367 = arith.addf %364, %366 : vector<16x624xf32>
    %368 = arith.negf %367 : vector<16x624xf32>
    %369 = math.exp %368 : vector<16x624xf32>
    %cst_343 = arith.constant 1.000000e+00 : f32
    %370 = vector.broadcast %cst_343 : f32 to vector<16x624xf32>
    %371 = arith.addf %370, %369 : vector<16x624xf32>
    %372 = arith.divf %370, %371 : vector<16x624xf32>
    %373 = arith.mulf %114, %372 : vector<16x624xf32>
    %374 = vector.broadcast %0 : vector<1x624xf32> to vector<16x624xf32>
    %375 = arith.mulf %373, %374 : vector<16x624xf32>
    %cst_344 = arith.constant dense<0.000000e+00> : vector<16xf32>
    %376 = vector.multi_reduction <add>, %375, %cst_344 [1] : vector<16x624xf32> to vector<16xf32>
    %377 = vector.shape_cast %376 : vector<16xf32> to vector<16x1xf32>
    %cst_345 = arith.constant 0.00173611112 : f32
    %378 = vector.broadcast %cst_345 : f32 to vector<16x1xf32>
    %379 = arith.mulf %377, %378 : vector<16x1xf32>
    %380 = vector.broadcast %379 : vector<16x1xf32> to vector<16x624xf32>
    %381 = arith.subf %373, %380 : vector<16x624xf32>
    %382 = vector.broadcast %0 : vector<1x624xf32> to vector<16x624xf32>
    %383 = arith.mulf %381, %382 : vector<16x624xf32>
    %384 = arith.mulf %383, %383 : vector<16x624xf32>
    %cst_346 = arith.constant dense<0.000000e+00> : vector<16xf32>
    %385 = vector.multi_reduction <add>, %384, %cst_346 [1] : vector<16x624xf32> to vector<16xf32>
    %386 = vector.shape_cast %385 : vector<16xf32> to vector<16x1xf32>
    %cst_347 = arith.constant 0.00173611112 : f32
    %387 = vector.broadcast %cst_347 : f32 to vector<16x1xf32>
    %388 = arith.mulf %386, %387 : vector<16x1xf32>
    %389 = math.sqrt %388 : vector<16x1xf32>
    %390 = arith.addf %389, %379 : vector<16x1xf32>
    %c0_348 = arith.constant 0 : index
    %c0_349 = arith.constant 0 : index
    %391 = vector.load %arg29[%c0_348, %c0_349] : memref<16x1xf32, #tpu.memory_space<vmem>>, vector<16x1xf32>
    %392 = arith.mulf %391, %390 : vector<16x1xf32>
    %cst_350 = arith.constant dense<0.000000e+00> : vector<1xf32>
    %393 = vector.multi_reduction <add>, %392, %cst_350 [0] : vector<16x1xf32> to vector<1xf32>
    %394 = vector.shape_cast %393 : vector<1xf32> to vector<1x1xf32>
    %c0_351 = arith.constant 0 : index
    %c0_352 = arith.constant 0 : index
    %395 = vector.load %arg30[%c0_351, %c0_352] : memref<1x1xf32, #tpu.memory_space<vmem>>, vector<1x1xf32>
    %396 = arith.addf %394, %395 : vector<1x1xf32>
    %cst_353 = arith.constant 0.000000e+00 : f32
    %397 = vector.broadcast %cst_353 : f32 to vector<1x1xf32>
    %398 = arith.maximumf %396, %397 : vector<1x1xf32>
    %c0_354 = arith.constant 0 : index
    %c0_355 = arith.constant 0 : index
    %399 = vector.load %arg31[%c0_354, %c0_355] : memref<16x1xf32, #tpu.memory_space<vmem>>, vector<16x1xf32>
    %400 = vector.broadcast %398 : vector<1x1xf32> to vector<16x1xf32>
    %401 = arith.mulf %399, %400 : vector<16x1xf32>
    %cst_356 = arith.constant dense<0.000000e+00> : vector<16xf32>
    %402 = vector.multi_reduction <add>, %401, %cst_356 [1] : vector<16x1xf32> to vector<16xf32>
    %403 = vector.shape_cast %402 : vector<16xf32> to vector<16x1xf32>
    %c0_357 = arith.constant 0 : index
    %c0_358 = arith.constant 0 : index
    %404 = vector.load %arg32[%c0_357, %c0_358] : memref<16x1xf32, #tpu.memory_space<vmem>>, vector<16x1xf32>
    %405 = arith.addf %403, %404 : vector<16x1xf32>
    %406 = arith.negf %405 : vector<16x1xf32>
    %407 = math.exp %406 : vector<16x1xf32>
    %cst_359 = arith.constant 1.000000e+00 : f32
    %408 = vector.broadcast %cst_359 : f32 to vector<16x1xf32>
    %409 = arith.addf %408, %407 : vector<16x1xf32>
    %410 = arith.divf %408, %409 : vector<16x1xf32>
    %411 = vector.broadcast %410 : vector<16x1xf32> to vector<16x624xf32>
    %412 = arith.mulf %373, %411 : vector<16x624xf32>
    %c0_360 = arith.constant 0 : index
    %c0_361 = arith.constant 0 : index
    %c0_362 = arith.constant 0 : index
    %413 = vector.load %arg33[%c0_360, %c0_361, %c0_362] : memref<1x16x624xf32, #tpu.memory_space<vmem>>, vector<1x16x624xf32>
    %414 = vector.shape_cast %413 : vector<1x16x624xf32> to vector<16x624xf32>
    %415 = vector.shape_cast %412 : vector<16x624xf32> to vector<1x16x624xf32>
    tpu.vector_store %arg33[%c0_360, %c0_361, %c0_362], %415 {strides = array<i32>} : memref<1x16x624xf32, #tpu.memory_space<vmem>>, vector<1x16x624xf32>,
    return
  }
  func.func @transform_0(%arg0: i32) -> (i32, i32, i32) {
    %c0_i32 = arith.constant 0 : i32
    %c0_i32_0 = arith.constant 0 : i32
    %c0_i32_1 = arith.constant 0 : i32
    return %arg0, %c0_i32, %c0_i32_0 : i32, i32, i32
  }
  func.func @transform_1(%arg0: i32) -> (i32, i32) {
    %c0_i32 = arith.constant 0 : i32
    %c0_i32_0 = arith.constant 0 : i32
    %c0_i32_1 = arith.constant 0 : i32
    return %c0_i32, %c0_i32_0 : i32, i32
  }
  func.func @transform_2(%arg0: i32) -> (i32, i32) {
    %c0_i32 = arith.constant 0 : i32
    %c0_i32_0 = arith.constant 0 : i32
    %c0_i32_1 = arith.constant 0 : i32
    return %c0_i32, %c0_i32_0 : i32, i32
  }
  func.func @transform_3(%arg0: i32) -> (i32, i32) {
    %c0_i32 = arith.constant 0 : i32
    %c0_i32_0 = arith.constant 0 : i32
    %c0_i32_1 = arith.constant 0 : i32
    return %c0_i32, %c0_i32_0 : i32, i32
  }
  func.func @transform_4(%arg0: i32) -> (i32, i32) {
    %c0_i32 = arith.constant 0 : i32
    %c0_i32_0 = arith.constant 0 : i32
    %c0_i32_1 = arith.constant 0 : i32
    return %c0_i32, %c0_i32_0 : i32, i32
  }
  func.func @transform_5(%arg0: i32) -> (i32, i32) {
    %c0_i32 = arith.constant 0 : i32
    %c0_i32_0 = arith.constant 0 : i32
    %c0_i32_1 = arith.constant 0 : i32
    return %c0_i32, %c0_i32_0 : i32, i32
  }
  func.func @transform_6(%arg0: i32) -> (i32, i32) {
    %c0_i32 = arith.constant 0 : i32
    %c0_i32_0 = arith.constant 0 : i32
    %c0_i32_1 = arith.constant 0 : i32
    return %c0_i32, %c0_i32_0 : i32, i32
  }
  func.func @transform_7(%arg0: i32) -> (i32, i32) {
    %c0_i32 = arith.constant 0 : i32
    %c0_i32_0 = arith.constant 0 : i32
    %c0_i32_1 = arith.constant 0 : i32
    return %c0_i32, %c0_i32_0 : i32, i32
  }
  func.func @transform_8(%arg0: i32) -> (i32, i32) {
    %c0_i32 = arith.constant 0 : i32
    %c0_i32_0 = arith.constant 0 : i32
    %c0_i32_1 = arith.constant 0 : i32
    return %c0_i32, %c0_i32_0 : i32, i32
  }
  func.func @transform_9(%arg0: i32) -> (i32, i32) {
    %c0_i32 = arith.constant 0 : i32
    %c0_i32_0 = arith.constant 0 : i32
    %c0_i32_1 = arith.constant 0 : i32
    return %c0_i32, %c0_i32_0 : i32, i32
  }
  func.func @transform_10(%arg0: i32) -> (i32, i32) {
    %c0_i32 = arith.constant 0 : i32
    %c0_i32_0 = arith.constant 0 : i32
    %c0_i32_1 = arith.constant 0 : i32
    return %c0_i32, %c0_i32_0 : i32, i32
  }
  func.func @transform_11(%arg0: i32) -> (i32, i32) {
    %c0_i32 = arith.constant 0 : i32
    %c0_i32_0 = arith.constant 0 : i32
    %c0_i32_1 = arith.constant 0 : i32
    return %c0_i32, %c0_i32_0 : i32, i32
  }
  func.func @transform_12(%arg0: i32) -> (i32, i32, i32) {
    %c0_i32 = arith.constant 0 : i32
    %c0_i32_0 = arith.constant 0 : i32
    %c0_i32_1 = arith.constant 0 : i32
    %c0_i32_2 = arith.constant 0 : i32
    return %c0_i32, %c0_i32_0, %c0_i32_1 : i32, i32, i32
  }
  func.func @transform_13(%arg0: i32) -> (i32, i32) {
    %c0_i32 = arith.constant 0 : i32
    %c0_i32_0 = arith.constant 0 : i32
    %c0_i32_1 = arith.constant 0 : i32
    return %c0_i32, %c0_i32_0 : i32, i32
  }
  func.func @transform_14(%arg0: i32) -> (i32, i32) {
    %c0_i32 = arith.constant 0 : i32
    %c0_i32_0 = arith.constant 0 : i32
    %c0_i32_1 = arith.constant 0 : i32
    return %c0_i32, %c0_i32_0 : i32, i32
  }
  func.func @transform_15(%arg0: i32) -> (i32, i32, i32) {
    %c0_i32 = arith.constant 0 : i32
    %c0_i32_0 = arith.constant 0 : i32
    %c0_i32_1 = arith.constant 0 : i32
    %c0_i32_2 = arith.constant 0 : i32
    return %c0_i32, %c0_i32_0, %c0_i32_1 : i32, i32, i32
  }
  func.func @transform_16(%arg0: i32) -> (i32, i32) {
    %c0_i32 = arith.constant 0 : i32
    %c0_i32_0 = arith.constant 0 : i32
    %c0_i32_1 = arith.constant 0 : i32
    return %c0_i32, %c0_i32_0 : i32, i32
  }
  func.func @transform_17(%arg0: i32) -> (i32, i32, i32) {
    %c0_i32 = arith.constant 0 : i32
    %c0_i32_0 = arith.constant 0 : i32
    %c0_i32_1 = arith.constant 0 : i32
    %c0_i32_2 = arith.constant 0 : i32
    return %c0_i32, %c0_i32_0, %c0_i32_1 : i32, i32, i32
  }
  func.func @transform_18(%arg0: i32) -> (i32, i32) {
    %c0_i32 = arith.constant 0 : i32
    %c0_i32_0 = arith.constant 0 : i32
    %c0_i32_1 = arith.constant 0 : i32
    return %c0_i32, %c0_i32_0 : i32, i32
  }
  func.func @transform_19(%arg0: i32) -> (i32, i32, i32) {
    %c0_i32 = arith.constant 0 : i32
    %c0_i32_0 = arith.constant 0 : i32
    %c0_i32_1 = arith.constant 0 : i32
    %c0_i32_2 = arith.constant 0 : i32
    return %c0_i32, %c0_i32_0, %c0_i32_1 : i32, i32, i32
  }
  func.func @transform_20(%arg0: i32) -> (i32, i32) {
    %c0_i32 = arith.constant 0 : i32
    %c0_i32_0 = arith.constant 0 : i32
    %c0_i32_1 = arith.constant 0 : i32
    return %c0_i32, %c0_i32_0 : i32, i32
  }
  func.func @transform_21(%arg0: i32) -> (i32, i32) {
    %c0_i32 = arith.constant 0 : i32
    %c0_i32_0 = arith.constant 0 : i32
    %c0_i32_1 = arith.constant 0 : i32
    return %c0_i32, %c0_i32_0 : i32, i32
  }
  func.func @transform_22(%arg0: i32) -> (i32, i32) {
    %c0_i32 = arith.constant 0 : i32
    %c0_i32_0 = arith.constant 0 : i32
    %c0_i32_1 = arith.constant 0 : i32
    return %c0_i32, %c0_i32_0 : i32, i32
  }
  func.func @transform_23(%arg0: i32) -> (i32, i32) {
    %c0_i32 = arith.constant 0 : i32
    %c0_i32_0 = arith.constant 0 : i32
    %c0_i32_1 = arith.constant 0 : i32
    return %c0_i32, %c0_i32_0 : i32, i32
  }
  func.func @transform_24(%arg0: i32) -> (i32, i32) {
    %c0_i32 = arith.constant 0 : i32
    %c0_i32_0 = arith.constant 0 : i32
    %c0_i32_1 = arith.constant 0 : i32
    return %c0_i32, %c0_i32_0 : i32, i32
  }
  func.func @transform_25(%arg0: i32) -> (i32, i32) {
    %c0_i32 = arith.constant 0 : i32
    %c0_i32_0 = arith.constant 0 : i32
    %c0_i32_1 = arith.constant 0 : i32
    return %c0_i32, %c0_i32_0 : i32, i32
  }
  func.func @transform_26(%arg0: i32) -> (i32, i32) {
    %c0_i32 = arith.constant 0 : i32
    %c0_i32_0 = arith.constant 0 : i32
    %c0_i32_1 = arith.constant 0 : i32
    return %c0_i32, %c0_i32_0 : i32, i32
  }
  func.func @transform_27(%arg0: i32) -> (i32, i32) {
    %c0_i32 = arith.constant 0 : i32
    %c0_i32_0 = arith.constant 0 : i32
    %c0_i32_1 = arith.constant 0 : i32
    return %c0_i32, %c0_i32_0 : i32, i32
  }
  func.func @transform_28(%arg0: i32) -> (i32, i32) {
    %c0_i32 = arith.constant 0 : i32
    %c0_i32_0 = arith.constant 0 : i32
    %c0_i32_1 = arith.constant 0 : i32
    return %c0_i32, %c0_i32_0 : i32, i32
  }
  func.func @transform_29(%arg0: i32) -> (i32, i32) {
    %c0_i32 = arith.constant 0 : i32
    %c0_i32_0 = arith.constant 0 : i32
    %c0_i32_1 = arith.constant 0 : i32
    return %c0_i32, %c0_i32_0 : i32, i32
  }
  func.func @transform_30(%arg0: i32) -> (i32, i32) {
    %c0_i32 = arith.constant 0 : i32
    %c0_i32_0 = arith.constant 0 : i32
    %c0_i32_1 = arith.constant 0 : i32
    return %c0_i32, %c0_i32_0 : i32, i32
  }
  func.func @transform_31(%arg0: i32) -> (i32, i32) {
    %c0_i32 = arith.constant 0 : i32
    %c0_i32_0 = arith.constant 0 : i32
    %c0_i32_1 = arith.constant 0 : i32
    return %c0_i32, %c0_i32_0 : i32, i32
  }
  func.func @transform_32(%arg0: i32) -> (i32, i32, i32) {
    %c0_i32 = arith.constant 0 : i32
    %c0_i32_0 = arith.constant 0 : i32
    %c0_i32_1 = arith.constant 0 : i32
    return %arg0, %c0_i32, %c0_i32_0 : i32, i32, i32
  }
}

</mosaic_0001>

<llo_original>
// kernel: blueprint_shortcut_block.1
$region0: #{blueprint_shortcut_block.1}
  #allocation0 [shape = 'u32[]', space=smem, size = 0x4, offset = 0x4, fixed_abs, tag = 'smem constant byte address 0x4 - core index']
  #allocation1 [shape = 'u32[144,128]{1,0:T(1,128)}', space=vmem, size = 0x12000, scoped, tag = 'internal scratch']
  #allocation2 [shape = 'f32[16,779]{1,0:T(8,128)}', space=vmem, size = 0xe000, scoped, tag = 'scratch operand']
  #allocation3 [shape = 'f32[4,624]{1,0:T(4,128)}', space=vmem, size = 0x2800, scoped, tag = 'scratch operand']
  #allocation4 [shape = 'f32[4,121]{1,0:T(4,128)}', space=vmem, size = 0x800, scoped, tag = 'scratch operand']
  #allocation5 [shape = 'f32[4,103]{1,0:T(4,128)}', space=vmem, size = 0x800, scoped, tag = 'scratch operand']
  #allocation6 [shape = 'f32[4,20]{1,0:T(4,128)}', space=vmem, size = 0x800, scoped, tag = 'scratch operand']
  #allocation7 [shape = 'f32[1,1]{1,0:T(1,128)S(1)}', space=vmem, size = 0x200, scoped, tag = 'scoped memory for blueprint_shortcut_block.1']
  %s0 = inlined_call_operand.smem [shape: u32[33], index: -1, kind: input, shape index: {}]
  %s1 = sld [smem:[%s0]]
  %s2 = scalar_lea.smem %s0, 1
  %s3 = sld [smem:[%s2]]
  %s4 = scalar_lea.smem %s0, 2
  %s5 = sld [smem:[%s4]]
  %s6 = scalar_lea.smem %s0, 3
  %s7 = sld [smem:[%s6]]
  %s8 = scalar_lea.smem %s0, 4
  %s9 = sld [smem:[%s8]]
  %s10 = scalar_lea.smem %s0, 5
  %s11 = sld [smem:[%s10]]
  %s12 = scalar_lea.smem %s0, 6
  %s13 = sld [smem:[%s12]]
  %s14 = scalar_lea.smem %s0, 7
  %s15 = sld [smem:[%s14]]
  %s16 = scalar_lea.smem %s0, 8
  %s17 = sld [smem:[%s16]]
  %s18 = scalar_lea.smem %s0, 9
  %s19 = sld [smem:[%s18]]
  %s20 = scalar_lea.smem %s0, 10
  %s21 = sld [smem:[%s20]]
  %s22 = scalar_lea.smem %s0, 11
  %s23 = sld [smem:[%s22]]
  %s24 = scalar_lea.smem %s0, 12
  %s25 = sld [smem:[%s24]]
  %s26 = scalar_lea.smem %s0, 13
  %s27 = sld [smem:[%s26]]
  %s28 = scalar_lea.smem %s0, 14
  %s29 = sld [smem:[%s28]]
  %s30 = scalar_lea.smem %s0, 15
  %s31 = sld [smem:[%s30]]
  %s32 = scalar_lea.smem %s0, 16
  %s33 = sld [smem:[%s32]]
  %s34 = scalar_lea.smem %s0, 17
  %s35 = sld [smem:[%s34]]
  %s36 = scalar_lea.smem %s0, 18
  %s37 = sld [smem:[%s36]]
  %s38 = scalar_lea.smem %s0, 19
  %s39 = sld [smem:[%s38]]
  %s40 = scalar_lea.smem %s0, 20
  %s41 = sld [smem:[%s40]]
  %s42 = scalar_lea.smem %s0, 21
  %s43 = sld [smem:[%s42]]
  %s44 = scalar_lea.smem %s0, 22
  %s45 = sld [smem:[%s44]]
  %s46 = scalar_lea.smem %s0, 23
  %s47 = sld [smem:[%s46]]
  %s48 = scalar_lea.smem %s0, 24
  %s49 = sld [smem:[%s48]]
  %s50 = scalar_lea.smem %s0, 25
  %s51 = sld [smem:[%s50]]
  %s52 = scalar_lea.smem %s0, 26
  %s53 = sld [smem:[%s52]]
  %s54 = scalar_lea.smem %s0, 27
  %s55 = sld [smem:[%s54]]
  %s56 = scalar_lea.smem %s0, 28
  %s57 = sld [smem:[%s56]]
  %s58 = scalar_lea.smem %s0, 29
  %s59 = sld [smem:[%s58]]
  %s60 = scalar_lea.smem %s0, 30
  %s61 = sld [smem:[%s60]]
  %s62 = scalar_lea.smem %s0, 31
  %s63 = sld [smem:[%s62]]
  %s64 = scalar_lea.smem %s0, 32
  %s65 = sld [smem:[%s64]]
  %s66 = sld [smem:[#allocation0]]
  $region161: #{blueprint_shortcut_block.1} parent=0
    _
  %s68 = ssub.s32 1, %s66
  %s69 = scalar_select 0, %s68, %s66
  %v70 = vstv %s59
  %71 = vst [vmem:[#allocation7] sm:$0x1] %v70
  loop: start=0, step=1, limit=4
  $region2: #{blueprint_shortcut_block.1} parent=0 // loop_pre_header
    _
  $region3: #{blueprint_shortcut_block.1} parent=0 // loop_header
    %s73 = sphi 0, %s77
    %p74 = scmp.ge.s32.totalorder %s73, 4
    %s83 = sphi 0, %s85
    %s86 = sphi 0, %s83
    %s87 = sphi 0, %s86
    %s103 = sphi 0, %s87
    %s107 = sphi 0, %s107
    %s109 = sphi 0, %s107
    %s110 = sphi 0, %s109
    %s124 = sphi 0, %s110
    %s128 = sphi 0, %s128
    %s130 = sphi 0, %s128
    %s131 = sphi 0, %s130
    %s145 = sphi 0, %s131
    %s149 = sphi 0, %s149
    %s151 = sphi 0, %s149
    %s152 = sphi 0, %s151
    %s166 = sphi 0, %s152
    %s170 = sphi 0, %s170
    %s172 = sphi 0, %s170
    %s173 = sphi 0, %s172
    %s187 = sphi 0, %s173
    %s191 = sphi 0, %s191
    %s193 = sphi 0, %s191
    %s194 = sphi 0, %s193
    %s208 = sphi 0, %s194
    %s212 = sphi 0, %s212
    %s214 = sphi 0, %s212
    %s215 = sphi 0, %s214
    %s229 = sphi 0, %s215
    %s233 = sphi 0, %s233
    %s235 = sphi 0, %s233
    %s236 = sphi 0, %s235
    %s250 = sphi 0, %s236
    %s254 = sphi 0, %s254
    %s256 = sphi 0, %s254
    %s257 = sphi 0, %s256
    %s271 = sphi 0, %s257
    %s275 = sphi 0, %s275
    %s277 = sphi 0, %s275
    %s278 = sphi 0, %s277
    %s292 = sphi 0, %s278
    %s296 = sphi 0, %s296
    %s298 = sphi 0, %s296
    %s299 = sphi 0, %s298
    %s313 = sphi 0, %s299
    %s317 = sphi 0, %s317
    %s319 = sphi 0, %s317
    %s320 = sphi 0, %s319
    %s334 = sphi 0, %s320
    %s338 = sphi 0, %s338
    %s340 = sphi 0, %s338
    %s341 = sphi 0, %s340
    %s355 = sphi 0, %s341
    %s359 = sphi 0, %s359
    %s361 = sphi 0, %s359
    %s362 = sphi 0, %s361
    %s376 = sphi 0, %s362
    %s380 = sphi 0, %s380
    %s382 = sphi 0, %s380
    %s383 = sphi 0, %s382
    %s397 = sphi 0, %s383
    %s401 = sphi 0, %s401
    %s403 = sphi 0, %s401
    %s404 = sphi 0, %s403
    %s418 = sphi 0, %s404
    %s422 = sphi 0, %s422
    %s424 = sphi 0, %s422
    %s425 = sphi 0, %s424
    %s439 = sphi 0, %s425
    %s443 = sphi 0, %s443
    %s445 = sphi 0, %s443
    %s446 = sphi 0, %s445
    %s460 = sphi 0, %s446
    %s464 = sphi 0, %s464
    %s466 = sphi 0, %s464
    %s467 = sphi 0, %s466
    %s481 = sphi 0, %s467
    %s485 = sphi 0, %s485
    %s487 = sphi 0, %s485
    %s488 = sphi 0, %s487
    %s502 = sphi 0, %s488
    %s506 = sphi 0, %s506
    %s508 = sphi 0, %s506
    %s509 = sphi 0, %s508
    %s523 = sphi 0, %s509
    %s527 = sphi 0, %s527
    %s529 = sphi 0, %s527
    %s530 = sphi 0, %s529
    %s544 = sphi 0, %s530
    %s548 = sphi 0, %s548
    %s550 = sphi 0, %s548
    %s551 = sphi 0, %s550
    %s565 = sphi 0, %s551
    %s569 = sphi 0, %s569
    %s571 = sphi 0, %s569
    %s572 = sphi 0, %s571
    %s586 = sphi 0, %s572
    %s590 = sphi 0, %s590
    %s592 = sphi 0, %s590
    %s593 = sphi 0, %s592
    %s607 = sphi 0, %s593
    %s611 = sphi 0, %s611
    %s613 = sphi 0, %s611
    %s614 = sphi 0, %s613
    %s628 = sphi 0, %s614
    %s632 = sphi 0, %s632
    %s634 = sphi 0, %s632
    %s635 = sphi 0, %s634
    %s649 = sphi 0, %s635
    %s653 = sphi 0, %s653
    %s655 = sphi 0, %s653
    %s656 = sphi 0, %s655
    %s670 = sphi 0, %s656
    %s674 = sphi 0, %s674
    %s676 = sphi 0, %s674
    %s677 = sphi 0, %s676
    %s691 = sphi 0, %s677
    %s695 = sphi 0, %s695
    %s697 = sphi 0, %s695
    %s698 = sphi 0, %s697
    %s712 = sphi 0, %s698
    %s716 = sphi 0, %s716
    %s718 = sphi 0, %s716
    %s719 = sphi 0, %s718
    %s733 = sphi 0, %s719
    %s737 = sphi 0, %s737
    %s739 = sphi 0, %s737
    %s740 = sphi 0, %s739
    %s754 = sphi 0, %s740
    %s760 = sphi 0, %s762
    %s763 = sphi 0, %s760
    %s764 = sphi 0, %s763
    %s780 = sphi 0, %s764
  $region4: #{blueprint_shortcut_block.1} parent=0 // loop_header_branch
    %76 = sbr.rel (%p74) target = $region8
  $region5: #{blueprint_shortcut_block.1} parent=0 // loop_body
    %s78 = ssub.s32 %s73, 1
    %s79 = ssub.s32 %s73, 2
    %s80 = sadd.s32 %s73, 1
    %s81 = ssub.s32 %s73, %s80
    %p82 = scmp.eq.s32.totalorder %s81, 0
    %s84 = sadd.s32 %s83, 1
    %s85 = scalar_select %p82, %s83, %s84
    %p88 = pneg %p82
    %p89 = scmp.eq.s32.totalorder %s73, 1
    %p90 = por %p88, %p89
    %p91 = scmp.ne.s32.totalorder %s83, %s86
    %p92 = scmp.eq.s32.totalorder %s73, 0
    %p93 = por %p91, %p92
    %p94 = scmp.ne.s32.totalorder %s83, %s86
    %p95 = scmp.eq.s32.totalorder %s78, 1
    %p96 = por %p94, %p95
    %p97 = scmp.ne.s32.totalorder %s86, %s87
    %p98 = scmp.eq.s32.totalorder %s78, 0
    %p99 = por %p97, %p98
    %p100 = scmp.ne.s32.totalorder %s86, %s87
    %p101 = scmp.eq.s32.totalorder %s79, 1
    %p102 = por %p100, %p101
    %p104 = scmp.ne.s32.totalorder %s87, %s103
    %p105 = scmp.eq.s32.totalorder %s79, 0
    %p106 = por %p104, %p105
    %s108 = sadd.s32 %s107, 1
    %p111 = scmp.eq.s32.totalorder %s73, 1
    %p112 = scmp.ne.s32.totalorder %s107, %s109
    %p113 = scmp.eq.s32.totalorder %s73, 0
    %p114 = por %p112, %p113
    %p115 = scmp.ne.s32.totalorder %s107, %s109
    %p116 = scmp.eq.s32.totalorder %s78, 1
    %p117 = por %p115, %p116
    %p118 = scmp.ne.s32.totalorder %s109, %s110
    %p119 = scmp.eq.s32.totalorder %s78, 0
    %p120 = por %p118, %p119
    %p121 = scmp.ne.s32.totalorder %s109, %s110
    %p122 = scmp.eq.s32.totalorder %s79, 1
    %p123 = por %p121, %p122
    %p125 = scmp.ne.s32.totalorder %s110, %s124
    %p126 = scmp.eq.s32.totalorder %s79, 0
    %p127 = por %p125, %p126
    %s129 = sadd.s32 %s128, 1
    %p132 = scmp.eq.s32.totalorder %s73, 1
    %p133 = scmp.ne.s32.totalorder %s128, %s130
    %p134 = scmp.eq.s32.totalorder %s73, 0
    %p135 = por %p133, %p134
    %p136 = scmp.ne.s32.totalorder %s128, %s130
    %p137 = scmp.eq.s32.totalorder %s78, 1
    %p138 = por %p136, %p137
    %p139 = scmp.ne.s32.totalorder %s130, %s131
    %p140 = scmp.eq.s32.totalorder %s78, 0
    %p141 = por %p139, %p140
    %p142 = scmp.ne.s32.totalorder %s130, %s131
    %p143 = scmp.eq.s32.totalorder %s79, 1
    %p144 = por %p142, %p143
    %p146 = scmp.ne.s32.totalorder %s131, %s145
    %p147 = scmp.eq.s32.totalorder %s79, 0
    %p148 = por %p146, %p147
    %s150 = sadd.s32 %s149, 1
    %p153 = scmp.eq.s32.totalorder %s73, 1
    %p154 = scmp.ne.s32.totalorder %s149, %s151
    %p155 = scmp.eq.s32.totalorder %s73, 0
    %p156 = por %p154, %p155
    %p157 = scmp.ne.s32.totalorder %s149, %s151
    %p158 = scmp.eq.s32.totalorder %s78, 1
    %p159 = por %p157, %p158
    %p160 = scmp.ne.s32.totalorder %s151, %s152
    %p161 = scmp.eq.s32.totalorder %s78, 0
    %p162 = por %p160, %p161
    %p163 = scmp.ne.s32.totalorder %s151, %s152
    %p164 = scmp.eq.s32.totalorder %s79, 1
    %p165 = por %p163, %p164
    %p167 = scmp.ne.s32.totalorder %s152, %s166
    %p168 = scmp.eq.s32.totalorder %s79, 0
    %p169 = por %p167, %p168
    %s171 = sadd.s32 %s170, 1
    %p174 = scmp.eq.s32.totalorder %s73, 1
    %p175 = scmp.ne.s32.totalorder %s170, %s172
    %p176 = scmp.eq.s32.totalorder %s73, 0
    %p177 = por %p175, %p176
    %p178 = scmp.ne.s32.totalorder %s170, %s172
    %p179 = scmp.eq.s32.totalorder %s78, 1
    %p180 = por %p178, %p179
    %p181 = scmp.ne.s32.totalorder %s172, %s173
    %p182 = scmp.eq.s32.totalorder %s78, 0
    %p183 = por %p181, %p182
    %p184 = scmp.ne.s32.totalorder %s172, %s173
    %p185 = scmp.eq.s32.totalorder %s79, 1
    %p186 = por %p184, %p185
    %p188 = scmp.ne.s32.totalorder %s173, %s187
    %p189 = scmp.eq.s32.totalorder %s79, 0
    %p190 = por %p188, %p189
    %s192 = sadd.s32 %s191, 1
    %p195 = scmp.eq.s32.totalorder %s73, 1
    %p196 = scmp.ne.s32.totalorder %s191, %s193
    %p197 = scmp.eq.s32.totalorder %s73, 0
    %p198 = por %p196, %p197
    %p199 = scmp.ne.s32.totalorder %s191, %s193
    %p200 = scmp.eq.s32.totalorder %s78, 1
    %p201 = por %p199, %p200
    %p202 = scmp.ne.s32.totalorder %s193, %s194
    %p203 = scmp.eq.s32.totalorder %s78, 0
    %p204 = por %p202, %p203
    %p205 = scmp.ne.s32.totalorder %s193, %s194
    %p206 = scmp.eq.s32.totalorder %s79, 1
    %p207 = por %p205, %p206
    %p209 = scmp.ne.s32.totalorder %s194, %s208
    %p210 = scmp.eq.s32.totalorder %s79, 0
    %p211 = por %p209, %p210
    %s213 = sadd.s32 %s212, 1
    %p216 = scmp.eq.s32.totalorder %s73, 1
    %p217 = scmp.ne.s32.totalorder %s212, %s214
    %p218 = scmp.eq.s32.totalorder %s73, 0
    %p219 = por %p217, %p218
    %p220 = scmp.ne.s32.totalorder %s212, %s214
    %p221 = scmp.eq.s32.totalorder %s78, 1
    %p222 = por %p220, %p221
    %p223 = scmp.ne.s32.totalorder %s214, %s215
    %p224 = scmp.eq.s32.totalorder %s78, 0
    %p225 = por %p223, %p224
    %p226 = scmp.ne.s32.totalorder %s214, %s215
    %p227 = scmp.eq.s32.totalorder %s79, 1
    %p228 = por %p226, %p227
    %p230 = scmp.ne.s32.totalorder %s215, %s229
    %p231 = scmp.eq.s32.totalorder %s79, 0
    %p232 = por %p230, %p231
    %s234 = sadd.s32 %s233, 1
    %p237 = scmp.eq.s32.totalorder %s73, 1
    %p238 = scmp.ne.s32.totalorder %s233, %s235
    %p239 = scmp.eq.s32.totalorder %s73, 0
    %p240 = por %p238, %p239
    %p241 = scmp.ne.s32.totalorder %s233, %s235
    %p242 = scmp.eq.s32.totalorder %s78, 1
    %p243 = por %p241, %p242
    %p244 = scmp.ne.s32.totalorder %s235, %s236
    %p245 = scmp.eq.s32.totalorder %s78, 0
    %p246 = por %p244, %p245
    %p247 = scmp.ne.s32.totalorder %s235, %s236
    %p248 = scmp.eq.s32.totalorder %s79, 1
    %p249 = por %p247, %p248
    %p251 = scmp.ne.s32.totalorder %s236, %s250
    %p252 = scmp.eq.s32.totalorder %s79, 0
    %p253 = por %p251, %p252
    %s255 = sadd.s32 %s254, 1
    %p258 = scmp.eq.s32.totalorder %s73, 1
    %p259 = scmp.ne.s32.totalorder %s254, %s256
    %p260 = scmp.eq.s32.totalorder %s73, 0
    %p261 = por %p259, %p260
    %p262 = scmp.ne.s32.totalorder %s254, %s256
    %p263 = scmp.eq.s32.totalorder %s78, 1
    %p264 = por %p262, %p263
    %p265 = scmp.ne.s32.totalorder %s256, %s257
    %p266 = scmp.eq.s32.totalorder %s78, 0
    %p267 = por %p265, %p266
    %p268 = scmp.ne.s32.totalorder %s256, %s257
    %p269 = scmp.eq.s32.totalorder %s79, 1
    %p270 = por %p268, %p269
    %p272 = scmp.ne.s32.totalorder %s257, %s271
    %p273 = scmp.eq.s32.totalorder %s79, 0
    %p274 = por %p272, %p273
    %s276 = sadd.s32 %s275, 1
    %p279 = scmp.eq.s32.totalorder %s73, 1
    %p280 = scmp.ne.s32.totalorder %s275, %s277
    %p281 = scmp.eq.s32.totalorder %s73, 0
    %p282 = por %p280, %p281
    %p283 = scmp.ne.s32.totalorder %s275, %s277
    %p284 = scmp.eq.s32.totalorder %s78, 1
    %p285 = por %p283, %p284
    %p286 = scmp.ne.s32.totalorder %s277, %s278
    %p287 = scmp.eq.s32.totalorder %s78, 0
    %p288 = por %p286, %p287
    %p289 = scmp.ne.s32.totalorder %s277, %s278
    %p290 = scmp.eq.s32.totalorder %s79, 1
    %p291 = por %p289, %p290
    %p293 = scmp.ne.s32.totalorder %s278, %s292
    %p294 = scmp.eq.s32.totalorder %s79, 0
    %p295 = por %p293, %p294
    %s297 = sadd.s32 %s296, 1
    %p300 = scmp.eq.s32.totalorder %s73, 1
    %p301 = scmp.ne.s32.totalorder %s296, %s298
    %p302 = scmp.eq.s32.totalorder %s73, 0
    %p303 = por %p301, %p302
    %p304 = scmp.ne.s32.totalorder %s296, %s298
    %p305 = scmp.eq.s32.totalorder %s78, 1
    %p306 = por %p304, %p305
    %p307 = scmp.ne.s32.totalorder %s298, %s299
    %p308 = scmp.eq.s32.totalorder %s78, 0
    %p309 = por %p307, %p308
    %p310 = scmp.ne.s32.totalorder %s298, %s299
    %p311 = scmp.eq.s32.totalorder %s79, 1
    %p312 = por %p310, %p311
    %p314 = scmp.ne.s32.totalorder %s299, %s313
    %p315 = scmp.eq.s32.totalorder %s79, 0
    %p316 = por %p314, %p315
    %s318 = sadd.s32 %s317, 1
    %p321 = scmp.eq.s32.totalorder %s73, 1
    %p322 = scmp.ne.s32.totalorder %s317, %s319
    %p323 = scmp.eq.s32.totalorder %s73, 0
    %p324 = por %p322, %p323
    %p325 = scmp.ne.s32.totalorder %s317, %s319
    %p326 = scmp.eq.s32.totalorder %s78, 1
    %p327 = por %p325, %p326
    %p328 = scmp.ne.s32.totalorder %s319, %s320
    %p329 = scmp.eq.s32.totalorder %s78, 0
    %p330 = por %p328, %p329
    %p331 = scmp.ne.s32.totalorder %s319, %s320
    %p332 = scmp.eq.s32.totalorder %s79, 1
    %p333 = por %p331, %p332
    %p335 = scmp.ne.s32.totalorder %s320, %s334
    %p336 = scmp.eq.s32.totalorder %s79, 0
    %p337 = por %p335, %p336
    %s339 = sadd.s32 %s338, 1
    %p342 = scmp.eq.s32.totalorder %s73, 1
    %p343 = scmp.ne.s32.totalorder %s338, %s340
    %p344 = scmp.eq.s32.totalorder %s73, 0
    %p345 = por %p343, %p344
    %p346 = scmp.ne.s32.totalorder %s338, %s340
    %p347 = scmp.eq.s32.totalorder %s78, 1
    %p348 = por %p346, %p347
    %p349 = scmp.ne.s32.totalorder %s340, %s341
    %p350 = scmp.eq.s32.totalorder %s78, 0
    %p351 = por %p349, %p350
    %p352 = scmp.ne.s32.totalorder %s340, %s341
    %p353 = scmp.eq.s32.totalorder %s79, 1
    %p354 = por %p352, %p353
    %p356 = scmp.ne.s32.totalorder %s341, %s355
    %p357 = scmp.eq.s32.totalorder %s79, 0
    %p358 = por %p356, %p357
    %s360 = sadd.s32 %s359, 1
    %p363 = scmp.eq.s32.totalorder %s73, 1
    %p364 = scmp.ne.s32.totalorder %s359, %s361
    %p365 = scmp.eq.s32.totalorder %s73, 0
    %p366 = por %p364, %p365
    %p367 = scmp.ne.s32.totalorder %s359, %s361
    %p368 = scmp.eq.s32.totalorder %s78, 1
    %p369 = por %p367, %p368
    %p370 = scmp.ne.s32.totalorder %s361, %s362
    %p371 = scmp.eq.s32.totalorder %s78, 0
    %p372 = por %p370, %p371
    %p373 = scmp.ne.s32.totalorder %s361, %s362
    %p374 = scmp.eq.s32.totalorder %s79, 1
    %p375 = por %p373, %p374
    %p377 = scmp.ne.s32.totalorder %s362, %s376
    %p378 = scmp.eq.s32.totalorder %s79, 0
    %p379 = por %p377, %p378
    %s381 = sadd.s32 %s380, 1
    %p384 = scmp.eq.s32.totalorder %s73, 1
    %p385 = scmp.ne.s32.totalorder %s380, %s382
    %p386 = scmp.eq.s32.totalorder %s73, 0
    %p387 = por %p385, %p386
    %p388 = scmp.ne.s32.totalorder %s380, %s382
    %p389 = scmp.eq.s32.totalorder %s78, 1
    %p390 = por %p388, %p389
    %p391 = scmp.ne.s32.totalorder %s382, %s383
    %p392 = scmp.eq.s32.totalorder %s78, 0
    %p393 = por %p391, %p392
    %p394 = scmp.ne.s32.totalorder %s382, %s383
    %p395 = scmp.eq.s32.totalorder %s79, 1
    %p396 = por %p394, %p395
    %p398 = scmp.ne.s32.totalorder %s383, %s397
    %p399 = scmp.eq.s32.totalorder %s79, 0
    %p400 = por %p398, %p399
    %s402 = sadd.s32 %s401, 1
    %p405 = scmp.eq.s32.totalorder %s73, 1
    %p406 = scmp.ne.s32.totalorder %s401, %s403
    %p407 = scmp.eq.s32.totalorder %s73, 0
    %p408 = por %p406, %p407
    %p409 = scmp.ne.s32.totalorder %s401, %s403
    %p410 = scmp.eq.s32.totalorder %s78, 1
    %p411 = por %p409, %p410
    %p412 = scmp.ne.s32.totalorder %s403, %s404
    %p413 = scmp.eq.s32.totalorder %s78, 0
    %p414 = por %p412, %p413
    %p415 = scmp.ne.s32.totalorder %s403, %s404
    %p416 = scmp.eq.s32.totalorder %s79, 1
    %p417 = por %p415, %p416
    %p419 = scmp.ne.s32.totalorder %s404, %s418
    %p420 = scmp.eq.s32.totalorder %s79, 0
    %p421 = por %p419, %p420
    %s423 = sadd.s32 %s422, 1
    %p426 = scmp.eq.s32.totalorder %s73, 1
    %p427 = scmp.ne.s32.totalorder %s422, %s424
    %p428 = scmp.eq.s32.totalorder %s73, 0
    %p429 = por %p427, %p428
    %p430 = scmp.ne.s32.totalorder %s422, %s424
    %p431 = scmp.eq.s32.totalorder %s78, 1
    %p432 = por %p430, %p431
    %p433 = scmp.ne.s32.totalorder %s424, %s425
    %p434 = scmp.eq.s32.totalorder %s78, 0
    %p435 = por %p433, %p434
    %p436 = scmp.ne.s32.totalorder %s424, %s425
    %p437 = scmp.eq.s32.totalorder %s79, 1
    %p438 = por %p436, %p437
    %p440 = scmp.ne.s32.totalorder %s425, %s439
    %p441 = scmp.eq.s32.totalorder %s79, 0
    %p442 = por %p440, %p441
    %s444 = sadd.s32 %s443, 1
    %p447 = scmp.eq.s32.totalorder %s73, 1
    %p448 = scmp.ne.s32.totalorder %s443, %s445
    %p449 = scmp.eq.s32.totalorder %s73, 0
    %p450 = por %p448, %p449
    %p451 = scmp.ne.s32.totalorder %s443, %s445
    %p452 = scmp.eq.s32.totalorder %s78, 1
    %p453 = por %p451, %p452
    %p454 = scmp.ne.s32.totalorder %s445, %s446
    %p455 = scmp.eq.s32.totalorder %s78, 0
    %p456 = por %p454, %p455
    %p457 = scmp.ne.s32.totalorder %s445, %s446
    %p458 = scmp.eq.s32.totalorder %s79, 1
    %p459 = por %p457, %p458
    %p461 = scmp.ne.s32.totalorder %s446, %s460
    %p462 = scmp.eq.s32.totalorder %s79, 0
    %p463 = por %p461, %p462
    %s465 = sadd.s32 %s464, 1
    %p468 = scmp.eq.s32.totalorder %s73, 1
    %p469 = scmp.ne.s32.totalorder %s464, %s466
    %p470 = scmp.eq.s32.totalorder %s73, 0
    %p471 = por %p469, %p470
    %p472 = scmp.ne.s32.totalorder %s464, %s466
    %p473 = scmp.eq.s32.totalorder %s78, 1
    %p474 = por %p472, %p473
    %p475 = scmp.ne.s32.totalorder %s466, %s467
    %p476 = scmp.eq.s32.totalorder %s78, 0
    %p477 = por %p475, %p476
    %p478 = scmp.ne.s32.totalorder %s466, %s467
    %p479 = scmp.eq.s32.totalorder %s79, 1
    %p480 = por %p478, %p479
    %p482 = scmp.ne.s32.totalorder %s467, %s481
    %p483 = scmp.eq.s32.totalorder %s79, 0
    %p484 = por %p482, %p483
    %s486 = sadd.s32 %s485, 1
    %p489 = scmp.eq.s32.totalorder %s73, 1
    %p490 = scmp.ne.s32.totalorder %s485, %s487
    %p491 = scmp.eq.s32.totalorder %s73, 0
    %p492 = por %p490, %p491
    %p493 = scmp.ne.s32.totalorder %s485, %s487
    %p494 = scmp.eq.s32.totalorder %s78, 1
    %p495 = por %p493, %p494
    %p496 = scmp.ne.s32.totalorder %s487, %s488
    %p497 = scmp.eq.s32.totalorder %s78, 0
    %p498 = por %p496, %p497
    %p499 = scmp.ne.s32.totalorder %s487, %s488
    %p500 = scmp.eq.s32.totalorder %s79, 1
    %p501 = por %p499, %p500
    %p503 = scmp.ne.s32.totalorder %s488, %s502
    %p504 = scmp.eq.s32.totalorder %s79, 0
    %p505 = por %p503, %p504
    %s507 = sadd.s32 %s506, 1
    %p510 = scmp.eq.s32.totalorder %s73, 1
    %p511 = scmp.ne.s32.totalorder %s506, %s508
    %p512 = scmp.eq.s32.totalorder %s73, 0
    %p513 = por %p511, %p512
    %p514 = scmp.ne.s32.totalorder %s506, %s508
    %p515 = scmp.eq.s32.totalorder %s78, 1
    %p516 = por %p514, %p515
    %p517 = scmp.ne.s32.totalorder %s508, %s509
    %p518 = scmp.eq.s32.totalorder %s78, 0
    %p519 = por %p517, %p518
    %p520 = scmp.ne.s32.totalorder %s508, %s509
    %p521 = scmp.eq.s32.totalorder %s79, 1
    %p522 = por %p520, %p521
    %p524 = scmp.ne.s32.totalorder %s509, %s523
    %p525 = scmp.eq.s32.totalorder %s79, 0
    %p526 = por %p524, %p525
    %s528 = sadd.s32 %s527, 1
    %p531 = scmp.eq.s32.totalorder %s73, 1
    %p532 = scmp.ne.s32.totalorder %s527, %s529
    %p533 = scmp.eq.s32.totalorder %s73, 0
    %p534 = por %p532, %p533
    %p535 = scmp.ne.s32.totalorder %s527, %s529
    %p536 = scmp.eq.s32.totalorder %s78, 1
    %p537 = por %p535, %p536
    %p538 = scmp.ne.s32.totalorder %s529, %s530
    %p539 = scmp.eq.s32.totalorder %s78, 0
    %p540 = por %p538, %p539
    %p541 = scmp.ne.s32.totalorder %s529, %s530
    %p542 = scmp.eq.s32.totalorder %s79, 1
    %p543 = por %p541, %p542
    %p545 = scmp.ne.s32.totalorder %s530, %s544
    %p546 = scmp.eq.s32.totalorder %s79, 0
    %p547 = por %p545, %p546
    %s549 = sadd.s32 %s548, 1
    %p552 = scmp.eq.s32.totalorder %s73, 1
    %p553 = scmp.ne.s32.totalorder %s548, %s550
    %p554 = scmp.eq.s32.totalorder %s73, 0
    %p555 = por %p553, %p554
    %p556 = scmp.ne.s32.totalorder %s548, %s550
    %p557 = scmp.eq.s32.totalorder %s78, 1
    %p558 = por %p556, %p557
    %p559 = scmp.ne.s32.totalorder %s550, %s551
    %p560 = scmp.eq.s32.totalorder %s78, 0
    %p561 = por %p559, %p560
    %p562 = scmp.ne.s32.totalorder %s550, %s551
    %p563 = scmp.eq.s32.totalorder %s79, 1
    %p564 = por %p562, %p563
    %p566 = scmp.ne.s32.totalorder %s551, %s565
    %p567 = scmp.eq.s32.totalorder %s79, 0
    %p568 = por %p566, %p567
    %s570 = sadd.s32 %s569, 1
    %p573 = scmp.eq.s32.totalorder %s73, 1
    %p574 = scmp.ne.s32.totalorder %s569, %s571
    %p575 = scmp.eq.s32.totalorder %s73, 0
    %p576 = por %p574, %p575
    %p577 = scmp.ne.s32.totalorder %s569, %s571
    %p578 = scmp.eq.s32.totalorder %s78, 1
    %p579 = por %p577, %p578
    %p580 = scmp.ne.s32.totalorder %s571, %s572
    %p581 = scmp.eq.s32.totalorder %s78, 0
    %p582 = por %p580, %p581
    %p583 = scmp.ne.s32.totalorder %s571, %s572
    %p584 = scmp.eq.s32.totalorder %s79, 1
    %p585 = por %p583, %p584
    %p587 = scmp.ne.s32.totalorder %s572, %s586
    %p588 = scmp.eq.s32.totalorder %s79, 0
    %p589 = por %p587, %p588
    %s591 = sadd.s32 %s590, 1
    %p594 = scmp.eq.s32.totalorder %s73, 1
    %p595 = scmp.ne.s32.totalorder %s590, %s592
    %p596 = scmp.eq.s32.totalorder %s73, 0
    %p597 = por %p595, %p596
    %p598 = scmp.ne.s32.totalorder %s590, %s592
    %p599 = scmp.eq.s32.totalorder %s78, 1
    %p600 = por %p598, %p599
    %p601 = scmp.ne.s32.totalorder %s592, %s593
    %p602 = scmp.eq.s32.totalorder %s78, 0
    %p603 = por %p601, %p602
    %p604 = scmp.ne.s32.totalorder %s592, %s593
    %p605 = scmp.eq.s32.totalorder %s79, 1
    %p606 = por %p604, %p605
    %p608 = scmp.ne.s32.totalorder %s593, %s607
    %p609 = scmp.eq.s32.totalorder %s79, 0
    %p610 = por %p608, %p609
    %s612 = sadd.s32 %s611, 1
    %p615 = scmp.eq.s32.totalorder %s73, 1
    %p616 = scmp.ne.s32.totalorder %s611, %s613
    %p617 = scmp.eq.s32.totalorder %s73, 0
    %p618 = por %p616, %p617
    %p619 = scmp.ne.s32.totalorder %s611, %s613
    %p620 = scmp.eq.s32.totalorder %s78, 1
    %p621 = por %p619, %p620
    %p622 = scmp.ne.s32.totalorder %s613, %s614
    %p623 = scmp.eq.s32.totalorder %s78, 0
    %p624 = por %p622, %p623
    %p625 = scmp.ne.s32.totalorder %s613, %s614
    %p626 = scmp.eq.s32.totalorder %s79, 1
    %p627 = por %p625, %p626
    %p629 = scmp.ne.s32.totalorder %s614, %s628
    %p630 = scmp.eq.s32.totalorder %s79, 0
    %p631 = por %p629, %p630
    %s633 = sadd.s32 %s632, 1
    %p636 = scmp.eq.s32.totalorder %s73, 1
    %p637 = scmp.ne.s32.totalorder %s632, %s634
    %p638 = scmp.eq.s32.totalorder %s73, 0
    %p639 = por %p637, %p638
    %p640 = scmp.ne.s32.totalorder %s632, %s634
    %p641 = scmp.eq.s32.totalorder %s78, 1
    %p642 = por %p640, %p641
    %p643 = scmp.ne.s32.totalorder %s634, %s635
    %p644 = scmp.eq.s32.totalorder %s78, 0
    %p645 = por %p643, %p644
    %p646 = scmp.ne.s32.totalorder %s634, %s635
    %p647 = scmp.eq.s32.totalorder %s79, 1
    %p648 = por %p646, %p647
    %p650 = scmp.ne.s32.totalorder %s635, %s649
    %p651 = scmp.eq.s32.totalorder %s79, 0
    %p652 = por %p650, %p651
    %s654 = sadd.s32 %s653, 1
    %p657 = scmp.eq.s32.totalorder %s73, 1
    %p658 = scmp.ne.s32.totalorder %s653, %s655
    %p659 = scmp.eq.s32.totalorder %s73, 0
    %p660 = por %p658, %p659
    %p661 = scmp.ne.s32.totalorder %s653, %s655
    %p662 = scmp.eq.s32.totalorder %s78, 1
    %p663 = por %p661, %p662
    %p664 = scmp.ne.s32.totalorder %s655, %s656
    %p665 = scmp.eq.s32.totalorder %s78, 0
    %p666 = por %p664, %p665
    %p667 = scmp.ne.s32.totalorder %s655, %s656
    %p668 = scmp.eq.s32.totalorder %s79, 1
    %p669 = por %p667, %p668
    %p671 = scmp.ne.s32.totalorder %s656, %s670
    %p672 = scmp.eq.s32.totalorder %s79, 0
    %p673 = por %p671, %p672
    %s675 = sadd.s32 %s674, 1
    %p678 = scmp.eq.s32.totalorder %s73, 1
    %p679 = scmp.ne.s32.totalorder %s674, %s676
    %p680 = scmp.eq.s32.totalorder %s73, 0
    %p681 = por %p679, %p680
    %p682 = scmp.ne.s32.totalorder %s674, %s676
    %p683 = scmp.eq.s32.totalorder %s78, 1
    %p684 = por %p682, %p683
    %p685 = scmp.ne.s32.totalorder %s676, %s677
    %p686 = scmp.eq.s32.totalorder %s78, 0
    %p687 = por %p685, %p686
    %p688 = scmp.ne.s32.totalorder %s676, %s677
    %p689 = scmp.eq.s32.totalorder %s79, 1
    %p690 = por %p688, %p689
    %p692 = scmp.ne.s32.totalorder %s677, %s691
    %p693 = scmp.eq.s32.totalorder %s79, 0
    %p694 = por %p692, %p693
    %s696 = sadd.s32 %s695, 1
    %p699 = scmp.eq.s32.totalorder %s73, 1
    %p700 = scmp.ne.s32.totalorder %s695, %s697
    %p701 = scmp.eq.s32.totalorder %s73, 0
    %p702 = por %p700, %p701
    %p703 = scmp.ne.s32.totalorder %s695, %s697
    %p704 = scmp.eq.s32.totalorder %s78, 1
    %p705 = por %p703, %p704
    %p706 = scmp.ne.s32.totalorder %s697, %s698
    %p707 = scmp.eq.s32.totalorder %s78, 0
    %p708 = por %p706, %p707
    %p709 = scmp.ne.s32.totalorder %s697, %s698
    %p710 = scmp.eq.s32.totalorder %s79, 1
    %p711 = por %p709, %p710
    %p713 = scmp.ne.s32.totalorder %s698, %s712
    %p714 = scmp.eq.s32.totalorder %s79, 0
    %p715 = por %p713, %p714
    %s717 = sadd.s32 %s716, 1
    %p720 = scmp.eq.s32.totalorder %s73, 1
    %p721 = scmp.ne.s32.totalorder %s716, %s718
    %p722 = scmp.eq.s32.totalorder %s73, 0
    %p723 = por %p721, %p722
    %p724 = scmp.ne.s32.totalorder %s716, %s718
    %p725 = scmp.eq.s32.totalorder %s78, 1
    %p726 = por %p724, %p725
    %p727 = scmp.ne.s32.totalorder %s718, %s719
    %p728 = scmp.eq.s32.totalorder %s78, 0
    %p729 = por %p727, %p728
    %p730 = scmp.ne.s32.totalorder %s718, %s719
    %p731 = scmp.eq.s32.totalorder %s79, 1
    %p732 = por %p730, %p731
    %p734 = scmp.ne.s32.totalorder %s719, %s733
    %p735 = scmp.eq.s32.totalorder %s79, 0
    %p736 = por %p734, %p735
    %s738 = sadd.s32 %s737, 1
    %p741 = scmp.eq.s32.totalorder %s73, 1
    %p742 = scmp.ne.s32.totalorder %s737, %s739
    %p743 = scmp.eq.s32.totalorder %s73, 0
    %p744 = por %p742, %p743
    %p745 = scmp.ne.s32.totalorder %s737, %s739
    %p746 = scmp.eq.s32.totalorder %s78, 1
    %p747 = por %p745, %p746
    %p748 = scmp.ne.s32.totalorder %s739, %s740
    %p749 = scmp.eq.s32.totalorder %s78, 0
    %p750 = por %p748, %p749
    %p751 = scmp.ne.s32.totalorder %s739, %s740
    %p752 = scmp.eq.s32.totalorder %s79, 1
    %p753 = por %p751, %p752
    %p755 = scmp.ne.s32.totalorder %s740, %s754
    %p756 = scmp.eq.s32.totalorder %s79, 0
    %p757 = por %p755, %p756
    %s758 = ssub.s32 %s73, %s80
    %p759 = scmp.eq.s32.totalorder %s758, 0
    %s761 = sadd.s32 %s760, 1
    %s762 = scalar_select %p759, %s760, %s761
    %p765 = pneg %p759
    %p766 = scmp.eq.s32.totalorder %s73, 1
    %p767 = por %p765, %p766
    %p768 = scmp.ne.s32.totalorder %s760, %s763
    %p769 = scmp.eq.s32.totalorder %s73, 0
    %p770 = por %p768, %p769
    %p771 = scmp.ne.s32.totalorder %s760, %s763
    %p772 = scmp.eq.s32.totalorder %s78, 1
    %p773 = por %p771, %p772
    %p774 = scmp.ne.s32.totalorder %s763, %s764
    %p775 = scmp.eq.s32.totalorder %s78, 0
    %p776 = por %p774, %p775
    %p777 = scmp.ne.s32.totalorder %s763, %s764
    %p778 = scmp.eq.s32.totalorder %s79, 1
    %p779 = por %p777, %p778
    %p781 = scmp.ne.s32.totalorder %s764, %s780
    %p782 = scmp.eq.s32.totalorder %s79, 0
    %p783 = por %p781, %p782
    %p784 = scmp.le.s32.totalorder 1, %s73
    %p785 = scmp.lt.s32.totalorder %s73, 3
    %p786 = pnand %p784, %p785
    %p787 = pneg %p786
    // Predicated region
    $region9: #{blueprint_shortcut_block.1} parent=5 // pred_check
      _
    $region10: #{blueprint_shortcut_block.1} parent=5 // pred_check_branch
      %789 = sbr.rel (%p786) target = $region12
    $region11: #{blueprint_shortcut_block.1} parent=5 // pred_region
      %s790 = ssub.s32 %s73, 1
      // Predicated region
      $region13: #{blueprint_shortcut_block.1} parent=11 // pred_check
        %p791 = pneg %p120
      $region14: #{blueprint_shortcut_block.1} parent=11 // pred_check_branch
        %793 = sbr.rel (%p791) target = $region16
      $region15: #{blueprint_shortcut_block.1} parent=11 // pred_region
        _
      $region16: #{blueprint_shortcut_block.1} parent=11 // pred_fallthru
        _
      // Predicated region
      $region17: #{blueprint_shortcut_block.1} parent=11 // pred_check
        %p794 = pneg %p141
      $region18: #{blueprint_shortcut_block.1} parent=11 // pred_check_branch
        %796 = sbr.rel (%p794) target = $region20
      $region19: #{blueprint_shortcut_block.1} parent=11 // pred_region
        _
      $region20: #{blueprint_shortcut_block.1} parent=11 // pred_fallthru
        _
      // Predicated region
      $region21: #{blueprint_shortcut_block.1} parent=11 // pred_check
        %p797 = pneg %p162
      $region22: #{blueprint_shortcut_block.1} parent=11 // pred_check_branch
        %799 = sbr.rel (%p797) target = $region24
      $region23: #{blueprint_shortcut_block.1} parent=11 // pred_region
        _
      $region24: #{blueprint_shortcut_block.1} parent=11 // pred_fallthru
        _
      // Predicated region
      $region25: #{blueprint_shortcut_block.1} parent=11 // pred_check
        %p800 = pneg %p183
      $region26: #{blueprint_shortcut_block.1} parent=11 // pred_check_branch
        %802 = sbr.rel (%p800) target = $region28
      $region27: #{blueprint_shortcut_block.1} parent=11 // pred_region
        _
      $region28: #{blueprint_shortcut_block.1} parent=11 // pred_fallthru
        _
      // Predicated region
      $region29: #{blueprint_shortcut_block.1} parent=11 // pred_check
        %p803 = pneg %p204
      $region30: #{blueprint_shortcut_block.1} parent=11 // pred_check_branch
        %805 = sbr.rel (%p803) target = $region32
      $region31: #{blueprint_shortcut_block.1} parent=11 // pred_region
        _
      $region32: #{blueprint_shortcut_block.1} parent=11 // pred_fallthru
        _
      // Predicated region
      $region33: #{blueprint_shortcut_block.1} parent=11 // pred_check
        %p806 = pneg %p225
      $region34: #{blueprint_shortcut_block.1} parent=11 // pred_check_branch
        %808 = sbr.rel (%p806) target = $region36
      $region35: #{blueprint_shortcut_block.1} parent=11 // pred_region
        _
      $region36: #{blueprint_shortcut_block.1} parent=11 // pred_fallthru
        _
      // Predicated region
      $region37: #{blueprint_shortcut_block.1} parent=11 // pred_check
        %p809 = pneg %p246
      $region38: #{blueprint_shortcut_block.1} parent=11 // pred_check_branch
        %811 = sbr.rel (%p809) target = $region40
      $region39: #{blueprint_shortcut_block.1} parent=11 // pred_region
        _
      $region40: #{blueprint_shortcut_block.1} parent=11 // pred_fallthru
        _
      // Predicated region
      $region41: #{blueprint_shortcut_block.1} parent=11 // pred_check
        %p812 = pneg %p267
      $region42: #{blueprint_shortcut_block.1} parent=11 // pred_check_branch
        %814 = sbr.rel (%p812) target = $region44
      $region43: #{blueprint_shortcut_block.1} parent=11 // pred_region
        _
      $region44: #{blueprint_shortcut_block.1} parent=11 // pred_fallthru
        _
      // Predicated region
      $region45: #{blueprint_shortcut_block.1} parent=11 // pred_check
        %p815 = pneg %p288
      $region46: #{blueprint_shortcut_block.1} parent=11 // pred_check_branch
        %817 = sbr.rel (%p815) target = $region48
      $region47: #{blueprint_shortcut_block.1} parent=11 // pred_region
        _
      $region48: #{blueprint_shortcut_block.1} parent=11 // pred_fallthru
        _
      // Predicated region
      $region49: #{blueprint_shortcut_block.1} parent=11 // pred_check
        %p818 = pneg %p309
      $region50: #{blueprint_shortcut_block.1} parent=11 // pred_check_branch
        %820 = sbr.rel (%p818) target = $region52
      $region51: #{blueprint_shortcut_block.1} parent=11 // pred_region
        _
      $region52: #{blueprint_shortcut_block.1} parent=11 // pred_fallthru
        _
      // Predicated region
      $region53: #{blueprint_shortcut_block.1} parent=11 // pred_check
        %p821 = pneg %p330
      $region54: #{blueprint_shortcut_block.1} parent=11 // pred_check_branch
        %823 = sbr.rel (%p821) target = $region56
      $region55: #{blueprint_shortcut_block.1} parent=11 // pred_region
        _
      $region56: #{blueprint_shortcut_block.1} parent=11 // pred_fallthru
        _
      // Predicated region
      $region57: #{blueprint_shortcut_block.1} parent=11 // pred_check
        %p824 = pneg %p351
      $region58: #{blueprint_shortcut_block.1} parent=11 // pred_check_branch
        %826 = sbr.rel (%p824) target = $region60
      $region59: #{blueprint_shortcut_block.1} parent=11 // pred_region
        _
      $region60: #{blueprint_shortcut_block.1} parent=11 // pred_fallthru
        _
      // Predicated region
      $region61: #{blueprint_shortcut_block.1} parent=11 // pred_check
        %p827 = pneg %p372
      $region62: #{blueprint_shortcut_block.1} parent=11 // pred_check_branch
        %829 = sbr.rel (%p827) target = $region64
      $region63: #{blueprint_shortcut_block.1} parent=11 // pred_region
        _
      $region64: #{blueprint_shortcut_block.1} parent=11 // pred_fallthru
        _
      // Predicated region
      $region65: #{blueprint_shortcut_block.1} parent=11 // pred_check
        %p830 = pneg %p393
      $region66: #{blueprint_shortcut_block.1} parent=11 // pred_check_branch
        %832 = sbr.rel (%p830) target = $region68
      $region67: #{blueprint_shortcut_block.1} parent=11 // pred_region
        _
      $region68: #{blueprint_shortcut_block.1} parent=11 // pred_fallthru
        _
      // Predicated region
      $region69: #{blueprint_shortcut_block.1} parent=11 // pred_check
        %p833 = pneg %p414
      $region70: #{blueprint_shortcut_block.1} parent=11 // pred_check_branch
        %835 = sbr.rel (%p833) target = $region72
      $region71: #{blueprint_shortcut_block.1} parent=11 // pred_region
        _
      $region72: #{blueprint_shortcut_block.1} parent=11 // pred_fallthru
        _
      // Predicated region
      $region73: #{blueprint_shortcut_block.1} parent=11 // pred_check
        %p836 = pneg %p435
      $region74: #{blueprint_shortcut_block.1} parent=11 // pred_check_branch
        %838 = sbr.rel (%p836) target = $region76
      $region75: #{blueprint_shortcut_block.1} parent=11 // pred_region
        _
      $region76: #{blueprint_shortcut_block.1} parent=11 // pred_fallthru
        _
      // Predicated region
      $region77: #{blueprint_shortcut_block.1} parent=11 // pred_check
        %p839 = pneg %p456
      $region78: #{blueprint_shortcut_block.1} parent=11 // pred_check_branch
        %841 = sbr.rel (%p839) target = $region80
      $region79: #{blueprint_shortcut_block.1} parent=11 // pred_region
        _
      $region80: #{blueprint_shortcut_block.1} parent=11 // pred_fallthru
        _
      // Predicated region
      $region81: #{blueprint_shortcut_block.1} parent=11 // pred_check
        %p842 = pneg %p477
      $region82: #{blueprint_shortcut_block.1} parent=11 // pred_check_branch
        %844 = sbr.rel (%p842) target = $region84
      $region83: #{blueprint_shortcut_block.1} parent=11 // pred_region
        _
      $region84: #{blueprint_shortcut_block.1} parent=11 // pred_fallthru
        _
      // Predicated region
      $region85: #{blueprint_shortcut_block.1} parent=11 // pred_check
        %p845 = pneg %p498
      $region86: #{blueprint_shortcut_block.1} parent=11 // pred_check_branch
        %847 = sbr.rel (%p845) target = $region88
      $region87: #{blueprint_shortcut_block.1} parent=11 // pred_region
        _
      $region88: #{blueprint_shortcut_block.1} parent=11 // pred_fallthru
        _
      // Predicated region
      $region89: #{blueprint_shortcut_block.1} parent=11 // pred_check
        %p848 = pneg %p519
      $region90: #{blueprint_shortcut_block.1} parent=11 // pred_check_branch
        %850 = sbr.rel (%p848) target = $region92
      $region91: #{blueprint_shortcut_block.1} parent=11 // pred_region
        _
      $region92: #{blueprint_shortcut_block.1} parent=11 // pred_fallthru
        _
      // Predicated region
      $region93: #{blueprint_shortcut_block.1} parent=11 // pred_check
        %p851 = pneg %p540
      $region94: #{blueprint_shortcut_block.1} parent=11 // pred_check_branch
        %853 = sbr.rel (%p851) target = $region96
      $region95: #{blueprint_shortcut_block.1} parent=11 // pred_region
        _
      $region96: #{blueprint_shortcut_block.1} parent=11 // pred_fallthru
        _
      // Predicated region
      $region97: #{blueprint_shortcut_block.1} parent=11 // pred_check
        %p854 = pneg %p561
      $region98: #{blueprint_shortcut_block.1} parent=11 // pred_check_branch
        %856 = sbr.rel (%p854) target = $region100
      $region99: #{blueprint_shortcut_block.1} parent=11 // pred_region
        _
      $region100: #{blueprint_shortcut_block.1} parent=11 // pred_fallthru
        _
      // Predicated region
      $region101: #{blueprint_shortcut_block.1} parent=11 // pred_check
        %p857 = pneg %p582
      $region102: #{blueprint_shortcut_block.1} parent=11 // pred_check_branch
        %859 = sbr.rel (%p857) target = $region104
      $region103: #{blueprint_shortcut_block.1} parent=11 // pred_region
        _
      $region104: #{blueprint_shortcut_block.1} parent=11 // pred_fallthru
        _
      // Predicated region
      $region105: #{blueprint_shortcut_block.1} parent=11 // pred_check
        %p860 = pneg %p603
      $region106: #{blueprint_shortcut_block.1} parent=11 // pred_check_branch
        %862 = sbr.rel (%p860) target = $region108
      $region107: #{blueprint_shortcut_block.1} parent=11 // pred_region
        _
      $region108: #{blueprint_shortcut_block.1} parent=11 // pred_fallthru
        _
      // Predicated region
      $region109: #{blueprint_shortcut_block.1} parent=11 // pred_check
        %p863 = pneg %p624
      $region110: #{blueprint_shortcut_block.1} parent=11 // pred_check_branch
        %865 = sbr.rel (%p863) target = $region112
      $region111: #{blueprint_shortcut_block.1} parent=11 // pred_region
        _
      $region112: #{blueprint_shortcut_block.1} parent=11 // pred_fallthru
        _
      // Predicated region
      $region113: #{blueprint_shortcut_block.1} parent=11 // pred_check
        %p866 = pneg %p645
      $region114: #{blueprint_shortcut_block.1} parent=11 // pred_check_branch
        %868 = sbr.rel (%p866) target = $region116
      $region115: #{blueprint_shortcut_block.1} parent=11 // pred_region
        _
      $region116: #{blueprint_shortcut_block.1} parent=11 // pred_fallthru
        _
      // Predicated region
      $region117: #{blueprint_shortcut_block.1} parent=11 // pred_check
        %p869 = pneg %p666
      $region118: #{blueprint_shortcut_block.1} parent=11 // pred_check_branch
        %871 = sbr.rel (%p869) target = $region120
      $region119: #{blueprint_shortcut_block.1} parent=11 // pred_region
        _
      $region120: #{blueprint_shortcut_block.1} parent=11 // pred_fallthru
        _
      // Predicated region
      $region121: #{blueprint_shortcut_block.1} parent=11 // pred_check
        %p872 = pneg %p687
      $region122: #{blueprint_shortcut_block.1} parent=11 // pred_check_branch
        %874 = sbr.rel (%p872) target = $region124
      $region123: #{blueprint_shortcut_block.1} parent=11 // pred_region
        _
      $region124: #{blueprint_shortcut_block.1} parent=11 // pred_fallthru
        _
      // Predicated region
      $region125: #{blueprint_shortcut_block.1} parent=11 // pred_check
        %p875 = pneg %p708
      $region126: #{blueprint_shortcut_block.1} parent=11 // pred_check_branch
        %877 = sbr.rel (%p875) target = $region128
      $region127: #{blueprint_shortcut_block.1} parent=11 // pred_region
        _
      $region128: #{blueprint_shortcut_block.1} parent=11 // pred_fallthru
        _
      // Predicated region
      $region129: #{blueprint_shortcut_block.1} parent=11 // pred_check
        %p878 = pneg %p729
      $region130: #{blueprint_shortcut_block.1} parent=11 // pred_check_branch
        %880 = sbr.rel (%p878) target = $region132
      $region131: #{blueprint_shortcut_block.1} parent=11 // pred_region
        _
      $region132: #{blueprint_shortcut_block.1} parent=11 // pred_fallthru
        _
      // Predicated region
      $region133: #{blueprint_shortcut_block.1} parent=11 // pred_check
        %p881 = pneg %p750
      $region134: #{blueprint_shortcut_block.1} parent=11 // pred_check_branch
        %883 = sbr.rel (%p881) target = $region136
      $region135: #{blueprint_shortcut_block.1} parent=11 // pred_region
        _
      $region136: #{blueprint_shortcut_block.1} parent=11 // pred_fallthru
        _
    $region12: #{blueprint_shortcut_block.1} parent=5 // pred_fallthru
      _
    %p884 = scmp.lt.s32.totalorder %s73, 2
    // Predicated region
    $region137: #{blueprint_shortcut_block.1} parent=5 // pred_check
      %p885 = pneg %p884
    $region138: #{blueprint_shortcut_block.1} parent=5 // pred_check_branch
      %887 = sbr.rel (%p885) target = $region140
    $region139: #{blueprint_shortcut_block.1} parent=5 // pred_region
      // Predicated region
      $region141: #{blueprint_shortcut_block.1} parent=139 // pred_check
        %p888 = pneg %p93
      $region142: #{blueprint_shortcut_block.1} parent=139 // pred_check_branch
        %890 = sbr.rel (%p888) target = $region144
      $region143: #{blueprint_shortcut_block.1} parent=139 // pred_region
        %p891 = scmp.lt.s32.totalorder %s73, 1
        %s892 = scalar_select %p891, %s73, 1
        %s893 = smul.addr %s892, 25
        %s894 = smul.addr %s893, 4
        %s895 = scalar_lea.vmem %s1, %s894
      $region144: #{blueprint_shortcut_block.1} parent=139 // pred_fallthru
        _
    $region140: #{blueprint_shortcut_block.1} parent=5 // pred_fallthru
      _
    %p896 = scmp.le.s32.totalorder 1, %s73
    %p897 = scmp.lt.s32.totalorder %s73, 3
    %p898 = pnand %p896, %p897
    %p899 = pneg %p898
    // Predicated region
    $region145: #{blueprint_shortcut_block.1} parent=5 // pred_check
      _
    $region146: #{blueprint_shortcut_block.1} parent=5 // pred_check_branch
      %901 = sbr.rel (%p898) target = $region148
    $region147: #{blueprint_shortcut_block.1} parent=5 // pred_region
      %s902 = ssub.s32 %s73, 1
      %p903 = scmp.lt.s32.totalorder %s78, 1
      %s904 = scalar_select %p903, %s78, 1
      %s905 = smul.addr %s904, 25
      %s906 = smul.addr %s905, 4
      %s907 = scalar_lea.vmem %s1, %s906
      %p908 = pneg %p99
      %p909 = pneg %p96
      %p910 = pneg %p120
      %p911 = pneg %p117
      %p912 = pneg %p141
      %p913 = pneg %p138
      %p914 = pneg %p162
      %p915 = pneg %p159
      %p916 = pneg %p183
      %p917 = pneg %p180
      %p918 = pneg %p204
      %p919 = pneg %p201
      %p920 = pneg %p225
      %p921 = pneg %p222
      %p922 = pneg %p246
      %p923 = pneg %p243
      %p924 = pneg %p267
      %p925 = pneg %p264
      %p926 = pneg %p288
      %p927 = pneg %p285
      %p928 = pneg %p309
      %p929 = pneg %p306
      %p930 = pneg %p330
      %p931 = pneg %p327
      %p932 = pneg %p351
      %p933 = pneg %p348
      %p934 = pneg %p372
      %p935 = pneg %p369
      %p936 = pneg %p393
      %p937 = pneg %p390
      %p938 = pneg %p414
      %p939 = pneg %p411
      %p940 = pneg %p435
      %p941 = pneg %p432
      %p942 = pneg %p456
      %p943 = pneg %p453
      %p944 = pneg %p477
      %p945 = pneg %p474
      %p946 = pneg %p498
      %p947 = pneg %p495
      %p948 = pneg %p519
      %p949 = pneg %p516
      %p950 = pneg %p540
      %p951 = pneg %p537
      %p952 = pneg %p561
      %p953 = pneg %p558
      %p954 = pneg %p582
      %p955 = pneg %p579
      %p956 = pneg %p603
      %p957 = pneg %p600
      %p958 = pneg %p624
      %p959 = pneg %p621
      %p960 = pneg %p645
      %p961 = pneg %p642
      %p962 = pneg %p666
      %p963 = pneg %p663
      %p964 = pneg %p687
      %p965 = pneg %p684
      %p966 = pneg %p708
      %p967 = pneg %p705
      %p968 = pneg %p729
      %p969 = pneg %p726
      %p970 = pneg %p750
      %p971 = pneg %p747
      %p972 = pneg %p776
      %p973 = pneg %p773
      %p974 = scmp.lt.s32.totalorder %s78, 1
      %s975 = scalar_select %p974, %s78, 1
      %s976 = smul.addr %s975, 10
      %s977 = smul.addr %s976, 8
      %s978 = scalar_lea.vmem %s65, %s977
      %p979 = scmp.lt.s32.totalorder %s78, 1
      %s980 = scalar_select %p979, %s78, 1
      %s981 = smul.addr %s980, 25
      %s982 = smul.addr %s981, 4
      %s983 = scalar_lea.vmem %s1, %s982
      %p984 = scmp.lt.s32.totalorder %s78, 1
      %s985 = scalar_select %p984, %s78, 1
      %s986 = smul.addr %s985, 10
      %s987 = smul.addr %s986, 8
      %s988 = scalar_lea.vmem %s65, %s987
      %v990 = vld [vmem:[%s3] sm:$0x1f]
      %v991 = vld [vmem:[%s5] sm:$0xf]
      %v992 = vld [vmem:[%s5 + $0x4] sm:$0xf]
      %v993 = vld [vmem:[%s983] sm:$0xff]
      %v994 = vld [vmem:[%s983 + $0x8] sm:$0xff]
      %v995 = vld [vmem:[%s983 + $0x10] sm:$0xf]
      %v996 = vld [vmem:[%s983 + $0x14] sm:$0xff]
      %v997 = vld [vmem:[%s983 + $0x1c] sm:$0xff]
      %v998 = vld [vmem:[%s983 + $0x24] sm:$0xf]
      %v999 = vld [vmem:[%s983 + $0x28] sm:$0xff]
      %v1000 = vld [vmem:[%s983 + $0x30] sm:$0xff]
      %v1001 = vld [vmem:[%s983 + $0x38] sm:$0xf]
      %v1002 = vld [vmem:[%s983 + $0x3c] sm:$0xff]
      %v1003 = vld [vmem:[%s983 + $0x44] sm:$0xff]
      %v1004 = vld [vmem:[%s983 + $0x4c] sm:$0xf]
      %v1005 = vld [vmem:[%s983 + $0x50] sm:$0x33]
      %v1006 = vld [vmem:[%s983 + $0x58] sm:$0x33]
      %v1007 = vld [vmem:[%s983 + $0x60] sm:$0x3]
      %v1008 = vld [vmem:[%s7] sm:$0xff]
      %v1009 = vld [vmem:[%s7 + $0x8] sm:$0xff]
      %1011 = vset.pattern.permute.xlu0 0
      %1012 = vperm.xlu0 %1011, %v1008
      %v1013 = vpop.permute.xlu0 %1012
      %1016 = vset.pattern.permute.xlu0 0
      %1017 = vperm.xlu0 %1016, %v1009
      %v1018 = vpop.permute.xlu0 %1017
      %v1022 = vunpack.c.l.b16 %v991
      %v1023 = vunpack.c.l.b16 %v992
      %v1024 = vpack.c.b16 %v1023, %v1022
      %v1040 = vunpack.c.l.b16 %v993
      %v1041 = vunpack.c.h.b16 %v993
      %v1042 = vunpack.c.l.b16 %v994
      %v1043 = vunpack.c.h.b16 %v994
      %v1044 = vunpack.c.l.b16 %v995
      %v1045 = vunpack.c.l.b16 %v996
      %v1046 = vunpack.c.h.b16 %v996
      %v1047 = vunpack.c.l.b16 %v997
      %v1048 = vunpack.c.h.b16 %v997
      %v1049 = vunpack.c.l.b16 %v998
      %v1050 = vunpack.c.l.b16 %v999
      %v1051 = vunpack.c.h.b16 %v999
      %v1052 = vunpack.c.l.b16 %v1000
      %v1053 = vunpack.c.h.b16 %v1000
      %v1054 = vunpack.c.l.b16 %v1001
      %v1055 = vunpack.c.l.b16 %v1002
      %v1056 = vunpack.c.h.b16 %v1002
      %v1057 = vunpack.c.l.b16 %v1003
      %v1058 = vunpack.c.h.b16 %v1003
      %v1059 = vunpack.c.l.b16 %v1004
      %v1060 = vunpack.c.l.b16 %v1005
      %v1061 = vunpack.c.h.b16 %v1005
      %v1062 = vunpack.c.l.b16 %v1006
      %v1063 = vunpack.c.h.b16 %v1006
      %v1064 = vunpack.c.l.b16 %v1007
      %v1065 = vpack.c.b16 %v1045, %v1040
      %v1066 = vpack.c.b16 %v1046, %v1041
      %v1067 = vpack.c.b16 %v1047, %v1042
      %v1068 = vpack.c.b16 %v1048, %v1043
      %v1069 = vpack.c.b16 %v1049, %v1044
      %v1070 = vpack.c.b16 %v1055, %v1050
      %v1071 = vpack.c.b16 %v1056, %v1051
      %v1072 = vpack.c.b16 %v1057, %v1052
      %v1073 = vpack.c.b16 %v1058, %v1053
      %v1074 = vpack.c.b16 %v1059, %v1054
      %v1075 = vpack.c.b16 %v1060, %v1060
      %v1076 = vpack.c.b16 %v1061, %v1061
      %v1077 = vpack.c.b16 %v1062, %v1062
      %v1078 = vpack.c.b16 %v1063, %v1063
      %v1079 = vpack.c.b16 %v1064, %v1064
      %vm1090 = vcmask 293888
      %v1092 = vsel %vm1090, %v1024, 0
      %vm1094 = vcmask 1041408
      %v1096 = vsel %vm1094, %v1075, 0
      %v1099 = vsel %vm1094, %v1076, 0
      %v1102 = vsel %vm1094, %v1077, 0
      %v1105 = vsel %vm1094, %v1078, 0
      %v1108 = vsel %vm1094, %v1079, 0
      %1110 = vmatprep.subr.bf16.mxu0 0
      %1111 = vmatpush1.bf16.msra.mxu0 0
      %1112 = vmatprep.subr.bf16.mxu0 0
      %1113 = vmatpush1.bf16.msra.mxu0 0
      %1114 = vmatprep.subr.bf16.mxu0 0
      %1115 = vmatpush1.bf16.msra.mxu0 0
      %1116 = vmatprep.subr.bf16.mxu0 0
      %1117 = vmatpush1.bf16.msra.mxu0 0
      %1118 = vmatprep.subr.bf16.mxu0 0
      %1119 = vmatpush1.bf16.msra.mxu0 0
      %1120 = vmatprep.subr.bf16.mxu0 %v1099
      %1121 = vmatpush1.bf16.msra.mxu0 %v1096
      %1122 = vmatprep.subr.bf16.mxu0 %v1071
      %1123 = vmatpush1.bf16.msra.mxu0 %v1070
      %1124 = vmatprep.subr.bf16.mxu0 %v1066
      %1125 = vmatpush1.bf16.msra.mxu0 %v1065
      %1126 = vmatprep.subr.bf16.mxu0 0
      %1127 = vmatpush2.bf16.msra.mxu0 0
      %1128 = vmatprep.subr.bf16.mxu0 0
      %1129 = vmatpush2.bf16.msra.mxu0 0
      %1130 = vmatprep.subr.bf16.mxu0 0
      %1131 = vmatpush2.bf16.msra.mxu0 0
      %1132 = vmatprep.subr.bf16.mxu0 0
      %1133 = vmatpush2.bf16.msra.mxu0 0
      %1134 = vmatprep.subr.bf16.mxu0 0
      %1135 = vmatpush2.bf16.msra.mxu0 0
      %1136 = vmatprep.subr.bf16.mxu0 0
      %1137 = vmatpush2.bf16.msra.mxu0 0
      %1138 = vmatprep.subr.bf16.mxu0 0
      %1139 = vmatpush2.bf16.msra.mxu0 0
      %1140 = vmatprep.subr.bf16.mxu0 0
      %1141 = vmatpush2.bf16.msra.mxu0 0
      %1142 = vmatprep.mubr.bf16.mxu0 0
      %1143 = vmatmul.mubr.bf16.gmra.mxu0 %v1092
      %v1144 = vpop.f32.mrf.mxu0
      %v1145 = vadd.f32 %v1013, %v1144
      %v1146 = vpop.f32.mrf.mxu0
      %v1147 = vadd.f32 %v1013, %v1146
      %v1148 = vpop.f32.mrf.mxu0
      %v1149 = vadd.f32 %v1018, %v1148
      %v1150 = vpop.f32.mrf.mxu0
      %v1151 = vadd.f32 %v1018, %v1150
      %1152 = vdwg.mxu0
      %1153 = vmatprep.subr.bf16.mxu0 0
      %1154 = vmatpush1.bf16.msra.mxu0 0
      %1155 = vmatprep.subr.bf16.mxu0 0
      %1156 = vmatpush1.bf16.msra.mxu0 0
      %1157 = vmatprep.subr.bf16.mxu0 0
      %1158 = vmatpush1.bf16.msra.mxu0 0
      %1159 = vmatprep.subr.bf16.mxu0 0
      %1160 = vmatpush1.bf16.msra.mxu0 0
      %1161 = vmatprep.subr.bf16.mxu0 0
      %1162 = vmatpush1.bf16.msra.mxu0 0
      %1163 = vmatprep.subr.bf16.mxu0 %v1105
      %1164 = vmatpush1.bf16.msra.mxu0 %v1102
      %1165 = vmatprep.subr.bf16.mxu0 %v1073
      %1166 = vmatpush1.bf16.msra.mxu0 %v1072
      %1167 = vmatprep.subr.bf16.mxu0 %v1068
      %1168 = vmatpush1.bf16.msra.mxu0 %v1067
      %1169 = vmatprep.subr.bf16.mxu0 0
      %1170 = vmatpush2.bf16.msra.mxu0 0
      %1171 = vmatprep.subr.bf16.mxu0 0
      %1172 = vmatpush2.bf16.msra.mxu0 0
      %1173 = vmatprep.subr.bf16.mxu0 0
      %1174 = vmatpush2.bf16.msra.mxu0 0
      %1175 = vmatprep.subr.bf16.mxu0 0
      %1176 = vmatpush2.bf16.msra.mxu0 0
      %1177 = vmatprep.subr.bf16.mxu0 0
      %1178 = vmatpush2.bf16.msra.mxu0 0
      %1179 = vmatprep.subr.bf16.mxu0 0
      %1180 = vmatpush2.bf16.msra.mxu0 0
      %1181 = vmatprep.subr.bf16.mxu0 0
      %1182 = vmatpush2.bf16.msra.mxu0 0
      %1183 = vmatprep.subr.bf16.mxu0 0
      %1184 = vmatpush2.bf16.msra.mxu0 0
      %1185 = vmatprep.mubr.bf16.mxu0 0
      %1186 = vmatmul.mubr.bf16.gmra.mxu0 %v1092
      %v1187 = vpop.f32.mrf.mxu0
      %v1188 = vadd.f32 %v1013, %v1187
      %v1189 = vpop.f32.mrf.mxu0
      %v1190 = vadd.f32 %v1013, %v1189
      %v1191 = vpop.f32.mrf.mxu0
      %v1192 = vadd.f32 %v1018, %v1191
      %v1193 = vpop.f32.mrf.mxu0
      %v1194 = vadd.f32 %v1018, %v1193
      %1195 = vdwg.mxu0
      %1196 = vmatprep.subr.bf16.mxu0 0
      %1197 = vmatpush1.bf16.msra.mxu0 0
      %1198 = vmatprep.subr.bf16.mxu0 0
      %1199 = vmatpush1.bf16.msra.mxu0 0
      %1200 = vmatprep.subr.bf16.mxu0 0
      %1201 = vmatpush1.bf16.msra.mxu0 0
      %1202 = vmatprep.subr.bf16.mxu0 0
      %1203 = vmatpush1.bf16.msra.mxu0 0
      %1204 = vmatprep.subr.bf16.mxu0 0
      %1205 = vmatpush1.bf16.msra.mxu0 0
      %1206 = vmatprep.subr.bf16.mxu0 0
      %1207 = vmatpush1.bf16.msra.mxu0 %v1108
      %1208 = vmatprep.subr.bf16.mxu0 0
      %1209 = vmatpush1.bf16.msra.mxu0 %v1074
      %1210 = vmatprep.subr.bf16.mxu0 0
      %1211 = vmatpush1.bf16.msra.mxu0 %v1069
      %1212 = vmatprep.subr.bf16.mxu0 0
      %1213 = vmatpush2.bf16.msra.mxu0 0
      %1214 = vmatprep.subr.bf16.mxu0 0
      %1215 = vmatpush2.bf16.msra.mxu0 0
      %1216 = vmatprep.subr.bf16.mxu0 0
      %1217 = vmatpush2.bf16.msra.mxu0 0
      %1218 = vmatprep.subr.bf16.mxu0 0
      %1219 = vmatpush2.bf16.msra.mxu0 0
      %1220 = vmatprep.subr.bf16.mxu0 0
      %1221 = vmatpush2.bf16.msra.mxu0 0
      %1222 = vmatprep.subr.bf16.mxu0 0
      %1223 = vmatpush2.bf16.msra.mxu0 0
      %1224 = vmatprep.subr.bf16.mxu0 0
      %1225 = vmatpush2.bf16.msra.mxu0 0
      %1226 = vmatprep.subr.bf16.mxu0 0
      %1227 = vmatpush2.bf16.msra.mxu0 0
      %1228 = vmatprep.mubr.bf16.mxu0 0
      %1229 = vmatmul.mubr.bf16.gmra.mxu0 %v1092
      %v1230 = vpop.f32.mrf.mxu0
      %v1231 = vadd.f32 %v1013, %v1230
      %v1232 = vpop.f32.mrf.mxu0
      %v1233 = vpop.f32.mrf.mxu0
      %v1234 = vadd.f32 %v1018, %v1233
      %v1235 = vpop.f32.mrf.mxu0
      %1236 = vdwg.mxu0
      %1237 = vst [vmem:[#allocation2] sm:$0xff] 0.0
      %1238 = vst [vmem:[#allocation2 + $0x38] sm:$0xff] 0.0
      %vm1239 = vcmask 1048448
      %1240 = vst.msk [vmem:[#allocation2 + $0x28] sm:$0xff] %vm1239, 0.0
      %vm1241 = vcmask 89088
      %1242 = vst.msk [vmem:[#allocation2 + $0x30] sm:$0xff] %vm1241, 0.0
      %1243 = vst.msk [vmem:[#allocation2 + $0x60] sm:$0xff] %vm1239, 0.0
      %1244 = vst.msk [vmem:[#allocation2 + $0x68] sm:$0xff] %vm1241, 0.0
      %v1246 = vlaneseq
      %v1247 = vshrl.u32 %v1246, 7
      %v1248 = vsub.s32 0, %v1247
      %v1249 = vrot.slane %v990, %v1248
      %v1250 = vlaneseq
      %v1251 = vshrl.u32 %v1250, 7
      %v1252 = vsub.s32 1, %v1251
      %v1253 = vrot.slane %v990, %v1252
      %v1254 = vlaneseq
      %v1255 = vshrl.u32 %v1254, 7
      %v1256 = vsub.s32 2, %v1255
      %v1257 = vrot.slane %v990, %v1256
      %v1258 = vlaneseq
      %v1259 = vshrl.u32 %v1258, 7
      %v1260 = vsub.s32 3, %v1259
      %v1261 = vrot.slane %v990, %v1260
      %v1262 = vlaneseq
      %v1263 = vshrl.u32 %v1262, 7
      %v1264 = vsub.s32 4, %v1263
      %v1265 = vrot.slane %v990, %v1264
      %v1271 = vmul.f32 %v1145, %v1249
      %v1272 = vmul.f32 %v1147, %v1253
      %v1273 = vmul.f32 %v1188, %v1257
      %v1274 = vmul.f32 %v1190, %v1261
      %v1275 = vmul.f32 %v1231, %v1265
      %v1276 = vmul.f32 %v1149, %v1249
      %v1277 = vmul.f32 %v1151, %v1253
      %v1278 = vmul.f32 %v1192, %v1257
      %v1279 = vmul.f32 %v1194, %v1261
      %v1280 = vmul.f32 %v1234, %v1265
      %1281 = vst [vmem:[#allocation2 + $0x8] sm:$0xff] %v1271
      %1282 = vst [vmem:[#allocation2 + $0x10] sm:$0xff] %v1272
      %1283 = vst [vmem:[#allocation2 + $0x18] sm:$0xff] %v1273
      %1284 = vst [vmem:[#allocation2 + $0x20] sm:$0xff] %v1274
      %vm1285 = vcmask 916480
      %1286 = vst.msk [vmem:[#allocation2 + $0x28] sm:$0xff] %vm1285, %v1275
      %1287 = vst [vmem:[#allocation2 + $0x40] sm:$0xff] %v1276
      %1288 = vst [vmem:[#allocation2 + $0x48] sm:$0xff] %v1277
      %1289 = vst [vmem:[#allocation2 + $0x50] sm:$0xff] %v1278
      %1290 = vst [vmem:[#allocation2 + $0x58] sm:$0xff] %v1279
      %1291 = vst.msk [vmem:[#allocation2 + $0x60] sm:$0xff] %vm1285, %v1280
      %v1292 = vld [vmem:[#allocation2] sm:$0xff]
      %v1293 = vld [vmem:[#allocation2 + $0x8] sm:$0xff]
      %v1294 = vld [vmem:[#allocation2 + $0x10] sm:$0xff]
      %v1295 = vld [vmem:[#allocation2 + $0x18] sm:$0xff]
      %v1296 = vld [vmem:[#allocation2 + $0x20] sm:$0xff]
      %v1297 = vld [vmem:[#allocation2 + $0x28] sm:$0xff]
      %v1298 = vld [vmem:[#allocation2 + $0x38] sm:$0xff]
      %v1299 = vld [vmem:[#allocation2 + $0x40] sm:$0xff]
      %v1300 = vld [vmem:[#allocation2 + $0x48] sm:$0xff]
      %v1301 = vld [vmem:[#allocation2 + $0x50] sm:$0xff]
      %v1302 = vld [vmem:[#allocation2 + $0x58] sm:$0xff]
      %v1303 = vld [vmem:[#allocation2 + $0x60] sm:$0xff]
      %v1304 = vld [vmem:[%s9] sm:$0xff]
      %v1305 = vld [vmem:[%s9 + $0x8] sm:$0xff]
      %1307 = vset.pattern.permute.xlu0 0
      %1308 = vperm.xlu0 %1307, %v1304
      %v1309 = vpop.permute.xlu0 %1308
      %1312 = vset.pattern.permute.xlu0 0
      %1313 = vperm.xlu0 %1312, %v1305
      %v1314 = vpop.permute.xlu0 %1313
      %v1316 = vmul.f32 %v1292, %v1309
      %v1317 = vmul.f32 %v1293, %v1309
      %v1318 = vmul.f32 %v1294, %v1309
      %v1319 = vmul.f32 %v1295, %v1309
      %v1320 = vmul.f32 %v1296, %v1309
      %v1321 = vmul.f32 %v1297, %v1309
      %v1322 = vmul.f32 %v1298, %v1314
      %v1323 = vmul.f32 %v1299, %v1314
      %v1324 = vmul.f32 %v1300, %v1314
      %v1325 = vmul.f32 %v1301, %v1314
      %v1326 = vmul.f32 %v1302, %v1314
      %v1327 = vmul.f32 %v1303, %v1314
      %1328 = vset.pattern.permute.xlu0 1
      %1329 = vperm.xlu0 %1328, %v1304
      %v1330 = vpop.permute.xlu0 %1329
      %1332 = vset.pattern.permute.xlu0 1
      %1333 = vperm.xlu0 %1332, %v1305
      %v1334 = vpop.permute.xlu0 %1333
      %v1336 = vmul.f32 %v1292, %v1330
      %v1337 = vmul.f32 %v1293, %v1330
      %v1338 = vmul.f32 %v1294, %v1330
      %v1339 = vmul.f32 %v1295, %v1330
      %v1340 = vmul.f32 %v1296, %v1330
      %v1341 = vmul.f32 %v1297, %v1330
      %v1342 = vmul.f32 %v1298, %v1334
      %v1343 = vmul.f32 %v1299, %v1334
      %v1344 = vmul.f32 %v1300, %v1334
      %v1345 = vmul.f32 %v1301, %v1334
      %v1346 = vmul.f32 %v1302, %v1334
      %v1347 = vmul.f32 %v1303, %v1334
      %1360 = vrot.lane.b32.xlu0 %v1336, 127
      %v1361 = vpop.permute.xlu0 %1360
      %1362 = vrot.lane.b32.xlu0 %v1337, 127
      %v1363 = vpop.permute.xlu0 %1362
      %1364 = vrot.lane.b32.xlu0 %v1338, 127
      %v1365 = vpop.permute.xlu0 %1364
      %1366 = vrot.lane.b32.xlu0 %v1339, 127
      %v1367 = vpop.permute.xlu0 %1366
      %1368 = vrot.lane.b32.xlu0 %v1340, 127
      %v1369 = vpop.permute.xlu0 %1368
      %1370 = vrot.lane.b32.xlu0 %v1341, 127
      %v1371 = vpop.permute.xlu0 %1370
      %1372 = vrot.lane.b32.xlu0 %v1342, 127
      %v1373 = vpop.permute.xlu0 %1372
      %1374 = vrot.lane.b32.xlu0 %v1343, 127
      %v1375 = vpop.permute.xlu0 %1374
      %1376 = vrot.lane.b32.xlu0 %v1344, 127
      %v1377 = vpop.permute.xlu0 %1376
      %1378 = vrot.lane.b32.xlu0 %v1345, 127
      %v1379 = vpop.permute.xlu0 %1378
      %1380 = vrot.lane.b32.xlu0 %v1346, 127
      %v1381 = vpop.permute.xlu0 %1380
      %1382 = vrot.lane.b32.xlu0 %v1347, 127
      %v1383 = vpop.permute.xlu0 %1382
      %vm1384 = vcmask 1039360
      %v1385 = vsel %vm1384, %v1361, %v1363
      %v1386 = vsel %vm1384, %v1363, %v1365
      %v1387 = vsel %vm1384, %v1365, %v1367
      %v1388 = vsel %vm1384, %v1367, %v1369
      %v1389 = vsel %vm1384, %v1369, %v1371
      %v1390 = vsel %vm1384, %v1373, %v1375
      %v1391 = vsel %vm1384, %v1375, %v1377
      %v1392 = vsel %vm1384, %v1377, %v1379
      %v1393 = vsel %vm1384, %v1379, %v1381
      %v1394 = vsel %vm1384, %v1381, %v1383
      %v1407 = vadd.f32 %v1316, %v1385
      %v1408 = vadd.f32 %v1317, %v1386
      %v1409 = vadd.f32 %v1318, %v1387
      %v1410 = vadd.f32 %v1319, %v1388
      %v1411 = vadd.f32 %v1320, %v1389
      %v1412 = vadd.f32 %v1321, %v1371
      %v1413 = vadd.f32 %v1322, %v1390
      %v1414 = vadd.f32 %v1323, %v1391
      %v1415 = vadd.f32 %v1324, %v1392
      %v1416 = vadd.f32 %v1325, %v1393
      %v1417 = vadd.f32 %v1326, %v1394
      %v1418 = vadd.f32 %v1327, %v1383
      %1419 = vset.pattern.permute.xlu0 2
      %1420 = vperm.xlu0 %1419, %v1304
      %v1421 = vpop.permute.xlu0 %1420
      %1423 = vset.pattern.permute.xlu0 2
      %1424 = vperm.xlu0 %1423, %v1305
      %v1425 = vpop.permute.xlu0 %1424
      %v1427 = vmul.f32 %v1292, %v1421
      %v1428 = vmul.f32 %v1293, %v1421
      %v1429 = vmul.f32 %v1294, %v1421
      %v1430 = vmul.f32 %v1295, %v1421
      %v1431 = vmul.f32 %v1296, %v1421
      %v1432 = vmul.f32 %v1297, %v1421
      %v1433 = vmul.f32 %v1298, %v1425
      %v1434 = vmul.f32 %v1299, %v1425
      %v1435 = vmul.f32 %v1300, %v1425
      %v1436 = vmul.f32 %v1301, %v1425
      %v1437 = vmul.f32 %v1302, %v1425
      %v1438 = vmul.f32 %v1303, %v1425
      %1451 = vrot.lane.b32.xlu0 %v1427, 126
      %v1452 = vpop.permute.xlu0 %1451
      %1453 = vrot.lane.b32.xlu0 %v1428, 126
      %v1454 = vpop.permute.xlu0 %1453
      %1455 = vrot.lane.b32.xlu0 %v1429, 126
      %v1456 = vpop.permute.xlu0 %1455
      %1457 = vrot.lane.b32.xlu0 %v1430, 126
      %v1458 = vpop.permute.xlu0 %1457
      %1459 = vrot.lane.b32.xlu0 %v1431, 126
      %v1460 = vpop.permute.xlu0 %1459
      %1461 = vrot.lane.b32.xlu0 %v1432, 126
      %v1462 = vpop.permute.xlu0 %1461
      %1463 = vrot.lane.b32.xlu0 %v1433, 126
      %v1464 = vpop.permute.xlu0 %1463
      %1465 = vrot.lane.b32.xlu0 %v1434, 126
      %v1466 = vpop.permute.xlu0 %1465
      %1467 = vrot.lane.b32.xlu0 %v1435, 126
      %v1468 = vpop.permute.xlu0 %1467
      %1469 = vrot.lane.b32.xlu0 %v1436, 126
      %v1470 = vpop.permute.xlu0 %1469
      %1471 = vrot.lane.b32.xlu0 %v1437, 126
      %v1472 = vpop.permute.xlu0 %1471
      %1473 = vrot.lane.b32.xlu0 %v1438, 126
      %v1474 = vpop.permute.xlu0 %1473
      %vm1475 = vcmask 1031168
      %v1476 = vsel %vm1475, %v1452, %v1454
      %v1477 = vsel %vm1475, %v1454, %v1456
      %v1478 = vsel %vm1475, %v1456, %v1458
      %v1479 = vsel %vm1475, %v1458, %v1460
      %v1480 = vsel %vm1475, %v1460, %v1462
      %v1481 = vsel %vm1475, %v1464, %v1466
      %v1482 = vsel %vm1475, %v1466, %v1468
      %v1483 = vsel %vm1475, %v1468, %v1470
      %v1484 = vsel %vm1475, %v1470, %v1472
      %v1485 = vsel %vm1475, %v1472, %v1474
      %v1498 = vadd.f32 %v1407, %v1476
      %v1499 = vadd.f32 %v1408, %v1477
      %v1500 = vadd.f32 %v1409, %v1478
      %v1501 = vadd.f32 %v1410, %v1479
      %v1502 = vadd.f32 %v1411, %v1480
      %v1503 = vadd.f32 %v1412, %v1462
      %v1504 = vadd.f32 %v1413, %v1481
      %v1505 = vadd.f32 %v1414, %v1482
      %v1506 = vadd.f32 %v1415, %v1483
      %v1507 = vadd.f32 %v1416, %v1484
      %v1508 = vadd.f32 %v1417, %v1485
      %v1509 = vadd.f32 %v1418, %v1474
      %1510 = vset.pattern.permute.xlu0 3
      %1511 = vperm.xlu0 %1510, %v1304
      %v1512 = vpop.permute.xlu0 %1511
      %1514 = vset.pattern.permute.xlu0 3
      %1515 = vperm.xlu0 %1514, %v1305
      %v1516 = vpop.permute.xlu0 %1515
      %v1518 = vmul.f32 %v1292, %v1512
      %v1519 = vmul.f32 %v1293, %v1512
      %v1520 = vmul.f32 %v1294, %v1512
      %v1521 = vmul.f32 %v1295, %v1512
      %v1522 = vmul.f32 %v1296, %v1512
      %v1523 = vmul.f32 %v1297, %v1512
      %v1524 = vmul.f32 %v1298, %v1516
      %v1525 = vmul.f32 %v1299, %v1516
      %v1526 = vmul.f32 %v1300, %v1516
      %v1527 = vmul.f32 %v1301, %v1516
      %v1528 = vmul.f32 %v1302, %v1516
      %v1529 = vmul.f32 %v1303, %v1516
      %1542 = vrot.lane.b32.xlu0 %v1518, 102
      %v1543 = vpop.permute.xlu0 %1542
      %1544 = vrot.lane.b32.xlu0 %v1519, 102
      %v1545 = vpop.permute.xlu0 %1544
      %1546 = vrot.lane.b32.xlu0 %v1520, 102
      %v1547 = vpop.permute.xlu0 %1546
      %1548 = vrot.lane.b32.xlu0 %v1521, 102
      %v1549 = vpop.permute.xlu0 %1548
      %1550 = vrot.lane.b32.xlu0 %v1522, 102
      %v1551 = vpop.permute.xlu0 %1550
      %1552 = vrot.lane.b32.xlu0 %v1523, 102
      %v1553 = vpop.permute.xlu0 %1552
      %1554 = vrot.lane.b32.xlu0 %v1524, 102
      %v1555 = vpop.permute.xlu0 %1554
      %1556 = vrot.lane.b32.xlu0 %v1525, 102
      %v1557 = vpop.permute.xlu0 %1556
      %1558 = vrot.lane.b32.xlu0 %v1526, 102
      %v1559 = vpop.permute.xlu0 %1558
      %1560 = vrot.lane.b32.xlu0 %v1527, 102
      %v1561 = vpop.permute.xlu0 %1560
      %1562 = vrot.lane.b32.xlu0 %v1528, 102
      %v1563 = vpop.permute.xlu0 %1562
      %1564 = vrot.lane.b32.xlu0 %v1529, 102
      %v1565 = vpop.permute.xlu0 %1564
      %vm1566 = vcmask 834560
      %v1567 = vsel %vm1566, %v1543, %v1545
      %v1568 = vsel %vm1566, %v1545, %v1547
      %v1569 = vsel %vm1566, %v1547, %v1549
      %v1570 = vsel %vm1566, %v1549, %v1551
      %v1571 = vsel %vm1566, %v1551, %v1553
      %v1572 = vsel %vm1566, %v1555, %v1557
      %v1573 = vsel %vm1566, %v1557, %v1559
      %v1574 = vsel %vm1566, %v1559, %v1561
      %v1575 = vsel %vm1566, %v1561, %v1563
      %v1576 = vsel %vm1566, %v1563, %v1565
      %v1589 = vadd.f32 %v1498, %v1567
      %v1590 = vadd.f32 %v1499, %v1568
      %v1591 = vadd.f32 %v1500, %v1569
      %v1592 = vadd.f32 %v1501, %v1570
      %v1593 = vadd.f32 %v1502, %v1571
      %v1594 = vadd.f32 %v1503, %v1553
      %v1595 = vadd.f32 %v1504, %v1572
      %v1596 = vadd.f32 %v1505, %v1573
      %v1597 = vadd.f32 %v1506, %v1574
      %v1598 = vadd.f32 %v1507, %v1575
      %v1599 = vadd.f32 %v1508, %v1576
      %v1600 = vadd.f32 %v1509, %v1565
      %1601 = vset.pattern.permute.xlu0 4
      %1602 = vperm.xlu0 %1601, %v1304
      %v1603 = vpop.permute.xlu0 %1602
      %1605 = vset.pattern.permute.xlu0 4
      %1606 = vperm.xlu0 %1605, %v1305
      %v1607 = vpop.permute.xlu0 %1606
      %v1609 = vmul.f32 %v1293, %v1603
      %v1610 = vmul.f32 %v1294, %v1603
      %v1611 = vmul.f32 %v1295, %v1603
      %v1612 = vmul.f32 %v1296, %v1603
      %v1613 = vmul.f32 %v1297, %v1603
      %v1614 = vmul.f32 %v1299, %v1607
      %v1615 = vmul.f32 %v1300, %v1607
      %v1616 = vmul.f32 %v1301, %v1607
      %v1617 = vmul.f32 %v1302, %v1607
      %v1618 = vmul.f32 %v1303, %v1607
      %1629 = vrot.lane.b32.xlu0 %v1609, 101
      %v1630 = vpop.permute.xlu0 %1629
      %1631 = vrot.lane.b32.xlu0 %v1610, 101
      %v1632 = vpop.permute.xlu0 %1631
      %1633 = vrot.lane.b32.xlu0 %v1611, 101
      %v1634 = vpop.permute.xlu0 %1633
      %1635 = vrot.lane.b32.xlu0 %v1612, 101
      %v1636 = vpop.permute.xlu0 %1635
      %1637 = vrot.lane.b32.xlu0 %v1613, 101
      %v1638 = vpop.permute.xlu0 %1637
      %1639 = vrot.lane.b32.xlu0 %v1614, 101
      %v1640 = vpop.permute.xlu0 %1639
      %1641 = vrot.lane.b32.xlu0 %v1615, 101
      %v1642 = vpop.permute.xlu0 %1641
      %1643 = vrot.lane.b32.xlu0 %v1616, 101
      %v1644 = vpop.permute.xlu0 %1643
      %1645 = vrot.lane.b32.xlu0 %v1617, 101
      %v1646 = vpop.permute.xlu0 %1645
      %1647 = vrot.lane.b32.xlu0 %v1618, 101
      %v1648 = vpop.permute.xlu0 %1647
      %vm1649 = vcmask 826368
      %v1650 = vsel %vm1649, %v1630, %v1632
      %v1651 = vsel %vm1649, %v1632, %v1634
      %v1652 = vsel %vm1649, %v1634, %v1636
      %v1653 = vsel %vm1649, %v1636, %v1638
      %v1654 = vsel %vm1649, %v1640, %v1642
      %v1655 = vsel %vm1649, %v1642, %v1644
      %v1656 = vsel %vm1649, %v1644, %v1646
      %v1657 = vsel %vm1649, %v1646, %v1648
      %v1670 = vadd.f32 %v1589, %v1630
      %v1671 = vadd.f32 %v1590, %v1650
      %v1672 = vadd.f32 %v1591, %v1651
      %v1673 = vadd.f32 %v1592, %v1652
      %v1674 = vadd.f32 %v1593, %v1653
      %v1675 = vadd.f32 %v1594, %v1638
      %v1676 = vadd.f32 %v1595, %v1640
      %v1677 = vadd.f32 %v1596, %v1654
      %v1678 = vadd.f32 %v1597, %v1655
      %v1679 = vadd.f32 %v1598, %v1656
      %v1680 = vadd.f32 %v1599, %v1657
      %v1681 = vadd.f32 %v1600, %v1648
      %1682 = vset.pattern.permute.xlu0 5
      %1683 = vperm.xlu0 %1682, %v1304
      %v1684 = vpop.permute.xlu0 %1683
      %1686 = vset.pattern.permute.xlu0 5
      %1687 = vperm.xlu0 %1686, %v1305
      %v1688 = vpop.permute.xlu0 %1687
      %v1690 = vmul.f32 %v1293, %v1684
      %v1691 = vmul.f32 %v1294, %v1684
      %v1692 = vmul.f32 %v1295, %v1684
      %v1693 = vmul.f32 %v1296, %v1684
      %v1694 = vmul.f32 %v1297, %v1684
      %v1695 = vmul.f32 %v1299, %v1688
      %v1696 = vmul.f32 %v1300, %v1688
      %v1697 = vmul.f32 %v1301, %v1688
      %v1698 = vmul.f32 %v1302, %v1688
      %v1699 = vmul.f32 %v1303, %v1688
      %1710 = vrot.lane.b32.xlu0 %v1690, 100
      %v1711 = vpop.permute.xlu0 %1710
      %1712 = vrot.lane.b32.xlu0 %v1691, 100
      %v1713 = vpop.permute.xlu0 %1712
      %1714 = vrot.lane.b32.xlu0 %v1692, 100
      %v1715 = vpop.permute.xlu0 %1714
      %1716 = vrot.lane.b32.xlu0 %v1693, 100
      %v1717 = vpop.permute.xlu0 %1716
      %1718 = vrot.lane.b32.xlu0 %v1694, 100
      %v1719 = vpop.permute.xlu0 %1718
      %1720 = vrot.lane.b32.xlu0 %v1695, 100
      %v1721 = vpop.permute.xlu0 %1720
      %1722 = vrot.lane.b32.xlu0 %v1696, 100
      %v1723 = vpop.permute.xlu0 %1722
      %1724 = vrot.lane.b32.xlu0 %v1697, 100
      %v1725 = vpop.permute.xlu0 %1724
      %1726 = vrot.lane.b32.xlu0 %v1698, 100
      %v1727 = vpop.permute.xlu0 %1726
      %1728 = vrot.lane.b32.xlu0 %v1699, 100
      %v1729 = vpop.permute.xlu0 %1728
      %vm1730 = vcmask 818176
      %v1731 = vsel %vm1730, %v1711, %v1713
      %v1732 = vsel %vm1730, %v1713, %v1715
      %v1733 = vsel %vm1730, %v1715, %v1717
      %v1734 = vsel %vm1730, %v1717, %v1719
      %v1735 = vsel %vm1730, %v1721, %v1723
      %v1736 = vsel %vm1730, %v1723, %v1725
      %v1737 = vsel %vm1730, %v1725, %v1727
      %v1738 = vsel %vm1730, %v1727, %v1729
      %v1751 = vadd.f32 %v1670, %v1711
      %v1752 = vadd.f32 %v1671, %v1731
      %v1753 = vadd.f32 %v1672, %v1732
      %v1754 = vadd.f32 %v1673, %v1733
      %v1755 = vadd.f32 %v1674, %v1734
      %v1756 = vadd.f32 %v1675, %v1719
      %v1757 = vadd.f32 %v1676, %v1721
      %v1758 = vadd.f32 %v1677, %v1735
      %v1759 = vadd.f32 %v1678, %v1736
      %v1760 = vadd.f32 %v1679, %v1737
      %v1761 = vadd.f32 %v1680, %v1738
      %v1762 = vadd.f32 %v1681, %v1729
      %v1763 = vld [vmem:[#allocation2 + $0x8] sm:$0xff]
      %v1764 = vld [vmem:[#allocation2 + $0x10] sm:$0xff]
      %v1765 = vld [vmem:[#allocation2 + $0x18] sm:$0xff]
      %v1766 = vld [vmem:[#allocation2 + $0x20] sm:$0xff]
      %v1767 = vld [vmem:[#allocation2 + $0x28] sm:$0xff]
      %v1768 = vld [vmem:[#allocation2 + $0x30] sm:$0xff]
      %v1769 = vld [vmem:[#allocation2 + $0x40] sm:$0xff]
      %v1770 = vld [vmem:[#allocation2 + $0x48] sm:$0xff]
      %v1771 = vld [vmem:[#allocation2 + $0x50] sm:$0xff]
      %v1772 = vld [vmem:[#allocation2 + $0x58] sm:$0xff]
      %v1773 = vld [vmem:[#allocation2 + $0x60] sm:$0xff]
      %v1774 = vld [vmem:[#allocation2 + $0x68] sm:$0xff]
      %1775 = vset.pattern.permute.xlu0 6
      %1776 = vperm.xlu0 %1775, %v1304
      %v1777 = vpop.permute.xlu0 %1776
      %1779 = vset.pattern.permute.xlu0 6
      %1780 = vperm.xlu0 %1779, %v1305
      %v1781 = vpop.permute.xlu0 %1780
      %v1783 = vmul.f32 %v1763, %v1777
      %v1784 = vmul.f32 %v1764, %v1777
      %v1785 = vmul.f32 %v1765, %v1777
      %v1786 = vmul.f32 %v1766, %v1777
      %v1787 = vmul.f32 %v1767, %v1777
      %v1788 = vmul.f32 %v1768, %v1777
      %v1789 = vmul.f32 %v1769, %v1781
      %v1790 = vmul.f32 %v1770, %v1781
      %v1791 = vmul.f32 %v1771, %v1781
      %v1792 = vmul.f32 %v1772, %v1781
      %v1793 = vmul.f32 %v1773, %v1781
      %v1794 = vmul.f32 %v1774, %v1781
      %1807 = vrot.lane.b32.xlu0 %v1783, 76
      %v1808 = vpop.permute.xlu0 %1807
      %1809 = vrot.lane.b32.xlu0 %v1784, 76
      %v1810 = vpop.permute.xlu0 %1809
      %1811 = vrot.lane.b32.xlu0 %v1785, 76
      %v1812 = vpop.permute.xlu0 %1811
      %1813 = vrot.lane.b32.xlu0 %v1786, 76
      %v1814 = vpop.permute.xlu0 %1813
      %1815 = vrot.lane.b32.xlu0 %v1787, 76
      %v1816 = vpop.permute.xlu0 %1815
      %1817 = vrot.lane.b32.xlu0 %v1788, 76
      %v1818 = vpop.permute.xlu0 %1817
      %1819 = vrot.lane.b32.xlu0 %v1789, 76
      %v1820 = vpop.permute.xlu0 %1819
      %1821 = vrot.lane.b32.xlu0 %v1790, 76
      %v1822 = vpop.permute.xlu0 %1821
      %1823 = vrot.lane.b32.xlu0 %v1791, 76
      %v1824 = vpop.permute.xlu0 %1823
      %1825 = vrot.lane.b32.xlu0 %v1792, 76
      %v1826 = vpop.permute.xlu0 %1825
      %1827 = vrot.lane.b32.xlu0 %v1793, 76
      %v1828 = vpop.permute.xlu0 %1827
      %1829 = vrot.lane.b32.xlu0 %v1794, 76
      %v1830 = vpop.permute.xlu0 %1829
      %vm1831 = vcmask 621568
      %v1832 = vsel %vm1831, %v1808, %v1810
      %v1833 = vsel %vm1831, %v1810, %v1812
      %v1834 = vsel %vm1831, %v1812, %v1814
      %v1835 = vsel %vm1831, %v1814, %v1816
      %v1836 = vsel %vm1831, %v1816, %v1818
      %v1837 = vsel %vm1831, %v1820, %v1822
      %v1838 = vsel %vm1831, %v1822, %v1824
      %v1839 = vsel %vm1831, %v1824, %v1826
      %v1840 = vsel %vm1831, %v1826, %v1828
      %v1841 = vsel %vm1831, %v1828, %v1830
      %v1854 = vadd.f32 %v1751, %v1808
      %v1855 = vadd.f32 %v1752, %v1832
      %v1856 = vadd.f32 %v1753, %v1833
      %v1857 = vadd.f32 %v1754, %v1834
      %v1858 = vadd.f32 %v1755, %v1835
      %v1859 = vadd.f32 %v1756, %v1836
      %v1860 = vadd.f32 %v1757, %v1820
      %v1861 = vadd.f32 %v1758, %v1837
      %v1862 = vadd.f32 %v1759, %v1838
      %v1863 = vadd.f32 %v1760, %v1839
      %v1864 = vadd.f32 %v1761, %v1840
      %v1865 = vadd.f32 %v1762, %v1841
      %1866 = vset.pattern.permute.xlu0 7
      %1867 = vperm.xlu0 %1866, %v1304
      %v1868 = vpop.permute.xlu0 %1867
      %1870 = vset.pattern.permute.xlu0 7
      %1871 = vperm.xlu0 %1870, %v1305
      %v1872 = vpop.permute.xlu0 %1871
      %v1874 = vmul.f32 %v1763, %v1868
      %v1875 = vmul.f32 %v1764, %v1868
      %v1876 = vmul.f32 %v1765, %v1868
      %v1877 = vmul.f32 %v1766, %v1868
      %v1878 = vmul.f32 %v1767, %v1868
      %v1879 = vmul.f32 %v1768, %v1868
      %v1880 = vmul.f32 %v1769, %v1872
      %v1881 = vmul.f32 %v1770, %v1872
      %v1882 = vmul.f32 %v1771, %v1872
      %v1883 = vmul.f32 %v1772, %v1872
      %v1884 = vmul.f32 %v1773, %v1872
      %v1885 = vmul.f32 %v1774, %v1872
      %1898 = vrot.lane.b32.xlu0 %v1874, 75
      %v1899 = vpop.permute.xlu0 %1898
      %1900 = vrot.lane.b32.xlu0 %v1875, 75
      %v1901 = vpop.permute.xlu0 %1900
      %1902 = vrot.lane.b32.xlu0 %v1876, 75
      %v1903 = vpop.permute.xlu0 %1902
      %1904 = vrot.lane.b32.xlu0 %v1877, 75
      %v1905 = vpop.permute.xlu0 %1904
      %1906 = vrot.lane.b32.xlu0 %v1878, 75
      %v1907 = vpop.permute.xlu0 %1906
      %1908 = vrot.lane.b32.xlu0 %v1879, 75
      %v1909 = vpop.permute.xlu0 %1908
      %1910 = vrot.lane.b32.xlu0 %v1880, 75
      %v1911 = vpop.permute.xlu0 %1910
      %1912 = vrot.lane.b32.xlu0 %v1881, 75
      %v1913 = vpop.permute.xlu0 %1912
      %1914 = vrot.lane.b32.xlu0 %v1882, 75
      %v1915 = vpop.permute.xlu0 %1914
      %1916 = vrot.lane.b32.xlu0 %v1883, 75
      %v1917 = vpop.permute.xlu0 %1916
      %1918 = vrot.lane.b32.xlu0 %v1884, 75
      %v1919 = vpop.permute.xlu0 %1918
      %1920 = vrot.lane.b32.xlu0 %v1885, 75
      %v1921 = vpop.permute.xlu0 %1920
      %vm1922 = vcmask 613376
      %v1923 = vsel %vm1922, %v1899, %v1901
      %v1924 = vsel %vm1922, %v1901, %v1903
      %v1925 = vsel %vm1922, %v1903, %v1905
      %v1926 = vsel %vm1922, %v1905, %v1907
      %v1927 = vsel %vm1922, %v1907, %v1909
      %v1928 = vsel %vm1922, %v1911, %v1913
      %v1929 = vsel %vm1922, %v1913, %v1915
      %v1930 = vsel %vm1922, %v1915, %v1917
      %v1931 = vsel %vm1922, %v1917, %v1919
      %v1932 = vsel %vm1922, %v1919, %v1921
      %v1945 = vadd.f32 %v1854, %v1899
      %v1946 = vadd.f32 %v1855, %v1923
      %v1947 = vadd.f32 %v1856, %v1924
      %v1948 = vadd.f32 %v1857, %v1925
      %v1949 = vadd.f32 %v1858, %v1926
      %v1950 = vadd.f32 %v1859, %v1927
      %v1951 = vadd.f32 %v1860, %v1911
      %v1952 = vadd.f32 %v1861, %v1928
      %v1953 = vadd.f32 %v1862, %v1929
      %v1954 = vadd.f32 %v1863, %v1930
      %v1955 = vadd.f32 %v1864, %v1931
      %v1956 = vadd.f32 %v1865, %v1932
      %1957 = vset.pattern.permute.xlu0 8
      %1958 = vperm.xlu0 %1957, %v1304
      %v1959 = vpop.permute.xlu0 %1958
      %1961 = vset.pattern.permute.xlu0 8
      %1962 = vperm.xlu0 %1961, %v1305
      %v1963 = vpop.permute.xlu0 %1962
      %v1965 = vmul.f32 %v1763, %v1959
      %v1966 = vmul.f32 %v1764, %v1959
      %v1967 = vmul.f32 %v1765, %v1959
      %v1968 = vmul.f32 %v1766, %v1959
      %v1969 = vmul.f32 %v1767, %v1959
      %v1970 = vmul.f32 %v1768, %v1959
      %v1971 = vmul.f32 %v1769, %v1963
      %v1972 = vmul.f32 %v1770, %v1963
      %v1973 = vmul.f32 %v1771, %v1963
      %v1974 = vmul.f32 %v1772, %v1963
      %v1975 = vmul.f32 %v1773, %v1963
      %v1976 = vmul.f32 %v1774, %v1963
      %1989 = vrot.lane.b32.xlu0 %v1965, 74
      %v1990 = vpop.permute.xlu0 %1989
      %1991 = vrot.lane.b32.xlu0 %v1966, 74
      %v1992 = vpop.permute.xlu0 %1991
      %1993 = vrot.lane.b32.xlu0 %v1967, 74
      %v1994 = vpop.permute.xlu0 %1993
      %1995 = vrot.lane.b32.xlu0 %v1968, 74
      %v1996 = vpop.permute.xlu0 %1995
      %1997 = vrot.lane.b32.xlu0 %v1969, 74
      %v1998 = vpop.permute.xlu0 %1997
      %1999 = vrot.lane.b32.xlu0 %v1970, 74
      %v2000 = vpop.permute.xlu0 %1999
      %2001 = vrot.lane.b32.xlu0 %v1971, 74
      %v2002 = vpop.permute.xlu0 %2001
      %2003 = vrot.lane.b32.xlu0 %v1972, 74
      %v2004 = vpop.permute.xlu0 %2003
      %2005 = vrot.lane.b32.xlu0 %v1973, 74
      %v2006 = vpop.permute.xlu0 %2005
      %2007 = vrot.lane.b32.xlu0 %v1974, 74
      %v2008 = vpop.permute.xlu0 %2007
      %2009 = vrot.lane.b32.xlu0 %v1975, 74
      %v2010 = vpop.permute.xlu0 %2009
      %2011 = vrot.lane.b32.xlu0 %v1976, 74
      %v2012 = vpop.permute.xlu0 %2011
      %vm2013 = vcmask 605184
      %v2014 = vsel %vm2013, %v1990, %v1992
      %v2015 = vsel %vm2013, %v1992, %v1994
      %v2016 = vsel %vm2013, %v1994, %v1996
      %v2017 = vsel %vm2013, %v1996, %v1998
      %v2018 = vsel %vm2013, %v1998, %v2000
      %v2019 = vsel %vm2013, %v2002, %v2004
      %v2020 = vsel %vm2013, %v2004, %v2006
      %v2021 = vsel %vm2013, %v2006, %v2008
      %v2022 = vsel %vm2013, %v2008, %v2010
      %v2023 = vsel %vm2013, %v2010, %v2012
      %v2036 = vadd.f32 %v1945, %v1990
      %v2037 = vadd.f32 %v1946, %v2014
      %v2038 = vadd.f32 %v1947, %v2015
      %v2039 = vadd.f32 %v1948, %v2016
      %v2040 = vadd.f32 %v1949, %v2017
      %v2041 = vadd.f32 %v1950, %v2018
      %v2042 = vadd.f32 %v1951, %v2002
      %v2043 = vadd.f32 %v1952, %v2019
      %v2044 = vadd.f32 %v1953, %v2020
      %v2045 = vadd.f32 %v1954, %v2021
      %v2046 = vadd.f32 %v1955, %v2022
      %v2047 = vadd.f32 %v1956, %v2023
      %v2048 = vld [vmem:[%s11] sm:$0xff]
      %v2049 = vld [vmem:[%s11 + $0x8] sm:$0xff]
      %2051 = vset.pattern.permute.xlu0 0
      %2052 = vperm.xlu0 %2051, %v2048
      %v2053 = vpop.permute.xlu0 %2052
      %2056 = vset.pattern.permute.xlu0 0
      %2057 = vperm.xlu0 %2056, %v2049
      %v2058 = vpop.permute.xlu0 %2057
      %v2060 = vadd.f32 %v2036, %v2053
      %v2061 = vadd.f32 %v2037, %v2053
      %v2062 = vadd.f32 %v2038, %v2053
      %v2063 = vadd.f32 %v2039, %v2053
      %v2064 = vadd.f32 %v2040, %v2053
      %v2065 = vadd.f32 %v2041, %v2053
      %v2066 = vadd.f32 %v2042, %v2058
      %v2067 = vadd.f32 %v2043, %v2058
      %v2068 = vadd.f32 %v2044, %v2058
      %v2069 = vadd.f32 %v2045, %v2058
      %v2070 = vadd.f32 %v2046, %v2058
      %v2071 = vadd.f32 %v2047, %v2058
      %v2072 = vld [vmem:[%s13] sm:$0xf]
      %v2073 = vld [vmem:[%s13 + $0x4] sm:$0xf]
      %v2074 = vld [vmem:[%s13 + $0x8] sm:$0xf]
      %v2075 = vld [vmem:[%s13 + $0xc] sm:$0xf]
      %v2076 = vld [vmem:[%s13 + $0x10] sm:$0xf]
      %v2077 = vld [vmem:[%s13 + $0x14] sm:$0xf]
      %v2078 = vld [vmem:[%s13 + $0x18] sm:$0xf]
      %v2079 = vld [vmem:[%s13 + $0x1c] sm:$0xf]
      %v2080 = vpack.c.bf16 %v2066, %v2060
      %v2081 = vpack.c.bf16 %v2067, %v2061
      %v2082 = vpack.c.bf16 %v2068, %v2062
      %v2083 = vpack.c.bf16 %v2069, %v2063
      %v2084 = vpack.c.bf16 %v2070, %v2064
      %v2085 = vpack.c.bf16 %v2071, %v2065
      %v2086 = vld [vmem:[%s15] sm:$0xff]
      %v2087 = vld [vmem:[%s15 + $0x8] sm:$0xff]
      %v2088 = vld [vmem:[%s15 + $0x10] sm:$0xff]
      %v2089 = vld [vmem:[%s15 + $0x18] sm:$0xff]
      %v2090 = vld [vmem:[%s15 + $0x20] sm:$0xff]
      %v2091 = vld [vmem:[%s15 + $0x28] sm:$0xff]
      %v2092 = vld [vmem:[%s15 + $0x30] sm:$0xff]
      %v2093 = vld [vmem:[%s15 + $0x38] sm:$0xff]
      %2095 = vset.pattern.permute.xlu0 0
      %2096 = vperm.xlu0 %2095, %v2086
      %v2097 = vpop.permute.xlu0 %2096
      %2100 = vset.pattern.permute.xlu0 0
      %2101 = vperm.xlu0 %2100, %v2087
      %v2102 = vpop.permute.xlu0 %2101
      %2105 = vset.pattern.permute.xlu0 0
      %2106 = vperm.xlu0 %2105, %v2088
      %v2107 = vpop.permute.xlu0 %2106
      %2110 = vset.pattern.permute.xlu0 0
      %2111 = vperm.xlu0 %2110, %v2089
      %v2112 = vpop.permute.xlu0 %2111
      %2115 = vset.pattern.permute.xlu0 0
      %2116 = vperm.xlu0 %2115, %v2090
      %v2117 = vpop.permute.xlu0 %2116
      %2120 = vset.pattern.permute.xlu0 0
      %2121 = vperm.xlu0 %2120, %v2091
      %v2122 = vpop.permute.xlu0 %2121
      %2125 = vset.pattern.permute.xlu0 0
      %2126 = vperm.xlu0 %2125, %v2092
      %v2127 = vpop.permute.xlu0 %2126
      %2130 = vset.pattern.permute.xlu0 0
      %2131 = vperm.xlu0 %2130, %v2093
      %v2132 = vpop.permute.xlu0 %2131
      %v2142 = vunpack.c.l.b16 %v2072
      %v2143 = vunpack.c.l.b16 %v2073
      %v2144 = vunpack.c.l.b16 %v2074
      %v2145 = vunpack.c.l.b16 %v2075
      %v2146 = vunpack.c.l.b16 %v2076
      %v2147 = vunpack.c.l.b16 %v2077
      %v2148 = vunpack.c.l.b16 %v2078
      %v2149 = vunpack.c.l.b16 %v2079
      %v2150 = vpack.c.b16 %v2143, %v2142
      %v2151 = vpack.c.b16 %v2145, %v2144
      %v2152 = vpack.c.b16 %v2147, %v2146
      %v2153 = vpack.c.b16 %v2149, %v2148
      %2160 = vrot.lane.b32.xlu0 %v2080, 27
      %v2161 = vpop.permute.xlu0 %2160
      %2162 = vrot.lane.b32.xlu0 %v2081, 27
      %v2163 = vpop.permute.xlu0 %2162
      %2164 = vrot.lane.b32.xlu0 %v2082, 27
      %v2165 = vpop.permute.xlu0 %2164
      %2166 = vrot.lane.b32.xlu0 %v2083, 27
      %v2167 = vpop.permute.xlu0 %2166
      %2168 = vrot.lane.b32.xlu0 %v2084, 27
      %v2169 = vpop.permute.xlu0 %2168
      %2170 = vrot.lane.b32.xlu0 %v2085, 27
      %v2171 = vpop.permute.xlu0 %2170
      %vm2172 = vcmask 220160
      %v2173 = vsel %vm2172, %v2161, %v2163
      %v2174 = vsel %vm2172, %v2163, %v2165
      %v2175 = vsel %vm2172, %v2165, %v2167
      %v2176 = vsel %vm2172, %v2167, %v2169
      %v2177 = vsel %vm2172, %v2169, %v2171
      %vm2183 = vcmask 130048
      %v2185 = vsel %vm2183, %v2150, 0
      %v2188 = vsel %vm2183, %v2151, 0
      %v2191 = vsel %vm2183, %v2152, 0
      %v2194 = vsel %vm2183, %v2153, 0
      %2196 = vmatprep.subr.bf16.mxu0 0
      %2197 = vmatpush1.bf16.msra.mxu0 0
      %2198 = vmatprep.subr.bf16.mxu0 0
      %2199 = vmatpush1.bf16.msra.mxu0 0
      %2200 = vmatprep.subr.bf16.mxu0 0
      %2201 = vmatpush1.bf16.msra.mxu0 0
      %2202 = vmatprep.subr.bf16.mxu0 0
      %2203 = vmatpush1.bf16.msra.mxu0 0
      %2204 = vmatprep.subr.bf16.mxu0 0
      %2205 = vmatpush1.bf16.msra.mxu0 0
      %2206 = vmatprep.subr.bf16.mxu0 0
      %2207 = vmatpush1.bf16.msra.mxu0 0
      %2208 = vmatprep.subr.bf16.mxu0 0
      %2209 = vmatpush1.bf16.msra.mxu0 0
      %2210 = vmatprep.subr.bf16.mxu0 %v2174
      %2211 = vmatpush1.bf16.msra.mxu0 %v2173
      %2212 = vmatprep.subr.bf16.mxu0 0
      %2213 = vmatpush2.bf16.msra.mxu0 0
      %2214 = vmatprep.subr.bf16.mxu0 0
      %2215 = vmatpush2.bf16.msra.mxu0 0
      %2216 = vmatprep.subr.bf16.mxu0 0
      %2217 = vmatpush2.bf16.msra.mxu0 0
      %2218 = vmatprep.subr.bf16.mxu0 0
      %2219 = vmatpush2.bf16.msra.mxu0 0
      %2220 = vmatprep.subr.bf16.mxu0 0
      %2221 = vmatpush2.bf16.msra.mxu0 0
      %2222 = vmatprep.subr.bf16.mxu0 0
      %2223 = vmatpush2.bf16.msra.mxu0 0
      %2224 = vmatprep.subr.bf16.mxu0 0
      %2225 = vmatpush2.bf16.msra.mxu0 0
      %2226 = vmatprep.subr.bf16.mxu0 0
      %2227 = vmatpush2.bf16.msra.mxu0 0
      %2228 = vmatprep.mubr.bf16.mxu0 0
      %2229 = vmatmul.mubr.bf16.gmra.mxu0 %v2185
      %v2230 = vpop.f32.mrf.mxu0
      %v2231 = vadd.f32 %v2097, %v2230
      %v2232 = vpop.f32.mrf.mxu0
      %v2233 = vadd.f32 %v2097, %v2232
      %v2234 = vpop.f32.mrf.mxu0
      %v2235 = vadd.f32 %v2102, %v2234
      %v2236 = vpop.f32.mrf.mxu0
      %v2237 = vadd.f32 %v2102, %v2236
      %2238 = vmatprep.mubr.bf16.mxu0 0
      %2239 = vmatmul.mubr.bf16.gmra.mxu0 %v2188
      %v2240 = vpop.f32.mrf.mxu0
      %v2241 = vadd.f32 %v2107, %v2240
      %v2242 = vpop.f32.mrf.mxu0
      %v2243 = vadd.f32 %v2107, %v2242
      %v2244 = vpop.f32.mrf.mxu0
      %v2245 = vadd.f32 %v2112, %v2244
      %v2246 = vpop.f32.mrf.mxu0
      %v2247 = vadd.f32 %v2112, %v2246
      %2248 = vmatprep.mubr.bf16.mxu0 0
      %2249 = vmatmul.mubr.bf16.gmra.mxu0 %v2191
      %v2250 = vpop.f32.mrf.mxu0
      %v2251 = vadd.f32 %v2117, %v2250
      %v2252 = vpop.f32.mrf.mxu0
      %v2253 = vadd.f32 %v2117, %v2252
      %v2254 = vpop.f32.mrf.mxu0
      %v2255 = vadd.f32 %v2122, %v2254
      %v2256 = vpop.f32.mrf.mxu0
      %v2257 = vadd.f32 %v2122, %v2256
      %2258 = vmatprep.mubr.bf16.mxu0 0
      %2259 = vmatmul.mubr.bf16.gmra.mxu0 %v2194
      %v2260 = vpop.f32.mrf.mxu0
      %v2261 = vadd.f32 %v2127, %v2260
      %v2262 = vpop.f32.mrf.mxu0
      %v2263 = vadd.f32 %v2127, %v2262
      %v2264 = vpop.f32.mrf.mxu0
      %v2265 = vadd.f32 %v2132, %v2264
      %v2266 = vpop.f32.mrf.mxu0
      %v2267 = vadd.f32 %v2132, %v2266
      %2268 = vdwg.mxu0
      %2269 = vmatprep.subr.bf16.mxu0 0
      %2270 = vmatpush1.bf16.msra.mxu0 0
      %2271 = vmatprep.subr.bf16.mxu0 0
      %2272 = vmatpush1.bf16.msra.mxu0 0
      %2273 = vmatprep.subr.bf16.mxu0 0
      %2274 = vmatpush1.bf16.msra.mxu0 0
      %2275 = vmatprep.subr.bf16.mxu0 0
      %2276 = vmatpush1.bf16.msra.mxu0 0
      %2277 = vmatprep.subr.bf16.mxu0 0
      %2278 = vmatpush1.bf16.msra.mxu0 0
      %2279 = vmatprep.subr.bf16.mxu0 0
      %2280 = vmatpush1.bf16.msra.mxu0 0
      %2281 = vmatprep.subr.bf16.mxu0 0
      %2282 = vmatpush1.bf16.msra.mxu0 0
      %2283 = vmatprep.subr.bf16.mxu0 %v2176
      %2284 = vmatpush1.bf16.msra.mxu0 %v2175
      %2285 = vmatprep.subr.bf16.mxu0 0
      %2286 = vmatpush2.bf16.msra.mxu0 0
      %2287 = vmatprep.subr.bf16.mxu0 0
      %2288 = vmatpush2.bf16.msra.mxu0 0
      %2289 = vmatprep.subr.bf16.mxu0 0
      %2290 = vmatpush2.bf16.msra.mxu0 0
      %2291 = vmatprep.subr.bf16.mxu0 0
      %2292 = vmatpush2.bf16.msra.mxu0 0
      %2293 = vmatprep.subr.bf16.mxu0 0
      %2294 = vmatpush2.bf16.msra.mxu0 0
      %2295 = vmatprep.subr.bf16.mxu0 0
      %2296 = vmatpush2.bf16.msra.mxu0 0
      %2297 = vmatprep.subr.bf16.mxu0 0
      %2298 = vmatpush2.bf16.msra.mxu0 0
      %2299 = vmatprep.subr.bf16.mxu0 0
      %2300 = vmatpush2.bf16.msra.mxu0 0
      %2301 = vmatprep.mubr.bf16.mxu0 0
      %2302 = vmatmul.mubr.bf16.gmra.mxu0 %v2185
      %v2303 = vpop.f32.mrf.mxu0
      %v2304 = vadd.f32 %v2097, %v2303
      %v2305 = vpop.f32.mrf.mxu0
      %v2306 = vadd.f32 %v2097, %v2305
      %v2307 = vpop.f32.mrf.mxu0
      %v2308 = vadd.f32 %v2102, %v2307
      %v2309 = vpop.f32.mrf.mxu0
      %v2310 = vadd.f32 %v2102, %v2309
      %2311 = vmatprep.mubr.bf16.mxu0 0
      %2312 = vmatmul.mubr.bf16.gmra.mxu0 %v2188
      %v2313 = vpop.f32.mrf.mxu0
      %v2314 = vadd.f32 %v2107, %v2313
      %v2315 = vpop.f32.mrf.mxu0
      %v2316 = vadd.f32 %v2107, %v2315
      %v2317 = vpop.f32.mrf.mxu0
      %v2318 = vadd.f32 %v2112, %v2317
      %v2319 = vpop.f32.mrf.mxu0
      %v2320 = vadd.f32 %v2112, %v2319
      %2321 = vmatprep.mubr.bf16.mxu0 0
      %2322 = vmatmul.mubr.bf16.gmra.mxu0 %v2191
      %v2323 = vpop.f32.mrf.mxu0
      %v2324 = vadd.f32 %v2117, %v2323
      %v2325 = vpop.f32.mrf.mxu0
      %v2326 = vadd.f32 %v2117, %v2325
      %v2327 = vpop.f32.mrf.mxu0
      %v2328 = vadd.f32 %v2122, %v2327
      %v2329 = vpop.f32.mrf.mxu0
      %v2330 = vadd.f32 %v2122, %v2329
      %2331 = vmatprep.mubr.bf16.mxu0 0
      %2332 = vmatmul.mubr.bf16.gmra.mxu0 %v2194
      %v2333 = vpop.f32.mrf.mxu0
      %v2334 = vadd.f32 %v2127, %v2333
      %v2335 = vpop.f32.mrf.mxu0
      %v2336 = vadd.f32 %v2127, %v2335
      %v2337 = vpop.f32.mrf.mxu0
      %v2338 = vadd.f32 %v2132, %v2337
      %v2339 = vpop.f32.mrf.mxu0
      %v2340 = vadd.f32 %v2132, %v2339
      %2341 = vdwg.mxu0
      %2342 = vmatprep.subr.bf16.mxu0 0
      %2343 = vmatpush1.bf16.msra.mxu0 0
      %2344 = vmatprep.subr.bf16.mxu0 0
      %2345 = vmatpush1.bf16.msra.mxu0 0
      %2346 = vmatprep.subr.bf16.mxu0 0
      %2347 = vmatpush1.bf16.msra.mxu0 0
      %2348 = vmatprep.subr.bf16.mxu0 0
      %2349 = vmatpush1.bf16.msra.mxu0 0
      %2350 = vmatprep.subr.bf16.mxu0 0
      %2351 = vmatpush1.bf16.msra.mxu0 0
      %2352 = vmatprep.subr.bf16.mxu0 0
      %2353 = vmatpush1.bf16.msra.mxu0 0
      %2354 = vmatprep.subr.bf16.mxu0 0
      %2355 = vmatpush1.bf16.msra.mxu0 0
      %2356 = vmatprep.subr.bf16.mxu0 0
      %2357 = vmatpush1.bf16.msra.mxu0 %v2177
      %2358 = vmatprep.subr.bf16.mxu0 0
      %2359 = vmatpush2.bf16.msra.mxu0 0
      %2360 = vmatprep.subr.bf16.mxu0 0
      %2361 = vmatpush2.bf16.msra.mxu0 0
      %2362 = vmatprep.subr.bf16.mxu0 0
      %2363 = vmatpush2.bf16.msra.mxu0 0
      %2364 = vmatprep.subr.bf16.mxu0 0
      %2365 = vmatpush2.bf16.msra.mxu0 0
      %2366 = vmatprep.subr.bf16.mxu0 0
      %2367 = vmatpush2.bf16.msra.mxu0 0
      %2368 = vmatprep.subr.bf16.mxu0 0
      %2369 = vmatpush2.bf16.msra.mxu0 0
      %2370 = vmatprep.subr.bf16.mxu0 0
      %2371 = vmatpush2.bf16.msra.mxu0 0
      %2372 = vmatprep.subr.bf16.mxu0 0
      %2373 = vmatpush2.bf16.msra.mxu0 0
      %2374 = vmatprep.mubr.bf16.mxu0 0
      %2375 = vmatmul.mubr.bf16.gmra.mxu0 %v2185
      %v2376 = vpop.f32.mrf.mxu0
      %v2377 = vadd.f32 %v2097, %v2376
      %v2378 = vpop.f32.mrf.mxu0
      %v2379 = vpop.f32.mrf.mxu0
      %v2380 = vadd.f32 %v2102, %v2379
      %v2381 = vpop.f32.mrf.mxu0
      %2382 = vmatprep.mubr.bf16.mxu0 0
      %2383 = vmatmul.mubr.bf16.gmra.mxu0 %v2188
      %v2384 = vpop.f32.mrf.mxu0
      %v2385 = vadd.f32 %v2107, %v2384
      %v2386 = vpop.f32.mrf.mxu0
      %v2387 = vpop.f32.mrf.mxu0
      %v2388 = vadd.f32 %v2112, %v2387
      %v2389 = vpop.f32.mrf.mxu0
      %2390 = vmatprep.mubr.bf16.mxu0 0
      %2391 = vmatmul.mubr.bf16.gmra.mxu0 %v2191
      %v2392 = vpop.f32.mrf.mxu0
      %v2393 = vadd.f32 %v2117, %v2392
      %v2394 = vpop.f32.mrf.mxu0
      %v2395 = vpop.f32.mrf.mxu0
      %v2396 = vadd.f32 %v2122, %v2395
      %v2397 = vpop.f32.mrf.mxu0
      %2398 = vmatprep.mubr.bf16.mxu0 0
      %2399 = vmatmul.mubr.bf16.gmra.mxu0 %v2194
      %v2400 = vpop.f32.mrf.mxu0
      %v2401 = vadd.f32 %v2127, %v2400
      %v2402 = vpop.f32.mrf.mxu0
      %v2403 = vpop.f32.mrf.mxu0
      %v2404 = vadd.f32 %v2132, %v2403
      %v2405 = vpop.f32.mrf.mxu0
      %2406 = vdwg.mxu0
      %v2407 = vmul.f32 %v2231, 0.70710677
      %v2408 = vmul.f32 %v2233, 0.70710677
      %v2409 = vmul.f32 %v2304, 0.70710677
      %v2410 = vmul.f32 %v2306, 0.70710677
      %v2411 = vmul.f32 %v2377, 0.70710677
      %v2412 = vmul.f32 %v2235, 0.70710677
      %v2413 = vmul.f32 %v2237, 0.70710677
      %v2414 = vmul.f32 %v2308, 0.70710677
      %v2415 = vmul.f32 %v2310, 0.70710677
      %v2416 = vmul.f32 %v2380, 0.70710677
      %v2417 = vmul.f32 %v2241, 0.70710677
      %v2418 = vmul.f32 %v2243, 0.70710677
      %v2419 = vmul.f32 %v2314, 0.70710677
      %v2420 = vmul.f32 %v2316, 0.70710677
      %v2421 = vmul.f32 %v2385, 0.70710677
      %v2422 = vmul.f32 %v2245, 0.70710677
      %v2423 = vmul.f32 %v2247, 0.70710677
      %v2424 = vmul.f32 %v2318, 0.70710677
      %v2425 = vmul.f32 %v2320, 0.70710677
      %v2426 = vmul.f32 %v2388, 0.70710677
      %v2427 = vmul.f32 %v2251, 0.70710677
      %v2428 = vmul.f32 %v2253, 0.70710677
      %v2429 = vmul.f32 %v2324, 0.70710677
      %v2430 = vmul.f32 %v2326, 0.70710677
      %v2431 = vmul.f32 %v2393, 0.70710677
      %v2432 = vmul.f32 %v2255, 0.70710677
      %v2433 = vmul.f32 %v2257, 0.70710677
      %v2434 = vmul.f32 %v2328, 0.70710677
      %v2435 = vmul.f32 %v2330, 0.70710677
      %v2436 = vmul.f32 %v2396, 0.70710677
      %v2437 = vmul.f32 %v2261, 0.70710677
      %v2438 = vmul.f32 %v2263, 0.70710677
      %v2439 = vmul.f32 %v2334, 0.70710677
      %v2440 = vmul.f32 %v2336, 0.70710677
      %v2441 = vmul.f32 %v2401, 0.70710677
      %v2442 = vmul.f32 %v2265, 0.70710677
      %v2443 = vmul.f32 %v2267, 0.70710677
      %v2444 = vmul.f32 %v2338, 0.70710677
      %v2445 = vmul.f32 %v2340, 0.70710677
      %v2446 = vmul.f32 %v2404, 0.70710677
      %vm2447 = vcmp.ge.f32.partialorder %v2407, 0.0
      %vm2448 = vcmp.ge.f32.partialorder %v2408, 0.0
      %vm2449 = vcmp.ge.f32.partialorder %v2409, 0.0
      %vm2450 = vcmp.ge.f32.partialorder %v2410, 0.0
      %vm2451 = vcmp.ge.f32.partialorder %v2411, 0.0
      %vm2452 = vcmp.ge.f32.partialorder %v2412, 0.0
      %vm2453 = vcmp.ge.f32.partialorder %v2413, 0.0
      %vm2454 = vcmp.ge.f32.partialorder %v2414, 0.0
      %vm2455 = vcmp.ge.f32.partialorder %v2415, 0.0
      %vm2456 = vcmp.ge.f32.partialorder %v2416, 0.0
      %vm2457 = vcmp.ge.f32.partialorder %v2417, 0.0
      %vm2458 = vcmp.ge.f32.partialorder %v2418, 0.0
      %vm2459 = vcmp.ge.f32.partialorder %v2419, 0.0
      %vm2460 = vcmp.ge.f32.partialorder %v2420, 0.0
      %vm2461 = vcmp.ge.f32.partialorder %v2421, 0.0
      %vm2462 = vcmp.ge.f32.partialorder %v2422, 0.0
      %vm2463 = vcmp.ge.f32.partialorder %v2423, 0.0
      %vm2464 = vcmp.ge.f32.partialorder %v2424, 0.0
      %vm2465 = vcmp.ge.f32.partialorder %v2425, 0.0
      %vm2466 = vcmp.ge.f32.partialorder %v2426, 0.0
      %vm2467 = vcmp.ge.f32.partialorder %v2427, 0.0
      %vm2468 = vcmp.ge.f32.partialorder %v2428, 0.0
      %vm2469 = vcmp.ge.f32.partialorder %v2429, 0.0
      %vm2470 = vcmp.ge.f32.partialorder %v2430, 0.0
      %vm2471 = vcmp.ge.f32.partialorder %v2431, 0.0
      %vm2472 = vcmp.ge.f32.partialorder %v2432, 0.0
      %vm2473 = vcmp.ge.f32.partialorder %v2433, 0.0
      %vm2474 = vcmp.ge.f32.partialorder %v2434, 0.0
      %vm2475 = vcmp.ge.f32.partialorder %v2435, 0.0
      %vm2476 = vcmp.ge.f32.partialorder %v2436, 0.0
      %vm2477 = vcmp.ge.f32.partialorder %v2437, 0.0
      %vm2478 = vcmp.ge.f32.partialorder %v2438, 0.0
      %vm2479 = vcmp.ge.f32.partialorder %v2439, 0.0
      %vm2480 = vcmp.ge.f32.partialorder %v2440, 0.0
      %vm2481 = vcmp.ge.f32.partialorder %v2441, 0.0
      %vm2482 = vcmp.ge.f32.partialorder %v2442, 0.0
      %vm2483 = vcmp.ge.f32.partialorder %v2443, 0.0
      %vm2484 = vcmp.ge.f32.partialorder %v2444, 0.0
      %vm2485 = vcmp.ge.f32.partialorder %v2445, 0.0
      %vm2486 = vcmp.ge.f32.partialorder %v2446, 0.0
      %v2487 = vsel %vm2447, 1.0, -1.0
      %v2488 = vsel %vm2448, 1.0, -1.0
      %v2489 = vsel %vm2449, 1.0, -1.0
      %v2490 = vsel %vm2450, 1.0, -1.0
      %v2491 = vsel %vm2451, 1.0, -1.0
      %v2492 = vsel %vm2452, 1.0, -1.0
      %v2493 = vsel %vm2453, 1.0, -1.0
      %v2494 = vsel %vm2454, 1.0, -1.0
      %v2495 = vsel %vm2455, 1.0, -1.0
      %v2496 = vsel %vm2456, 1.0, -1.0
      %v2497 = vsel %vm2457, 1.0, -1.0
      %v2498 = vsel %vm2458, 1.0, -1.0
      %v2499 = vsel %vm2459, 1.0, -1.0
      %v2500 = vsel %vm2460, 1.0, -1.0
      %v2501 = vsel %vm2461, 1.0, -1.0
      %v2502 = vsel %vm2462, 1.0, -1.0
      %v2503 = vsel %vm2463, 1.0, -1.0
      %v2504 = vsel %vm2464, 1.0, -1.0
      %v2505 = vsel %vm2465, 1.0, -1.0
      %v2506 = vsel %vm2466, 1.0, -1.0
      %v2507 = vsel %vm2467, 1.0, -1.0
      %v2508 = vsel %vm2468, 1.0, -1.0
      %v2509 = vsel %vm2469, 1.0, -1.0
      %v2510 = vsel %vm2470, 1.0, -1.0
      %v2511 = vsel %vm2471, 1.0, -1.0
      %v2512 = vsel %vm2472, 1.0, -1.0
      %v2513 = vsel %vm2473, 1.0, -1.0
      %v2514 = vsel %vm2474, 1.0, -1.0
      %v2515 = vsel %vm2475, 1.0, -1.0
      %v2516 = vsel %vm2476, 1.0, -1.0
      %v2517 = vsel %vm2477, 1.0, -1.0
      %v2518 = vsel %vm2478, 1.0, -1.0
      %v2519 = vsel %vm2479, 1.0, -1.0
      %v2520 = vsel %vm2480, 1.0, -1.0
      %v2521 = vsel %vm2481, 1.0, -1.0
      %v2522 = vsel %vm2482, 1.0, -1.0
      %v2523 = vsel %vm2483, 1.0, -1.0
      %v2524 = vsel %vm2484, 1.0, -1.0
      %v2525 = vsel %vm2485, 1.0, -1.0
      %v2526 = vsel %vm2486, 1.0, -1.0
      %v2527 = vand.u32 2147483647, %v2407
      %v2528 = vand.u32 2147483647, %v2408
      %v2529 = vand.u32 2147483647, %v2409
      %v2530 = vand.u32 2147483647, %v2410
      %v2531 = vand.u32 2147483647, %v2411
      %v2532 = vand.u32 2147483647, %v2412
      %v2533 = vand.u32 2147483647, %v2413
      %v2534 = vand.u32 2147483647, %v2414
      %v2535 = vand.u32 2147483647, %v2415
      %v2536 = vand.u32 2147483647, %v2416
      %v2537 = vand.u32 2147483647, %v2417
      %v2538 = vand.u32 2147483647, %v2418
      %v2539 = vand.u32 2147483647, %v2419
      %v2540 = vand.u32 2147483647, %v2420
      %v2541 = vand.u32 2147483647, %v2421
      %v2542 = vand.u32 2147483647, %v2422
      %v2543 = vand.u32 2147483647, %v2423
      %v2544 = vand.u32 2147483647, %v2424
      %v2545 = vand.u32 2147483647, %v2425
      %v2546 = vand.u32 2147483647, %v2426
      %v2547 = vand.u32 2147483647, %v2427
      %v2548 = vand.u32 2147483647, %v2428
      %v2549 = vand.u32 2147483647, %v2429
      %v2550 = vand.u32 2147483647, %v2430
      %v2551 = vand.u32 2147483647, %v2431
      %v2552 = vand.u32 2147483647, %v2432
      %v2553 = vand.u32 2147483647, %v2433
      %v2554 = vand.u32 2147483647, %v2434
      %v2555 = vand.u32 2147483647, %v2435
      %v2556 = vand.u32 2147483647, %v2436
      %v2557 = vand.u32 2147483647, %v2437
      %v2558 = vand.u32 2147483647, %v2438
      %v2559 = vand.u32 2147483647, %v2439
      %v2560 = vand.u32 2147483647, %v2440
      %v2561 = vand.u32 2147483647, %v2441
      %v2562 = vand.u32 2147483647, %v2442
      %v2563 = vand.u32 2147483647, %v2443
      %v2564 = vand.u32 2147483647, %v2444
      %v2565 = vand.u32 2147483647, %v2445
      %v2566 = vand.u32 2147483647, %v2446
      %v2567 = vmul.f32 %v2527, 0.3275911
      %v2568 = vmul.f32 %v2528, 0.3275911
      %v2569 = vmul.f32 %v2529, 0.3275911
      %v2570 = vmul.f32 %v2530, 0.3275911
      %v2571 = vmul.f32 %v2531, 0.3275911
      %v2572 = vmul.f32 %v2532, 0.3275911
      %v2573 = vmul.f32 %v2533, 0.3275911
      %v2574 = vmul.f32 %v2534, 0.3275911
      %v2575 = vmul.f32 %v2535, 0.3275911
      %v2576 = vmul.f32 %v2536, 0.3275911
      %v2577 = vmul.f32 %v2537, 0.3275911
      %v2578 = vmul.f32 %v2538, 0.3275911
      %v2579 = vmul.f32 %v2539, 0.3275911
      %v2580 = vmul.f32 %v2540, 0.3275911
      %v2581 = vmul.f32 %v2541, 0.3275911
      %v2582 = vmul.f32 %v2542, 0.3275911
      %v2583 = vmul.f32 %v2543, 0.3275911
      %v2584 = vmul.f32 %v2544, 0.3275911
      %v2585 = vmul.f32 %v2545, 0.3275911
      %v2586 = vmul.f32 %v2546, 0.3275911
      %v2587 = vmul.f32 %v2547, 0.3275911
      %v2588 = vmul.f32 %v2548, 0.3275911
      %v2589 = vmul.f32 %v2549, 0.3275911
      %v2590 = vmul.f32 %v2550, 0.3275911
      %v2591 = vmul.f32 %v2551, 0.3275911
      %v2592 = vmul.f32 %v2552, 0.3275911
      %v2593 = vmul.f32 %v2553, 0.3275911
      %v2594 = vmul.f32 %v2554, 0.3275911
      %v2595 = vmul.f32 %v2555, 0.3275911
      %v2596 = vmul.f32 %v2556, 0.3275911
      %v2597 = vmul.f32 %v2557, 0.3275911
      %v2598 = vmul.f32 %v2558, 0.3275911
      %v2599 = vmul.f32 %v2559, 0.3275911
      %v2600 = vmul.f32 %v2560, 0.3275911
      %v2601 = vmul.f32 %v2561, 0.3275911
      %v2602 = vmul.f32 %v2562, 0.3275911
      %v2603 = vmul.f32 %v2563, 0.3275911
      %v2604 = vmul.f32 %v2564, 0.3275911
      %v2605 = vmul.f32 %v2565, 0.3275911
      %v2606 = vmul.f32 %v2566, 0.3275911
      %v2607 = vadd.f32 %v2567, 1.0
      %v2608 = vadd.f32 %v2568, 1.0
      %v2609 = vadd.f32 %v2569, 1.0
      %v2610 = vadd.f32 %v2570, 1.0
      %v2611 = vadd.f32 %v2571, 1.0
      %v2612 = vadd.f32 %v2572, 1.0
      %v2613 = vadd.f32 %v2573, 1.0
      %v2614 = vadd.f32 %v2574, 1.0
      %v2615 = vadd.f32 %v2575, 1.0
      %v2616 = vadd.f32 %v2576, 1.0
      %v2617 = vadd.f32 %v2577, 1.0
      %v2618 = vadd.f32 %v2578, 1.0
      %v2619 = vadd.f32 %v2579, 1.0
      %v2620 = vadd.f32 %v2580, 1.0
      %v2621 = vadd.f32 %v2581, 1.0
      %v2622 = vadd.f32 %v2582, 1.0
      %v2623 = vadd.f32 %v2583, 1.0
      %v2624 = vadd.f32 %v2584, 1.0
      %v2625 = vadd.f32 %v2585, 1.0
      %v2626 = vadd.f32 %v2586, 1.0
      %v2627 = vadd.f32 %v2587, 1.0
      %v2628 = vadd.f32 %v2588, 1.0
      %v2629 = vadd.f32 %v2589, 1.0
      %v2630 = vadd.f32 %v2590, 1.0
      %v2631 = vadd.f32 %v2591, 1.0
      %v2632 = vadd.f32 %v2592, 1.0
      %v2633 = vadd.f32 %v2593, 1.0
      %v2634 = vadd.f32 %v2594, 1.0
      %v2635 = vadd.f32 %v2595, 1.0
      %v2636 = vadd.f32 %v2596, 1.0
      %v2637 = vadd.f32 %v2597, 1.0
      %v2638 = vadd.f32 %v2598, 1.0
      %v2639 = vadd.f32 %v2599, 1.0
      %v2640 = vadd.f32 %v2600, 1.0
      %v2641 = vadd.f32 %v2601, 1.0
      %v2642 = vadd.f32 %v2602, 1.0
      %v2643 = vadd.f32 %v2603, 1.0
      %v2644 = vadd.f32 %v2604, 1.0
      %v2645 = vadd.f32 %v2605, 1.0
      %v2646 = vadd.f32 %v2606, 1.0
      %v2647 = vrcp.pop %v2607
      %v2648 = vrcp.pop %v2608
      %v2649 = vrcp.pop %v2609
      %v2650 = vrcp.pop %v2610
      %v2651 = vrcp.pop %v2611
      %v2652 = vrcp.pop %v2612
      %v2653 = vrcp.pop %v2613
      %v2654 = vrcp.pop %v2614
      %v2655 = vrcp.pop %v2615
      %v2656 = vrcp.pop %v2616
      %v2657 = vrcp.pop %v2617
      %v2658 = vrcp.pop %v2618
      %v2659 = vrcp.pop %v2619
      %v2660 = vrcp.pop %v2620
      %v2661 = vrcp.pop %v2621
      %v2662 = vrcp.pop %v2622
      %v2663 = vrcp.pop %v2623
      %v2664 = vrcp.pop %v2624
      %v2665 = vrcp.pop %v2625
      %v2666 = vrcp.pop %v2626
      %v2667 = vrcp.pop %v2627
      %v2668 = vrcp.pop %v2628
      %v2669 = vrcp.pop %v2629
      %v2670 = vrcp.pop %v2630
      %v2671 = vrcp.pop %v2631
      %v2672 = vrcp.pop %v2632
      %v2673 = vrcp.pop %v2633
      %v2674 = vrcp.pop %v2634
      %v2675 = vrcp.pop %v2635
      %v2676 = vrcp.pop %v2636
      %v2677 = vrcp.pop %v2637
      %v2678 = vrcp.pop %v2638
      %v2679 = vrcp.pop %v2639
      %v2680 = vrcp.pop %v2640
      %v2681 = vrcp.pop %v2641
      %v2682 = vrcp.pop %v2642
      %v2683 = vrcp.pop %v2643
      %v2684 = vrcp.pop %v2644
      %v2685 = vrcp.pop %v2645
      %v2686 = vrcp.pop %v2646
      %v2687 = vmul.f32 %v2647, 1.0614054
      %v2688 = vmul.f32 %v2648, 1.0614054
      %v2689 = vmul.f32 %v2649, 1.0614054
      %v2690 = vmul.f32 %v2650, 1.0614054
      %v2691 = vmul.f32 %v2651, 1.0614054
      %v2692 = vmul.f32 %v2652, 1.0614054
      %v2693 = vmul.f32 %v2653, 1.0614054
      %v2694 = vmul.f32 %v2654, 1.0614054
      %v2695 = vmul.f32 %v2655, 1.0614054
      %v2696 = vmul.f32 %v2656, 1.0614054
      %v2697 = vmul.f32 %v2657, 1.0614054
      %v2698 = vmul.f32 %v2658, 1.0614054
      %v2699 = vmul.f32 %v2659, 1.0614054
      %v2700 = vmul.f32 %v2660, 1.0614054
      %v2701 = vmul.f32 %v2661, 1.0614054
      %v2702 = vmul.f32 %v2662, 1.0614054
      %v2703 = vmul.f32 %v2663, 1.0614054
      %v2704 = vmul.f32 %v2664, 1.0614054
      %v2705 = vmul.f32 %v2665, 1.0614054
      %v2706 = vmul.f32 %v2666, 1.0614054
      %v2707 = vmul.f32 %v2667, 1.0614054
      %v2708 = vmul.f32 %v2668, 1.0614054
      %v2709 = vmul.f32 %v2669, 1.0614054
      %v2710 = vmul.f32 %v2670, 1.0614054
      %v2711 = vmul.f32 %v2671, 1.0614054
      %v2712 = vmul.f32 %v2672, 1.0614054
      %v2713 = vmul.f32 %v2673, 1.0614054
      %v2714 = vmul.f32 %v2674, 1.0614054
      %v2715 = vmul.f32 %v2675, 1.0614054
      %v2716 = vmul.f32 %v2676, 1.0614054
      %v2717 = vmul.f32 %v2677, 1.0614054
      %v2718 = vmul.f32 %v2678, 1.0614054
      %v2719 = vmul.f32 %v2679, 1.0614054
      %v2720 = vmul.f32 %v2680, 1.0614054
      %v2721 = vmul.f32 %v2681, 1.0614054
      %v2722 = vmul.f32 %v2682, 1.0614054
      %v2723 = vmul.f32 %v2683, 1.0614054
      %v2724 = vmul.f32 %v2684, 1.0614054
      %v2725 = vmul.f32 %v2685, 1.0614054
      %v2726 = vmul.f32 %v2686, 1.0614054
      %v2727 = vadd.f32 %v2687, -1.4531521
      %v2728 = vadd.f32 %v2688, -1.4531521
      %v2729 = vadd.f32 %v2689, -1.4531521
      %v2730 = vadd.f32 %v2690, -1.4531521
      %v2731 = vadd.f32 %v2691, -1.4531521
      %v2732 = vadd.f32 %v2692, -1.4531521
      %v2733 = vadd.f32 %v2693, -1.4531521
      %v2734 = vadd.f32 %v2694, -1.4531521
      %v2735 = vadd.f32 %v2695, -1.4531521
      %v2736 = vadd.f32 %v2696, -1.4531521
      %v2737 = vadd.f32 %v2697, -1.4531521
      %v2738 = vadd.f32 %v2698, -1.4531521
      %v2739 = vadd.f32 %v2699, -1.4531521
      %v2740 = vadd.f32 %v2700, -1.4531521
      %v2741 = vadd.f32 %v2701, -1.4531521
      %v2742 = vadd.f32 %v2702, -1.4531521
      %v2743 = vadd.f32 %v2703, -1.4531521
      %v2744 = vadd.f32 %v2704, -1.4531521
      %v2745 = vadd.f32 %v2705, -1.4531521
      %v2746 = vadd.f32 %v2706, -1.4531521
      %v2747 = vadd.f32 %v2707, -1.4531521
      %v2748 = vadd.f32 %v2708, -1.4531521
      %v2749 = vadd.f32 %v2709, -1.4531521
      %v2750 = vadd.f32 %v2710, -1.4531521
      %v2751 = vadd.f32 %v2711, -1.4531521
      %v2752 = vadd.f32 %v2712, -1.4531521
      %v2753 = vadd.f32 %v2713, -1.4531521
      %v2754 = vadd.f32 %v2714, -1.4531521
      %v2755 = vadd.f32 %v2715, -1.4531521
      %v2756 = vadd.f32 %v2716, -1.4531521
      %v2757 = vadd.f32 %v2717, -1.4531521
      %v2758 = vadd.f32 %v2718, -1.4531521
      %v2759 = vadd.f32 %v2719, -1.4531521
      %v2760 = vadd.f32 %v2720, -1.4531521
      %v2761 = vadd.f32 %v2721, -1.4531521
      %v2762 = vadd.f32 %v2722, -1.4531521
      %v2763 = vadd.f32 %v2723, -1.4531521
      %v2764 = vadd.f32 %v2724, -1.4531521
      %v2765 = vadd.f32 %v2725, -1.4531521
      %v2766 = vadd.f32 %v2726, -1.4531521
      %v2767 = vmul.f32 %v2727, %v2647
      %v2768 = vmul.f32 %v2728, %v2648
      %v2769 = vmul.f32 %v2729, %v2649
      %v2770 = vmul.f32 %v2730, %v2650
      %v2771 = vmul.f32 %v2731, %v2651
      %v2772 = vmul.f32 %v2732, %v2652
      %v2773 = vmul.f32 %v2733, %v2653
      %v2774 = vmul.f32 %v2734, %v2654
      %v2775 = vmul.f32 %v2735, %v2655
      %v2776 = vmul.f32 %v2736, %v2656
      %v2777 = vmul.f32 %v2737, %v2657
      %v2778 = vmul.f32 %v2738, %v2658
      %v2779 = vmul.f32 %v2739, %v2659
      %v2780 = vmul.f32 %v2740, %v2660
      %v2781 = vmul.f32 %v2741, %v2661
      %v2782 = vmul.f32 %v2742, %v2662
      %v2783 = vmul.f32 %v2743, %v2663
      %v2784 = vmul.f32 %v2744, %v2664
      %v2785 = vmul.f32 %v2745, %v2665
      %v2786 = vmul.f32 %v2746, %v2666
      %v2787 = vmul.f32 %v2747, %v2667
      %v2788 = vmul.f32 %v2748, %v2668
      %v2789 = vmul.f32 %v2749, %v2669
      %v2790 = vmul.f32 %v2750, %v2670
      %v2791 = vmul.f32 %v2751, %v2671
      %v2792 = vmul.f32 %v2752, %v2672
      %v2793 = vmul.f32 %v2753, %v2673
      %v2794 = vmul.f32 %v2754, %v2674
      %v2795 = vmul.f32 %v2755, %v2675
      %v2796 = vmul.f32 %v2756, %v2676
      %v2797 = vmul.f32 %v2757, %v2677
      %v2798 = vmul.f32 %v2758, %v2678
      %v2799 = vmul.f32 %v2759, %v2679
      %v2800 = vmul.f32 %v2760, %v2680
      %v2801 = vmul.f32 %v2761, %v2681
      %v2802 = vmul.f32 %v2762, %v2682
      %v2803 = vmul.f32 %v2763, %v2683
      %v2804 = vmul.f32 %v2764, %v2684
      %v2805 = vmul.f32 %v2765, %v2685
      %v2806 = vmul.f32 %v2766, %v2686
      %v2807 = vadd.f32 %v2767, 1.4214138
      %v2808 = vadd.f32 %v2768, 1.4214138
      %v2809 = vadd.f32 %v2769, 1.4214138
      %v2810 = vadd.f32 %v2770, 1.4214138
      %v2811 = vadd.f32 %v2771, 1.4214138
      %v2812 = vadd.f32 %v2772, 1.4214138
      %v2813 = vadd.f32 %v2773, 1.4214138
      %v2814 = vadd.f32 %v2774, 1.4214138
      %v2815 = vadd.f32 %v2775, 1.4214138
      %v2816 = vadd.f32 %v2776, 1.4214138
      %v2817 = vadd.f32 %v2777, 1.4214138
      %v2818 = vadd.f32 %v2778, 1.4214138
      %v2819 = vadd.f32 %v2779, 1.4214138
      %v2820 = vadd.f32 %v2780, 1.4214138
      %v2821 = vadd.f32 %v2781, 1.4214138
      %v2822 = vadd.f32 %v2782, 1.4214138
      %v2823 = vadd.f32 %v2783, 1.4214138
      %v2824 = vadd.f32 %v2784, 1.4214138
      %v2825 = vadd.f32 %v2785, 1.4214138
      %v2826 = vadd.f32 %v2786, 1.4214138
      %v2827 = vadd.f32 %v2787, 1.4214138
      %v2828 = vadd.f32 %v2788, 1.4214138
      %v2829 = vadd.f32 %v2789, 1.4214138
      %v2830 = vadd.f32 %v2790, 1.4214138
      %v2831 = vadd.f32 %v2791, 1.4214138
      %v2832 = vadd.f32 %v2792, 1.4214138
      %v2833 = vadd.f32 %v2793, 1.4214138
      %v2834 = vadd.f32 %v2794, 1.4214138
      %v2835 = vadd.f32 %v2795, 1.4214138
      %v2836 = vadd.f32 %v2796, 1.4214138
      %v2837 = vadd.f32 %v2797, 1.4214138
      %v2838 = vadd.f32 %v2798, 1.4214138
      %v2839 = vadd.f32 %v2799, 1.4214138
      %v2840 = vadd.f32 %v2800, 1.4214138
      %v2841 = vadd.f32 %v2801, 1.4214138
      %v2842 = vadd.f32 %v2802, 1.4214138
      %v2843 = vadd.f32 %v2803, 1.4214138
      %v2844 = vadd.f32 %v2804, 1.4214138
      %v2845 = vadd.f32 %v2805, 1.4214138
      %v2846 = vadd.f32 %v2806, 1.4214138
      %v2847 = vmul.f32 %v2807, %v2647
      %v2848 = vmul.f32 %v2808, %v2648
      %v2849 = vmul.f32 %v2809, %v2649
      %v2850 = vmul.f32 %v2810, %v2650
      %v2851 = vmul.f32 %v2811, %v2651
      %v2852 = vmul.f32 %v2812, %v2652
      %v2853 = vmul.f32 %v2813, %v2653
      %v2854 = vmul.f32 %v2814, %v2654
      %v2855 = vmul.f32 %v2815, %v2655
      %v2856 = vmul.f32 %v2816, %v2656
      %v2857 = vmul.f32 %v2817, %v2657
      %v2858 = vmul.f32 %v2818, %v2658
      %v2859 = vmul.f32 %v2819, %v2659
      %v2860 = vmul.f32 %v2820, %v2660
      %v2861 = vmul.f32 %v2821, %v2661
      %v2862 = vmul.f32 %v2822, %v2662
      %v2863 = vmul.f32 %v2823, %v2663
      %v2864 = vmul.f32 %v2824, %v2664
      %v2865 = vmul.f32 %v2825, %v2665
      %v2866 = vmul.f32 %v2826, %v2666
      %v2867 = vmul.f32 %v2827, %v2667
      %v2868 = vmul.f32 %v2828, %v2668
      %v2869 = vmul.f32 %v2829, %v2669
      %v2870 = vmul.f32 %v2830, %v2670
      %v2871 = vmul.f32 %v2831, %v2671
      %v2872 = vmul.f32 %v2832, %v2672
      %v2873 = vmul.f32 %v2833, %v2673
      %v2874 = vmul.f32 %v2834, %v2674
      %v2875 = vmul.f32 %v2835, %v2675
      %v2876 = vmul.f32 %v2836, %v2676
      %v2877 = vmul.f32 %v2837, %v2677
      %v2878 = vmul.f32 %v2838, %v2678
      %v2879 = vmul.f32 %v2839, %v2679
      %v2880 = vmul.f32 %v2840, %v2680
      %v2881 = vmul.f32 %v2841, %v2681
      %v2882 = vmul.f32 %v2842, %v2682
      %v2883 = vmul.f32 %v2843, %v2683
      %v2884 = vmul.f32 %v2844, %v2684
      %v2885 = vmul.f32 %v2845, %v2685
      %v2886 = vmul.f32 %v2846, %v2686
      %v2887 = vadd.f32 %v2847, -0.28449672
      %v2888 = vadd.f32 %v2848, -0.28449672
      %v2889 = vadd.f32 %v2849, -0.28449672
      %v2890 = vadd.f32 %v2850, -0.28449672
      %v2891 = vadd.f32 %v2851, -0.28449672
      %v2892 = vadd.f32 %v2852, -0.28449672
      %v2893 = vadd.f32 %v2853, -0.28449672
      %v2894 = vadd.f32 %v2854, -0.28449672
      %v2895 = vadd.f32 %v2855, -0.28449672
      %v2896 = vadd.f32 %v2856, -0.28449672
      %v2897 = vadd.f32 %v2857, -0.28449672
      %v2898 = vadd.f32 %v2858, -0.28449672
      %v2899 = vadd.f32 %v2859, -0.28449672
      %v2900 = vadd.f32 %v2860, -0.28449672
      %v2901 = vadd.f32 %v2861, -0.28449672
      %v2902 = vadd.f32 %v2862, -0.28449672
      %v2903 = vadd.f32 %v2863, -0.28449672
      %v2904 = vadd.f32 %v2864, -0.28449672
      %v2905 = vadd.f32 %v2865, -0.28449672
      %v2906 = vadd.f32 %v2866, -0.28449672
      %v2907 = vadd.f32 %v2867, -0.28449672
      %v2908 = vadd.f32 %v2868, -0.28449672
      %v2909 = vadd.f32 %v2869, -0.28449672
      %v2910 = vadd.f32 %v2870, -0.28449672
      %v2911 = vadd.f32 %v2871, -0.28449672
      %v2912 = vadd.f32 %v2872, -0.28449672
      %v2913 = vadd.f32 %v2873, -0.28449672
      %v2914 = vadd.f32 %v2874, -0.28449672
      %v2915 = vadd.f32 %v2875, -0.28449672
      %v2916 = vadd.f32 %v2876, -0.28449672
      %v2917 = vadd.f32 %v2877, -0.28449672
      %v2918 = vadd.f32 %v2878, -0.28449672
      %v2919 = vadd.f32 %v2879, -0.28449672
      %v2920 = vadd.f32 %v2880, -0.28449672
      %v2921 = vadd.f32 %v2881, -0.28449672
      %v2922 = vadd.f32 %v2882, -0.28449672
      %v2923 = vadd.f32 %v2883, -0.28449672
      %v2924 = vadd.f32 %v2884, -0.28449672
      %v2925 = vadd.f32 %v2885, -0.28449672
      %v2926 = vadd.f32 %v2886, -0.28449672
      %v2927 = vmul.f32 %v2887, %v2647
      %v2928 = vmul.f32 %v2888, %v2648
      %v2929 = vmul.f32 %v2889, %v2649
      %v2930 = vmul.f32 %v2890, %v2650
      %v2931 = vmul.f32 %v2891, %v2651
      %v2932 = vmul.f32 %v2892, %v2652
      %v2933 = vmul.f32 %v2893, %v2653
      %v2934 = vmul.f32 %v2894, %v2654
      %v2935 = vmul.f32 %v2895, %v2655
      %v2936 = vmul.f32 %v2896, %v2656
      %v2937 = vmul.f32 %v2897, %v2657
      %v2938 = vmul.f32 %v2898, %v2658
      %v2939 = vmul.f32 %v2899, %v2659
      %v2940 = vmul.f32 %v2900, %v2660
      %v2941 = vmul.f32 %v2901, %v2661
      %v2942 = vmul.f32 %v2902, %v2662
      %v2943 = vmul.f32 %v2903, %v2663
      %v2944 = vmul.f32 %v2904, %v2664
      %v2945 = vmul.f32 %v2905, %v2665
      %v2946 = vmul.f32 %v2906, %v2666
      %v2947 = vmul.f32 %v2907, %v2667
      %v2948 = vmul.f32 %v2908, %v2668
      %v2949 = vmul.f32 %v2909, %v2669
      %v2950 = vmul.f32 %v2910, %v2670
      %v2951 = vmul.f32 %v2911, %v2671
      %v2952 = vmul.f32 %v2912, %v2672
      %v2953 = vmul.f32 %v2913, %v2673
      %v2954 = vmul.f32 %v2914, %v2674
      %v2955 = vmul.f32 %v2915, %v2675
      %v2956 = vmul.f32 %v2916, %v2676
      %v2957 = vmul.f32 %v2917, %v2677
      %v2958 = vmul.f32 %v2918, %v2678
      %v2959 = vmul.f32 %v2919, %v2679
      %v2960 = vmul.f32 %v2920, %v2680
      %v2961 = vmul.f32 %v2921, %v2681
      %v2962 = vmul.f32 %v2922, %v2682
      %v2963 = vmul.f32 %v2923, %v2683
      %v2964 = vmul.f32 %v2924, %v2684
      %v2965 = vmul.f32 %v2925, %v2685
      %v2966 = vmul.f32 %v2926, %v2686
      %v2967 = vadd.f32 %v2927, 0.2548296
      %v2968 = vadd.f32 %v2928, 0.2548296
      %v2969 = vadd.f32 %v2929, 0.2548296
      %v2970 = vadd.f32 %v2930, 0.2548296
      %v2971 = vadd.f32 %v2931, 0.2548296
      %v2972 = vadd.f32 %v2932, 0.2548296
      %v2973 = vadd.f32 %v2933, 0.2548296
      %v2974 = vadd.f32 %v2934, 0.2548296
      %v2975 = vadd.f32 %v2935, 0.2548296
      %v2976 = vadd.f32 %v2936, 0.2548296
      %v2977 = vadd.f32 %v2937, 0.2548296
      %v2978 = vadd.f32 %v2938, 0.2548296
      %v2979 = vadd.f32 %v2939, 0.2548296
      %v2980 = vadd.f32 %v2940, 0.2548296
      %v2981 = vadd.f32 %v2941, 0.2548296
      %v2982 = vadd.f32 %v2942, 0.2548296
      %v2983 = vadd.f32 %v2943, 0.2548296
      %v2984 = vadd.f32 %v2944, 0.2548296
      %v2985 = vadd.f32 %v2945, 0.2548296
      %v2986 = vadd.f32 %v2946, 0.2548296
      %v2987 = vadd.f32 %v2947, 0.2548296
      %v2988 = vadd.f32 %v2948, 0.2548296
      %v2989 = vadd.f32 %v2949, 0.2548296
      %v2990 = vadd.f32 %v2950, 0.2548296
      %v2991 = vadd.f32 %v2951, 0.2548296
      %v2992 = vadd.f32 %v2952, 0.2548296
      %v2993 = vadd.f32 %v2953, 0.2548296
      %v2994 = vadd.f32 %v2954, 0.2548296
      %v2995 = vadd.f32 %v2955, 0.2548296
      %v2996 = vadd.f32 %v2956, 0.2548296
      %v2997 = vadd.f32 %v2957, 0.2548296
      %v2998 = vadd.f32 %v2958, 0.2548296
      %v2999 = vadd.f32 %v2959, 0.2548296
      %v3000 = vadd.f32 %v2960, 0.2548296
      %v3001 = vadd.f32 %v2961, 0.2548296
      %v3002 = vadd.f32 %v2962, 0.2548296
      %v3003 = vadd.f32 %v2963, 0.2548296
      %v3004 = vadd.f32 %v2964, 0.2548296
      %v3005 = vadd.f32 %v2965, 0.2548296
      %v3006 = vadd.f32 %v2966, 0.2548296
      %v3007 = vmul.f32 %v2967, %v2647
      %v3008 = vmul.f32 %v2968, %v2648
      %v3009 = vmul.f32 %v2969, %v2649
      %v3010 = vmul.f32 %v2970, %v2650
      %v3011 = vmul.f32 %v2971, %v2651
      %v3012 = vmul.f32 %v2972, %v2652
      %v3013 = vmul.f32 %v2973, %v2653
      %v3014 = vmul.f32 %v2974, %v2654
      %v3015 = vmul.f32 %v2975, %v2655
      %v3016 = vmul.f32 %v2976, %v2656
      %v3017 = vmul.f32 %v2977, %v2657
      %v3018 = vmul.f32 %v2978, %v2658
      %v3019 = vmul.f32 %v2979, %v2659
      %v3020 = vmul.f32 %v2980, %v2660
      %v3021 = vmul.f32 %v2981, %v2661
      %v3022 = vmul.f32 %v2982, %v2662
      %v3023 = vmul.f32 %v2983, %v2663
      %v3024 = vmul.f32 %v2984, %v2664
      %v3025 = vmul.f32 %v2985, %v2665
      %v3026 = vmul.f32 %v2986, %v2666
      %v3027 = vmul.f32 %v2987, %v2667
      %v3028 = vmul.f32 %v2988, %v2668
      %v3029 = vmul.f32 %v2989, %v2669
      %v3030 = vmul.f32 %v2990, %v2670
      %v3031 = vmul.f32 %v2991, %v2671
      %v3032 = vmul.f32 %v2992, %v2672
      %v3033 = vmul.f32 %v2993, %v2673
      %v3034 = vmul.f32 %v2994, %v2674
      %v3035 = vmul.f32 %v2995, %v2675
      %v3036 = vmul.f32 %v2996, %v2676
      %v3037 = vmul.f32 %v2997, %v2677
      %v3038 = vmul.f32 %v2998, %v2678
      %v3039 = vmul.f32 %v2999, %v2679
      %v3040 = vmul.f32 %v3000, %v2680
      %v3041 = vmul.f32 %v3001, %v2681
      %v3042 = vmul.f32 %v3002, %v2682
      %v3043 = vmul.f32 %v3003, %v2683
      %v3044 = vmul.f32 %v3004, %v2684
      %v3045 = vmul.f32 %v3005, %v2685
      %v3046 = vmul.f32 %v3006, %v2686
      %v3047 = vsub.f32 0.0, %v2527
      %v3048 = vsub.f32 0.0, %v2528
      %v3049 = vsub.f32 0.0, %v2529
      %v3050 = vsub.f32 0.0, %v2530
      %v3051 = vsub.f32 0.0, %v2531
      %v3052 = vsub.f32 0.0, %v2532
      %v3053 = vsub.f32 0.0, %v2533
      %v3054 = vsub.f32 0.0, %v2534
      %v3055 = vsub.f32 0.0, %v2535
      %v3056 = vsub.f32 0.0, %v2536
      %v3057 = vsub.f32 0.0, %v2537
      %v3058 = vsub.f32 0.0, %v2538
      %v3059 = vsub.f32 0.0, %v2539
      %v3060 = vsub.f32 0.0, %v2540
      %v3061 = vsub.f32 0.0, %v2541
      %v3062 = vsub.f32 0.0, %v2542
      %v3063 = vsub.f32 0.0, %v2543
      %v3064 = vsub.f32 0.0, %v2544
      %v3065 = vsub.f32 0.0, %v2545
      %v3066 = vsub.f32 0.0, %v2546
      %v3067 = vsub.f32 0.0, %v2547
      %v3068 = vsub.f32 0.0, %v2548
      %v3069 = vsub.f32 0.0, %v2549
      %v3070 = vsub.f32 0.0, %v2550
      %v3071 = vsub.f32 0.0, %v2551
      %v3072 = vsub.f32 0.0, %v2552
      %v3073 = vsub.f32 0.0, %v2553
      %v3074 = vsub.f32 0.0, %v2554
      %v3075 = vsub.f32 0.0, %v2555
      %v3076 = vsub.f32 0.0, %v2556
      %v3077 = vsub.f32 0.0, %v2557
      %v3078 = vsub.f32 0.0, %v2558
      %v3079 = vsub.f32 0.0, %v2559
      %v3080 = vsub.f32 0.0, %v2560
      %v3081 = vsub.f32 0.0, %v2561
      %v3082 = vsub.f32 0.0, %v2562
      %v3083 = vsub.f32 0.0, %v2563
      %v3084 = vsub.f32 0.0, %v2564
      %v3085 = vsub.f32 0.0, %v2565
      %v3086 = vsub.f32 0.0, %v2566
      %v3087 = vmul.f32 %v3047, %v2527
      %v3088 = vmul.f32 %v3048, %v2528
      %v3089 = vmul.f32 %v3049, %v2529
      %v3090 = vmul.f32 %v3050, %v2530
      %v3091 = vmul.f32 %v3051, %v2531
      %v3092 = vmul.f32 %v3052, %v2532
      %v3093 = vmul.f32 %v3053, %v2533
      %v3094 = vmul.f32 %v3054, %v2534
      %v3095 = vmul.f32 %v3055, %v2535
      %v3096 = vmul.f32 %v3056, %v2536
      %v3097 = vmul.f32 %v3057, %v2537
      %v3098 = vmul.f32 %v3058, %v2538
      %v3099 = vmul.f32 %v3059, %v2539
      %v3100 = vmul.f32 %v3060, %v2540
      %v3101 = vmul.f32 %v3061, %v2541
      %v3102 = vmul.f32 %v3062, %v2542
      %v3103 = vmul.f32 %v3063, %v2543
      %v3104 = vmul.f32 %v3064, %v2544
      %v3105 = vmul.f32 %v3065, %v2545
      %v3106 = vmul.f32 %v3066, %v2546
      %v3107 = vmul.f32 %v3067, %v2547
      %v3108 = vmul.f32 %v3068, %v2548
      %v3109 = vmul.f32 %v3069, %v2549
      %v3110 = vmul.f32 %v3070, %v2550
      %v3111 = vmul.f32 %v3071, %v2551
      %v3112 = vmul.f32 %v3072, %v2552
      %v3113 = vmul.f32 %v3073, %v2553
      %v3114 = vmul.f32 %v3074, %v2554
      %v3115 = vmul.f32 %v3075, %v2555
      %v3116 = vmul.f32 %v3076, %v2556
      %v3117 = vmul.f32 %v3077, %v2557
      %v3118 = vmul.f32 %v3078, %v2558
      %v3119 = vmul.f32 %v3079, %v2559
      %v3120 = vmul.f32 %v3080, %v2560
      %v3121 = vmul.f32 %v3081, %v2561
      %v3122 = vmul.f32 %v3082, %v2562
      %v3123 = vmul.f32 %v3083, %v2563
      %v3124 = vmul.f32 %v3084, %v2564
      %v3125 = vmul.f32 %v3085, %v2565
      %v3126 = vmul.f32 %v3086, %v2566
      %v3127 = vmul.f32 %v3087, 1.442695
      %v3128 = vpow.pop %v3127
      %v3129 = vmul.f32 %v3088, 1.442695
      %v3130 = vpow.pop %v3129
      %v3131 = vmul.f32 %v3089, 1.442695
      %v3132 = vpow.pop %v3131
      %v3133 = vmul.f32 %v3090, 1.442695
      %v3134 = vpow.pop %v3133
      %v3135 = vmul.f32 %v3091, 1.442695
      %v3136 = vpow.pop %v3135
      %v3137 = vmul.f32 %v3092, 1.442695
      %v3138 = vpow.pop %v3137
      %v3139 = vmul.f32 %v3093, 1.442695
      %v3140 = vpow.pop %v3139
      %v3141 = vmul.f32 %v3094, 1.442695
      %v3142 = vpow.pop %v3141
      %v3143 = vmul.f32 %v3095, 1.442695
      %v3144 = vpow.pop %v3143
      %v3145 = vmul.f32 %v3096, 1.442695
      %v3146 = vpow.pop %v3145
      %v3147 = vmul.f32 %v3097, 1.442695
      %v3148 = vpow.pop %v3147
      %v3149 = vmul.f32 %v3098, 1.442695
      %v3150 = vpow.pop %v3149
      %v3151 = vmul.f32 %v3099, 1.442695
      %v3152 = vpow.pop %v3151
      %v3153 = vmul.f32 %v3100, 1.442695
      %v3154 = vpow.pop %v3153
      %v3155 = vmul.f32 %v3101, 1.442695
      %v3156 = vpow.pop %v3155
      %v3157 = vmul.f32 %v3102, 1.442695
      %v3158 = vpow.pop %v3157
      %v3159 = vmul.f32 %v3103, 1.442695
      %v3160 = vpow.pop %v3159
      %v3161 = vmul.f32 %v3104, 1.442695
      %v3162 = vpow.pop %v3161
      %v3163 = vmul.f32 %v3105, 1.442695
      %v3164 = vpow.pop %v3163
      %v3165 = vmul.f32 %v3106, 1.442695
      %v3166 = vpow.pop %v3165
      %v3167 = vmul.f32 %v3107, 1.442695
      %v3168 = vpow.pop %v3167
      %v3169 = vmul.f32 %v3108, 1.442695
      %v3170 = vpow.pop %v3169
      %v3171 = vmul.f32 %v3109, 1.442695
      %v3172 = vpow.pop %v3171
      %v3173 = vmul.f32 %v3110, 1.442695
      %v3174 = vpow.pop %v3173
      %v3175 = vmul.f32 %v3111, 1.442695
      %v3176 = vpow.pop %v3175
      %v3177 = vmul.f32 %v3112, 1.442695
      %v3178 = vpow.pop %v3177
      %v3179 = vmul.f32 %v3113, 1.442695
      %v3180 = vpow.pop %v3179
      %v3181 = vmul.f32 %v3114, 1.442695
      %v3182 = vpow.pop %v3181
      %v3183 = vmul.f32 %v3115, 1.442695
      %v3184 = vpow.pop %v3183
      %v3185 = vmul.f32 %v3116, 1.442695
      %v3186 = vpow.pop %v3185
      %v3187 = vmul.f32 %v3117, 1.442695
      %v3188 = vpow.pop %v3187
      %v3189 = vmul.f32 %v3118, 1.442695
      %v3190 = vpow.pop %v3189
      %v3191 = vmul.f32 %v3119, 1.442695
      %v3192 = vpow.pop %v3191
      %v3193 = vmul.f32 %v3120, 1.442695
      %v3194 = vpow.pop %v3193
      %v3195 = vmul.f32 %v3121, 1.442695
      %v3196 = vpow.pop %v3195
      %v3197 = vmul.f32 %v3122, 1.442695
      %v3198 = vpow.pop %v3197
      %v3199 = vmul.f32 %v3123, 1.442695
      %v3200 = vpow.pop %v3199
      %v3201 = vmul.f32 %v3124, 1.442695
      %v3202 = vpow.pop %v3201
      %v3203 = vmul.f32 %v3125, 1.442695
      %v3204 = vpow.pop %v3203
      %v3205 = vmul.f32 %v3126, 1.442695
      %v3206 = vpow.pop %v3205
      %v3207 = vmul.f32 %v3007, %v3128
      %v3208 = vmul.f32 %v3008, %v3130
      %v3209 = vmul.f32 %v3009, %v3132
      %v3210 = vmul.f32 %v3010, %v3134
      %v3211 = vmul.f32 %v3011, %v3136
      %v3212 = vmul.f32 %v3012, %v3138
      %v3213 = vmul.f32 %v3013, %v3140
      %v3214 = vmul.f32 %v3014, %v3142
      %v3215 = vmul.f32 %v3015, %v3144
      %v3216 = vmul.f32 %v3016, %v3146
      %v3217 = vmul.f32 %v3017, %v3148
      %v3218 = vmul.f32 %v3018, %v3150
      %v3219 = vmul.f32 %v3019, %v3152
      %v3220 = vmul.f32 %v3020, %v3154
      %v3221 = vmul.f32 %v3021, %v3156
      %v3222 = vmul.f32 %v3022, %v3158
      %v3223 = vmul.f32 %v3023, %v3160
      %v3224 = vmul.f32 %v3024, %v3162
      %v3225 = vmul.f32 %v3025, %v3164
      %v3226 = vmul.f32 %v3026, %v3166
      %v3227 = vmul.f32 %v3027, %v3168
      %v3228 = vmul.f32 %v3028, %v3170
      %v3229 = vmul.f32 %v3029, %v3172
      %v3230 = vmul.f32 %v3030, %v3174
      %v3231 = vmul.f32 %v3031, %v3176
      %v3232 = vmul.f32 %v3032, %v3178
      %v3233 = vmul.f32 %v3033, %v3180
      %v3234 = vmul.f32 %v3034, %v3182
      %v3235 = vmul.f32 %v3035, %v3184
      %v3236 = vmul.f32 %v3036, %v3186
      %v3237 = vmul.f32 %v3037, %v3188
      %v3238 = vmul.f32 %v3038, %v3190
      %v3239 = vmul.f32 %v3039, %v3192
      %v3240 = vmul.f32 %v3040, %v3194
      %v3241 = vmul.f32 %v3041, %v3196
      %v3242 = vmul.f32 %v3042, %v3198
      %v3243 = vmul.f32 %v3043, %v3200
      %v3244 = vmul.f32 %v3044, %v3202
      %v3245 = vmul.f32 %v3045, %v3204
      %v3246 = vmul.f32 %v3046, %v3206
      %v3247 = vsub.f32 1.0, %v3207
      %v3248 = vsub.f32 1.0, %v3208
      %v3249 = vsub.f32 1.0, %v3209
      %v3250 = vsub.f32 1.0, %v3210
      %v3251 = vsub.f32 1.0, %v3211
      %v3252 = vsub.f32 1.0, %v3212
      %v3253 = vsub.f32 1.0, %v3213
      %v3254 = vsub.f32 1.0, %v3214
      %v3255 = vsub.f32 1.0, %v3215
      %v3256 = vsub.f32 1.0, %v3216
      %v3257 = vsub.f32 1.0, %v3217
      %v3258 = vsub.f32 1.0, %v3218
      %v3259 = vsub.f32 1.0, %v3219
      %v3260 = vsub.f32 1.0, %v3220
      %v3261 = vsub.f32 1.0, %v3221
      %v3262 = vsub.f32 1.0, %v3222
      %v3263 = vsub.f32 1.0, %v3223
      %v3264 = vsub.f32 1.0, %v3224
      %v3265 = vsub.f32 1.0, %v3225
      %v3266 = vsub.f32 1.0, %v3226
      %v3267 = vsub.f32 1.0, %v3227
      %v3268 = vsub.f32 1.0, %v3228
      %v3269 = vsub.f32 1.0, %v3229
      %v3270 = vsub.f32 1.0, %v3230
      %v3271 = vsub.f32 1.0, %v3231
      %v3272 = vsub.f32 1.0, %v3232
      %v3273 = vsub.f32 1.0, %v3233
      %v3274 = vsub.f32 1.0, %v3234
      %v3275 = vsub.f32 1.0, %v3235
      %v3276 = vsub.f32 1.0, %v3236
      %v3277 = vsub.f32 1.0, %v3237
      %v3278 = vsub.f32 1.0, %v3238
      %v3279 = vsub.f32 1.0, %v3239
      %v3280 = vsub.f32 1.0, %v3240
      %v3281 = vsub.f32 1.0, %v3241
      %v3282 = vsub.f32 1.0, %v3242
      %v3283 = vsub.f32 1.0, %v3243
      %v3284 = vsub.f32 1.0, %v3244
      %v3285 = vsub.f32 1.0, %v3245
      %v3286 = vsub.f32 1.0, %v3246
      %v3287 = vmul.f32 %v2487, %v3247
      %v3288 = vmul.f32 %v2488, %v3248
      %v3289 = vmul.f32 %v2489, %v3249
      %v3290 = vmul.f32 %v2490, %v3250
      %v3291 = vmul.f32 %v2491, %v3251
      %v3292 = vmul.f32 %v2492, %v3252
      %v3293 = vmul.f32 %v2493, %v3253
      %v3294 = vmul.f32 %v2494, %v3254
      %v3295 = vmul.f32 %v2495, %v3255
      %v3296 = vmul.f32 %v2496, %v3256
      %v3297 = vmul.f32 %v2497, %v3257
      %v3298 = vmul.f32 %v2498, %v3258
      %v3299 = vmul.f32 %v2499, %v3259
      %v3300 = vmul.f32 %v2500, %v3260
      %v3301 = vmul.f32 %v2501, %v3261
      %v3302 = vmul.f32 %v2502, %v3262
      %v3303 = vmul.f32 %v2503, %v3263
      %v3304 = vmul.f32 %v2504, %v3264
      %v3305 = vmul.f32 %v2505, %v3265
      %v3306 = vmul.f32 %v2506, %v3266
      %v3307 = vmul.f32 %v2507, %v3267
      %v3308 = vmul.f32 %v2508, %v3268
      %v3309 = vmul.f32 %v2509, %v3269
      %v3310 = vmul.f32 %v2510, %v3270
      %v3311 = vmul.f32 %v2511, %v3271
      %v3312 = vmul.f32 %v2512, %v3272
      %v3313 = vmul.f32 %v2513, %v3273
      %v3314 = vmul.f32 %v2514, %v3274
      %v3315 = vmul.f32 %v2515, %v3275
      %v3316 = vmul.f32 %v2516, %v3276
      %v3317 = vmul.f32 %v2517, %v3277
      %v3318 = vmul.f32 %v2518, %v3278
      %v3319 = vmul.f32 %v2519, %v3279
      %v3320 = vmul.f32 %v2520, %v3280
      %v3321 = vmul.f32 %v2521, %v3281
      %v3322 = vmul.f32 %v2522, %v3282
      %v3323 = vmul.f32 %v2523, %v3283
      %v3324 = vmul.f32 %v2524, %v3284
      %v3325 = vmul.f32 %v2525, %v3285
      %v3326 = vmul.f32 %v2526, %v3286
      %v3327 = vmul.f32 %v2231, 0.5
      %v3328 = vmul.f32 %v2233, 0.5
      %v3329 = vmul.f32 %v2304, 0.5
      %v3330 = vmul.f32 %v2306, 0.5
      %v3331 = vmul.f32 %v2377, 0.5
      %v3332 = vmul.f32 %v2235, 0.5
      %v3333 = vmul.f32 %v2237, 0.5
      %v3334 = vmul.f32 %v2308, 0.5
      %v3335 = vmul.f32 %v2310, 0.5
      %v3336 = vmul.f32 %v2380, 0.5
      %v3337 = vmul.f32 %v2241, 0.5
      %v3338 = vmul.f32 %v2243, 0.5
      %v3339 = vmul.f32 %v2314, 0.5
      %v3340 = vmul.f32 %v2316, 0.5
      %v3341 = vmul.f32 %v2385, 0.5
      %v3342 = vmul.f32 %v2245, 0.5
      %v3343 = vmul.f32 %v2247, 0.5
      %v3344 = vmul.f32 %v2318, 0.5
      %v3345 = vmul.f32 %v2320, 0.5
      %v3346 = vmul.f32 %v2388, 0.5
      %v3347 = vmul.f32 %v2251, 0.5
      %v3348 = vmul.f32 %v2253, 0.5
      %v3349 = vmul.f32 %v2324, 0.5
      %v3350 = vmul.f32 %v2326, 0.5
      %v3351 = vmul.f32 %v2393, 0.5
      %v3352 = vmul.f32 %v2255, 0.5
      %v3353 = vmul.f32 %v2257, 0.5
      %v3354 = vmul.f32 %v2328, 0.5
      %v3355 = vmul.f32 %v2330, 0.5
      %v3356 = vmul.f32 %v2396, 0.5
      %v3357 = vmul.f32 %v2261, 0.5
      %v3358 = vmul.f32 %v2263, 0.5
      %v3359 = vmul.f32 %v2334, 0.5
      %v3360 = vmul.f32 %v2336, 0.5
      %v3361 = vmul.f32 %v2401, 0.5
      %v3362 = vmul.f32 %v2265, 0.5
      %v3363 = vmul.f32 %v2267, 0.5
      %v3364 = vmul.f32 %v2338, 0.5
      %v3365 = vmul.f32 %v2340, 0.5
      %v3366 = vmul.f32 %v2404, 0.5
      %v3367 = vadd.f32 %v3287, 1.0
      %v3368 = vadd.f32 %v3288, 1.0
      %v3369 = vadd.f32 %v3289, 1.0
      %v3370 = vadd.f32 %v3290, 1.0
      %v3371 = vadd.f32 %v3291, 1.0
      %v3372 = vadd.f32 %v3292, 1.0
      %v3373 = vadd.f32 %v3293, 1.0
      %v3374 = vadd.f32 %v3294, 1.0
      %v3375 = vadd.f32 %v3295, 1.0
      %v3376 = vadd.f32 %v3296, 1.0
      %v3377 = vadd.f32 %v3297, 1.0
      %v3378 = vadd.f32 %v3298, 1.0
      %v3379 = vadd.f32 %v3299, 1.0
      %v3380 = vadd.f32 %v3300, 1.0
      %v3381 = vadd.f32 %v3301, 1.0
      %v3382 = vadd.f32 %v3302, 1.0
      %v3383 = vadd.f32 %v3303, 1.0
      %v3384 = vadd.f32 %v3304, 1.0
      %v3385 = vadd.f32 %v3305, 1.0
      %v3386 = vadd.f32 %v3306, 1.0
      %v3387 = vadd.f32 %v3307, 1.0
      %v3388 = vadd.f32 %v3308, 1.0
      %v3389 = vadd.f32 %v3309, 1.0
      %v3390 = vadd.f32 %v3310, 1.0
      %v3391 = vadd.f32 %v3311, 1.0
      %v3392 = vadd.f32 %v3312, 1.0
      %v3393 = vadd.f32 %v3313, 1.0
      %v3394 = vadd.f32 %v3314, 1.0
      %v3395 = vadd.f32 %v3315, 1.0
      %v3396 = vadd.f32 %v3316, 1.0
      %v3397 = vadd.f32 %v3317, 1.0
      %v3398 = vadd.f32 %v3318, 1.0
      %v3399 = vadd.f32 %v3319, 1.0
      %v3400 = vadd.f32 %v3320, 1.0
      %v3401 = vadd.f32 %v3321, 1.0
      %v3402 = vadd.f32 %v3322, 1.0
      %v3403 = vadd.f32 %v3323, 1.0
      %v3404 = vadd.f32 %v3324, 1.0
      %v3405 = vadd.f32 %v3325, 1.0
      %v3406 = vadd.f32 %v3326, 1.0
      %v3407 = vmul.f32 %v3327, %v3367
      %v3408 = vmul.f32 %v3328, %v3368
      %v3409 = vmul.f32 %v3329, %v3369
      %v3410 = vmul.f32 %v3330, %v3370
      %v3411 = vmul.f32 %v3331, %v3371
      %v3412 = vmul.f32 %v3332, %v3372
      %v3413 = vmul.f32 %v3333, %v3373
      %v3414 = vmul.f32 %v3334, %v3374
      %v3415 = vmul.f32 %v3335, %v3375
      %v3416 = vmul.f32 %v3336, %v3376
      %v3417 = vmul.f32 %v3337, %v3377
      %v3418 = vmul.f32 %v3338, %v3378
      %v3419 = vmul.f32 %v3339, %v3379
      %v3420 = vmul.f32 %v3340, %v3380
      %v3421 = vmul.f32 %v3341, %v3381
      %v3422 = vmul.f32 %v3342, %v3382
      %v3423 = vmul.f32 %v3343, %v3383
      %v3424 = vmul.f32 %v3344, %v3384
      %v3425 = vmul.f32 %v3345, %v3385
      %v3426 = vmul.f32 %v3346, %v3386
      %v3427 = vmul.f32 %v3347, %v3387
      %v3428 = vmul.f32 %v3348, %v3388
      %v3429 = vmul.f32 %v3349, %v3389
      %v3430 = vmul.f32 %v3350, %v3390
      %v3431 = vmul.f32 %v3351, %v3391
      %v3432 = vmul.f32 %v3352, %v3392
      %v3433 = vmul.f32 %v3353, %v3393
      %v3434 = vmul.f32 %v3354, %v3394
      %v3435 = vmul.f32 %v3355, %v3395
      %v3436 = vmul.f32 %v3356, %v3396
      %v3437 = vmul.f32 %v3357, %v3397
      %v3438 = vmul.f32 %v3358, %v3398
      %v3439 = vmul.f32 %v3359, %v3399
      %v3440 = vmul.f32 %v3360, %v3400
      %v3441 = vmul.f32 %v3361, %v3401
      %v3442 = vmul.f32 %v3362, %v3402
      %v3443 = vmul.f32 %v3363, %v3403
      %v3444 = vmul.f32 %v3364, %v3404
      %v3445 = vmul.f32 %v3365, %v3405
      %v3446 = vmul.f32 %v3366, %v3406
      %v3447 = vld [vmem:[%s17] sm:$0xf]
      %v3448 = vld [vmem:[%s17 + $0x4] sm:$0xf]
      %v3449 = vpack.c.bf16 %v3412, %v3407
      %v3450 = vpack.c.bf16 %v3413, %v3408
      %v3451 = vpack.c.bf16 %v3414, %v3409
      %v3452 = vpack.c.bf16 %v3415, %v3410
      %v3453 = vpack.c.bf16 %v3416, %v3411
      %v3454 = vpack.c.bf16 %v3422, %v3417
      %v3455 = vpack.c.bf16 %v3423, %v3418
      %v3456 = vpack.c.bf16 %v3424, %v3419
      %v3457 = vpack.c.bf16 %v3425, %v3420
      %v3458 = vpack.c.bf16 %v3426, %v3421
      %v3459 = vpack.c.bf16 %v3432, %v3427
      %v3460 = vpack.c.bf16 %v3433, %v3428
      %v3461 = vpack.c.bf16 %v3434, %v3429
      %v3462 = vpack.c.bf16 %v3435, %v3430
      %v3463 = vpack.c.bf16 %v3436, %v3431
      %v3464 = vpack.c.bf16 %v3442, %v3437
      %v3465 = vpack.c.bf16 %v3443, %v3438
      %v3466 = vpack.c.bf16 %v3444, %v3439
      %v3467 = vpack.c.bf16 %v3445, %v3440
      %v3468 = vpack.c.bf16 %v3446, %v3441
      %v3471 = vunpack.c.l.b16 %v3447
      %v3472 = vunpack.c.l.b16 %v3448
      %v3473 = vpack.c.b16 %v3472, %v3471
      %vm3474 = vcmask 523264
      %v3476 = vsel %vm3474, %v3473, 0
      %3478 = vmatprep.subr.bf16.mxu0 0
      %3479 = vmatpush1.bf16.msra.mxu0 0
      %3480 = vmatprep.subr.bf16.mxu0 0
      %3481 = vmatpush1.bf16.msra.mxu0 0
      %3482 = vmatprep.subr.bf16.mxu0 0
      %3483 = vmatpush1.bf16.msra.mxu0 0
      %3484 = vmatprep.subr.bf16.mxu0 0
      %3485 = vmatpush1.bf16.msra.mxu0 0
      %3486 = vmatprep.subr.bf16.mxu0 %v3465
      %3487 = vmatpush1.bf16.msra.mxu0 %v3464
      %3488 = vmatprep.subr.bf16.mxu0 %v3460
      %3489 = vmatpush1.bf16.msra.mxu0 %v3459
      %3490 = vmatprep.subr.bf16.mxu0 %v3455
      %3491 = vmatpush1.bf16.msra.mxu0 %v3454
      %3492 = vmatprep.subr.bf16.mxu0 %v3450
      %3493 = vmatpush1.bf16.msra.mxu0 %v3449
      %3494 = vmatprep.subr.bf16.mxu0 0
      %3495 = vmatpush2.bf16.msra.mxu0 0
      %3496 = vmatprep.subr.bf16.mxu0 0
      %3497 = vmatpush2.bf16.msra.mxu0 0
      %3498 = vmatprep.subr.bf16.mxu0 0
      %3499 = vmatpush2.bf16.msra.mxu0 0
      %3500 = vmatprep.subr.bf16.mxu0 0
      %3501 = vmatpush2.bf16.msra.mxu0 0
      %3502 = vmatprep.subr.bf16.mxu0 0
      %3503 = vmatpush2.bf16.msra.mxu0 0
      %3504 = vmatprep.subr.bf16.mxu0 0
      %3505 = vmatpush2.bf16.msra.mxu0 0
      %3506 = vmatprep.subr.bf16.mxu0 0
      %3507 = vmatpush2.bf16.msra.mxu0 0
      %3508 = vmatprep.subr.bf16.mxu0 0
      %3509 = vmatpush2.bf16.msra.mxu0 0
      %3510 = vmatprep.mubr.bf16.mxu0 0
      %3511 = vmatmul.mubr.bf16.gmra.mxu0 %v3476
      %v3512 = vpop.f32.mrf.mxu0
      %v3513 = vadd.f32 0.0, %v3512
      %v3514 = vpop.f32.mrf.mxu0
      %v3515 = vadd.f32 0.0, %v3514
      %v3516 = vpop.f32.mrf.mxu0
      %v3517 = vadd.f32 0.0, %v3516
      %v3518 = vpop.f32.mrf.mxu0
      %v3519 = vadd.f32 0.0, %v3518
      %3520 = vdwg.mxu0
      %3521 = vmatprep.subr.bf16.mxu0 0
      %3522 = vmatpush1.bf16.msra.mxu0 0
      %3523 = vmatprep.subr.bf16.mxu0 0
      %3524 = vmatpush1.bf16.msra.mxu0 0
      %3525 = vmatprep.subr.bf16.mxu0 0
      %3526 = vmatpush1.bf16.msra.mxu0 0
      %3527 = vmatprep.subr.bf16.mxu0 0
      %3528 = vmatpush1.bf16.msra.mxu0 0
      %3529 = vmatprep.subr.bf16.mxu0 %v3467
      %3530 = vmatpush1.bf16.msra.mxu0 %v3466
      %3531 = vmatprep.subr.bf16.mxu0 %v3462
      %3532 = vmatpush1.bf16.msra.mxu0 %v3461
      %3533 = vmatprep.subr.bf16.mxu0 %v3457
      %3534 = vmatpush1.bf16.msra.mxu0 %v3456
      %3535 = vmatprep.subr.bf16.mxu0 %v3452
      %3536 = vmatpush1.bf16.msra.mxu0 %v3451
      %3537 = vmatprep.subr.bf16.mxu0 0
      %3538 = vmatpush2.bf16.msra.mxu0 0
      %3539 = vmatprep.subr.bf16.mxu0 0
      %3540 = vmatpush2.bf16.msra.mxu0 0
      %3541 = vmatprep.subr.bf16.mxu0 0
      %3542 = vmatpush2.bf16.msra.mxu0 0
      %3543 = vmatprep.subr.bf16.mxu0 0
      %3544 = vmatpush2.bf16.msra.mxu0 0
      %3545 = vmatprep.subr.bf16.mxu0 0
      %3546 = vmatpush2.bf16.msra.mxu0 0
      %3547 = vmatprep.subr.bf16.mxu0 0
      %3548 = vmatpush2.bf16.msra.mxu0 0
      %3549 = vmatprep.subr.bf16.mxu0 0
      %3550 = vmatpush2.bf16.msra.mxu0 0
      %3551 = vmatprep.subr.bf16.mxu0 0
      %3552 = vmatpush2.bf16.msra.mxu0 0
      %3553 = vmatprep.mubr.bf16.mxu0 0
      %3554 = vmatmul.mubr.bf16.gmra.mxu0 %v3476
      %v3555 = vpop.f32.mrf.mxu0
      %v3556 = vadd.f32 0.0, %v3555
      %v3557 = vpop.f32.mrf.mxu0
      %v3558 = vadd.f32 0.0, %v3557
      %v3559 = vpop.f32.mrf.mxu0
      %v3560 = vadd.f32 0.0, %v3559
      %v3561 = vpop.f32.mrf.mxu0
      %v3562 = vadd.f32 0.0, %v3561
      %3563 = vdwg.mxu0
      %3564 = vmatprep.subr.bf16.mxu0 0
      %3565 = vmatpush1.bf16.msra.mxu0 0
      %3566 = vmatprep.subr.bf16.mxu0 0
      %3567 = vmatpush1.bf16.msra.mxu0 0
      %3568 = vmatprep.subr.bf16.mxu0 0
      %3569 = vmatpush1.bf16.msra.mxu0 0
      %3570 = vmatprep.subr.bf16.mxu0 0
      %3571 = vmatpush1.bf16.msra.mxu0 0
      %3572 = vmatprep.subr.bf16.mxu0 0
      %3573 = vmatpush1.bf16.msra.mxu0 %v3468
      %3574 = vmatprep.subr.bf16.mxu0 0
      %3575 = vmatpush1.bf16.msra.mxu0 %v3463
      %3576 = vmatprep.subr.bf16.mxu0 0
      %3577 = vmatpush1.bf16.msra.mxu0 %v3458
      %3578 = vmatprep.subr.bf16.mxu0 0
      %3579 = vmatpush1.bf16.msra.mxu0 %v3453
      %3580 = vmatprep.subr.bf16.mxu0 0
      %3581 = vmatpush2.bf16.msra.mxu0 0
      %3582 = vmatprep.subr.bf16.mxu0 0
      %3583 = vmatpush2.bf16.msra.mxu0 0
      %3584 = vmatprep.subr.bf16.mxu0 0
      %3585 = vmatpush2.bf16.msra.mxu0 0
      %3586 = vmatprep.subr.bf16.mxu0 0
      %3587 = vmatpush2.bf16.msra.mxu0 0
      %3588 = vmatprep.subr.bf16.mxu0 0
      %3589 = vmatpush2.bf16.msra.mxu0 0
      %3590 = vmatprep.subr.bf16.mxu0 0
      %3591 = vmatpush2.bf16.msra.mxu0 0
      %3592 = vmatprep.subr.bf16.mxu0 0
      %3593 = vmatpush2.bf16.msra.mxu0 0
      %3594 = vmatprep.subr.bf16.mxu0 0
      %3595 = vmatpush2.bf16.msra.mxu0 0
      %3596 = vmatprep.mubr.bf16.mxu0 0
      %3597 = vmatmul.mubr.bf16.gmra.mxu0 %v3476
      %v3598 = vpop.f32.mrf.mxu0
      %v3599 = vadd.f32 0.0, %v3598
      %v3600 = vpop.f32.mrf.mxu0
      %v3601 = vpop.f32.mrf.mxu0
      %v3602 = vadd.f32 0.0, %v3601
      %v3603 = vpop.f32.mrf.mxu0
      %3604 = vdwg.mxu0
      %v3605 = vadd.f32 %v1145, %v3513
      %v3606 = vadd.f32 %v1147, %v3515
      %v3607 = vadd.f32 %v1188, %v3556
      %v3608 = vadd.f32 %v1190, %v3558
      %v3609 = vadd.f32 %v1231, %v3599
      %v3610 = vadd.f32 %v1149, %v3517
      %v3611 = vadd.f32 %v1151, %v3519
      %v3612 = vadd.f32 %v1192, %v3560
      %v3613 = vadd.f32 %v1194, %v3562
      %v3614 = vadd.f32 %v1234, %v3602
      %v3615 = vld [vmem:[%s19] sm:$0xff]
      %v3616 = vld [vmem:[%s19 + $0x8] sm:$0xff]
      %3618 = vset.pattern.permute.xlu0 0
      %3619 = vperm.xlu0 %3618, %v3615
      %v3620 = vpop.permute.xlu0 %3619
      %3623 = vset.pattern.permute.xlu0 0
      %3624 = vperm.xlu0 %3623, %v3616
      %v3625 = vpop.permute.xlu0 %3624
      %v3627 = vadd.f32 %v3605, %v3620
      %v3628 = vadd.f32 %v3606, %v3620
      %v3629 = vadd.f32 %v3607, %v3620
      %v3630 = vadd.f32 %v3608, %v3620
      %v3631 = vadd.f32 %v3609, %v3620
      %v3632 = vadd.f32 %v3610, %v3625
      %v3633 = vadd.f32 %v3611, %v3625
      %v3634 = vadd.f32 %v3612, %v3625
      %v3635 = vadd.f32 %v3613, %v3625
      %v3636 = vadd.f32 %v3614, %v3625
      %v3637 = vld [vmem:[%s21] sm:$0x3]
      %v3638 = vpack.c.bf16 %v3632, %v3627
      %v3639 = vpack.c.bf16 %v3633, %v3628
      %v3640 = vpack.c.bf16 %v3634, %v3629
      %v3641 = vpack.c.bf16 %v3635, %v3630
      %v3642 = vpack.c.bf16 %v3636, %v3631
      %v3643 = vld [vmem:[%s23] sm:$0xf]
      %3645 = vset.pattern.permute.xlu0 0
      %3646 = vperm.xlu0 %3645, %v3643
      %v3647 = vpop.permute.xlu0 %3646
      %v3650 = vsel %vm2183, %v3637, 0
      %3652 = vmatprep.subr.bf16.mxu0 0
      %3653 = vmatpush1.bf16.msra.mxu0 0
      %3654 = vmatprep.subr.bf16.mxu0 0
      %3655 = vmatpush1.bf16.msra.mxu0 0
      %3656 = vmatprep.subr.bf16.mxu0 0
      %3657 = vmatpush1.bf16.msra.mxu0 0
      %3658 = vmatprep.subr.bf16.mxu0 0
      %3659 = vmatpush1.bf16.msra.mxu0 0
      %3660 = vmatprep.subr.bf16.mxu0 0
      %3661 = vmatpush1.bf16.msra.mxu0 0
      %3662 = vmatprep.subr.bf16.mxu0 0
      %3663 = vmatpush1.bf16.msra.mxu0 0
      %3664 = vmatprep.subr.bf16.mxu0 0
      %3665 = vmatpush1.bf16.msra.mxu0 0
      %3666 = vmatprep.subr.bf16.mxu0 %v3639
      %3667 = vmatpush1.bf16.msra.mxu0 %v3638
      %3668 = vmatprep.subr.bf16.mxu0 0
      %3669 = vmatpush2.bf16.msra.mxu0 0
      %3670 = vmatprep.subr.bf16.mxu0 0
      %3671 = vmatpush2.bf16.msra.mxu0 0
      %3672 = vmatprep.subr.bf16.mxu0 0
      %3673 = vmatpush2.bf16.msra.mxu0 0
      %3674 = vmatprep.subr.bf16.mxu0 0
      %3675 = vmatpush2.bf16.msra.mxu0 0
      %3676 = vmatprep.subr.bf16.mxu0 0
      %3677 = vmatpush2.bf16.msra.mxu0 0
      %3678 = vmatprep.subr.bf16.mxu0 0
      %3679 = vmatpush2.bf16.msra.mxu0 0
      %3680 = vmatprep.subr.bf16.mxu0 0
      %3681 = vmatpush2.bf16.msra.mxu0 0
      %3682 = vmatprep.subr.bf16.mxu0 0
      %3683 = vmatpush2.bf16.msra.mxu0 0
      %3684 = vmatprep.mubr.bf16.mxu0 0
      %3685 = vmatmul.mubr.bf16.gmra.mxu0 %v3650
      %v3686 = vpop.f32.mrf.mxu0
      %v3687 = vadd.f32 %v3647, %v3686
      %v3688 = vpop.f32.mrf.mxu0
      %v3689 = vadd.f32 %v3647, %v3688
      %v3690 = vpop.f32.mrf.mxu0
      %v3691 = vpop.f32.mrf.mxu0
      %3692 = vdwg.mxu0
      %3693 = vmatprep.subr.bf16.mxu0 0
      %3694 = vmatpush1.bf16.msra.mxu0 0
      %3695 = vmatprep.subr.bf16.mxu0 0
      %3696 = vmatpush1.bf16.msra.mxu0 0
      %3697 = vmatprep.subr.bf16.mxu0 0
      %3698 = vmatpush1.bf16.msra.mxu0 0
      %3699 = vmatprep.subr.bf16.mxu0 0
      %3700 = vmatpush1.bf16.msra.mxu0 0
      %3701 = vmatprep.subr.bf16.mxu0 0
      %3702 = vmatpush1.bf16.msra.mxu0 0
      %3703 = vmatprep.subr.bf16.mxu0 0
      %3704 = vmatpush1.bf16.msra.mxu0 0
      %3705 = vmatprep.subr.bf16.mxu0 0
      %3706 = vmatpush1.bf16.msra.mxu0 0
      %3707 = vmatprep.subr.bf16.mxu0 %v3641
      %3708 = vmatpush1.bf16.msra.mxu0 %v3640
      %3709 = vmatprep.subr.bf16.mxu0 0
      %3710 = vmatpush2.bf16.msra.mxu0 0
      %3711 = vmatprep.subr.bf16.mxu0 0
      %3712 = vmatpush2.bf16.msra.mxu0 0
      %3713 = vmatprep.subr.bf16.mxu0 0
      %3714 = vmatpush2.bf16.msra.mxu0 0
      %3715 = vmatprep.subr.bf16.mxu0 0
      %3716 = vmatpush2.bf16.msra.mxu0 0
      %3717 = vmatprep.subr.bf16.mxu0 0
      %3718 = vmatpush2.bf16.msra.mxu0 0
      %3719 = vmatprep.subr.bf16.mxu0 0
      %3720 = vmatpush2.bf16.msra.mxu0 0
      %3721 = vmatprep.subr.bf16.mxu0 0
      %3722 = vmatpush2.bf16.msra.mxu0 0
      %3723 = vmatprep.subr.bf16.mxu0 0
      %3724 = vmatpush2.bf16.msra.mxu0 0
      %3725 = vmatprep.mubr.bf16.mxu0 0
      %3726 = vmatmul.mubr.bf16.gmra.mxu0 %v3650
      %v3727 = vpop.f32.mrf.mxu0
      %v3728 = vadd.f32 %v3647, %v3727
      %v3729 = vpop.f32.mrf.mxu0
      %v3730 = vadd.f32 %v3647, %v3729
      %v3731 = vpop.f32.mrf.mxu0
      %v3732 = vpop.f32.mrf.mxu0
      %3733 = vdwg.mxu0
      %3734 = vmatprep.subr.bf16.mxu0 0
      %3735 = vmatpush1.bf16.msra.mxu0 0
      %3736 = vmatprep.subr.bf16.mxu0 0
      %3737 = vmatpush1.bf16.msra.mxu0 0
      %3738 = vmatprep.subr.bf16.mxu0 0
      %3739 = vmatpush1.bf16.msra.mxu0 0
      %3740 = vmatprep.subr.bf16.mxu0 0
      %3741 = vmatpush1.bf16.msra.mxu0 0
      %3742 = vmatprep.subr.bf16.mxu0 0
      %3743 = vmatpush1.bf16.msra.mxu0 0
      %3744 = vmatprep.subr.bf16.mxu0 0
      %3745 = vmatpush1.bf16.msra.mxu0 0
      %3746 = vmatprep.subr.bf16.mxu0 0
      %3747 = vmatpush1.bf16.msra.mxu0 0
      %3748 = vmatprep.subr.bf16.mxu0 0
      %3749 = vmatpush1.bf16.msra.mxu0 %v3642
      %3750 = vmatprep.subr.bf16.mxu0 0
      %3751 = vmatpush2.bf16.msra.mxu0 0
      %3752 = vmatprep.subr.bf16.mxu0 0
      %3753 = vmatpush2.bf16.msra.mxu0 0
      %3754 = vmatprep.subr.bf16.mxu0 0
      %3755 = vmatpush2.bf16.msra.mxu0 0
      %3756 = vmatprep.subr.bf16.mxu0 0
      %3757 = vmatpush2.bf16.msra.mxu0 0
      %3758 = vmatprep.subr.bf16.mxu0 0
      %3759 = vmatpush2.bf16.msra.mxu0 0
      %3760 = vmatprep.subr.bf16.mxu0 0
      %3761 = vmatpush2.bf16.msra.mxu0 0
      %3762 = vmatprep.subr.bf16.mxu0 0
      %3763 = vmatpush2.bf16.msra.mxu0 0
      %3764 = vmatprep.subr.bf16.mxu0 0
      %3765 = vmatpush2.bf16.msra.mxu0 0
      %3766 = vmatprep.mubr.bf16.mxu0 0
      %3767 = vmatmul.mubr.bf16.gmra.mxu0 %v3650
      %v3768 = vpop.f32.mrf.mxu0
      %v3769 = vadd.f32 %v3647, %v3768
      %v3770 = vpop.f32.mrf.mxu0
      %v3771 = vpop.f32.mrf.mxu0
      %v3772 = vpop.f32.mrf.mxu0
      %3773 = vdwg.mxu0
      %v3778 = vcombine.low %v3687, %v3689
      %v3779 = vcombine.low %v3728, %v3730
      %3782 = vst [vmem:[#allocation3] sm:$0xff] %v3778
      %3783 = vst [vmem:[#allocation3 + $0x8] sm:$0xff] %v3779
      %vm3784 = vcmask 912384
      %3785 = vst.msk [vmem:[#allocation3 + $0x10] sm:$0xf] %vm3784, %v3769
      %v3786 = vld [vmem:[%s25] sm:$0xf]
      %v3787 = vld [vmem:[#allocation3] sm:$0xff]
      %v3788 = vld [vmem:[#allocation3 + $0x8] sm:$0xff]
      %v3789 = vld [vmem:[#allocation3 + $0x10] sm:$0xf]
      %s3790 = scalar_lea.vmem %s25, 4
      %v3791 = vld [vmem:[%s3790] sm:$0xf]
      %v3795 = vcombine.high %v3787, %v3787
      %v3796 = vcombine.high %v3788, %v3788
      %3797 = vrot.lane.b32.xlu0 %v3787, 127
      %v3798 = vpop.permute.xlu0 %3797
      %3799 = vrot.lane.b32.xlu0 %v3795, 127
      %v3800 = vpop.permute.xlu0 %3799
      %3801 = vrot.lane.b32.xlu0 %v3788, 127
      %v3802 = vpop.permute.xlu0 %3801
      %3803 = vrot.lane.b32.xlu0 %v3796, 127
      %v3804 = vpop.permute.xlu0 %3803
      %3805 = vrot.lane.b32.xlu0 %v3789, 127
      %v3806 = vpop.permute.xlu0 %3805
      %v3807 = vsel %vm1384, %v3798, %v3800
      %v3808 = vsel %vm1384, %v3800, %v3802
      %v3809 = vsel %vm1384, %v3802, %v3804
      %v3810 = vsel %vm1384, %v3804, %v3806
      %vm3811 = vcmask 31744
      %v3813 = vsel %vm3811, %v3791, 0
      %vm3815 = vcmask 1043456
      %v3816 = vsel %vm3815, %v3807, 0
      %v3818 = vsel %vm3815, %v3808, 0
      %v3820 = vsel %vm3815, %v3809, 0
      %v3822 = vsel %vm3815, %v3810, 0
      %v3824 = vsel %vm3815, %v3806, 0
      %3826 = vmatprep.subr.mxu0 0.0
      %3827 = vmatpush1.msra.mxu0 0.0
      %3828 = vmatprep.subr.mxu0 0.0
      %3829 = vmatpush1.msra.mxu0 0.0
      %3830 = vmatprep.subr.mxu0 0.0
      %3831 = vmatpush1.msra.mxu0 0.0
      %3832 = vmatprep.subr.mxu0 0.0
      %3833 = vmatpush1.msra.mxu0 0.0
      %3834 = vmatprep.subr.mxu0 0.0
      %3835 = vmatpush1.msra.mxu0 0.0
      %3836 = vmatprep.subr.mxu0 0.0
      %3837 = vmatpush1.msra.mxu0 0.0
      %3838 = vmatprep.subr.mxu0 0.0
      %3839 = vmatpush1.msra.mxu0 0.0
      %3840 = vmatprep.subr.mxu0 0.0
      %3841 = vmatpush1.msra.mxu0 0.0
      %3842 = vmatprep.subr.mxu0 0.0
      %3843 = vmatpush1.msra.mxu0 0.0
      %3844 = vmatprep.subr.mxu0 0.0
      %3845 = vmatpush1.msra.mxu0 0.0
      %3846 = vmatprep.subr.mxu0 0.0
      %3847 = vmatpush1.msra.mxu0 0.0
      %3848 = vmatprep.subr.mxu0 0.0
      %3849 = vmatpush1.msra.mxu0 0.0
      %3850 = vmatprep.subr.mxu0 0.0
      %3851 = vmatpush1.msra.mxu0 0.0
      %3852 = vmatprep.subr.mxu0 0.0
      %3853 = vmatpush1.msra.mxu0 0.0
      %3854 = vmatprep.subr.mxu0 0.0
      %3855 = vmatpush1.msra.mxu0 0.0
      %3856 = vmatprep.subr.mxu0 %v3818
      %3857 = vmatpush1.msra.mxu0 %v3816
      %3858 = vmatprep.subr.mxu0 0.0
      %3859 = vmatpush2.msra.mxu0 0.0
      %3860 = vmatprep.subr.mxu0 0.0
      %3861 = vmatpush2.msra.mxu0 0.0
      %3862 = vmatprep.subr.mxu0 0.0
      %3863 = vmatpush2.msra.mxu0 0.0
      %3864 = vmatprep.subr.mxu0 0.0
      %3865 = vmatpush2.msra.mxu0 0.0
      %3866 = vmatprep.subr.mxu0 0.0
      %3867 = vmatpush2.msra.mxu0 0.0
      %3868 = vmatprep.subr.mxu0 0.0
      %3869 = vmatpush2.msra.mxu0 0.0
      %3870 = vmatprep.subr.mxu0 0.0
      %3871 = vmatpush2.msra.mxu0 0.0
      %3872 = vmatprep.subr.mxu0 0.0
      %3873 = vmatpush2.msra.mxu0 0.0
      %3874 = vmatprep.subr.mxu0 0.0
      %3875 = vmatpush2.msra.mxu0 0.0
      %3876 = vmatprep.subr.mxu0 0.0
      %3877 = vmatpush2.msra.mxu0 0.0
      %3878 = vmatprep.subr.mxu0 0.0
      %3879 = vmatpush2.msra.mxu0 0.0
      %3880 = vmatprep.subr.mxu0 0.0
      %3881 = vmatpush2.msra.mxu0 0.0
      %3882 = vmatprep.subr.mxu0 0.0
      %3883 = vmatpush2.msra.mxu0 0.0
      %3884 = vmatprep.subr.mxu0 0.0
      %3885 = vmatpush2.msra.mxu0 0.0
      %3886 = vmatprep.subr.mxu0 0.0
      %3887 = vmatpush2.msra.mxu0 0.0
      %3888 = vmatprep.subr.mxu0 0.0
      %3889 = vmatpush2.msra.mxu0 0.0
      %3890 = vmatprep.mubr.f32.mxu0 0.0
      %3891 = vmatmul.mubr.f32.gmra.mxu0 %v3813
      %v3892 = vpop.f32.mrf.mxu0
      %v3893 = vadd.f32 0.0, %v3892
      %v3894 = vpop.f32.mrf.mxu0
      %v3895 = vadd.f32 0.0, %v3894
      %3896 = vdwg.mxu0
      %3897 = vmatprep.subr.mxu0 0.0
      %3898 = vmatpush1.msra.mxu0 0.0
      %3899 = vmatprep.subr.mxu0 0.0
      %3900 = vmatpush1.msra.mxu0 0.0
      %3901 = vmatprep.subr.mxu0 0.0
      %3902 = vmatpush1.msra.mxu0 0.0
      %3903 = vmatprep.subr.mxu0 0.0
      %3904 = vmatpush1.msra.mxu0 0.0
      %3905 = vmatprep.subr.mxu0 0.0
      %3906 = vmatpush1.msra.mxu0 0.0
      %3907 = vmatprep.subr.mxu0 0.0
      %3908 = vmatpush1.msra.mxu0 0.0
      %3909 = vmatprep.subr.mxu0 0.0
      %3910 = vmatpush1.msra.mxu0 0.0
      %3911 = vmatprep.subr.mxu0 0.0
      %3912 = vmatpush1.msra.mxu0 0.0
      %3913 = vmatprep.subr.mxu0 0.0
      %3914 = vmatpush1.msra.mxu0 0.0
      %3915 = vmatprep.subr.mxu0 0.0
      %3916 = vmatpush1.msra.mxu0 0.0
      %3917 = vmatprep.subr.mxu0 0.0
      %3918 = vmatpush1.msra.mxu0 0.0
      %3919 = vmatprep.subr.mxu0 0.0
      %3920 = vmatpush1.msra.mxu0 0.0
      %3921 = vmatprep.subr.mxu0 0.0
      %3922 = vmatpush1.msra.mxu0 0.0
      %3923 = vmatprep.subr.mxu0 0.0
      %3924 = vmatpush1.msra.mxu0 0.0
      %3925 = vmatprep.subr.mxu0 0.0
      %3926 = vmatpush1.msra.mxu0 0.0
      %3927 = vmatprep.subr.mxu0 %v3822
      %3928 = vmatpush1.msra.mxu0 %v3820
      %3929 = vmatprep.subr.mxu0 0.0
      %3930 = vmatpush2.msra.mxu0 0.0
      %3931 = vmatprep.subr.mxu0 0.0
      %3932 = vmatpush2.msra.mxu0 0.0
      %3933 = vmatprep.subr.mxu0 0.0
      %3934 = vmatpush2.msra.mxu0 0.0
      %3935 = vmatprep.subr.mxu0 0.0
      %3936 = vmatpush2.msra.mxu0 0.0
      %3937 = vmatprep.subr.mxu0 0.0
      %3938 = vmatpush2.msra.mxu0 0.0
      %3939 = vmatprep.subr.mxu0 0.0
      %3940 = vmatpush2.msra.mxu0 0.0
      %3941 = vmatprep.subr.mxu0 0.0
      %3942 = vmatpush2.msra.mxu0 0.0
      %3943 = vmatprep.subr.mxu0 0.0
      %3944 = vmatpush2.msra.mxu0 0.0
      %3945 = vmatprep.subr.mxu0 0.0
      %3946 = vmatpush2.msra.mxu0 0.0
      %3947 = vmatprep.subr.mxu0 0.0
      %3948 = vmatpush2.msra.mxu0 0.0
      %3949 = vmatprep.subr.mxu0 0.0
      %3950 = vmatpush2.msra.mxu0 0.0
      %3951 = vmatprep.subr.mxu0 0.0
      %3952 = vmatpush2.msra.mxu0 0.0
      %3953 = vmatprep.subr.mxu0 0.0
      %3954 = vmatpush2.msra.mxu0 0.0
      %3955 = vmatprep.subr.mxu0 0.0
      %3956 = vmatpush2.msra.mxu0 0.0
      %3957 = vmatprep.subr.mxu0 0.0
      %3958 = vmatpush2.msra.mxu0 0.0
      %3959 = vmatprep.subr.mxu0 0.0
      %3960 = vmatpush2.msra.mxu0 0.0
      %3961 = vmatprep.mubr.f32.mxu0 0.0
      %3962 = vmatmul.mubr.f32.gmra.mxu0 %v3813
      %v3963 = vpop.f32.mrf.mxu0
      %v3964 = vadd.f32 0.0, %v3963
      %v3965 = vpop.f32.mrf.mxu0
      %v3966 = vadd.f32 0.0, %v3965
      %3967 = vdwg.mxu0
      %3968 = vmatprep.subr.mxu0 0.0
      %3969 = vmatpush1.msra.mxu0 0.0
      %3970 = vmatprep.subr.mxu0 0.0
      %3971 = vmatpush1.msra.mxu0 0.0
      %3972 = vmatprep.subr.mxu0 0.0
      %3973 = vmatpush1.msra.mxu0 0.0
      %3974 = vmatprep.subr.mxu0 0.0
      %3975 = vmatpush1.msra.mxu0 0.0
      %3976 = vmatprep.subr.mxu0 0.0
      %3977 = vmatpush1.msra.mxu0 0.0
      %3978 = vmatprep.subr.mxu0 0.0
      %3979 = vmatpush1.msra.mxu0 0.0
      %3980 = vmatprep.subr.mxu0 0.0
      %3981 = vmatpush1.msra.mxu0 0.0
      %3982 = vmatprep.subr.mxu0 0.0
      %3983 = vmatpush1.msra.mxu0 0.0
      %3984 = vmatprep.subr.mxu0 0.0
      %3985 = vmatpush1.msra.mxu0 0.0
      %3986 = vmatprep.subr.mxu0 0.0
      %3987 = vmatpush1.msra.mxu0 0.0
      %3988 = vmatprep.subr.mxu0 0.0
      %3989 = vmatpush1.msra.mxu0 0.0
      %3990 = vmatprep.subr.mxu0 0.0
      %3991 = vmatpush1.msra.mxu0 0.0
      %3992 = vmatprep.subr.mxu0 0.0
      %3993 = vmatpush1.msra.mxu0 0.0
      %3994 = vmatprep.subr.mxu0 0.0
      %3995 = vmatpush1.msra.mxu0 0.0
      %3996 = vmatprep.subr.mxu0 0.0
      %3997 = vmatpush1.msra.mxu0 0.0
      %3998 = vmatprep.subr.mxu0 0.0
      %3999 = vmatpush1.msra.mxu0 %v3824
      %4000 = vmatprep.subr.mxu0 0.0
      %4001 = vmatpush2.msra.mxu0 0.0
      %4002 = vmatprep.subr.mxu0 0.0
      %4003 = vmatpush2.msra.mxu0 0.0
      %4004 = vmatprep.subr.mxu0 0.0
      %4005 = vmatpush2.msra.mxu0 0.0
      %4006 = vmatprep.subr.mxu0 0.0
      %4007 = vmatpush2.msra.mxu0 0.0
      %4008 = vmatprep.subr.mxu0 0.0
      %4009 = vmatpush2.msra.mxu0 0.0
      %4010 = vmatprep.subr.mxu0 0.0
      %4011 = vmatpush2.msra.mxu0 0.0
      %4012 = vmatprep.subr.mxu0 0.0
      %4013 = vmatpush2.msra.mxu0 0.0
      %4014 = vmatprep.subr.mxu0 0.0
      %4015 = vmatpush2.msra.mxu0 0.0
      %4016 = vmatprep.subr.mxu0 0.0
      %4017 = vmatpush2.msra.mxu0 0.0
      %4018 = vmatprep.subr.mxu0 0.0
      %4019 = vmatpush2.msra.mxu0 0.0
      %4020 = vmatprep.subr.mxu0 0.0
      %4021 = vmatpush2.msra.mxu0 0.0
      %4022 = vmatprep.subr.mxu0 0.0
      %4023 = vmatpush2.msra.mxu0 0.0
      %4024 = vmatprep.subr.mxu0 0.0
      %4025 = vmatpush2.msra.mxu0 0.0
      %4026 = vmatprep.subr.mxu0 0.0
      %4027 = vmatpush2.msra.mxu0 0.0
      %4028 = vmatprep.subr.mxu0 0.0
      %4029 = vmatpush2.msra.mxu0 0.0
      %4030 = vmatprep.subr.mxu0 0.0
      %4031 = vmatpush2.msra.mxu0 0.0
      %4032 = vmatprep.mubr.f32.mxu0 0.0
      %4033 = vmatmul.mubr.f32.gmra.mxu0 %v3813
      %v4034 = vpop.f32.mrf.mxu0
      %v4035 = vadd.f32 0.0, %v4034
      %v4036 = vpop.f32.mrf.mxu0
      %4037 = vdwg.mxu0
      %v4039 = vsel %vm3811, %v3786, 0
      %v4041 = vsel %vm3815, %v3787, 0
      %v4043 = vsel %vm3815, %v3795, 0
      %v4045 = vsel %vm3815, %v3788, 0
      %v4047 = vsel %vm3815, %v3796, 0
      %v4049 = vsel %vm3815, %v3789, 0
      %4051 = vmatprep.subr.mxu0 0.0
      %4052 = vmatpush1.msra.mxu0 0.0
      %4053 = vmatprep.subr.mxu0 0.0
      %4054 = vmatpush1.msra.mxu0 0.0
      %4055 = vmatprep.subr.mxu0 0.0
      %4056 = vmatpush1.msra.mxu0 0.0
      %4057 = vmatprep.subr.mxu0 0.0
      %4058 = vmatpush1.msra.mxu0 0.0
      %4059 = vmatprep.subr.mxu0 0.0
      %4060 = vmatpush1.msra.mxu0 0.0
      %4061 = vmatprep.subr.mxu0 0.0
      %4062 = vmatpush1.msra.mxu0 0.0
      %4063 = vmatprep.subr.mxu0 0.0
      %4064 = vmatpush1.msra.mxu0 0.0
      %4065 = vmatprep.subr.mxu0 0.0
      %4066 = vmatpush1.msra.mxu0 0.0
      %4067 = vmatprep.subr.mxu0 0.0
      %4068 = vmatpush1.msra.mxu0 0.0
      %4069 = vmatprep.subr.mxu0 0.0
      %4070 = vmatpush1.msra.mxu0 0.0
      %4071 = vmatprep.subr.mxu0 0.0
      %4072 = vmatpush1.msra.mxu0 0.0
      %4073 = vmatprep.subr.mxu0 0.0
      %4074 = vmatpush1.msra.mxu0 0.0
      %4075 = vmatprep.subr.mxu0 0.0
      %4076 = vmatpush1.msra.mxu0 0.0
      %4077 = vmatprep.subr.mxu0 0.0
      %4078 = vmatpush1.msra.mxu0 0.0
      %4079 = vmatprep.subr.mxu0 0.0
      %4080 = vmatpush1.msra.mxu0 0.0
      %4081 = vmatprep.subr.mxu0 %v4043
      %4082 = vmatpush1.msra.mxu0 %v4041
      %4083 = vmatprep.subr.mxu0 0.0
      %4084 = vmatpush2.msra.mxu0 0.0
      %4085 = vmatprep.subr.mxu0 0.0
      %4086 = vmatpush2.msra.mxu0 0.0
      %4087 = vmatprep.subr.mxu0 0.0
      %4088 = vmatpush2.msra.mxu0 0.0
      %4089 = vmatprep.subr.mxu0 0.0
      %4090 = vmatpush2.msra.mxu0 0.0
      %4091 = vmatprep.subr.mxu0 0.0
      %4092 = vmatpush2.msra.mxu0 0.0
      %4093 = vmatprep.subr.mxu0 0.0
      %4094 = vmatpush2.msra.mxu0 0.0
      %4095 = vmatprep.subr.mxu0 0.0
      %4096 = vmatpush2.msra.mxu0 0.0
      %4097 = vmatprep.subr.mxu0 0.0
      %4098 = vmatpush2.msra.mxu0 0.0
      %4099 = vmatprep.subr.mxu0 0.0
      %4100 = vmatpush2.msra.mxu0 0.0
      %4101 = vmatprep.subr.mxu0 0.0
      %4102 = vmatpush2.msra.mxu0 0.0
      %4103 = vmatprep.subr.mxu0 0.0
      %4104 = vmatpush2.msra.mxu0 0.0
      %4105 = vmatprep.subr.mxu0 0.0
      %4106 = vmatpush2.msra.mxu0 0.0
      %4107 = vmatprep.subr.mxu0 0.0
      %4108 = vmatpush2.msra.mxu0 0.0
      %4109 = vmatprep.subr.mxu0 0.0
      %4110 = vmatpush2.msra.mxu0 0.0
      %4111 = vmatprep.subr.mxu0 0.0
      %4112 = vmatpush2.msra.mxu0 0.0
      %4113 = vmatprep.subr.mxu0 0.0
      %4114 = vmatpush2.msra.mxu0 0.0
      %4115 = vmatprep.mubr.f32.mxu0 0.0
      %4116 = vmatmul.mubr.f32.gmra.mxu0 %v4039
      %v4117 = vpop.f32.mrf.mxu0
      %v4118 = vadd.f32 %v3893, %v4117
      %v4119 = vpop.f32.mrf.mxu0
      %v4120 = vadd.f32 %v3895, %v4119
      %4121 = vdwg.mxu0
      %4122 = vmatprep.subr.mxu0 0.0
      %4123 = vmatpush1.msra.mxu0 0.0
      %4124 = vmatprep.subr.mxu0 0.0
      %4125 = vmatpush1.msra.mxu0 0.0
      %4126 = vmatprep.subr.mxu0 0.0
      %4127 = vmatpush1.msra.mxu0 0.0
      %4128 = vmatprep.subr.mxu0 0.0
      %4129 = vmatpush1.msra.mxu0 0.0
      %4130 = vmatprep.subr.mxu0 0.0
      %4131 = vmatpush1.msra.mxu0 0.0
      %4132 = vmatprep.subr.mxu0 0.0
      %4133 = vmatpush1.msra.mxu0 0.0
      %4134 = vmatprep.subr.mxu0 0.0
      %4135 = vmatpush1.msra.mxu0 0.0
      %4136 = vmatprep.subr.mxu0 0.0
      %4137 = vmatpush1.msra.mxu0 0.0
      %4138 = vmatprep.subr.mxu0 0.0
      %4139 = vmatpush1.msra.mxu0 0.0
      %4140 = vmatprep.subr.mxu0 0.0
      %4141 = vmatpush1.msra.mxu0 0.0
      %4142 = vmatprep.subr.mxu0 0.0
      %4143 = vmatpush1.msra.mxu0 0.0
      %4144 = vmatprep.subr.mxu0 0.0
      %4145 = vmatpush1.msra.mxu0 0.0
      %4146 = vmatprep.subr.mxu0 0.0
      %4147 = vmatpush1.msra.mxu0 0.0
      %4148 = vmatprep.subr.mxu0 0.0
      %4149 = vmatpush1.msra.mxu0 0.0
      %4150 = vmatprep.subr.mxu0 0.0
      %4151 = vmatpush1.msra.mxu0 0.0
      %4152 = vmatprep.subr.mxu0 %v4047
      %4153 = vmatpush1.msra.mxu0 %v4045
      %4154 = vmatprep.subr.mxu0 0.0
      %4155 = vmatpush2.msra.mxu0 0.0
      %4156 = vmatprep.subr.mxu0 0.0
      %4157 = vmatpush2.msra.mxu0 0.0
      %4158 = vmatprep.subr.mxu0 0.0
      %4159 = vmatpush2.msra.mxu0 0.0
      %4160 = vmatprep.subr.mxu0 0.0
      %4161 = vmatpush2.msra.mxu0 0.0
      %4162 = vmatprep.subr.mxu0 0.0
      %4163 = vmatpush2.msra.mxu0 0.0
      %4164 = vmatprep.subr.mxu0 0.0
      %4165 = vmatpush2.msra.mxu0 0.0
      %4166 = vmatprep.subr.mxu0 0.0
      %4167 = vmatpush2.msra.mxu0 0.0
      %4168 = vmatprep.subr.mxu0 0.0
      %4169 = vmatpush2.msra.mxu0 0.0
      %4170 = vmatprep.subr.mxu0 0.0
      %4171 = vmatpush2.msra.mxu0 0.0
      %4172 = vmatprep.subr.mxu0 0.0
      %4173 = vmatpush2.msra.mxu0 0.0
      %4174 = vmatprep.subr.mxu0 0.0
      %4175 = vmatpush2.msra.mxu0 0.0
      %4176 = vmatprep.subr.mxu0 0.0
      %4177 = vmatpush2.msra.mxu0 0.0
      %4178 = vmatprep.subr.mxu0 0.0
      %4179 = vmatpush2.msra.mxu0 0.0
      %4180 = vmatprep.subr.mxu0 0.0
      %4181 = vmatpush2.msra.mxu0 0.0
      %4182 = vmatprep.subr.mxu0 0.0
      %4183 = vmatpush2.msra.mxu0 0.0
      %4184 = vmatprep.subr.mxu0 0.0
      %4185 = vmatpush2.msra.mxu0 0.0
      %4186 = vmatprep.mubr.f32.mxu0 0.0
      %4187 = vmatmul.mubr.f32.gmra.mxu0 %v4039
      %v4188 = vpop.f32.mrf.mxu0
      %v4189 = vadd.f32 %v3964, %v4188
      %v4190 = vpop.f32.mrf.mxu0
      %v4191 = vadd.f32 %v3966, %v4190
      %4192 = vdwg.mxu0
      %4193 = vmatprep.subr.mxu0 0.0
      %4194 = vmatpush1.msra.mxu0 0.0
      %4195 = vmatprep.subr.mxu0 0.0
      %4196 = vmatpush1.msra.mxu0 0.0
      %4197 = vmatprep.subr.mxu0 0.0
      %4198 = vmatpush1.msra.mxu0 0.0
      %4199 = vmatprep.subr.mxu0 0.0
      %4200 = vmatpush1.msra.mxu0 0.0
      %4201 = vmatprep.subr.mxu0 0.0
      %4202 = vmatpush1.msra.mxu0 0.0
      %4203 = vmatprep.subr.mxu0 0.0
      %4204 = vmatpush1.msra.mxu0 0.0
      %4205 = vmatprep.subr.mxu0 0.0
      %4206 = vmatpush1.msra.mxu0 0.0
      %4207 = vmatprep.subr.mxu0 0.0
      %4208 = vmatpush1.msra.mxu0 0.0
      %4209 = vmatprep.subr.mxu0 0.0
      %4210 = vmatpush1.msra.mxu0 0.0
      %4211 = vmatprep.subr.mxu0 0.0
      %4212 = vmatpush1.msra.mxu0 0.0
      %4213 = vmatprep.subr.mxu0 0.0
      %4214 = vmatpush1.msra.mxu0 0.0
      %4215 = vmatprep.subr.mxu0 0.0
      %4216 = vmatpush1.msra.mxu0 0.0
      %4217 = vmatprep.subr.mxu0 0.0
      %4218 = vmatpush1.msra.mxu0 0.0
      %4219 = vmatprep.subr.mxu0 0.0
      %4220 = vmatpush1.msra.mxu0 0.0
      %4221 = vmatprep.subr.mxu0 0.0
      %4222 = vmatpush1.msra.mxu0 0.0
      %4223 = vmatprep.subr.mxu0 0.0
      %4224 = vmatpush1.msra.mxu0 %v4049
      %4225 = vmatprep.subr.mxu0 0.0
      %4226 = vmatpush2.msra.mxu0 0.0
      %4227 = vmatprep.subr.mxu0 0.0
      %4228 = vmatpush2.msra.mxu0 0.0
      %4229 = vmatprep.subr.mxu0 0.0
      %4230 = vmatpush2.msra.mxu0 0.0
      %4231 = vmatprep.subr.mxu0 0.0
      %4232 = vmatpush2.msra.mxu0 0.0
      %4233 = vmatprep.subr.mxu0 0.0
      %4234 = vmatpush2.msra.mxu0 0.0
      %4235 = vmatprep.subr.mxu0 0.0
      %4236 = vmatpush2.msra.mxu0 0.0
      %4237 = vmatprep.subr.mxu0 0.0
      %4238 = vmatpush2.msra.mxu0 0.0
      %4239 = vmatprep.subr.mxu0 0.0
      %4240 = vmatpush2.msra.mxu0 0.0
      %4241 = vmatprep.subr.mxu0 0.0
      %4242 = vmatpush2.msra.mxu0 0.0
      %4243 = vmatprep.subr.mxu0 0.0
      %4244 = vmatpush2.msra.mxu0 0.0
      %4245 = vmatprep.subr.mxu0 0.0
      %4246 = vmatpush2.msra.mxu0 0.0
      %4247 = vmatprep.subr.mxu0 0.0
      %4248 = vmatpush2.msra.mxu0 0.0
      %4249 = vmatprep.subr.mxu0 0.0
      %4250 = vmatpush2.msra.mxu0 0.0
      %4251 = vmatprep.subr.mxu0 0.0
      %4252 = vmatpush2.msra.mxu0 0.0
      %4253 = vmatprep.subr.mxu0 0.0
      %4254 = vmatpush2.msra.mxu0 0.0
      %4255 = vmatprep.subr.mxu0 0.0
      %4256 = vmatpush2.msra.mxu0 0.0
      %4257 = vmatprep.mubr.f32.mxu0 0.0
      %4258 = vmatmul.mubr.f32.gmra.mxu0 %v4039
      %v4259 = vpop.f32.mrf.mxu0
      %v4260 = vadd.f32 %v4035, %v4259
      %v4261 = vpop.f32.mrf.mxu0
      %4262 = vdwg.mxu0
      %s4263 = scalar_lea.vmem %s25, 8
      %v4264 = vld [vmem:[%s4263] sm:$0xf]
      %v4265 = vld [vmem:[#allocation3] sm:$0xff]
      %v4266 = vld [vmem:[#allocation3 + $0x8] sm:$0xff]
      %v4267 = vld [vmem:[#allocation3 + $0x10] sm:$0xf]
      %v4271 = vcombine.high %v4265, %v4265
      %v4272 = vcombine.high %v4266, %v4266
      %4273 = vrot.lane.b32.xlu0 %v4265, 126
      %v4274 = vpop.permute.xlu0 %4273
      %4275 = vrot.lane.b32.xlu0 %v4271, 126
      %v4276 = vpop.permute.xlu0 %4275
      %4277 = vrot.lane.b32.xlu0 %v4266, 126
      %v4278 = vpop.permute.xlu0 %4277
      %4279 = vrot.lane.b32.xlu0 %v4272, 126
      %v4280 = vpop.permute.xlu0 %4279
      %4281 = vrot.lane.b32.xlu0 %v4267, 126
      %v4282 = vpop.permute.xlu0 %4281
      %v4283 = vsel %vm1475, %v4274, %v4276
      %v4284 = vsel %vm1475, %v4276, %v4278
      %v4285 = vsel %vm1475, %v4278, %v4280
      %v4286 = vsel %vm1475, %v4280, %v4282
      %v4288 = vsel %vm3811, %v4264, 0
      %v4290 = vsel %vm3815, %v4283, 0
      %v4292 = vsel %vm3815, %v4284, 0
      %v4294 = vsel %vm3815, %v4285, 0
      %v4296 = vsel %vm3815, %v4286, 0
      %v4298 = vsel %vm3815, %v4282, 0
      %4300 = vmatprep.subr.mxu0 0.0
      %4301 = vmatpush1.msra.mxu0 0.0
      %4302 = vmatprep.subr.mxu0 0.0
      %4303 = vmatpush1.msra.mxu0 0.0
      %4304 = vmatprep.subr.mxu0 0.0
      %4305 = vmatpush1.msra.mxu0 0.0
      %4306 = vmatprep.subr.mxu0 0.0
      %4307 = vmatpush1.msra.mxu0 0.0
      %4308 = vmatprep.subr.mxu0 0.0
      %4309 = vmatpush1.msra.mxu0 0.0
      %4310 = vmatprep.subr.mxu0 0.0
      %4311 = vmatpush1.msra.mxu0 0.0
      %4312 = vmatprep.subr.mxu0 0.0
      %4313 = vmatpush1.msra.mxu0 0.0
      %4314 = vmatprep.subr.mxu0 0.0
      %4315 = vmatpush1.msra.mxu0 0.0
      %4316 = vmatprep.subr.mxu0 0.0
      %4317 = vmatpush1.msra.mxu0 0.0
      %4318 = vmatprep.subr.mxu0 0.0
      %4319 = vmatpush1.msra.mxu0 0.0
      %4320 = vmatprep.subr.mxu0 0.0
      %4321 = vmatpush1.msra.mxu0 0.0
      %4322 = vmatprep.subr.mxu0 0.0
      %4323 = vmatpush1.msra.mxu0 0.0
      %4324 = vmatprep.subr.mxu0 0.0
      %4325 = vmatpush1.msra.mxu0 0.0
      %4326 = vmatprep.subr.mxu0 0.0
      %4327 = vmatpush1.msra.mxu0 0.0
      %4328 = vmatprep.subr.mxu0 0.0
      %4329 = vmatpush1.msra.mxu0 0.0
      %4330 = vmatprep.subr.mxu0 %v4292
      %4331 = vmatpush1.msra.mxu0 %v4290
      %4332 = vmatprep.subr.mxu0 0.0
      %4333 = vmatpush2.msra.mxu0 0.0
      %4334 = vmatprep.subr.mxu0 0.0
      %4335 = vmatpush2.msra.mxu0 0.0
      %4336 = vmatprep.subr.mxu0 0.0
      %4337 = vmatpush2.msra.mxu0 0.0
      %4338 = vmatprep.subr.mxu0 0.0
      %4339 = vmatpush2.msra.mxu0 0.0
      %4340 = vmatprep.subr.mxu0 0.0
      %4341 = vmatpush2.msra.mxu0 0.0
      %4342 = vmatprep.subr.mxu0 0.0
      %4343 = vmatpush2.msra.mxu0 0.0
      %4344 = vmatprep.subr.mxu0 0.0
      %4345 = vmatpush2.msra.mxu0 0.0
      %4346 = vmatprep.subr.mxu0 0.0
      %4347 = vmatpush2.msra.mxu0 0.0
      %4348 = vmatprep.subr.mxu0 0.0
      %4349 = vmatpush2.msra.mxu0 0.0
      %4350 = vmatprep.subr.mxu0 0.0
      %4351 = vmatpush2.msra.mxu0 0.0
      %4352 = vmatprep.subr.mxu0 0.0
      %4353 = vmatpush2.msra.mxu0 0.0
      %4354 = vmatprep.subr.mxu0 0.0
      %4355 = vmatpush2.msra.mxu0 0.0
      %4356 = vmatprep.subr.mxu0 0.0
      %4357 = vmatpush2.msra.mxu0 0.0
      %4358 = vmatprep.subr.mxu0 0.0
      %4359 = vmatpush2.msra.mxu0 0.0
      %4360 = vmatprep.subr.mxu0 0.0
      %4361 = vmatpush2.msra.mxu0 0.0
      %4362 = vmatprep.subr.mxu0 0.0
      %4363 = vmatpush2.msra.mxu0 0.0
      %4364 = vmatprep.mubr.f32.mxu0 0.0
      %4365 = vmatmul.mubr.f32.gmra.mxu0 %v4288
      %v4366 = vpop.f32.mrf.mxu0
      %v4367 = vadd.f32 0.0, %v4366
      %v4368 = vpop.f32.mrf.mxu0
      %v4369 = vadd.f32 0.0, %v4368
      %4370 = vdwg.mxu0
      %4371 = vmatprep.subr.mxu0 0.0
      %4372 = vmatpush1.msra.mxu0 0.0
      %4373 = vmatprep.subr.mxu0 0.0
      %4374 = vmatpush1.msra.mxu0 0.0
      %4375 = vmatprep.subr.mxu0 0.0
      %4376 = vmatpush1.msra.mxu0 0.0
      %4377 = vmatprep.subr.mxu0 0.0
      %4378 = vmatpush1.msra.mxu0 0.0
      %4379 = vmatprep.subr.mxu0 0.0
      %4380 = vmatpush1.msra.mxu0 0.0
      %4381 = vmatprep.subr.mxu0 0.0
      %4382 = vmatpush1.msra.mxu0 0.0
      %4383 = vmatprep.subr.mxu0 0.0
      %4384 = vmatpush1.msra.mxu0 0.0
      %4385 = vmatprep.subr.mxu0 0.0
      %4386 = vmatpush1.msra.mxu0 0.0
      %4387 = vmatprep.subr.mxu0 0.0
      %4388 = vmatpush1.msra.mxu0 0.0
      %4389 = vmatprep.subr.mxu0 0.0
      %4390 = vmatpush1.msra.mxu0 0.0
      %4391 = vmatprep.subr.mxu0 0.0
      %4392 = vmatpush1.msra.mxu0 0.0
      %4393 = vmatprep.subr.mxu0 0.0
      %4394 = vmatpush1.msra.mxu0 0.0
      %4395 = vmatprep.subr.mxu0 0.0
      %4396 = vmatpush1.msra.mxu0 0.0
      %4397 = vmatprep.subr.mxu0 0.0
      %4398 = vmatpush1.msra.mxu0 0.0
      %4399 = vmatprep.subr.mxu0 0.0
      %4400 = vmatpush1.msra.mxu0 0.0
      %4401 = vmatprep.subr.mxu0 %v4296
      %4402 = vmatpush1.msra.mxu0 %v4294
      %4403 = vmatprep.subr.mxu0 0.0
      %4404 = vmatpush2.msra.mxu0 0.0
      %4405 = vmatprep.subr.mxu0 0.0
      %4406 = vmatpush2.msra.mxu0 0.0
      %4407 = vmatprep.subr.mxu0 0.0
      %4408 = vmatpush2.msra.mxu0 0.0
      %4409 = vmatprep.subr.mxu0 0.0
      %4410 = vmatpush2.msra.mxu0 0.0
      %4411 = vmatprep.subr.mxu0 0.0
      %4412 = vmatpush2.msra.mxu0 0.0
      %4413 = vmatprep.subr.mxu0 0.0
      %4414 = vmatpush2.msra.mxu0 0.0
      %4415 = vmatprep.subr.mxu0 0.0
      %4416 = vmatpush2.msra.mxu0 0.0
      %4417 = vmatprep.subr.mxu0 0.0
      %4418 = vmatpush2.msra.mxu0 0.0
      %4419 = vmatprep.subr.mxu0 0.0
      %4420 = vmatpush2.msra.mxu0 0.0
      %4421 = vmatprep.subr.mxu0 0.0
      %4422 = vmatpush2.msra.mxu0 0.0
      %4423 = vmatprep.subr.mxu0 0.0
      %4424 = vmatpush2.msra.mxu0 0.0
      %4425 = vmatprep.subr.mxu0 0.0
      %4426 = vmatpush2.msra.mxu0 0.0
      %4427 = vmatprep.subr.mxu0 0.0
      %4428 = vmatpush2.msra.mxu0 0.0
      %4429 = vmatprep.subr.mxu0 0.0
      %4430 = vmatpush2.msra.mxu0 0.0
      %4431 = vmatprep.subr.mxu0 0.0
      %4432 = vmatpush2.msra.mxu0 0.0
      %4433 = vmatprep.subr.mxu0 0.0
      %4434 = vmatpush2.msra.mxu0 0.0
      %4435 = vmatprep.mubr.f32.mxu0 0.0
      %4436 = vmatmul.mubr.f32.gmra.mxu0 %v4288
      %v4437 = vpop.f32.mrf.mxu0
      %v4438 = vadd.f32 0.0, %v4437
      %v4439 = vpop.f32.mrf.mxu0
      %v4440 = vadd.f32 0.0, %v4439
      %4441 = vdwg.mxu0
      %4442 = vmatprep.subr.mxu0 0.0
      %4443 = vmatpush1.msra.mxu0 0.0
      %4444 = vmatprep.subr.mxu0 0.0
      %4445 = vmatpush1.msra.mxu0 0.0
      %4446 = vmatprep.subr.mxu0 0.0
      %4447 = vmatpush1.msra.mxu0 0.0
      %4448 = vmatprep.subr.mxu0 0.0
      %4449 = vmatpush1.msra.mxu0 0.0
      %4450 = vmatprep.subr.mxu0 0.0
      %4451 = vmatpush1.msra.mxu0 0.0
      %4452 = vmatprep.subr.mxu0 0.0
      %4453 = vmatpush1.msra.mxu0 0.0
      %4454 = vmatprep.subr.mxu0 0.0
      %4455 = vmatpush1.msra.mxu0 0.0
      %4456 = vmatprep.subr.mxu0 0.0
      %4457 = vmatpush1.msra.mxu0 0.0
      %4458 = vmatprep.subr.mxu0 0.0
      %4459 = vmatpush1.msra.mxu0 0.0
      %4460 = vmatprep.subr.mxu0 0.0
      %4461 = vmatpush1.msra.mxu0 0.0
      %4462 = vmatprep.subr.mxu0 0.0
      %4463 = vmatpush1.msra.mxu0 0.0
      %4464 = vmatprep.subr.mxu0 0.0
      %4465 = vmatpush1.msra.mxu0 0.0
      %4466 = vmatprep.subr.mxu0 0.0
      %4467 = vmatpush1.msra.mxu0 0.0
      %4468 = vmatprep.subr.mxu0 0.0
      %4469 = vmatpush1.msra.mxu0 0.0
      %4470 = vmatprep.subr.mxu0 0.0
      %4471 = vmatpush1.msra.mxu0 0.0
      %4472 = vmatprep.subr.mxu0 0.0
      %4473 = vmatpush1.msra.mxu0 %v4298
      %4474 = vmatprep.subr.mxu0 0.0
      %4475 = vmatpush2.msra.mxu0 0.0
      %4476 = vmatprep.subr.mxu0 0.0
      %4477 = vmatpush2.msra.mxu0 0.0
      %4478 = vmatprep.subr.mxu0 0.0
      %4479 = vmatpush2.msra.mxu0 0.0
      %4480 = vmatprep.subr.mxu0 0.0
      %4481 = vmatpush2.msra.mxu0 0.0
      %4482 = vmatprep.subr.mxu0 0.0
      %4483 = vmatpush2.msra.mxu0 0.0
      %4484 = vmatprep.subr.mxu0 0.0
      %4485 = vmatpush2.msra.mxu0 0.0
      %4486 = vmatprep.subr.mxu0 0.0
      %4487 = vmatpush2.msra.mxu0 0.0
      %4488 = vmatprep.subr.mxu0 0.0
      %4489 = vmatpush2.msra.mxu0 0.0
      %4490 = vmatprep.subr.mxu0 0.0
      %4491 = vmatpush2.msra.mxu0 0.0
      %4492 = vmatprep.subr.mxu0 0.0
      %4493 = vmatpush2.msra.mxu0 0.0
      %4494 = vmatprep.subr.mxu0 0.0
      %4495 = vmatpush2.msra.mxu0 0.0
      %4496 = vmatprep.subr.mxu0 0.0
      %4497 = vmatpush2.msra.mxu0 0.0
      %4498 = vmatprep.subr.mxu0 0.0
      %4499 = vmatpush2.msra.mxu0 0.0
      %4500 = vmatprep.subr.mxu0 0.0
      %4501 = vmatpush2.msra.mxu0 0.0
      %4502 = vmatprep.subr.mxu0 0.0
      %4503 = vmatpush2.msra.mxu0 0.0
      %4504 = vmatprep.subr.mxu0 0.0
      %4505 = vmatpush2.msra.mxu0 0.0
      %4506 = vmatprep.mubr.f32.mxu0 0.0
      %4507 = vmatmul.mubr.f32.gmra.mxu0 %v4288
      %v4508 = vpop.f32.mrf.mxu0
      %v4509 = vadd.f32 0.0, %v4508
      %v4510 = vpop.f32.mrf.mxu0
      %4511 = vdwg.mxu0
      %v4512 = vadd.f32 %v4118, %v4367
      %v4513 = vadd.f32 %v4120, %v4369
      %v4514 = vadd.f32 %v4189, %v4438
      %v4515 = vadd.f32 %v4191, %v4440
      %v4516 = vadd.f32 %v4260, %v4509
      %s4517 = scalar_lea.vmem %s25, 12
      %v4518 = vld [vmem:[%s4517] sm:$0xf]
      %v4519 = vld [vmem:[#allocation3] sm:$0xff]
      %v4520 = vld [vmem:[#allocation3 + $0x8] sm:$0xff]
      %v4521 = vld [vmem:[#allocation3 + $0x10] sm:$0xf]
      %v4525 = vcombine.high %v4519, %v4519
      %v4526 = vcombine.high %v4520, %v4520
      %4527 = vrot.lane.b32.xlu0 %v4519, 102
      %v4528 = vpop.permute.xlu0 %4527
      %4529 = vrot.lane.b32.xlu0 %v4525, 102
      %v4530 = vpop.permute.xlu0 %4529
      %4531 = vrot.lane.b32.xlu0 %v4520, 102
      %v4532 = vpop.permute.xlu0 %4531
      %4533 = vrot.lane.b32.xlu0 %v4526, 102
      %v4534 = vpop.permute.xlu0 %4533
      %4535 = vrot.lane.b32.xlu0 %v4521, 102
      %v4536 = vpop.permute.xlu0 %4535
      %v4537 = vsel %vm1566, %v4528, %v4530
      %v4538 = vsel %vm1566, %v4530, %v4532
      %v4539 = vsel %vm1566, %v4532, %v4534
      %v4540 = vsel %vm1566, %v4534, %v4536
      %v4542 = vsel %vm3811, %v4518, 0
      %v4544 = vsel %vm3815, %v4537, 0
      %v4546 = vsel %vm3815, %v4538, 0
      %v4548 = vsel %vm3815, %v4539, 0
      %v4550 = vsel %vm3815, %v4540, 0
      %v4552 = vsel %vm3815, %v4536, 0
      %4554 = vmatprep.subr.mxu0 0.0
      %4555 = vmatpush1.msra.mxu0 0.0
      %4556 = vmatprep.subr.mxu0 0.0
      %4557 = vmatpush1.msra.mxu0 0.0
      %4558 = vmatprep.subr.mxu0 0.0
      %4559 = vmatpush1.msra.mxu0 0.0
      %4560 = vmatprep.subr.mxu0 0.0
      %4561 = vmatpush1.msra.mxu0 0.0
      %4562 = vmatprep.subr.mxu0 0.0
      %4563 = vmatpush1.msra.mxu0 0.0
      %4564 = vmatprep.subr.mxu0 0.0
      %4565 = vmatpush1.msra.mxu0 0.0
      %4566 = vmatprep.subr.mxu0 0.0
      %4567 = vmatpush1.msra.mxu0 0.0
      %4568 = vmatprep.subr.mxu0 0.0
      %4569 = vmatpush1.msra.mxu0 0.0
      %4570 = vmatprep.subr.mxu0 0.0
      %4571 = vmatpush1.msra.mxu0 0.0
      %4572 = vmatprep.subr.mxu0 0.0
      %4573 = vmatpush1.msra.mxu0 0.0
      %4574 = vmatprep.subr.mxu0 0.0
      %4575 = vmatpush1.msra.mxu0 0.0
      %4576 = vmatprep.subr.mxu0 0.0
      %4577 = vmatpush1.msra.mxu0 0.0
      %4578 = vmatprep.subr.mxu0 0.0
      %4579 = vmatpush1.msra.mxu0 0.0
      %4580 = vmatprep.subr.mxu0 0.0
      %4581 = vmatpush1.msra.mxu0 0.0
      %4582 = vmatprep.subr.mxu0 0.0
      %4583 = vmatpush1.msra.mxu0 0.0
      %4584 = vmatprep.subr.mxu0 %v4546
      %4585 = vmatpush1.msra.mxu0 %v4544
      %4586 = vmatprep.subr.mxu0 0.0
      %4587 = vmatpush2.msra.mxu0 0.0
      %4588 = vmatprep.subr.mxu0 0.0
      %4589 = vmatpush2.msra.mxu0 0.0
      %4590 = vmatprep.subr.mxu0 0.0
      %4591 = vmatpush2.msra.mxu0 0.0
      %4592 = vmatprep.subr.mxu0 0.0
      %4593 = vmatpush2.msra.mxu0 0.0
      %4594 = vmatprep.subr.mxu0 0.0
      %4595 = vmatpush2.msra.mxu0 0.0
      %4596 = vmatprep.subr.mxu0 0.0
      %4597 = vmatpush2.msra.mxu0 0.0
      %4598 = vmatprep.subr.mxu0 0.0
      %4599 = vmatpush2.msra.mxu0 0.0
      %4600 = vmatprep.subr.mxu0 0.0
      %4601 = vmatpush2.msra.mxu0 0.0
      %4602 = vmatprep.subr.mxu0 0.0
      %4603 = vmatpush2.msra.mxu0 0.0
      %4604 = vmatprep.subr.mxu0 0.0
      %4605 = vmatpush2.msra.mxu0 0.0
      %4606 = vmatprep.subr.mxu0 0.0
      %4607 = vmatpush2.msra.mxu0 0.0
      %4608 = vmatprep.subr.mxu0 0.0
      %4609 = vmatpush2.msra.mxu0 0.0
      %4610 = vmatprep.subr.mxu0 0.0
      %4611 = vmatpush2.msra.mxu0 0.0
      %4612 = vmatprep.subr.mxu0 0.0
      %4613 = vmatpush2.msra.mxu0 0.0
      %4614 = vmatprep.subr.mxu0 0.0
      %4615 = vmatpush2.msra.mxu0 0.0
      %4616 = vmatprep.subr.mxu0 0.0
      %4617 = vmatpush2.msra.mxu0 0.0
      %4618 = vmatprep.mubr.f32.mxu0 0.0
      %4619 = vmatmul.mubr.f32.gmra.mxu0 %v4542
      %v4620 = vpop.f32.mrf.mxu0
      %v4621 = vadd.f32 0.0, %v4620
      %v4622 = vpop.f32.mrf.mxu0
      %v4623 = vadd.f32 0.0, %v4622
      %4624 = vdwg.mxu0
      %4625 = vmatprep.subr.mxu0 0.0
      %4626 = vmatpush1.msra.mxu0 0.0
      %4627 = vmatprep.subr.mxu0 0.0
      %4628 = vmatpush1.msra.mxu0 0.0
      %4629 = vmatprep.subr.mxu0 0.0
      %4630 = vmatpush1.msra.mxu0 0.0
      %4631 = vmatprep.subr.mxu0 0.0
      %4632 = vmatpush1.msra.mxu0 0.0
      %4633 = vmatprep.subr.mxu0 0.0
      %4634 = vmatpush1.msra.mxu0 0.0
      %4635 = vmatprep.subr.mxu0 0.0
      %4636 = vmatpush1.msra.mxu0 0.0
      %4637 = vmatprep.subr.mxu0 0.0
      %4638 = vmatpush1.msra.mxu0 0.0
      %4639 = vmatprep.subr.mxu0 0.0
      %4640 = vmatpush1.msra.mxu0 0.0
      %4641 = vmatprep.subr.mxu0 0.0
      %4642 = vmatpush1.msra.mxu0 0.0
      %4643 = vmatprep.subr.mxu0 0.0
      %4644 = vmatpush1.msra.mxu0 0.0
      %4645 = vmatprep.subr.mxu0 0.0
      %4646 = vmatpush1.msra.mxu0 0.0
      %4647 = vmatprep.subr.mxu0 0.0
      %4648 = vmatpush1.msra.mxu0 0.0
      %4649 = vmatprep.subr.mxu0 0.0
      %4650 = vmatpush1.msra.mxu0 0.0
      %4651 = vmatprep.subr.mxu0 0.0
      %4652 = vmatpush1.msra.mxu0 0.0
      %4653 = vmatprep.subr.mxu0 0.0
      %4654 = vmatpush1.msra.mxu0 0.0
      %4655 = vmatprep.subr.mxu0 %v4550
      %4656 = vmatpush1.msra.mxu0 %v4548
      %4657 = vmatprep.subr.mxu0 0.0
      %4658 = vmatpush2.msra.mxu0 0.0
      %4659 = vmatprep.subr.mxu0 0.0
      %4660 = vmatpush2.msra.mxu0 0.0
      %4661 = vmatprep.subr.mxu0 0.0
      %4662 = vmatpush2.msra.mxu0 0.0
      %4663 = vmatprep.subr.mxu0 0.0
      %4664 = vmatpush2.msra.mxu0 0.0
      %4665 = vmatprep.subr.mxu0 0.0
      %4666 = vmatpush2.msra.mxu0 0.0
      %4667 = vmatprep.subr.mxu0 0.0
      %4668 = vmatpush2.msra.mxu0 0.0
      %4669 = vmatprep.subr.mxu0 0.0
      %4670 = vmatpush2.msra.mxu0 0.0
      %4671 = vmatprep.subr.mxu0 0.0
      %4672 = vmatpush2.msra.mxu0 0.0
      %4673 = vmatprep.subr.mxu0 0.0
      %4674 = vmatpush2.msra.mxu0 0.0
      %4675 = vmatprep.subr.mxu0 0.0
      %4676 = vmatpush2.msra.mxu0 0.0
      %4677 = vmatprep.subr.mxu0 0.0
      %4678 = vmatpush2.msra.mxu0 0.0
      %4679 = vmatprep.subr.mxu0 0.0
      %4680 = vmatpush2.msra.mxu0 0.0
      %4681 = vmatprep.subr.mxu0 0.0
      %4682 = vmatpush2.msra.mxu0 0.0
      %4683 = vmatprep.subr.mxu0 0.0
      %4684 = vmatpush2.msra.mxu0 0.0
      %4685 = vmatprep.subr.mxu0 0.0
      %4686 = vmatpush2.msra.mxu0 0.0
      %4687 = vmatprep.subr.mxu0 0.0
      %4688 = vmatpush2.msra.mxu0 0.0
      %4689 = vmatprep.mubr.f32.mxu0 0.0
      %4690 = vmatmul.mubr.f32.gmra.mxu0 %v4542
      %v4691 = vpop.f32.mrf.mxu0
      %v4692 = vadd.f32 0.0, %v4691
      %v4693 = vpop.f32.mrf.mxu0
      %v4694 = vadd.f32 0.0, %v4693
      %4695 = vdwg.mxu0
      %4696 = vmatprep.subr.mxu0 0.0
      %4697 = vmatpush1.msra.mxu0 0.0
      %4698 = vmatprep.subr.mxu0 0.0
      %4699 = vmatpush1.msra.mxu0 0.0
      %4700 = vmatprep.subr.mxu0 0.0
      %4701 = vmatpush1.msra.mxu0 0.0
      %4702 = vmatprep.subr.mxu0 0.0
      %4703 = vmatpush1.msra.mxu0 0.0
      %4704 = vmatprep.subr.mxu0 0.0
      %4705 = vmatpush1.msra.mxu0 0.0
      %4706 = vmatprep.subr.mxu0 0.0
      %4707 = vmatpush1.msra.mxu0 0.0
      %4708 = vmatprep.subr.mxu0 0.0
      %4709 = vmatpush1.msra.mxu0 0.0
      %4710 = vmatprep.subr.mxu0 0.0
      %4711 = vmatpush1.msra.mxu0 0.0
      %4712 = vmatprep.subr.mxu0 0.0
      %4713 = vmatpush1.msra.mxu0 0.0
      %4714 = vmatprep.subr.mxu0 0.0
      %4715 = vmatpush1.msra.mxu0 0.0
      %4716 = vmatprep.subr.mxu0 0.0
      %4717 = vmatpush1.msra.mxu0 0.0
      %4718 = vmatprep.subr.mxu0 0.0
      %4719 = vmatpush1.msra.mxu0 0.0
      %4720 = vmatprep.subr.mxu0 0.0
      %4721 = vmatpush1.msra.mxu0 0.0
      %4722 = vmatprep.subr.mxu0 0.0
      %4723 = vmatpush1.msra.mxu0 0.0
      %4724 = vmatprep.subr.mxu0 0.0
      %4725 = vmatpush1.msra.mxu0 0.0
      %4726 = vmatprep.subr.mxu0 0.0
      %4727 = vmatpush1.msra.mxu0 %v4552
      %4728 = vmatprep.subr.mxu0 0.0
      %4729 = vmatpush2.msra.mxu0 0.0
      %4730 = vmatprep.subr.mxu0 0.0
      %4731 = vmatpush2.msra.mxu0 0.0
      %4732 = vmatprep.subr.mxu0 0.0
      %4733 = vmatpush2.msra.mxu0 0.0
      %4734 = vmatprep.subr.mxu0 0.0
      %4735 = vmatpush2.msra.mxu0 0.0
      %4736 = vmatprep.subr.mxu0 0.0
      %4737 = vmatpush2.msra.mxu0 0.0
      %4738 = vmatprep.subr.mxu0 0.0
      %4739 = vmatpush2.msra.mxu0 0.0
      %4740 = vmatprep.subr.mxu0 0.0
      %4741 = vmatpush2.msra.mxu0 0.0
      %4742 = vmatprep.subr.mxu0 0.0
      %4743 = vmatpush2.msra.mxu0 0.0
      %4744 = vmatprep.subr.mxu0 0.0
      %4745 = vmatpush2.msra.mxu0 0.0
      %4746 = vmatprep.subr.mxu0 0.0
      %4747 = vmatpush2.msra.mxu0 0.0
      %4748 = vmatprep.subr.mxu0 0.0
      %4749 = vmatpush2.msra.mxu0 0.0
      %4750 = vmatprep.subr.mxu0 0.0
      %4751 = vmatpush2.msra.mxu0 0.0
      %4752 = vmatprep.subr.mxu0 0.0
      %4753 = vmatpush2.msra.mxu0 0.0
      %4754 = vmatprep.subr.mxu0 0.0
      %4755 = vmatpush2.msra.mxu0 0.0
      %4756 = vmatprep.subr.mxu0 0.0
      %4757 = vmatpush2.msra.mxu0 0.0
      %4758 = vmatprep.subr.mxu0 0.0
      %4759 = vmatpush2.msra.mxu0 0.0
      %4760 = vmatprep.mubr.f32.mxu0 0.0
      %4761 = vmatmul.mubr.f32.gmra.mxu0 %v4542
      %v4762 = vpop.f32.mrf.mxu0
      %v4763 = vadd.f32 0.0, %v4762
      %v4764 = vpop.f32.mrf.mxu0
      %4765 = vdwg.mxu0
      %v4766 = vadd.f32 %v4512, %v4621
      %v4767 = vadd.f32 %v4513, %v4623
      %v4768 = vadd.f32 %v4514, %v4692
      %v4769 = vadd.f32 %v4515, %v4694
      %v4770 = vadd.f32 %v4516, %v4763
      %s4771 = scalar_lea.vmem %s25, 16
      %v4772 = vld [vmem:[%s4771] sm:$0xf]
      %v4773 = vld [vmem:[#allocation3] sm:$0xff]
      %v4774 = vld [vmem:[#allocation3 + $0x8] sm:$0xff]
      %v4775 = vld [vmem:[#allocation3 + $0x10] sm:$0xf]
      %v4779 = vcombine.high %v4773, %v4773
      %v4780 = vcombine.high %v4774, %v4774
      %4781 = vrot.lane.b32.xlu0 %v4773, 101
      %v4782 = vpop.permute.xlu0 %4781
      %4783 = vrot.lane.b32.xlu0 %v4779, 101
      %v4784 = vpop.permute.xlu0 %4783
      %4785 = vrot.lane.b32.xlu0 %v4774, 101
      %v4786 = vpop.permute.xlu0 %4785
      %4787 = vrot.lane.b32.xlu0 %v4780, 101
      %v4788 = vpop.permute.xlu0 %4787
      %4789 = vrot.lane.b32.xlu0 %v4775, 101
      %v4790 = vpop.permute.xlu0 %4789
      %v4791 = vsel %vm1649, %v4782, %v4784
      %v4792 = vsel %vm1649, %v4784, %v4786
      %v4793 = vsel %vm1649, %v4786, %v4788
      %v4794 = vsel %vm1649, %v4788, %v4790
      %v4796 = vsel %vm3811, %v4772, 0
      %v4798 = vsel %vm3815, %v4791, 0
      %v4800 = vsel %vm3815, %v4792, 0
      %v4802 = vsel %vm3815, %v4793, 0
      %v4804 = vsel %vm3815, %v4794, 0
      %v4806 = vsel %vm3815, %v4790, 0
      %4808 = vmatprep.subr.mxu0 0.0
      %4809 = vmatpush1.msra.mxu0 0.0
      %4810 = vmatprep.subr.mxu0 0.0
      %4811 = vmatpush1.msra.mxu0 0.0
      %4812 = vmatprep.subr.mxu0 0.0
      %4813 = vmatpush1.msra.mxu0 0.0
      %4814 = vmatprep.subr.mxu0 0.0
      %4815 = vmatpush1.msra.mxu0 0.0
      %4816 = vmatprep.subr.mxu0 0.0
      %4817 = vmatpush1.msra.mxu0 0.0
      %4818 = vmatprep.subr.mxu0 0.0
      %4819 = vmatpush1.msra.mxu0 0.0
      %4820 = vmatprep.subr.mxu0 0.0
      %4821 = vmatpush1.msra.mxu0 0.0
      %4822 = vmatprep.subr.mxu0 0.0
      %4823 = vmatpush1.msra.mxu0 0.0
      %4824 = vmatprep.subr.mxu0 0.0
      %4825 = vmatpush1.msra.mxu0 0.0
      %4826 = vmatprep.subr.mxu0 0.0
      %4827 = vmatpush1.msra.mxu0 0.0
      %4828 = vmatprep.subr.mxu0 0.0
      %4829 = vmatpush1.msra.mxu0 0.0
      %4830 = vmatprep.subr.mxu0 0.0
      %4831 = vmatpush1.msra.mxu0 0.0
      %4832 = vmatprep.subr.mxu0 0.0
      %4833 = vmatpush1.msra.mxu0 0.0
      %4834 = vmatprep.subr.mxu0 0.0
      %4835 = vmatpush1.msra.mxu0 0.0
      %4836 = vmatprep.subr.mxu0 0.0
      %4837 = vmatpush1.msra.mxu0 0.0
      %4838 = vmatprep.subr.mxu0 %v4800
      %4839 = vmatpush1.msra.mxu0 %v4798
      %4840 = vmatprep.subr.mxu0 0.0
      %4841 = vmatpush2.msra.mxu0 0.0
      %4842 = vmatprep.subr.mxu0 0.0
      %4843 = vmatpush2.msra.mxu0 0.0
      %4844 = vmatprep.subr.mxu0 0.0
      %4845 = vmatpush2.msra.mxu0 0.0
      %4846 = vmatprep.subr.mxu0 0.0
      %4847 = vmatpush2.msra.mxu0 0.0
      %4848 = vmatprep.subr.mxu0 0.0
      %4849 = vmatpush2.msra.mxu0 0.0
      %4850 = vmatprep.subr.mxu0 0.0
      %4851 = vmatpush2.msra.mxu0 0.0
      %4852 = vmatprep.subr.mxu0 0.0
      %4853 = vmatpush2.msra.mxu0 0.0
      %4854 = vmatprep.subr.mxu0 0.0
      %4855 = vmatpush2.msra.mxu0 0.0
      %4856 = vmatprep.subr.mxu0 0.0
      %4857 = vmatpush2.msra.mxu0 0.0
      %4858 = vmatprep.subr.mxu0 0.0
      %4859 = vmatpush2.msra.mxu0 0.0
      %4860 = vmatprep.subr.mxu0 0.0
      %4861 = vmatpush2.msra.mxu0 0.0
      %4862 = vmatprep.subr.mxu0 0.0
      %4863 = vmatpush2.msra.mxu0 0.0
      %4864 = vmatprep.subr.mxu0 0.0
      %4865 = vmatpush2.msra.mxu0 0.0
      %4866 = vmatprep.subr.mxu0 0.0
      %4867 = vmatpush2.msra.mxu0 0.0
      %4868 = vmatprep.subr.mxu0 0.0
      %4869 = vmatpush2.msra.mxu0 0.0
      %4870 = vmatprep.subr.mxu0 0.0
      %4871 = vmatpush2.msra.mxu0 0.0
      %4872 = vmatprep.mubr.f32.mxu0 0.0
      %4873 = vmatmul.mubr.f32.gmra.mxu0 %v4796
      %v4874 = vpop.f32.mrf.mxu0
      %v4875 = vadd.f32 0.0, %v4874
      %v4876 = vpop.f32.mrf.mxu0
      %v4877 = vadd.f32 0.0, %v4876
      %4878 = vdwg.mxu0
      %4879 = vmatprep.subr.mxu0 0.0
      %4880 = vmatpush1.msra.mxu0 0.0
      %4881 = vmatprep.subr.mxu0 0.0
      %4882 = vmatpush1.msra.mxu0 0.0
      %4883 = vmatprep.subr.mxu0 0.0
      %4884 = vmatpush1.msra.mxu0 0.0
      %4885 = vmatprep.subr.mxu0 0.0
      %4886 = vmatpush1.msra.mxu0 0.0
      %4887 = vmatprep.subr.mxu0 0.0
      %4888 = vmatpush1.msra.mxu0 0.0
      %4889 = vmatprep.subr.mxu0 0.0
      %4890 = vmatpush1.msra.mxu0 0.0
      %4891 = vmatprep.subr.mxu0 0.0
      %4892 = vmatpush1.msra.mxu0 0.0
      %4893 = vmatprep.subr.mxu0 0.0
      %4894 = vmatpush1.msra.mxu0 0.0
      %4895 = vmatprep.subr.mxu0 0.0
      %4896 = vmatpush1.msra.mxu0 0.0
      %4897 = vmatprep.subr.mxu0 0.0
      %4898 = vmatpush1.msra.mxu0 0.0
      %4899 = vmatprep.subr.mxu0 0.0
      %4900 = vmatpush1.msra.mxu0 0.0
      %4901 = vmatprep.subr.mxu0 0.0
      %4902 = vmatpush1.msra.mxu0 0.0
      %4903 = vmatprep.subr.mxu0 0.0
      %4904 = vmatpush1.msra.mxu0 0.0
      %4905 = vmatprep.subr.mxu0 0.0
      %4906 = vmatpush1.msra.mxu0 0.0
      %4907 = vmatprep.subr.mxu0 0.0
      %4908 = vmatpush1.msra.mxu0 0.0
      %4909 = vmatprep.subr.mxu0 %v4804
      %4910 = vmatpush1.msra.mxu0 %v4802
      %4911 = vmatprep.subr.mxu0 0.0
      %4912 = vmatpush2.msra.mxu0 0.0
      %4913 = vmatprep.subr.mxu0 0.0
      %4914 = vmatpush2.msra.mxu0 0.0
      %4915 = vmatprep.subr.mxu0 0.0
      %4916 = vmatpush2.msra.mxu0 0.0
      %4917 = vmatprep.subr.mxu0 0.0
      %4918 = vmatpush2.msra.mxu0 0.0
      %4919 = vmatprep.subr.mxu0 0.0
      %4920 = vmatpush2.msra.mxu0 0.0
      %4921 = vmatprep.subr.mxu0 0.0
      %4922 = vmatpush2.msra.mxu0 0.0
      %4923 = vmatprep.subr.mxu0 0.0
      %4924 = vmatpush2.msra.mxu0 0.0
      %4925 = vmatprep.subr.mxu0 0.0
      %4926 = vmatpush2.msra.mxu0 0.0
      %4927 = vmatprep.subr.mxu0 0.0
      %4928 = vmatpush2.msra.mxu0 0.0
      %4929 = vmatprep.subr.mxu0 0.0
      %4930 = vmatpush2.msra.mxu0 0.0
      %4931 = vmatprep.subr.mxu0 0.0
      %4932 = vmatpush2.msra.mxu0 0.0
      %4933 = vmatprep.subr.mxu0 0.0
      %4934 = vmatpush2.msra.mxu0 0.0
      %4935 = vmatprep.subr.mxu0 0.0
      %4936 = vmatpush2.msra.mxu0 0.0
      %4937 = vmatprep.subr.mxu0 0.0
      %4938 = vmatpush2.msra.mxu0 0.0
      %4939 = vmatprep.subr.mxu0 0.0
      %4940 = vmatpush2.msra.mxu0 0.0
      %4941 = vmatprep.subr.mxu0 0.0
      %4942 = vmatpush2.msra.mxu0 0.0
      %4943 = vmatprep.mubr.f32.mxu0 0.0
      %4944 = vmatmul.mubr.f32.gmra.mxu0 %v4796
      %v4945 = vpop.f32.mrf.mxu0
      %v4946 = vadd.f32 0.0, %v4945
      %v4947 = vpop.f32.mrf.mxu0
      %v4948 = vadd.f32 0.0, %v4947
      %4949 = vdwg.mxu0
      %4950 = vmatprep.subr.mxu0 0.0
      %4951 = vmatpush1.msra.mxu0 0.0
      %4952 = vmatprep.subr.mxu0 0.0
      %4953 = vmatpush1.msra.mxu0 0.0
      %4954 = vmatprep.subr.mxu0 0.0
      %4955 = vmatpush1.msra.mxu0 0.0
      %4956 = vmatprep.subr.mxu0 0.0
      %4957 = vmatpush1.msra.mxu0 0.0
      %4958 = vmatprep.subr.mxu0 0.0
      %4959 = vmatpush1.msra.mxu0 0.0
      %4960 = vmatprep.subr.mxu0 0.0
      %4961 = vmatpush1.msra.mxu0 0.0
      %4962 = vmatprep.subr.mxu0 0.0
      %4963 = vmatpush1.msra.mxu0 0.0
      %4964 = vmatprep.subr.mxu0 0.0
      %4965 = vmatpush1.msra.mxu0 0.0
      %4966 = vmatprep.subr.mxu0 0.0
      %4967 = vmatpush1.msra.mxu0 0.0
      %4968 = vmatprep.subr.mxu0 0.0
      %4969 = vmatpush1.msra.mxu0 0.0
      %4970 = vmatprep.subr.mxu0 0.0
      %4971 = vmatpush1.msra.mxu0 0.0
      %4972 = vmatprep.subr.mxu0 0.0
      %4973 = vmatpush1.msra.mxu0 0.0
      %4974 = vmatprep.subr.mxu0 0.0
      %4975 = vmatpush1.msra.mxu0 0.0
      %4976 = vmatprep.subr.mxu0 0.0
      %4977 = vmatpush1.msra.mxu0 0.0
      %4978 = vmatprep.subr.mxu0 0.0
      %4979 = vmatpush1.msra.mxu0 0.0
      %4980 = vmatprep.subr.mxu0 0.0
      %4981 = vmatpush1.msra.mxu0 %v4806
      %4982 = vmatprep.subr.mxu0 0.0
      %4983 = vmatpush2.msra.mxu0 0.0
      %4984 = vmatprep.subr.mxu0 0.0
      %4985 = vmatpush2.msra.mxu0 0.0
      %4986 = vmatprep.subr.mxu0 0.0
      %4987 = vmatpush2.msra.mxu0 0.0
      %4988 = vmatprep.subr.mxu0 0.0
      %4989 = vmatpush2.msra.mxu0 0.0
      %4990 = vmatprep.subr.mxu0 0.0
      %4991 = vmatpush2.msra.mxu0 0.0
      %4992 = vmatprep.subr.mxu0 0.0
      %4993 = vmatpush2.msra.mxu0 0.0
      %4994 = vmatprep.subr.mxu0 0.0
      %4995 = vmatpush2.msra.mxu0 0.0
      %4996 = vmatprep.subr.mxu0 0.0
      %4997 = vmatpush2.msra.mxu0 0.0
      %4998 = vmatprep.subr.mxu0 0.0
      %4999 = vmatpush2.msra.mxu0 0.0
      %5000 = vmatprep.subr.mxu0 0.0
      %5001 = vmatpush2.msra.mxu0 0.0
      %5002 = vmatprep.subr.mxu0 0.0
      %5003 = vmatpush2.msra.mxu0 0.0
      %5004 = vmatprep.subr.mxu0 0.0
      %5005 = vmatpush2.msra.mxu0 0.0
      %5006 = vmatprep.subr.mxu0 0.0
      %5007 = vmatpush2.msra.mxu0 0.0
      %5008 = vmatprep.subr.mxu0 0.0
      %5009 = vmatpush2.msra.mxu0 0.0
      %5010 = vmatprep.subr.mxu0 0.0
      %5011 = vmatpush2.msra.mxu0 0.0
      %5012 = vmatprep.subr.mxu0 0.0
      %5013 = vmatpush2.msra.mxu0 0.0
      %5014 = vmatprep.mubr.f32.mxu0 0.0
      %5015 = vmatmul.mubr.f32.gmra.mxu0 %v4796
      %v5016 = vpop.f32.mrf.mxu0
      %v5017 = vadd.f32 0.0, %v5016
      %v5018 = vpop.f32.mrf.mxu0
      %5019 = vdwg.mxu0
      %v5020 = vadd.f32 %v4766, %v4875
      %v5021 = vadd.f32 %v4767, %v4877
      %v5022 = vadd.f32 %v4768, %v4946
      %v5023 = vadd.f32 %v4769, %v4948
      %v5024 = vadd.f32 %v4770, %v5017
      %s5025 = scalar_lea.vmem %s25, 20
      %v5026 = vld [vmem:[%s5025] sm:$0xf]
      %v5027 = vld [vmem:[#allocation3] sm:$0xff]
      %v5028 = vld [vmem:[#allocation3 + $0x8] sm:$0xff]
      %v5029 = vld [vmem:[#allocation3 + $0x10] sm:$0xf]
      %v5033 = vcombine.high %v5027, %v5027
      %v5034 = vcombine.high %v5028, %v5028
      %5035 = vrot.lane.b32.xlu0 %v5027, 100
      %v5036 = vpop.permute.xlu0 %5035
      %5037 = vrot.lane.b32.xlu0 %v5033, 100
      %v5038 = vpop.permute.xlu0 %5037
      %5039 = vrot.lane.b32.xlu0 %v5028, 100
      %v5040 = vpop.permute.xlu0 %5039
      %5041 = vrot.lane.b32.xlu0 %v5034, 100
      %v5042 = vpop.permute.xlu0 %5041
      %5043 = vrot.lane.b32.xlu0 %v5029, 100
      %v5044 = vpop.permute.xlu0 %5043
      %v5045 = vsel %vm1730, %v5036, %v5038
      %v5046 = vsel %vm1730, %v5038, %v5040
      %v5047 = vsel %vm1730, %v5040, %v5042
      %v5048 = vsel %vm1730, %v5042, %v5044
      %v5050 = vsel %vm3811, %v5026, 0
      %v5052 = vsel %vm3815, %v5045, 0
      %v5054 = vsel %vm3815, %v5046, 0
      %v5056 = vsel %vm3815, %v5047, 0
      %v5058 = vsel %vm3815, %v5048, 0
      %v5060 = vsel %vm3815, %v5044, 0
      %5062 = vmatprep.subr.mxu0 0.0
      %5063 = vmatpush1.msra.mxu0 0.0
      %5064 = vmatprep.subr.mxu0 0.0
      %5065 = vmatpush1.msra.mxu0 0.0
      %5066 = vmatprep.subr.mxu0 0.0
      %5067 = vmatpush1.msra.mxu0 0.0
      %5068 = vmatprep.subr.mxu0 0.0
      %5069 = vmatpush1.msra.mxu0 0.0
      %5070 = vmatprep.subr.mxu0 0.0
      %5071 = vmatpush1.msra.mxu0 0.0
      %5072 = vmatprep.subr.mxu0 0.0
      %5073 = vmatpush1.msra.mxu0 0.0
      %5074 = vmatprep.subr.mxu0 0.0
      %5075 = vmatpush1.msra.mxu0 0.0
      %5076 = vmatprep.subr.mxu0 0.0
      %5077 = vmatpush1.msra.mxu0 0.0
      %5078 = vmatprep.subr.mxu0 0.0
      %5079 = vmatpush1.msra.mxu0 0.0
      %5080 = vmatprep.subr.mxu0 0.0
      %5081 = vmatpush1.msra.mxu0 0.0
      %5082 = vmatprep.subr.mxu0 0.0
      %5083 = vmatpush1.msra.mxu0 0.0
      %5084 = vmatprep.subr.mxu0 0.0
      %5085 = vmatpush1.msra.mxu0 0.0
      %5086 = vmatprep.subr.mxu0 0.0
      %5087 = vmatpush1.msra.mxu0 0.0
      %5088 = vmatprep.subr.mxu0 0.0
      %5089 = vmatpush1.msra.mxu0 0.0
      %5090 = vmatprep.subr.mxu0 0.0
      %5091 = vmatpush1.msra.mxu0 0.0
      %5092 = vmatprep.subr.mxu0 %v5054
      %5093 = vmatpush1.msra.mxu0 %v5052
      %5094 = vmatprep.subr.mxu0 0.0
      %5095 = vmatpush2.msra.mxu0 0.0
      %5096 = vmatprep.subr.mxu0 0.0
      %5097 = vmatpush2.msra.mxu0 0.0
      %5098 = vmatprep.subr.mxu0 0.0
      %5099 = vmatpush2.msra.mxu0 0.0
      %5100 = vmatprep.subr.mxu0 0.0
      %5101 = vmatpush2.msra.mxu0 0.0
      %5102 = vmatprep.subr.mxu0 0.0
      %5103 = vmatpush2.msra.mxu0 0.0
      %5104 = vmatprep.subr.mxu0 0.0
      %5105 = vmatpush2.msra.mxu0 0.0
      %5106 = vmatprep.subr.mxu0 0.0
      %5107 = vmatpush2.msra.mxu0 0.0
      %5108 = vmatprep.subr.mxu0 0.0
      %5109 = vmatpush2.msra.mxu0 0.0
      %5110 = vmatprep.subr.mxu0 0.0
      %5111 = vmatpush2.msra.mxu0 0.0
      %5112 = vmatprep.subr.mxu0 0.0
      %5113 = vmatpush2.msra.mxu0 0.0
      %5114 = vmatprep.subr.mxu0 0.0
      %5115 = vmatpush2.msra.mxu0 0.0
      %5116 = vmatprep.subr.mxu0 0.0
      %5117 = vmatpush2.msra.mxu0 0.0
      %5118 = vmatprep.subr.mxu0 0.0
      %5119 = vmatpush2.msra.mxu0 0.0
      %5120 = vmatprep.subr.mxu0 0.0
      %5121 = vmatpush2.msra.mxu0 0.0
      %5122 = vmatprep.subr.mxu0 0.0
      %5123 = vmatpush2.msra.mxu0 0.0
      %5124 = vmatprep.subr.mxu0 0.0
      %5125 = vmatpush2.msra.mxu0 0.0
      %5126 = vmatprep.mubr.f32.mxu0 0.0
      %5127 = vmatmul.mubr.f32.gmra.mxu0 %v5050
      %v5128 = vpop.f32.mrf.mxu0
      %v5129 = vadd.f32 0.0, %v5128
      %v5130 = vpop.f32.mrf.mxu0
      %v5131 = vadd.f32 0.0, %v5130
      %5132 = vdwg.mxu0
      %5133 = vmatprep.subr.mxu0 0.0
      %5134 = vmatpush1.msra.mxu0 0.0
      %5135 = vmatprep.subr.mxu0 0.0
      %5136 = vmatpush1.msra.mxu0 0.0
      %5137 = vmatprep.subr.mxu0 0.0
      %5138 = vmatpush1.msra.mxu0 0.0
      %5139 = vmatprep.subr.mxu0 0.0
      %5140 = vmatpush1.msra.mxu0 0.0
      %5141 = vmatprep.subr.mxu0 0.0
      %5142 = vmatpush1.msra.mxu0 0.0
      %5143 = vmatprep.subr.mxu0 0.0
      %5144 = vmatpush1.msra.mxu0 0.0
      %5145 = vmatprep.subr.mxu0 0.0
      %5146 = vmatpush1.msra.mxu0 0.0
      %5147 = vmatprep.subr.mxu0 0.0
      %5148 = vmatpush1.msra.mxu0 0.0
      %5149 = vmatprep.subr.mxu0 0.0
      %5150 = vmatpush1.msra.mxu0 0.0
      %5151 = vmatprep.subr.mxu0 0.0
      %5152 = vmatpush1.msra.mxu0 0.0
      %5153 = vmatprep.subr.mxu0 0.0
      %5154 = vmatpush1.msra.mxu0 0.0
      %5155 = vmatprep.subr.mxu0 0.0
      %5156 = vmatpush1.msra.mxu0 0.0
      %5157 = vmatprep.subr.mxu0 0.0
      %5158 = vmatpush1.msra.mxu0 0.0
      %5159 = vmatprep.subr.mxu0 0.0
      %5160 = vmatpush1.msra.mxu0 0.0
      %5161 = vmatprep.subr.mxu0 0.0
      %5162 = vmatpush1.msra.mxu0 0.0
      %5163 = vmatprep.subr.mxu0 %v5058
      %5164 = vmatpush1.msra.mxu0 %v5056
      %5165 = vmatprep.subr.mxu0 0.0
      %5166 = vmatpush2.msra.mxu0 0.0
      %5167 = vmatprep.subr.mxu0 0.0
      %5168 = vmatpush2.msra.mxu0 0.0
      %5169 = vmatprep.subr.mxu0 0.0
      %5170 = vmatpush2.msra.mxu0 0.0
      %5171 = vmatprep.subr.mxu0 0.0
      %5172 = vmatpush2.msra.mxu0 0.0
      %5173 = vmatprep.subr.mxu0 0.0
      %5174 = vmatpush2.msra.mxu0 0.0
      %5175 = vmatprep.subr.mxu0 0.0
      %5176 = vmatpush2.msra.mxu0 0.0
      %5177 = vmatprep.subr.mxu0 0.0
      %5178 = vmatpush2.msra.mxu0 0.0
      %5179 = vmatprep.subr.mxu0 0.0
      %5180 = vmatpush2.msra.mxu0 0.0
      %5181 = vmatprep.subr.mxu0 0.0
      %5182 = vmatpush2.msra.mxu0 0.0
      %5183 = vmatprep.subr.mxu0 0.0
      %5184 = vmatpush2.msra.mxu0 0.0
      %5185 = vmatprep.subr.mxu0 0.0
      %5186 = vmatpush2.msra.mxu0 0.0
      %5187 = vmatprep.subr.mxu0 0.0
      %5188 = vmatpush2.msra.mxu0 0.0
      %5189 = vmatprep.subr.mxu0 0.0
      %5190 = vmatpush2.msra.mxu0 0.0
      %5191 = vmatprep.subr.mxu0 0.0
      %5192 = vmatpush2.msra.mxu0 0.0
      %5193 = vmatprep.subr.mxu0 0.0
      %5194 = vmatpush2.msra.mxu0 0.0
      %5195 = vmatprep.subr.mxu0 0.0
      %5196 = vmatpush2.msra.mxu0 0.0
      %5197 = vmatprep.mubr.f32.mxu0 0.0
      %5198 = vmatmul.mubr.f32.gmra.mxu0 %v5050
      %v5199 = vpop.f32.mrf.mxu0
      %v5200 = vadd.f32 0.0, %v5199
      %v5201 = vpop.f32.mrf.mxu0
      %v5202 = vadd.f32 0.0, %v5201
      %5203 = vdwg.mxu0
      %5204 = vmatprep.subr.mxu0 0.0
      %5205 = vmatpush1.msra.mxu0 0.0
      %5206 = vmatprep.subr.mxu0 0.0
      %5207 = vmatpush1.msra.mxu0 0.0
      %5208 = vmatprep.subr.mxu0 0.0
      %5209 = vmatpush1.msra.mxu0 0.0
      %5210 = vmatprep.subr.mxu0 0.0
      %5211 = vmatpush1.msra.mxu0 0.0
      %5212 = vmatprep.subr.mxu0 0.0
      %5213 = vmatpush1.msra.mxu0 0.0
      %5214 = vmatprep.subr.mxu0 0.0
      %5215 = vmatpush1.msra.mxu0 0.0
      %5216 = vmatprep.subr.mxu0 0.0
      %5217 = vmatpush1.msra.mxu0 0.0
      %5218 = vmatprep.subr.mxu0 0.0
      %5219 = vmatpush1.msra.mxu0 0.0
      %5220 = vmatprep.subr.mxu0 0.0
      %5221 = vmatpush1.msra.mxu0 0.0
      %5222 = vmatprep.subr.mxu0 0.0
      %5223 = vmatpush1.msra.mxu0 0.0
      %5224 = vmatprep.subr.mxu0 0.0
      %5225 = vmatpush1.msra.mxu0 0.0
      %5226 = vmatprep.subr.mxu0 0.0
      %5227 = vmatpush1.msra.mxu0 0.0
      %5228 = vmatprep.subr.mxu0 0.0
      %5229 = vmatpush1.msra.mxu0 0.0
      %5230 = vmatprep.subr.mxu0 0.0
      %5231 = vmatpush1.msra.mxu0 0.0
      %5232 = vmatprep.subr.mxu0 0.0
      %5233 = vmatpush1.msra.mxu0 0.0
      %5234 = vmatprep.subr.mxu0 0.0
      %5235 = vmatpush1.msra.mxu0 %v5060
      %5236 = vmatprep.subr.mxu0 0.0
      %5237 = vmatpush2.msra.mxu0 0.0
      %5238 = vmatprep.subr.mxu0 0.0
      %5239 = vmatpush2.msra.mxu0 0.0
      %5240 = vmatprep.subr.mxu0 0.0
      %5241 = vmatpush2.msra.mxu0 0.0
      %5242 = vmatprep.subr.mxu0 0.0
      %5243 = vmatpush2.msra.mxu0 0.0
      %5244 = vmatprep.subr.mxu0 0.0
      %5245 = vmatpush2.msra.mxu0 0.0
      %5246 = vmatprep.subr.mxu0 0.0
      %5247 = vmatpush2.msra.mxu0 0.0
      %5248 = vmatprep.subr.mxu0 0.0
      %5249 = vmatpush2.msra.mxu0 0.0
      %5250 = vmatprep.subr.mxu0 0.0
      %5251 = vmatpush2.msra.mxu0 0.0
      %5252 = vmatprep.subr.mxu0 0.0
      %5253 = vmatpush2.msra.mxu0 0.0
      %5254 = vmatprep.subr.mxu0 0.0
      %5255 = vmatpush2.msra.mxu0 0.0
      %5256 = vmatprep.subr.mxu0 0.0
      %5257 = vmatpush2.msra.mxu0 0.0
      %5258 = vmatprep.subr.mxu0 0.0
      %5259 = vmatpush2.msra.mxu0 0.0
      %5260 = vmatprep.subr.mxu0 0.0
      %5261 = vmatpush2.msra.mxu0 0.0
      %5262 = vmatprep.subr.mxu0 0.0
      %5263 = vmatpush2.msra.mxu0 0.0
      %5264 = vmatprep.subr.mxu0 0.0
      %5265 = vmatpush2.msra.mxu0 0.0
      %5266 = vmatprep.subr.mxu0 0.0
      %5267 = vmatpush2.msra.mxu0 0.0
      %5268 = vmatprep.mubr.f32.mxu0 0.0
      %5269 = vmatmul.mubr.f32.gmra.mxu0 %v5050
      %v5270 = vpop.f32.mrf.mxu0
      %v5271 = vadd.f32 0.0, %v5270
      %v5272 = vpop.f32.mrf.mxu0
      %5273 = vdwg.mxu0
      %v5274 = vadd.f32 %v5020, %v5129
      %v5275 = vadd.f32 %v5021, %v5131
      %v5276 = vadd.f32 %v5022, %v5200
      %v5277 = vadd.f32 %v5023, %v5202
      %v5278 = vadd.f32 %v5024, %v5271
      %s5279 = scalar_lea.vmem %s25, 24
      %v5280 = vld [vmem:[%s5279] sm:$0xf]
      %v5281 = vld [vmem:[#allocation3] sm:$0xff]
      %v5282 = vld [vmem:[#allocation3 + $0x8] sm:$0xff]
      %v5283 = vld [vmem:[#allocation3 + $0x10] sm:$0xf]
      %v5287 = vcombine.high %v5281, %v5281
      %v5288 = vcombine.high %v5282, %v5282
      %5289 = vrot.lane.b32.xlu0 %v5281, 76
      %v5290 = vpop.permute.xlu0 %5289
      %5291 = vrot.lane.b32.xlu0 %v5287, 76
      %v5292 = vpop.permute.xlu0 %5291
      %5293 = vrot.lane.b32.xlu0 %v5282, 76
      %v5294 = vpop.permute.xlu0 %5293
      %5295 = vrot.lane.b32.xlu0 %v5288, 76
      %v5296 = vpop.permute.xlu0 %5295
      %5297 = vrot.lane.b32.xlu0 %v5283, 76
      %v5298 = vpop.permute.xlu0 %5297
      %v5299 = vsel %vm1831, %v5290, %v5292
      %v5300 = vsel %vm1831, %v5292, %v5294
      %v5301 = vsel %vm1831, %v5294, %v5296
      %v5302 = vsel %vm1831, %v5296, %v5298
      %v5304 = vsel %vm3811, %v5280, 0
      %v5306 = vsel %vm3815, %v5299, 0
      %v5308 = vsel %vm3815, %v5300, 0
      %v5310 = vsel %vm3815, %v5301, 0
      %v5312 = vsel %vm3815, %v5302, 0
      %v5314 = vsel %vm3815, %v5298, 0
      %5316 = vmatprep.subr.mxu0 0.0
      %5317 = vmatpush1.msra.mxu0 0.0
      %5318 = vmatprep.subr.mxu0 0.0
      %5319 = vmatpush1.msra.mxu0 0.0
      %5320 = vmatprep.subr.mxu0 0.0
      %5321 = vmatpush1.msra.mxu0 0.0
      %5322 = vmatprep.subr.mxu0 0.0
      %5323 = vmatpush1.msra.mxu0 0.0
      %5324 = vmatprep.subr.mxu0 0.0
      %5325 = vmatpush1.msra.mxu0 0.0
      %5326 = vmatprep.subr.mxu0 0.0
      %5327 = vmatpush1.msra.mxu0 0.0
      %5328 = vmatprep.subr.mxu0 0.0
      %5329 = vmatpush1.msra.mxu0 0.0
      %5330 = vmatprep.subr.mxu0 0.0
      %5331 = vmatpush1.msra.mxu0 0.0
      %5332 = vmatprep.subr.mxu0 0.0
      %5333 = vmatpush1.msra.mxu0 0.0
      %5334 = vmatprep.subr.mxu0 0.0
      %5335 = vmatpush1.msra.mxu0 0.0
      %5336 = vmatprep.subr.mxu0 0.0
      %5337 = vmatpush1.msra.mxu0 0.0
      %5338 = vmatprep.subr.mxu0 0.0
      %5339 = vmatpush1.msra.mxu0 0.0
      %5340 = vmatprep.subr.mxu0 0.0
      %5341 = vmatpush1.msra.mxu0 0.0
      %5342 = vmatprep.subr.mxu0 0.0
      %5343 = vmatpush1.msra.mxu0 0.0
      %5344 = vmatprep.subr.mxu0 0.0
      %5345 = vmatpush1.msra.mxu0 0.0
      %5346 = vmatprep.subr.mxu0 %v5308
      %5347 = vmatpush1.msra.mxu0 %v5306
      %5348 = vmatprep.subr.mxu0 0.0
      %5349 = vmatpush2.msra.mxu0 0.0
      %5350 = vmatprep.subr.mxu0 0.0
      %5351 = vmatpush2.msra.mxu0 0.0
      %5352 = vmatprep.subr.mxu0 0.0
      %5353 = vmatpush2.msra.mxu0 0.0
      %5354 = vmatprep.subr.mxu0 0.0
      %5355 = vmatpush2.msra.mxu0 0.0
      %5356 = vmatprep.subr.mxu0 0.0
      %5357 = vmatpush2.msra.mxu0 0.0
      %5358 = vmatprep.subr.mxu0 0.0
      %5359 = vmatpush2.msra.mxu0 0.0
      %5360 = vmatprep.subr.mxu0 0.0
      %5361 = vmatpush2.msra.mxu0 0.0
      %5362 = vmatprep.subr.mxu0 0.0
      %5363 = vmatpush2.msra.mxu0 0.0
      %5364 = vmatprep.subr.mxu0 0.0
      %5365 = vmatpush2.msra.mxu0 0.0
      %5366 = vmatprep.subr.mxu0 0.0
      %5367 = vmatpush2.msra.mxu0 0.0
      %5368 = vmatprep.subr.mxu0 0.0
      %5369 = vmatpush2.msra.mxu0 0.0
      %5370 = vmatprep.subr.mxu0 0.0
      %5371 = vmatpush2.msra.mxu0 0.0
      %5372 = vmatprep.subr.mxu0 0.0
      %5373 = vmatpush2.msra.mxu0 0.0
      %5374 = vmatprep.subr.mxu0 0.0
      %5375 = vmatpush2.msra.mxu0 0.0
      %5376 = vmatprep.subr.mxu0 0.0
      %5377 = vmatpush2.msra.mxu0 0.0
      %5378 = vmatprep.subr.mxu0 0.0
      %5379 = vmatpush2.msra.mxu0 0.0
      %5380 = vmatprep.mubr.f32.mxu0 0.0
      %5381 = vmatmul.mubr.f32.gmra.mxu0 %v5304
      %v5382 = vpop.f32.mrf.mxu0
      %v5383 = vadd.f32 0.0, %v5382
      %v5384 = vpop.f32.mrf.mxu0
      %v5385 = vadd.f32 0.0, %v5384
      %5386 = vdwg.mxu0
      %5387 = vmatprep.subr.mxu0 0.0
      %5388 = vmatpush1.msra.mxu0 0.0
      %5389 = vmatprep.subr.mxu0 0.0
      %5390 = vmatpush1.msra.mxu0 0.0
      %5391 = vmatprep.subr.mxu0 0.0
      %5392 = vmatpush1.msra.mxu0 0.0
      %5393 = vmatprep.subr.mxu0 0.0
      %5394 = vmatpush1.msra.mxu0 0.0
      %5395 = vmatprep.subr.mxu0 0.0
      %5396 = vmatpush1.msra.mxu0 0.0
      %5397 = vmatprep.subr.mxu0 0.0
      %5398 = vmatpush1.msra.mxu0 0.0
      %5399 = vmatprep.subr.mxu0 0.0
      %5400 = vmatpush1.msra.mxu0 0.0
      %5401 = vmatprep.subr.mxu0 0.0
      %5402 = vmatpush1.msra.mxu0 0.0
      %5403 = vmatprep.subr.mxu0 0.0
      %5404 = vmatpush1.msra.mxu0 0.0
      %5405 = vmatprep.subr.mxu0 0.0
      %5406 = vmatpush1.msra.mxu0 0.0
      %5407 = vmatprep.subr.mxu0 0.0
      %5408 = vmatpush1.msra.mxu0 0.0
      %5409 = vmatprep.subr.mxu0 0.0
      %5410 = vmatpush1.msra.mxu0 0.0
      %5411 = vmatprep.subr.mxu0 0.0
      %5412 = vmatpush1.msra.mxu0 0.0
      %5413 = vmatprep.subr.mxu0 0.0
      %5414 = vmatpush1.msra.mxu0 0.0
      %5415 = vmatprep.subr.mxu0 0.0
      %5416 = vmatpush1.msra.mxu0 0.0
      %5417 = vmatprep.subr.mxu0 %v5312
      %5418 = vmatpush1.msra.mxu0 %v5310
      %5419 = vmatprep.subr.mxu0 0.0
      %5420 = vmatpush2.msra.mxu0 0.0
      %5421 = vmatprep.subr.mxu0 0.0
      %5422 = vmatpush2.msra.mxu0 0.0
      %5423 = vmatprep.subr.mxu0 0.0
      %5424 = vmatpush2.msra.mxu0 0.0
      %5425 = vmatprep.subr.mxu0 0.0
      %5426 = vmatpush2.msra.mxu0 0.0
      %5427 = vmatprep.subr.mxu0 0.0
      %5428 = vmatpush2.msra.mxu0 0.0
      %5429 = vmatprep.subr.mxu0 0.0
      %5430 = vmatpush2.msra.mxu0 0.0
      %5431 = vmatprep.subr.mxu0 0.0
      %5432 = vmatpush2.msra.mxu0 0.0
      %5433 = vmatprep.subr.mxu0 0.0
      %5434 = vmatpush2.msra.mxu0 0.0
      %5435 = vmatprep.subr.mxu0 0.0
      %5436 = vmatpush2.msra.mxu0 0.0
      %5437 = vmatprep.subr.mxu0 0.0
      %5438 = vmatpush2.msra.mxu0 0.0
      %5439 = vmatprep.subr.mxu0 0.0
      %5440 = vmatpush2.msra.mxu0 0.0
      %5441 = vmatprep.subr.mxu0 0.0
      %5442 = vmatpush2.msra.mxu0 0.0
      %5443 = vmatprep.subr.mxu0 0.0
      %5444 = vmatpush2.msra.mxu0 0.0
      %5445 = vmatprep.subr.mxu0 0.0
      %5446 = vmatpush2.msra.mxu0 0.0
      %5447 = vmatprep.subr.mxu0 0.0
      %5448 = vmatpush2.msra.mxu0 0.0
      %5449 = vmatprep.subr.mxu0 0.0
      %5450 = vmatpush2.msra.mxu0 0.0
      %5451 = vmatprep.mubr.f32.mxu0 0.0
      %5452 = vmatmul.mubr.f32.gmra.mxu0 %v5304
      %v5453 = vpop.f32.mrf.mxu0
      %v5454 = vadd.f32 0.0, %v5453
      %v5455 = vpop.f32.mrf.mxu0
      %v5456 = vadd.f32 0.0, %v5455
      %5457 = vdwg.mxu0
      %5458 = vmatprep.subr.mxu0 0.0
      %5459 = vmatpush1.msra.mxu0 0.0
      %5460 = vmatprep.subr.mxu0 0.0
      %5461 = vmatpush1.msra.mxu0 0.0
      %5462 = vmatprep.subr.mxu0 0.0
      %5463 = vmatpush1.msra.mxu0 0.0
      %5464 = vmatprep.subr.mxu0 0.0
      %5465 = vmatpush1.msra.mxu0 0.0
      %5466 = vmatprep.subr.mxu0 0.0
      %5467 = vmatpush1.msra.mxu0 0.0
      %5468 = vmatprep.subr.mxu0 0.0
      %5469 = vmatpush1.msra.mxu0 0.0
      %5470 = vmatprep.subr.mxu0 0.0
      %5471 = vmatpush1.msra.mxu0 0.0
      %5472 = vmatprep.subr.mxu0 0.0
      %5473 = vmatpush1.msra.mxu0 0.0
      %5474 = vmatprep.subr.mxu0 0.0
      %5475 = vmatpush1.msra.mxu0 0.0
      %5476 = vmatprep.subr.mxu0 0.0
      %5477 = vmatpush1.msra.mxu0 0.0
      %5478 = vmatprep.subr.mxu0 0.0
      %5479 = vmatpush1.msra.mxu0 0.0
      %5480 = vmatprep.subr.mxu0 0.0
      %5481 = vmatpush1.msra.mxu0 0.0
      %5482 = vmatprep.subr.mxu0 0.0
      %5483 = vmatpush1.msra.mxu0 0.0
      %5484 = vmatprep.subr.mxu0 0.0
      %5485 = vmatpush1.msra.mxu0 0.0
      %5486 = vmatprep.subr.mxu0 0.0
      %5487 = vmatpush1.msra.mxu0 0.0
      %5488 = vmatprep.subr.mxu0 0.0
      %5489 = vmatpush1.msra.mxu0 %v5314
      %5490 = vmatprep.subr.mxu0 0.0
      %5491 = vmatpush2.msra.mxu0 0.0
      %5492 = vmatprep.subr.mxu0 0.0
      %5493 = vmatpush2.msra.mxu0 0.0
      %5494 = vmatprep.subr.mxu0 0.0
      %5495 = vmatpush2.msra.mxu0 0.0
      %5496 = vmatprep.subr.mxu0 0.0
      %5497 = vmatpush2.msra.mxu0 0.0
      %5498 = vmatprep.subr.mxu0 0.0
      %5499 = vmatpush2.msra.mxu0 0.0
      %5500 = vmatprep.subr.mxu0 0.0
      %5501 = vmatpush2.msra.mxu0 0.0
      %5502 = vmatprep.subr.mxu0 0.0
      %5503 = vmatpush2.msra.mxu0 0.0
      %5504 = vmatprep.subr.mxu0 0.0
      %5505 = vmatpush2.msra.mxu0 0.0
      %5506 = vmatprep.subr.mxu0 0.0
      %5507 = vmatpush2.msra.mxu0 0.0
      %5508 = vmatprep.subr.mxu0 0.0
      %5509 = vmatpush2.msra.mxu0 0.0
      %5510 = vmatprep.subr.mxu0 0.0
      %5511 = vmatpush2.msra.mxu0 0.0
      %5512 = vmatprep.subr.mxu0 0.0
      %5513 = vmatpush2.msra.mxu0 0.0
      %5514 = vmatprep.subr.mxu0 0.0
      %5515 = vmatpush2.msra.mxu0 0.0
      %5516 = vmatprep.subr.mxu0 0.0
      %5517 = vmatpush2.msra.mxu0 0.0
      %5518 = vmatprep.subr.mxu0 0.0
      %5519 = vmatpush2.msra.mxu0 0.0
      %5520 = vmatprep.subr.mxu0 0.0
      %5521 = vmatpush2.msra.mxu0 0.0
      %5522 = vmatprep.mubr.f32.mxu0 0.0
      %5523 = vmatmul.mubr.f32.gmra.mxu0 %v5304
      %v5524 = vpop.f32.mrf.mxu0
      %v5525 = vadd.f32 0.0, %v5524
      %v5526 = vpop.f32.mrf.mxu0
      %5527 = vdwg.mxu0
      %v5528 = vadd.f32 %v5274, %v5383
      %v5529 = vadd.f32 %v5275, %v5385
      %v5530 = vadd.f32 %v5276, %v5454
      %v5531 = vadd.f32 %v5277, %v5456
      %v5532 = vadd.f32 %v5278, %v5525
      %s5533 = scalar_lea.vmem %s25, 28
      %v5534 = vld [vmem:[%s5533] sm:$0xf]
      %v5535 = vld [vmem:[#allocation3] sm:$0xff]
      %v5536 = vld [vmem:[#allocation3 + $0x8] sm:$0xff]
      %v5537 = vld [vmem:[#allocation3 + $0x10] sm:$0xf]
      %v5541 = vcombine.high %v5535, %v5535
      %v5542 = vcombine.high %v5536, %v5536
      %5543 = vrot.lane.b32.xlu0 %v5535, 75
      %v5544 = vpop.permute.xlu0 %5543
      %5545 = vrot.lane.b32.xlu0 %v5541, 75
      %v5546 = vpop.permute.xlu0 %5545
      %5547 = vrot.lane.b32.xlu0 %v5536, 75
      %v5548 = vpop.permute.xlu0 %5547
      %5549 = vrot.lane.b32.xlu0 %v5542, 75
      %v5550 = vpop.permute.xlu0 %5549
      %5551 = vrot.lane.b32.xlu0 %v5537, 75
      %v5552 = vpop.permute.xlu0 %5551
      %v5553 = vsel %vm1922, %v5544, %v5546
      %v5554 = vsel %vm1922, %v5546, %v5548
      %v5555 = vsel %vm1922, %v5548, %v5550
      %v5556 = vsel %vm1922, %v5550, %v5552
      %v5558 = vsel %vm3811, %v5534, 0
      %v5560 = vsel %vm3815, %v5553, 0
      %v5562 = vsel %vm3815, %v5554, 0
      %v5564 = vsel %vm3815, %v5555, 0
      %v5566 = vsel %vm3815, %v5556, 0
      %v5568 = vsel %vm3815, %v5552, 0
      %5570 = vmatprep.subr.mxu0 0.0
      %5571 = vmatpush1.msra.mxu0 0.0
      %5572 = vmatprep.subr.mxu0 0.0
      %5573 = vmatpush1.msra.mxu0 0.0
      %5574 = vmatprep.subr.mxu0 0.0
      %5575 = vmatpush1.msra.mxu0 0.0
      %5576 = vmatprep.subr.mxu0 0.0
      %5577 = vmatpush1.msra.mxu0 0.0
      %5578 = vmatprep.subr.mxu0 0.0
      %5579 = vmatpush1.msra.mxu0 0.0
      %5580 = vmatprep.subr.mxu0 0.0
      %5581 = vmatpush1.msra.mxu0 0.0
      %5582 = vmatprep.subr.mxu0 0.0
      %5583 = vmatpush1.msra.mxu0 0.0
      %5584 = vmatprep.subr.mxu0 0.0
      %5585 = vmatpush1.msra.mxu0 0.0
      %5586 = vmatprep.subr.mxu0 0.0
      %5587 = vmatpush1.msra.mxu0 0.0
      %5588 = vmatprep.subr.mxu0 0.0
      %5589 = vmatpush1.msra.mxu0 0.0
      %5590 = vmatprep.subr.mxu0 0.0
      %5591 = vmatpush1.msra.mxu0 0.0
      %5592 = vmatprep.subr.mxu0 0.0
      %5593 = vmatpush1.msra.mxu0 0.0
      %5594 = vmatprep.subr.mxu0 0.0
      %5595 = vmatpush1.msra.mxu0 0.0
      %5596 = vmatprep.subr.mxu0 0.0
      %5597 = vmatpush1.msra.mxu0 0.0
      %5598 = vmatprep.subr.mxu0 0.0
      %5599 = vmatpush1.msra.mxu0 0.0
      %5600 = vmatprep.subr.mxu0 %v5562
      %5601 = vmatpush1.msra.mxu0 %v5560
      %5602 = vmatprep.subr.mxu0 0.0
      %5603 = vmatpush2.msra.mxu0 0.0
      %5604 = vmatprep.subr.mxu0 0.0
      %5605 = vmatpush2.msra.mxu0 0.0
      %5606 = vmatprep.subr.mxu0 0.0
      %5607 = vmatpush2.msra.mxu0 0.0
      %5608 = vmatprep.subr.mxu0 0.0
      %5609 = vmatpush2.msra.mxu0 0.0
      %5610 = vmatprep.subr.mxu0 0.0
      %5611 = vmatpush2.msra.mxu0 0.0
      %5612 = vmatprep.subr.mxu0 0.0
      %5613 = vmatpush2.msra.mxu0 0.0
      %5614 = vmatprep.subr.mxu0 0.0
      %5615 = vmatpush2.msra.mxu0 0.0
      %5616 = vmatprep.subr.mxu0 0.0
      %5617 = vmatpush2.msra.mxu0 0.0
      %5618 = vmatprep.subr.mxu0 0.0
      %5619 = vmatpush2.msra.mxu0 0.0
      %5620 = vmatprep.subr.mxu0 0.0
      %5621 = vmatpush2.msra.mxu0 0.0
      %5622 = vmatprep.subr.mxu0 0.0
      %5623 = vmatpush2.msra.mxu0 0.0
      %5624 = vmatprep.subr.mxu0 0.0
      %5625 = vmatpush2.msra.mxu0 0.0
      %5626 = vmatprep.subr.mxu0 0.0
      %5627 = vmatpush2.msra.mxu0 0.0
      %5628 = vmatprep.subr.mxu0 0.0
      %5629 = vmatpush2.msra.mxu0 0.0
      %5630 = vmatprep.subr.mxu0 0.0
      %5631 = vmatpush2.msra.mxu0 0.0
      %5632 = vmatprep.subr.mxu0 0.0
      %5633 = vmatpush2.msra.mxu0 0.0
      %5634 = vmatprep.mubr.f32.mxu0 0.0
      %5635 = vmatmul.mubr.f32.gmra.mxu0 %v5558
      %v5636 = vpop.f32.mrf.mxu0
      %v5637 = vadd.f32 0.0, %v5636
      %v5638 = vpop.f32.mrf.mxu0
      %v5639 = vadd.f32 0.0, %v5638
      %5640 = vdwg.mxu0
      %5641 = vmatprep.subr.mxu0 0.0
      %5642 = vmatpush1.msra.mxu0 0.0
      %5643 = vmatprep.subr.mxu0 0.0
      %5644 = vmatpush1.msra.mxu0 0.0
      %5645 = vmatprep.subr.mxu0 0.0
      %5646 = vmatpush1.msra.mxu0 0.0
      %5647 = vmatprep.subr.mxu0 0.0
      %5648 = vmatpush1.msra.mxu0 0.0
      %5649 = vmatprep.subr.mxu0 0.0
      %5650 = vmatpush1.msra.mxu0 0.0
      %5651 = vmatprep.subr.mxu0 0.0
      %5652 = vmatpush1.msra.mxu0 0.0
      %5653 = vmatprep.subr.mxu0 0.0
      %5654 = vmatpush1.msra.mxu0 0.0
      %5655 = vmatprep.subr.mxu0 0.0
      %5656 = vmatpush1.msra.mxu0 0.0
      %5657 = vmatprep.subr.mxu0 0.0
      %5658 = vmatpush1.msra.mxu0 0.0
      %5659 = vmatprep.subr.mxu0 0.0
      %5660 = vmatpush1.msra.mxu0 0.0
      %5661 = vmatprep.subr.mxu0 0.0
      %5662 = vmatpush1.msra.mxu0 0.0
      %5663 = vmatprep.subr.mxu0 0.0
      %5664 = vmatpush1.msra.mxu0 0.0
      %5665 = vmatprep.subr.mxu0 0.0
      %5666 = vmatpush1.msra.mxu0 0.0
      %5667 = vmatprep.subr.mxu0 0.0
      %5668 = vmatpush1.msra.mxu0 0.0
      %5669 = vmatprep.subr.mxu0 0.0
      %5670 = vmatpush1.msra.mxu0 0.0
      %5671 = vmatprep.subr.mxu0 %v5566
      %5672 = vmatpush1.msra.mxu0 %v5564
      %5673 = vmatprep.subr.mxu0 0.0
      %5674 = vmatpush2.msra.mxu0 0.0
      %5675 = vmatprep.subr.mxu0 0.0
      %5676 = vmatpush2.msra.mxu0 0.0
      %5677 = vmatprep.subr.mxu0 0.0
      %5678 = vmatpush2.msra.mxu0 0.0
      %5679 = vmatprep.subr.mxu0 0.0
      %5680 = vmatpush2.msra.mxu0 0.0
      %5681 = vmatprep.subr.mxu0 0.0
      %5682 = vmatpush2.msra.mxu0 0.0
      %5683 = vmatprep.subr.mxu0 0.0
      %5684 = vmatpush2.msra.mxu0 0.0
      %5685 = vmatprep.subr.mxu0 0.0
      %5686 = vmatpush2.msra.mxu0 0.0
      %5687 = vmatprep.subr.mxu0 0.0
      %5688 = vmatpush2.msra.mxu0 0.0
      %5689 = vmatprep.subr.mxu0 0.0
      %5690 = vmatpush2.msra.mxu0 0.0
      %5691 = vmatprep.subr.mxu0 0.0
      %5692 = vmatpush2.msra.mxu0 0.0
      %5693 = vmatprep.subr.mxu0 0.0
      %5694 = vmatpush2.msra.mxu0 0.0
      %5695 = vmatprep.subr.mxu0 0.0
      %5696 = vmatpush2.msra.mxu0 0.0
      %5697 = vmatprep.subr.mxu0 0.0
      %5698 = vmatpush2.msra.mxu0 0.0
      %5699 = vmatprep.subr.mxu0 0.0
      %5700 = vmatpush2.msra.mxu0 0.0
      %5701 = vmatprep.subr.mxu0 0.0
      %5702 = vmatpush2.msra.mxu0 0.0
      %5703 = vmatprep.subr.mxu0 0.0
      %5704 = vmatpush2.msra.mxu0 0.0
      %5705 = vmatprep.mubr.f32.mxu0 0.0
      %5706 = vmatmul.mubr.f32.gmra.mxu0 %v5558
      %v5707 = vpop.f32.mrf.mxu0
      %v5708 = vadd.f32 0.0, %v5707
      %v5709 = vpop.f32.mrf.mxu0
      %v5710 = vadd.f32 0.0, %v5709
      %5711 = vdwg.mxu0
      %5712 = vmatprep.subr.mxu0 0.0
      %5713 = vmatpush1.msra.mxu0 0.0
      %5714 = vmatprep.subr.mxu0 0.0
      %5715 = vmatpush1.msra.mxu0 0.0
      %5716 = vmatprep.subr.mxu0 0.0
      %5717 = vmatpush1.msra.mxu0 0.0
      %5718 = vmatprep.subr.mxu0 0.0
      %5719 = vmatpush1.msra.mxu0 0.0
      %5720 = vmatprep.subr.mxu0 0.0
      %5721 = vmatpush1.msra.mxu0 0.0
      %5722 = vmatprep.subr.mxu0 0.0
      %5723 = vmatpush1.msra.mxu0 0.0
      %5724 = vmatprep.subr.mxu0 0.0
      %5725 = vmatpush1.msra.mxu0 0.0
      %5726 = vmatprep.subr.mxu0 0.0
      %5727 = vmatpush1.msra.mxu0 0.0
      %5728 = vmatprep.subr.mxu0 0.0
      %5729 = vmatpush1.msra.mxu0 0.0
      %5730 = vmatprep.subr.mxu0 0.0
      %5731 = vmatpush1.msra.mxu0 0.0
      %5732 = vmatprep.subr.mxu0 0.0
      %5733 = vmatpush1.msra.mxu0 0.0
      %5734 = vmatprep.subr.mxu0 0.0
      %5735 = vmatpush1.msra.mxu0 0.0
      %5736 = vmatprep.subr.mxu0 0.0
      %5737 = vmatpush1.msra.mxu0 0.0
      %5738 = vmatprep.subr.mxu0 0.0
      %5739 = vmatpush1.msra.mxu0 0.0
      %5740 = vmatprep.subr.mxu0 0.0
      %5741 = vmatpush1.msra.mxu0 0.0
      %5742 = vmatprep.subr.mxu0 0.0
      %5743 = vmatpush1.msra.mxu0 %v5568
      %5744 = vmatprep.subr.mxu0 0.0
      %5745 = vmatpush2.msra.mxu0 0.0
      %5746 = vmatprep.subr.mxu0 0.0
      %5747 = vmatpush2.msra.mxu0 0.0
      %5748 = vmatprep.subr.mxu0 0.0
      %5749 = vmatpush2.msra.mxu0 0.0
      %5750 = vmatprep.subr.mxu0 0.0
      %5751 = vmatpush2.msra.mxu0 0.0
      %5752 = vmatprep.subr.mxu0 0.0
      %5753 = vmatpush2.msra.mxu0 0.0
      %5754 = vmatprep.subr.mxu0 0.0
      %5755 = vmatpush2.msra.mxu0 0.0
      %5756 = vmatprep.subr.mxu0 0.0
      %5757 = vmatpush2.msra.mxu0 0.0
      %5758 = vmatprep.subr.mxu0 0.0
      %5759 = vmatpush2.msra.mxu0 0.0
      %5760 = vmatprep.subr.mxu0 0.0
      %5761 = vmatpush2.msra.mxu0 0.0
      %5762 = vmatprep.subr.mxu0 0.0
      %5763 = vmatpush2.msra.mxu0 0.0
      %5764 = vmatprep.subr.mxu0 0.0
      %5765 = vmatpush2.msra.mxu0 0.0
      %5766 = vmatprep.subr.mxu0 0.0
      %5767 = vmatpush2.msra.mxu0 0.0
      %5768 = vmatprep.subr.mxu0 0.0
      %5769 = vmatpush2.msra.mxu0 0.0
      %5770 = vmatprep.subr.mxu0 0.0
      %5771 = vmatpush2.msra.mxu0 0.0
      %5772 = vmatprep.subr.mxu0 0.0
      %5773 = vmatpush2.msra.mxu0 0.0
      %5774 = vmatprep.subr.mxu0 0.0
      %5775 = vmatpush2.msra.mxu0 0.0
      %5776 = vmatprep.mubr.f32.mxu0 0.0
      %5777 = vmatmul.mubr.f32.gmra.mxu0 %v5558
      %v5778 = vpop.f32.mrf.mxu0
      %v5779 = vadd.f32 0.0, %v5778
      %v5780 = vpop.f32.mrf.mxu0
      %5781 = vdwg.mxu0
      %v5782 = vadd.f32 %v5528, %v5637
      %v5783 = vadd.f32 %v5529, %v5639
      %v5784 = vadd.f32 %v5530, %v5708
      %v5785 = vadd.f32 %v5531, %v5710
      %v5786 = vadd.f32 %v5532, %v5779
      %s5787 = scalar_lea.vmem %s25, 32
      %v5788 = vld [vmem:[%s5787] sm:$0xf]
      %v5789 = vld [vmem:[#allocation3] sm:$0xff]
      %v5790 = vld [vmem:[#allocation3 + $0x8] sm:$0xff]
      %v5791 = vld [vmem:[#allocation3 + $0x10] sm:$0xf]
      %v5795 = vcombine.high %v5789, %v5789
      %v5796 = vcombine.high %v5790, %v5790
      %5797 = vrot.lane.b32.xlu0 %v5789, 74
      %v5798 = vpop.permute.xlu0 %5797
      %5799 = vrot.lane.b32.xlu0 %v5795, 74
      %v5800 = vpop.permute.xlu0 %5799
      %5801 = vrot.lane.b32.xlu0 %v5790, 74
      %v5802 = vpop.permute.xlu0 %5801
      %5803 = vrot.lane.b32.xlu0 %v5796, 74
      %v5804 = vpop.permute.xlu0 %5803
      %5805 = vrot.lane.b32.xlu0 %v5791, 74
      %v5806 = vpop.permute.xlu0 %5805
      %v5807 = vsel %vm2013, %v5798, %v5800
      %v5808 = vsel %vm2013, %v5800, %v5802
      %v5809 = vsel %vm2013, %v5802, %v5804
      %v5810 = vsel %vm2013, %v5804, %v5806
      %v5812 = vsel %vm3811, %v5788, 0
      %v5814 = vsel %vm3815, %v5807, 0
      %v5816 = vsel %vm3815, %v5808, 0
      %v5818 = vsel %vm3815, %v5809, 0
      %v5820 = vsel %vm3815, %v5810, 0
      %v5822 = vsel %vm3815, %v5806, 0
      %5824 = vmatprep.subr.mxu0 0.0
      %5825 = vmatpush1.msra.mxu0 0.0
      %5826 = vmatprep.subr.mxu0 0.0
      %5827 = vmatpush1.msra.mxu0 0.0
      %5828 = vmatprep.subr.mxu0 0.0
      %5829 = vmatpush1.msra.mxu0 0.0
      %5830 = vmatprep.subr.mxu0 0.0
      %5831 = vmatpush1.msra.mxu0 0.0
      %5832 = vmatprep.subr.mxu0 0.0
      %5833 = vmatpush1.msra.mxu0 0.0
      %5834 = vmatprep.subr.mxu0 0.0
      %5835 = vmatpush1.msra.mxu0 0.0
      %5836 = vmatprep.subr.mxu0 0.0
      %5837 = vmatpush1.msra.mxu0 0.0
      %5838 = vmatprep.subr.mxu0 0.0
      %5839 = vmatpush1.msra.mxu0 0.0
      %5840 = vmatprep.subr.mxu0 0.0
      %5841 = vmatpush1.msra.mxu0 0.0
      %5842 = vmatprep.subr.mxu0 0.0
      %5843 = vmatpush1.msra.mxu0 0.0
      %5844 = vmatprep.subr.mxu0 0.0
      %5845 = vmatpush1.msra.mxu0 0.0
      %5846 = vmatprep.subr.mxu0 0.0
      %5847 = vmatpush1.msra.mxu0 0.0
      %5848 = vmatprep.subr.mxu0 0.0
      %5849 = vmatpush1.msra.mxu0 0.0
      %5850 = vmatprep.subr.mxu0 0.0
      %5851 = vmatpush1.msra.mxu0 0.0
      %5852 = vmatprep.subr.mxu0 0.0
      %5853 = vmatpush1.msra.mxu0 0.0
      %5854 = vmatprep.subr.mxu0 %v5816
      %5855 = vmatpush1.msra.mxu0 %v5814
      %5856 = vmatprep.subr.mxu0 0.0
      %5857 = vmatpush2.msra.mxu0 0.0
      %5858 = vmatprep.subr.mxu0 0.0
      %5859 = vmatpush2.msra.mxu0 0.0
      %5860 = vmatprep.subr.mxu0 0.0
      %5861 = vmatpush2.msra.mxu0 0.0
      %5862 = vmatprep.subr.mxu0 0.0
      %5863 = vmatpush2.msra.mxu0 0.0
      %5864 = vmatprep.subr.mxu0 0.0
      %5865 = vmatpush2.msra.mxu0 0.0
      %5866 = vmatprep.subr.mxu0 0.0
      %5867 = vmatpush2.msra.mxu0 0.0
      %5868 = vmatprep.subr.mxu0 0.0
      %5869 = vmatpush2.msra.mxu0 0.0
      %5870 = vmatprep.subr.mxu0 0.0
      %5871 = vmatpush2.msra.mxu0 0.0
      %5872 = vmatprep.subr.mxu0 0.0
      %5873 = vmatpush2.msra.mxu0 0.0
      %5874 = vmatprep.subr.mxu0 0.0
      %5875 = vmatpush2.msra.mxu0 0.0
      %5876 = vmatprep.subr.mxu0 0.0
      %5877 = vmatpush2.msra.mxu0 0.0
      %5878 = vmatprep.subr.mxu0 0.0
      %5879 = vmatpush2.msra.mxu0 0.0
      %5880 = vmatprep.subr.mxu0 0.0
      %5881 = vmatpush2.msra.mxu0 0.0
      %5882 = vmatprep.subr.mxu0 0.0
      %5883 = vmatpush2.msra.mxu0 0.0
      %5884 = vmatprep.subr.mxu0 0.0
      %5885 = vmatpush2.msra.mxu0 0.0
      %5886 = vmatprep.subr.mxu0 0.0
      %5887 = vmatpush2.msra.mxu0 0.0
      %5888 = vmatprep.mubr.f32.mxu0 0.0
      %5889 = vmatmul.mubr.f32.gmra.mxu0 %v5812
      %v5890 = vpop.f32.mrf.mxu0
      %v5891 = vadd.f32 0.0, %v5890
      %v5892 = vpop.f32.mrf.mxu0
      %v5893 = vadd.f32 0.0, %v5892
      %5894 = vdwg.mxu0
      %5895 = vmatprep.subr.mxu0 0.0
      %5896 = vmatpush1.msra.mxu0 0.0
      %5897 = vmatprep.subr.mxu0 0.0
      %5898 = vmatpush1.msra.mxu0 0.0
      %5899 = vmatprep.subr.mxu0 0.0
      %5900 = vmatpush1.msra.mxu0 0.0
      %5901 = vmatprep.subr.mxu0 0.0
      %5902 = vmatpush1.msra.mxu0 0.0
      %5903 = vmatprep.subr.mxu0 0.0
      %5904 = vmatpush1.msra.mxu0 0.0
      %5905 = vmatprep.subr.mxu0 0.0
      %5906 = vmatpush1.msra.mxu0 0.0
      %5907 = vmatprep.subr.mxu0 0.0
      %5908 = vmatpush1.msra.mxu0 0.0
      %5909 = vmatprep.subr.mxu0 0.0
      %5910 = vmatpush1.msra.mxu0 0.0
      %5911 = vmatprep.subr.mxu0 0.0
      %5912 = vmatpush1.msra.mxu0 0.0
      %5913 = vmatprep.subr.mxu0 0.0
      %5914 = vmatpush1.msra.mxu0 0.0
      %5915 = vmatprep.subr.mxu0 0.0
      %5916 = vmatpush1.msra.mxu0 0.0
      %5917 = vmatprep.subr.mxu0 0.0
      %5918 = vmatpush1.msra.mxu0 0.0
      %5919 = vmatprep.subr.mxu0 0.0
      %5920 = vmatpush1.msra.mxu0 0.0
      %5921 = vmatprep.subr.mxu0 0.0
      %5922 = vmatpush1.msra.mxu0 0.0
      %5923 = vmatprep.subr.mxu0 0.0
      %5924 = vmatpush1.msra.mxu0 0.0
      %5925 = vmatprep.subr.mxu0 %v5820
      %5926 = vmatpush1.msra.mxu0 %v5818
      %5927 = vmatprep.subr.mxu0 0.0
      %5928 = vmatpush2.msra.mxu0 0.0
      %5929 = vmatprep.subr.mxu0 0.0
      %5930 = vmatpush2.msra.mxu0 0.0
      %5931 = vmatprep.subr.mxu0 0.0
      %5932 = vmatpush2.msra.mxu0 0.0
      %5933 = vmatprep.subr.mxu0 0.0
      %5934 = vmatpush2.msra.mxu0 0.0
      %5935 = vmatprep.subr.mxu0 0.0
      %5936 = vmatpush2.msra.mxu0 0.0
      %5937 = vmatprep.subr.mxu0 0.0
      %5938 = vmatpush2.msra.mxu0 0.0
      %5939 = vmatprep.subr.mxu0 0.0
      %5940 = vmatpush2.msra.mxu0 0.0
      %5941 = vmatprep.subr.mxu0 0.0
      %5942 = vmatpush2.msra.mxu0 0.0
      %5943 = vmatprep.subr.mxu0 0.0
      %5944 = vmatpush2.msra.mxu0 0.0
      %5945 = vmatprep.subr.mxu0 0.0
      %5946 = vmatpush2.msra.mxu0 0.0
      %5947 = vmatprep.subr.mxu0 0.0
      %5948 = vmatpush2.msra.mxu0 0.0
      %5949 = vmatprep.subr.mxu0 0.0
      %5950 = vmatpush2.msra.mxu0 0.0
      %5951 = vmatprep.subr.mxu0 0.0
      %5952 = vmatpush2.msra.mxu0 0.0
      %5953 = vmatprep.subr.mxu0 0.0
      %5954 = vmatpush2.msra.mxu0 0.0
      %5955 = vmatprep.subr.mxu0 0.0
      %5956 = vmatpush2.msra.mxu0 0.0
      %5957 = vmatprep.subr.mxu0 0.0
      %5958 = vmatpush2.msra.mxu0 0.0
      %5959 = vmatprep.mubr.f32.mxu0 0.0
      %5960 = vmatmul.mubr.f32.gmra.mxu0 %v5812
      %v5961 = vpop.f32.mrf.mxu0
      %v5962 = vadd.f32 0.0, %v5961
      %v5963 = vpop.f32.mrf.mxu0
      %v5964 = vadd.f32 0.0, %v5963
      %5965 = vdwg.mxu0
      %5966 = vmatprep.subr.mxu0 0.0
      %5967 = vmatpush1.msra.mxu0 0.0
      %5968 = vmatprep.subr.mxu0 0.0
      %5969 = vmatpush1.msra.mxu0 0.0
      %5970 = vmatprep.subr.mxu0 0.0
      %5971 = vmatpush1.msra.mxu0 0.0
      %5972 = vmatprep.subr.mxu0 0.0
      %5973 = vmatpush1.msra.mxu0 0.0
      %5974 = vmatprep.subr.mxu0 0.0
      %5975 = vmatpush1.msra.mxu0 0.0
      %5976 = vmatprep.subr.mxu0 0.0
      %5977 = vmatpush1.msra.mxu0 0.0
      %5978 = vmatprep.subr.mxu0 0.0
      %5979 = vmatpush1.msra.mxu0 0.0
      %5980 = vmatprep.subr.mxu0 0.0
      %5981 = vmatpush1.msra.mxu0 0.0
      %5982 = vmatprep.subr.mxu0 0.0
      %5983 = vmatpush1.msra.mxu0 0.0
      %5984 = vmatprep.subr.mxu0 0.0
      %5985 = vmatpush1.msra.mxu0 0.0
      %5986 = vmatprep.subr.mxu0 0.0
      %5987 = vmatpush1.msra.mxu0 0.0
      %5988 = vmatprep.subr.mxu0 0.0
      %5989 = vmatpush1.msra.mxu0 0.0
      %5990 = vmatprep.subr.mxu0 0.0
      %5991 = vmatpush1.msra.mxu0 0.0
      %5992 = vmatprep.subr.mxu0 0.0
      %5993 = vmatpush1.msra.mxu0 0.0
      %5994 = vmatprep.subr.mxu0 0.0
      %5995 = vmatpush1.msra.mxu0 0.0
      %5996 = vmatprep.subr.mxu0 0.0
      %5997 = vmatpush1.msra.mxu0 %v5822
      %5998 = vmatprep.subr.mxu0 0.0
      %5999 = vmatpush2.msra.mxu0 0.0
      %6000 = vmatprep.subr.mxu0 0.0
      %6001 = vmatpush2.msra.mxu0 0.0
      %6002 = vmatprep.subr.mxu0 0.0
      %6003 = vmatpush2.msra.mxu0 0.0
      %6004 = vmatprep.subr.mxu0 0.0
      %6005 = vmatpush2.msra.mxu0 0.0
      %6006 = vmatprep.subr.mxu0 0.0
      %6007 = vmatpush2.msra.mxu0 0.0
      %6008 = vmatprep.subr.mxu0 0.0
      %6009 = vmatpush2.msra.mxu0 0.0
      %6010 = vmatprep.subr.mxu0 0.0
      %6011 = vmatpush2.msra.mxu0 0.0
      %6012 = vmatprep.subr.mxu0 0.0
      %6013 = vmatpush2.msra.mxu0 0.0
      %6014 = vmatprep.subr.mxu0 0.0
      %6015 = vmatpush2.msra.mxu0 0.0
      %6016 = vmatprep.subr.mxu0 0.0
      %6017 = vmatpush2.msra.mxu0 0.0
      %6018 = vmatprep.subr.mxu0 0.0
      %6019 = vmatpush2.msra.mxu0 0.0
      %6020 = vmatprep.subr.mxu0 0.0
      %6021 = vmatpush2.msra.mxu0 0.0
      %6022 = vmatprep.subr.mxu0 0.0
      %6023 = vmatpush2.msra.mxu0 0.0
      %6024 = vmatprep.subr.mxu0 0.0
      %6025 = vmatpush2.msra.mxu0 0.0
      %6026 = vmatprep.subr.mxu0 0.0
      %6027 = vmatpush2.msra.mxu0 0.0
      %6028 = vmatprep.subr.mxu0 0.0
      %6029 = vmatpush2.msra.mxu0 0.0
      %6030 = vmatprep.mubr.f32.mxu0 0.0
      %6031 = vmatmul.mubr.f32.gmra.mxu0 %v5812
      %v6032 = vpop.f32.mrf.mxu0
      %v6033 = vadd.f32 0.0, %v6032
      %v6034 = vpop.f32.mrf.mxu0
      %6035 = vdwg.mxu0
      %v6036 = vadd.f32 %v5782, %v5891
      %v6037 = vadd.f32 %v5783, %v5893
      %v6038 = vadd.f32 %v5784, %v5962
      %v6039 = vadd.f32 %v5785, %v5964
      %v6040 = vadd.f32 %v5786, %v6033
      %v6041 = vld [vmem:[%s29] sm:$0xff]
      %v6042 = vld [vmem:[%s29 + $0x8] sm:$0xff]
      %v6043 = vld [vmem:[%s29 + $0x10] sm:$0xff]
      %v6044 = vld [vmem:[%s29 + $0x18] sm:$0xff]
      %v6045 = vld [vmem:[%s29 + $0x20] sm:$0xff]
      %v6046 = vld [vmem:[%s29 + $0x28] sm:$0xff]
      %v6047 = vld [vmem:[%s29 + $0x30] sm:$0xff]
      %v6048 = vld [vmem:[%s29 + $0x38] sm:$0xff]
      %v6049 = vld [vmem:[%s29 + $0x40] sm:$0xff]
      %v6050 = vld [vmem:[%s29 + $0x48] sm:$0xff]
      %v6051 = vld [vmem:[%s29 + $0x50] sm:$0xff]
      %v6052 = vld [vmem:[%s29 + $0x58] sm:$0xff]
      %v6053 = vld [vmem:[%s29 + $0x60] sm:$0xff]
      %v6054 = vld [vmem:[%s29 + $0x68] sm:$0xff]
      %v6055 = vld [vmem:[%s29 + $0x70] sm:$0xff]
      %v6056 = vld [vmem:[%s29 + $0x78] sm:$0xff]
      %v6057 = vld [vmem:[%s29 + $0x80] sm:$0xff]
      %v6058 = vld [vmem:[%s29 + $0x88] sm:$0xff]
      %v6059 = vld [vmem:[%s29 + $0x90] sm:$0xff]
      %v6060 = vld [vmem:[%s29 + $0x98] sm:$0xff]
      %v6061 = vld [vmem:[%s29 + $0xa0] sm:$0xff]
      %v6062 = vld [vmem:[%s29 + $0xa8] sm:$0xff]
      %v6063 = vld [vmem:[%s29 + $0xb0] sm:$0xff]
      %v6064 = vld [vmem:[%s29 + $0xb8] sm:$0xff]
      %v6065 = vld [vmem:[%s29 + $0xc0] sm:$0xff]
      %v6066 = vld [vmem:[%s29 + $0xc8] sm:$0xff]
      %v6067 = vld [vmem:[%s29 + $0xd0] sm:$0xff]
      %v6068 = vld [vmem:[%s29 + $0xd8] sm:$0xff]
      %v6069 = vld [vmem:[%s29 + $0xe0] sm:$0xff]
      %v6070 = vld [vmem:[%s29 + $0xe8] sm:$0xff]
      %v6071 = vld [vmem:[%s29 + $0xf0] sm:$0xff]
      %v6072 = vld [vmem:[%s29 + $0xf8] sm:$0xff]
      %v6073 = vld [vmem:[%s29 + $0x100] sm:$0xff]
      %v6074 = vld [vmem:[%s29 + $0x108] sm:$0xff]
      %v6075 = vld [vmem:[%s29 + $0x110] sm:$0xff]
      %v6076 = vld [vmem:[%s29 + $0x118] sm:$0xff]
      %v6077 = vld [vmem:[%s29 + $0x120] sm:$0xff]
      %v6078 = vld [vmem:[%s29 + $0x128] sm:$0xff]
      %v6079 = vld [vmem:[%s29 + $0x130] sm:$0xff]
      %v6080 = vld [vmem:[%s29 + $0x138] sm:$0xff]
      %v6081 = vld [vmem:[%s29 + $0x140] sm:$0xff]
      %v6082 = vld [vmem:[%s29 + $0x148] sm:$0xff]
      %v6083 = vld [vmem:[%s29 + $0x150] sm:$0xff]
      %v6084 = vld [vmem:[%s29 + $0x158] sm:$0xff]
      %v6085 = vld [vmem:[%s29 + $0x160] sm:$0xff]
      %v6086 = vld [vmem:[%s29 + $0x168] sm:$0xff]
      %v6087 = vld [vmem:[%s29 + $0x170] sm:$0xff]
      %v6088 = vld [vmem:[%s29 + $0x178] sm:$0xff]
      %v6089 = vld [vmem:[%s29 + $0x180] sm:$0xff]
      %v6090 = vld [vmem:[%s29 + $0x188] sm:$0xff]
      %v6091 = vld [vmem:[%s29 + $0x190] sm:$0xff]
      %v6092 = vld [vmem:[%s29 + $0x198] sm:$0xff]
      %v6093 = vld [vmem:[%s29 + $0x1a0] sm:$0xff]
      %v6094 = vld [vmem:[%s29 + $0x1a8] sm:$0xff]
      %v6095 = vld [vmem:[%s29 + $0x1b0] sm:$0xff]
      %v6096 = vld [vmem:[%s29 + $0x1b8] sm:$0xff]
      %v6097 = vld [vmem:[%s29 + $0x1c0] sm:$0xff]
      %v6098 = vld [vmem:[%s29 + $0x1c8] sm:$0xff]
      %v6099 = vld [vmem:[%s29 + $0x1d0] sm:$0xff]
      %v6100 = vld [vmem:[%s29 + $0x1d8] sm:$0xff]
      %v6101 = vld [vmem:[%s29 + $0x1e0] sm:$0xff]
      %v6102 = vld [vmem:[%s29 + $0x1e8] sm:$0xff]
      %v6103 = vld [vmem:[%s29 + $0x1f0] sm:$0xff]
      %v6104 = vld [vmem:[%s29 + $0x1f8] sm:$0xff]
      %v6105 = vld [vmem:[%s29 + $0x200] sm:$0xff]
      %v6106 = vld [vmem:[%s29 + $0x208] sm:$0xff]
      %v6107 = vld [vmem:[%s29 + $0x210] sm:$0xff]
      %v6108 = vld [vmem:[%s29 + $0x218] sm:$0x1f]
      %v6109 = vld [vmem:[%s27] sm:$0xf]
      %6111 = vset.pattern.permute.xlu0 0
      %6112 = vperm.xlu0 %6111, %v6109
      %v6113 = vpop.permute.xlu0 %6112
      %vm6115 = vcmask 236544
      %v6117 = vsel %vm6115, %v6040, 0
      %vm6119 = vcmask 1044480
      %v6121 = vsel %vm6119, %v6108, 0
      %6123 = vmatprep.subr.mxu0 0.0
      %6124 = vmatpush1.msra.mxu0 %v6056
      %6125 = vmatprep.subr.mxu0 0.0
      %6126 = vmatpush1.msra.mxu0 %v6055
      %6127 = vmatprep.subr.mxu0 0.0
      %6128 = vmatpush1.msra.mxu0 %v6054
      %6129 = vmatprep.subr.mxu0 0.0
      %6130 = vmatpush1.msra.mxu0 %v6053
      %6131 = vmatprep.subr.mxu0 0.0
      %6132 = vmatpush1.msra.mxu0 %v6052
      %6133 = vmatprep.subr.mxu0 0.0
      %6134 = vmatpush1.msra.mxu0 %v6051
      %6135 = vmatprep.subr.mxu0 0.0
      %6136 = vmatpush1.msra.mxu0 %v6050
      %6137 = vmatprep.subr.mxu0 0.0
      %6138 = vmatpush1.msra.mxu0 %v6049
      %6139 = vmatprep.subr.mxu0 0.0
      %6140 = vmatpush1.msra.mxu0 %v6048
      %6141 = vmatprep.subr.mxu0 0.0
      %6142 = vmatpush1.msra.mxu0 %v6047
      %6143 = vmatprep.subr.mxu0 0.0
      %6144 = vmatpush1.msra.mxu0 %v6046
      %6145 = vmatprep.subr.mxu0 0.0
      %6146 = vmatpush1.msra.mxu0 %v6045
      %6147 = vmatprep.subr.mxu0 0.0
      %6148 = vmatpush1.msra.mxu0 %v6044
      %6149 = vmatprep.subr.mxu0 0.0
      %6150 = vmatpush1.msra.mxu0 %v6043
      %6151 = vmatprep.subr.mxu0 0.0
      %6152 = vmatpush1.msra.mxu0 %v6042
      %6153 = vmatprep.subr.mxu0 0.0
      %6154 = vmatpush1.msra.mxu0 %v6041
      %6155 = vmatprep.subr.mxu0 0.0
      %6156 = vmatpush2.msra.mxu0 %v6072
      %6157 = vmatprep.subr.mxu0 0.0
      %6158 = vmatpush2.msra.mxu0 %v6071
      %6159 = vmatprep.subr.mxu0 0.0
      %6160 = vmatpush2.msra.mxu0 %v6070
      %6161 = vmatprep.subr.mxu0 0.0
      %6162 = vmatpush2.msra.mxu0 %v6069
      %6163 = vmatprep.subr.mxu0 0.0
      %6164 = vmatpush2.msra.mxu0 %v6068
      %6165 = vmatprep.subr.mxu0 0.0
      %6166 = vmatpush2.msra.mxu0 %v6067
      %6167 = vmatprep.subr.mxu0 0.0
      %6168 = vmatpush2.msra.mxu0 %v6066
      %6169 = vmatprep.subr.mxu0 0.0
      %6170 = vmatpush2.msra.mxu0 %v6065
      %6171 = vmatprep.subr.mxu0 0.0
      %6172 = vmatpush2.msra.mxu0 %v6064
      %6173 = vmatprep.subr.mxu0 0.0
      %6174 = vmatpush2.msra.mxu0 %v6063
      %6175 = vmatprep.subr.mxu0 0.0
      %6176 = vmatpush2.msra.mxu0 %v6062
      %6177 = vmatprep.subr.mxu0 0.0
      %6178 = vmatpush2.msra.mxu0 %v6061
      %6179 = vmatprep.subr.mxu0 0.0
      %6180 = vmatpush2.msra.mxu0 %v6060
      %6181 = vmatprep.subr.mxu0 0.0
      %6182 = vmatpush2.msra.mxu0 %v6059
      %6183 = vmatprep.subr.mxu0 0.0
      %6184 = vmatpush2.msra.mxu0 %v6058
      %6185 = vmatprep.subr.mxu0 0.0
      %6186 = vmatpush2.msra.mxu0 %v6057
      %6187 = vmatprep.mubr.f32.mxu0 %v6037
      %6188 = vmatmul.mubr.f32.gmra.mxu0 %v6036
      %v6189 = vpop.f32.mrf.mxu0
      %v6190 = vadd.f32 %v6113, %v6189
      %v6191 = vpop.f32.mrf.mxu0
      %6192 = vdwg.mxu0
      %6193 = vmatprep.subr.mxu0 0.0
      %6194 = vmatpush1.msra.mxu0 %v6088
      %6195 = vmatprep.subr.mxu0 0.0
      %6196 = vmatpush1.msra.mxu0 %v6087
      %6197 = vmatprep.subr.mxu0 0.0
      %6198 = vmatpush1.msra.mxu0 %v6086
      %6199 = vmatprep.subr.mxu0 0.0
      %6200 = vmatpush1.msra.mxu0 %v6085
      %6201 = vmatprep.subr.mxu0 0.0
      %6202 = vmatpush1.msra.mxu0 %v6084
      %6203 = vmatprep.subr.mxu0 0.0
      %6204 = vmatpush1.msra.mxu0 %v6083
      %6205 = vmatprep.subr.mxu0 0.0
      %6206 = vmatpush1.msra.mxu0 %v6082
      %6207 = vmatprep.subr.mxu0 0.0
      %6208 = vmatpush1.msra.mxu0 %v6081
      %6209 = vmatprep.subr.mxu0 0.0
      %6210 = vmatpush1.msra.mxu0 %v6080
      %6211 = vmatprep.subr.mxu0 0.0
      %6212 = vmatpush1.msra.mxu0 %v6079
      %6213 = vmatprep.subr.mxu0 0.0
      %6214 = vmatpush1.msra.mxu0 %v6078
      %6215 = vmatprep.subr.mxu0 0.0
      %6216 = vmatpush1.msra.mxu0 %v6077
      %6217 = vmatprep.subr.mxu0 0.0
      %6218 = vmatpush1.msra.mxu0 %v6076
      %6219 = vmatprep.subr.mxu0 0.0
      %6220 = vmatpush1.msra.mxu0 %v6075
      %6221 = vmatprep.subr.mxu0 0.0
      %6222 = vmatpush1.msra.mxu0 %v6074
      %6223 = vmatprep.subr.mxu0 0.0
      %6224 = vmatpush1.msra.mxu0 %v6073
      %6225 = vmatprep.subr.mxu0 0.0
      %6226 = vmatpush2.msra.mxu0 %v6104
      %6227 = vmatprep.subr.mxu0 0.0
      %6228 = vmatpush2.msra.mxu0 %v6103
      %6229 = vmatprep.subr.mxu0 0.0
      %6230 = vmatpush2.msra.mxu0 %v6102
      %6231 = vmatprep.subr.mxu0 0.0
      %6232 = vmatpush2.msra.mxu0 %v6101
      %6233 = vmatprep.subr.mxu0 0.0
      %6234 = vmatpush2.msra.mxu0 %v6100
      %6235 = vmatprep.subr.mxu0 0.0
      %6236 = vmatpush2.msra.mxu0 %v6099
      %6237 = vmatprep.subr.mxu0 0.0
      %6238 = vmatpush2.msra.mxu0 %v6098
      %6239 = vmatprep.subr.mxu0 0.0
      %6240 = vmatpush2.msra.mxu0 %v6097
      %6241 = vmatprep.subr.mxu0 0.0
      %6242 = vmatpush2.msra.mxu0 %v6096
      %6243 = vmatprep.subr.mxu0 0.0
      %6244 = vmatpush2.msra.mxu0 %v6095
      %6245 = vmatprep.subr.mxu0 0.0
      %6246 = vmatpush2.msra.mxu0 %v6094
      %6247 = vmatprep.subr.mxu0 0.0
      %6248 = vmatpush2.msra.mxu0 %v6093
      %6249 = vmatprep.subr.mxu0 0.0
      %6250 = vmatpush2.msra.mxu0 %v6092
      %6251 = vmatprep.subr.mxu0 0.0
      %6252 = vmatpush2.msra.mxu0 %v6091
      %6253 = vmatprep.subr.mxu0 0.0
      %6254 = vmatpush2.msra.mxu0 %v6090
      %6255 = vmatprep.subr.mxu0 0.0
      %6256 = vmatpush2.msra.mxu0 %v6089
      %6257 = vmatprep.mubr.f32.mxu0 %v6039
      %6258 = vmatmul.mubr.f32.gmra.mxu0 %v6038
      %v6259 = vpop.f32.mrf.mxu0
      %v6260 = vadd.f32 %v6190, %v6259
      %v6261 = vpop.f32.mrf.mxu0
      %6262 = vdwg.mxu0
      %6263 = vmatprep.subr.mxu0 0.0
      %6264 = vmatpush1.msra.mxu0 0.0
      %6265 = vmatprep.subr.mxu0 0.0
      %6266 = vmatpush1.msra.mxu0 0.0
      %6267 = vmatprep.subr.mxu0 0.0
      %6268 = vmatpush1.msra.mxu0 0.0
      %6269 = vmatprep.subr.mxu0 0.0
      %6270 = vmatpush1.msra.mxu0 0.0
      %6271 = vmatprep.subr.mxu0 0.0
      %6272 = vmatpush1.msra.mxu0 0.0
      %6273 = vmatprep.subr.mxu0 0.0
      %6274 = vmatpush1.msra.mxu0 0.0
      %6275 = vmatprep.subr.mxu0 0.0
      %6276 = vmatpush1.msra.mxu0 0.0
      %6277 = vmatprep.subr.mxu0 0.0
      %6278 = vmatpush1.msra.mxu0 0.0
      %6279 = vmatprep.subr.mxu0 0.0
      %6280 = vmatpush1.msra.mxu0 0.0
      %6281 = vmatprep.subr.mxu0 0.0
      %6282 = vmatpush1.msra.mxu0 0.0
      %6283 = vmatprep.subr.mxu0 0.0
      %6284 = vmatpush1.msra.mxu0 0.0
      %6285 = vmatprep.subr.mxu0 0.0
      %6286 = vmatpush1.msra.mxu0 0.0
      %6287 = vmatprep.subr.mxu0 0.0
      %6288 = vmatpush1.msra.mxu0 %v6121
      %6289 = vmatprep.subr.mxu0 0.0
      %6290 = vmatpush1.msra.mxu0 %v6107
      %6291 = vmatprep.subr.mxu0 0.0
      %6292 = vmatpush1.msra.mxu0 %v6106
      %6293 = vmatprep.subr.mxu0 0.0
      %6294 = vmatpush1.msra.mxu0 %v6105
      %6295 = vmatprep.subr.mxu0 0.0
      %6296 = vmatpush2.msra.mxu0 0.0
      %6297 = vmatprep.subr.mxu0 0.0
      %6298 = vmatpush2.msra.mxu0 0.0
      %6299 = vmatprep.subr.mxu0 0.0
      %6300 = vmatpush2.msra.mxu0 0.0
      %6301 = vmatprep.subr.mxu0 0.0
      %6302 = vmatpush2.msra.mxu0 0.0
      %6303 = vmatprep.subr.mxu0 0.0
      %6304 = vmatpush2.msra.mxu0 0.0
      %6305 = vmatprep.subr.mxu0 0.0
      %6306 = vmatpush2.msra.mxu0 0.0
      %6307 = vmatprep.subr.mxu0 0.0
      %6308 = vmatpush2.msra.mxu0 0.0
      %6309 = vmatprep.subr.mxu0 0.0
      %6310 = vmatpush2.msra.mxu0 0.0
      %6311 = vmatprep.subr.mxu0 0.0
      %6312 = vmatpush2.msra.mxu0 0.0
      %6313 = vmatprep.subr.mxu0 0.0
      %6314 = vmatpush2.msra.mxu0 0.0
      %6315 = vmatprep.subr.mxu0 0.0
      %6316 = vmatpush2.msra.mxu0 0.0
      %6317 = vmatprep.subr.mxu0 0.0
      %6318 = vmatpush2.msra.mxu0 0.0
      %6319 = vmatprep.subr.mxu0 0.0
      %6320 = vmatpush2.msra.mxu0 0.0
      %6321 = vmatprep.subr.mxu0 0.0
      %6322 = vmatpush2.msra.mxu0 0.0
      %6323 = vmatprep.subr.mxu0 0.0
      %6324 = vmatpush2.msra.mxu0 0.0
      %6325 = vmatprep.subr.mxu0 0.0
      %6326 = vmatpush2.msra.mxu0 0.0
      %6327 = vmatprep.mubr.f32.mxu0 0.0
      %6328 = vmatmul.mubr.f32.gmra.mxu0 %v6117
      %v6329 = vpop.f32.mrf.mxu0
      %v6330 = vadd.f32 %v6260, %v6329
      %v6331 = vpop.f32.mrf.mxu0
      %6332 = vdwg.mxu0
      %vm6333 = vcmask 986112
      %6334 = vst.msk [vmem:[#allocation4] sm:$0xf] %vm6333, %v6330
      %v6335 = vld [vmem:[#allocation4] sm:$0xf]
      %6337 = vrot.lane.b32.xlu0 %v6335, 127
      %v6338 = vpop.permute.xlu0 %6337
      %v6340 = vmax.f32 %v6335, %v6338
      %6341 = vrot.lane.b32.xlu0 %v6335, 126
      %v6342 = vpop.permute.xlu0 %6341
      %v6344 = vmax.f32 %v6340, %v6342
      %6345 = vrot.lane.b32.xlu0 %v6335, 125
      %v6346 = vpop.permute.xlu0 %6345
      %v6348 = vmax.f32 %v6344, %v6346
      %6349 = vrot.lane.b32.xlu0 %v6335, 124
      %v6350 = vpop.permute.xlu0 %6349
      %v6352 = vmax.f32 %v6348, %v6350
      %6353 = vrot.lane.b32.xlu0 %v6335, 123
      %v6354 = vpop.permute.xlu0 %6353
      %v6356 = vmax.f32 %v6352, %v6354
      %6357 = vrot.lane.b32.xlu0 %v6335, 122
      %v6358 = vpop.permute.xlu0 %6357
      %v6360 = vmax.f32 %v6356, %v6358
      %vm6361 = vcmask 838656
      %6362 = vst.msk [vmem:[#allocation5] sm:$0xf] %vm6361, %v6360
      %v6363 = vld [vmem:[#allocation5] sm:$0xf]
      %6365 = vrot.lane.b32.xlu0 %v6363, 117
      %v6366 = vpop.permute.xlu0 %6365
      %v6368 = vmax.f32 %v6363, %v6366
      %6369 = vrot.lane.b32.xlu0 %v6363, 106
      %v6370 = vpop.permute.xlu0 %6369
      %v6372 = vmax.f32 %v6368, %v6370
      %6373 = vrot.lane.b32.xlu0 %v6363, 95
      %v6374 = vpop.permute.xlu0 %6373
      %v6376 = vmax.f32 %v6372, %v6374
      %6377 = vrot.lane.b32.xlu0 %v6363, 84
      %v6378 = vpop.permute.xlu0 %6377
      %v6380 = vmax.f32 %v6376, %v6378
      %6381 = vrot.lane.b32.xlu0 %v6363, 73
      %v6382 = vpop.permute.xlu0 %6381
      %v6384 = vmax.f32 %v6380, %v6382
      %6385 = vrot.lane.b32.xlu0 %v6363, 62
      %v6386 = vpop.permute.xlu0 %6385
      %v6388 = vmax.f32 %v6384, %v6386
      %v6389 = vld [vmem:[%s43] sm:$0xff]
      %v6390 = vld [vmem:[%s43 + $0x8] sm:$0xff]
      %v6391 = vld [vmem:[%s43 + $0x10] sm:$0xff]
      %v6392 = vld [vmem:[%s43 + $0x18] sm:$0xff]
      %v6393 = vld [vmem:[%s43 + $0x20] sm:$0x1f]
      %vm6394 = vcmask 302080
      %v6396 = vsel %vm6394, %v6388, 0
      %v6399 = vsel %vm6119, %v6393, 0
      %6401 = vmatprep.subr.mxu0 0.0
      %6402 = vmatpush1.msra.mxu0 0.0
      %6403 = vmatprep.subr.mxu0 0.0
      %6404 = vmatpush1.msra.mxu0 0.0
      %6405 = vmatprep.subr.mxu0 0.0
      %6406 = vmatpush1.msra.mxu0 0.0
      %6407 = vmatprep.subr.mxu0 0.0
      %6408 = vmatpush1.msra.mxu0 0.0
      %6409 = vmatprep.subr.mxu0 0.0
      %6410 = vmatpush1.msra.mxu0 0.0
      %6411 = vmatprep.subr.mxu0 0.0
      %6412 = vmatpush1.msra.mxu0 0.0
      %6413 = vmatprep.subr.mxu0 0.0
      %6414 = vmatpush1.msra.mxu0 0.0
      %6415 = vmatprep.subr.mxu0 0.0
      %6416 = vmatpush1.msra.mxu0 0.0
      %6417 = vmatprep.subr.mxu0 0.0
      %6418 = vmatpush1.msra.mxu0 0.0
      %6419 = vmatprep.subr.mxu0 0.0
      %6420 = vmatpush1.msra.mxu0 0.0
      %6421 = vmatprep.subr.mxu0 0.0
      %6422 = vmatpush1.msra.mxu0 0.0
      %6423 = vmatprep.subr.mxu0 0.0
      %6424 = vmatpush1.msra.mxu0 %v6399
      %6425 = vmatprep.subr.mxu0 0.0
      %6426 = vmatpush1.msra.mxu0 %v6392
      %6427 = vmatprep.subr.mxu0 0.0
      %6428 = vmatpush1.msra.mxu0 %v6391
      %6429 = vmatprep.subr.mxu0 0.0
      %6430 = vmatpush1.msra.mxu0 %v6390
      %6431 = vmatprep.subr.mxu0 0.0
      %6432 = vmatpush1.msra.mxu0 %v6389
      %6433 = vmatprep.subr.mxu0 0.0
      %6434 = vmatpush2.msra.mxu0 0.0
      %6435 = vmatprep.subr.mxu0 0.0
      %6436 = vmatpush2.msra.mxu0 0.0
      %6437 = vmatprep.subr.mxu0 0.0
      %6438 = vmatpush2.msra.mxu0 0.0
      %6439 = vmatprep.subr.mxu0 0.0
      %6440 = vmatpush2.msra.mxu0 0.0
      %6441 = vmatprep.subr.mxu0 0.0
      %6442 = vmatpush2.msra.mxu0 0.0
      %6443 = vmatprep.subr.mxu0 0.0
      %6444 = vmatpush2.msra.mxu0 0.0
      %6445 = vmatprep.subr.mxu0 0.0
      %6446 = vmatpush2.msra.mxu0 0.0
      %6447 = vmatprep.subr.mxu0 0.0
      %6448 = vmatpush2.msra.mxu0 0.0
      %6449 = vmatprep.subr.mxu0 0.0
      %6450 = vmatpush2.msra.mxu0 0.0
      %6451 = vmatprep.subr.mxu0 0.0
      %6452 = vmatpush2.msra.mxu0 0.0
      %6453 = vmatprep.subr.mxu0 0.0
      %6454 = vmatpush2.msra.mxu0 0.0
      %6455 = vmatprep.subr.mxu0 0.0
      %6456 = vmatpush2.msra.mxu0 0.0
      %6457 = vmatprep.subr.mxu0 0.0
      %6458 = vmatpush2.msra.mxu0 0.0
      %6459 = vmatprep.subr.mxu0 0.0
      %6460 = vmatpush2.msra.mxu0 0.0
      %6461 = vmatprep.subr.mxu0 0.0
      %6462 = vmatpush2.msra.mxu0 0.0
      %6463 = vmatprep.subr.mxu0 0.0
      %6464 = vmatpush2.msra.mxu0 0.0
      %6465 = vmatprep.mubr.f32.mxu0 0.0
      %6466 = vmatmul.mubr.f32.gmra.mxu0 %v6396
      %v6467 = vpop.f32.mrf.mxu0
      %v6468 = vadd.f32 0.0, %v6467
      %v6469 = vpop.f32.mrf.mxu0
      %6470 = vdwg.mxu0
      %vm6471 = vcmask 158720
      %6472 = vst.msk [vmem:[#allocation6] sm:$0xf] %vm6471, %v6468
      %v6473 = vld [vmem:[%s31] sm:$0xf]
      %v6474 = vld [vmem:[#allocation6] sm:$0xf]
      %s6475 = scalar_lea.vmem %s31, 4
      %v6476 = vld [vmem:[%s6475] sm:$0xf]
      %6478 = vrot.lane.b32.xlu0 %v6474, 127
      %v6479 = vpop.permute.xlu0 %6478
      %v6481 = vsel %vm3811, %v6476, 0
      %v6483 = vsel %vm3815, %v6479, 0
      %6485 = vmatprep.subr.mxu0 0.0
      %6486 = vmatpush1.msra.mxu0 0.0
      %6487 = vmatprep.subr.mxu0 0.0
      %6488 = vmatpush1.msra.mxu0 0.0
      %6489 = vmatprep.subr.mxu0 0.0
      %6490 = vmatpush1.msra.mxu0 0.0
      %6491 = vmatprep.subr.mxu0 0.0
      %6492 = vmatpush1.msra.mxu0 0.0
      %6493 = vmatprep.subr.mxu0 0.0
      %6494 = vmatpush1.msra.mxu0 0.0
      %6495 = vmatprep.subr.mxu0 0.0
      %6496 = vmatpush1.msra.mxu0 0.0
      %6497 = vmatprep.subr.mxu0 0.0
      %6498 = vmatpush1.msra.mxu0 0.0
      %6499 = vmatprep.subr.mxu0 0.0
      %6500 = vmatpush1.msra.mxu0 0.0
      %6501 = vmatprep.subr.mxu0 0.0
      %6502 = vmatpush1.msra.mxu0 0.0
      %6503 = vmatprep.subr.mxu0 0.0
      %6504 = vmatpush1.msra.mxu0 0.0
      %6505 = vmatprep.subr.mxu0 0.0
      %6506 = vmatpush1.msra.mxu0 0.0
      %6507 = vmatprep.subr.mxu0 0.0
      %6508 = vmatpush1.msra.mxu0 0.0
      %6509 = vmatprep.subr.mxu0 0.0
      %6510 = vmatpush1.msra.mxu0 0.0
      %6511 = vmatprep.subr.mxu0 0.0
      %6512 = vmatpush1.msra.mxu0 0.0
      %6513 = vmatprep.subr.mxu0 0.0
      %6514 = vmatpush1.msra.mxu0 0.0
      %6515 = vmatprep.subr.mxu0 0.0
      %6516 = vmatpush1.msra.mxu0 %v6483
      %6517 = vmatprep.subr.mxu0 0.0
      %6518 = vmatpush2.msra.mxu0 0.0
      %6519 = vmatprep.subr.mxu0 0.0
      %6520 = vmatpush2.msra.mxu0 0.0
      %6521 = vmatprep.subr.mxu0 0.0
      %6522 = vmatpush2.msra.mxu0 0.0
      %6523 = vmatprep.subr.mxu0 0.0
      %6524 = vmatpush2.msra.mxu0 0.0
      %6525 = vmatprep.subr.mxu0 0.0
      %6526 = vmatpush2.msra.mxu0 0.0
      %6527 = vmatprep.subr.mxu0 0.0
      %6528 = vmatpush2.msra.mxu0 0.0
      %6529 = vmatprep.subr.mxu0 0.0
      %6530 = vmatpush2.msra.mxu0 0.0
      %6531 = vmatprep.subr.mxu0 0.0
      %6532 = vmatpush2.msra.mxu0 0.0
      %6533 = vmatprep.subr.mxu0 0.0
      %6534 = vmatpush2.msra.mxu0 0.0
      %6535 = vmatprep.subr.mxu0 0.0
      %6536 = vmatpush2.msra.mxu0 0.0
      %6537 = vmatprep.subr.mxu0 0.0
      %6538 = vmatpush2.msra.mxu0 0.0
      %6539 = vmatprep.subr.mxu0 0.0
      %6540 = vmatpush2.msra.mxu0 0.0
      %6541 = vmatprep.subr.mxu0 0.0
      %6542 = vmatpush2.msra.mxu0 0.0
      %6543 = vmatprep.subr.mxu0 0.0
      %6544 = vmatpush2.msra.mxu0 0.0
      %6545 = vmatprep.subr.mxu0 0.0
      %6546 = vmatpush2.msra.mxu0 0.0
      %6547 = vmatprep.subr.mxu0 0.0
      %6548 = vmatpush2.msra.mxu0 0.0
      %6549 = vmatprep.mubr.f32.mxu0 0.0
      %6550 = vmatmul.mubr.f32.gmra.mxu0 %v6481
      %v6551 = vpop.f32.mrf.mxu0
      %v6552 = vadd.f32 0.0, %v6551
      %v6553 = vpop.f32.mrf.mxu0
      %6554 = vdwg.mxu0
      %v6556 = vsel %vm3811, %v6473, 0
      %v6558 = vsel %vm3815, %v6474, 0
      %6560 = vmatprep.subr.mxu0 0.0
      %6561 = vmatpush1.msra.mxu0 0.0
      %6562 = vmatprep.subr.mxu0 0.0
      %6563 = vmatpush1.msra.mxu0 0.0
      %6564 = vmatprep.subr.mxu0 0.0
      %6565 = vmatpush1.msra.mxu0 0.0
      %6566 = vmatprep.subr.mxu0 0.0
      %6567 = vmatpush1.msra.mxu0 0.0
      %6568 = vmatprep.subr.mxu0 0.0
      %6569 = vmatpush1.msra.mxu0 0.0
      %6570 = vmatprep.subr.mxu0 0.0
      %6571 = vmatpush1.msra.mxu0 0.0
      %6572 = vmatprep.subr.mxu0 0.0
      %6573 = vmatpush1.msra.mxu0 0.0
      %6574 = vmatprep.subr.mxu0 0.0
      %6575 = vmatpush1.msra.mxu0 0.0
      %6576 = vmatprep.subr.mxu0 0.0
      %6577 = vmatpush1.msra.mxu0 0.0
      %6578 = vmatprep.subr.mxu0 0.0
      %6579 = vmatpush1.msra.mxu0 0.0
      %6580 = vmatprep.subr.mxu0 0.0
      %6581 = vmatpush1.msra.mxu0 0.0
      %6582 = vmatprep.subr.mxu0 0.0
      %6583 = vmatpush1.msra.mxu0 0.0
      %6584 = vmatprep.subr.mxu0 0.0
      %6585 = vmatpush1.msra.mxu0 0.0
      %6586 = vmatprep.subr.mxu0 0.0
      %6587 = vmatpush1.msra.mxu0 0.0
      %6588 = vmatprep.subr.mxu0 0.0
      %6589 = vmatpush1.msra.mxu0 0.0
      %6590 = vmatprep.subr.mxu0 0.0
      %6591 = vmatpush1.msra.mxu0 %v6558
      %6592 = vmatprep.subr.mxu0 0.0
      %6593 = vmatpush2.msra.mxu0 0.0
      %6594 = vmatprep.subr.mxu0 0.0
      %6595 = vmatpush2.msra.mxu0 0.0
      %6596 = vmatprep.subr.mxu0 0.0
      %6597 = vmatpush2.msra.mxu0 0.0
      %6598 = vmatprep.subr.mxu0 0.0
      %6599 = vmatpush2.msra.mxu0 0.0
      %6600 = vmatprep.subr.mxu0 0.0
      %6601 = vmatpush2.msra.mxu0 0.0
      %6602 = vmatprep.subr.mxu0 0.0
      %6603 = vmatpush2.msra.mxu0 0.0
      %6604 = vmatprep.subr.mxu0 0.0
      %6605 = vmatpush2.msra.mxu0 0.0
      %6606 = vmatprep.subr.mxu0 0.0
      %6607 = vmatpush2.msra.mxu0 0.0
      %6608 = vmatprep.subr.mxu0 0.0
      %6609 = vmatpush2.msra.mxu0 0.0
      %6610 = vmatprep.subr.mxu0 0.0
      %6611 = vmatpush2.msra.mxu0 0.0
      %6612 = vmatprep.subr.mxu0 0.0
      %6613 = vmatpush2.msra.mxu0 0.0
      %6614 = vmatprep.subr.mxu0 0.0
      %6615 = vmatpush2.msra.mxu0 0.0
      %6616 = vmatprep.subr.mxu0 0.0
      %6617 = vmatpush2.msra.mxu0 0.0
      %6618 = vmatprep.subr.mxu0 0.0
      %6619 = vmatpush2.msra.mxu0 0.0
      %6620 = vmatprep.subr.mxu0 0.0
      %6621 = vmatpush2.msra.mxu0 0.0
      %6622 = vmatprep.subr.mxu0 0.0
      %6623 = vmatpush2.msra.mxu0 0.0
      %6624 = vmatprep.mubr.f32.mxu0 0.0
      %6625 = vmatmul.mubr.f32.gmra.mxu0 %v6556
      %v6626 = vpop.f32.mrf.mxu0
      %v6627 = vadd.f32 %v6552, %v6626
      %v6628 = vpop.f32.mrf.mxu0
      %6629 = vdwg.mxu0
      %s6630 = scalar_lea.vmem %s31, 8
      %v6631 = vld [vmem:[%s6630] sm:$0xf]
      %6632 = vrot.lane.b32.xlu0 %v6474, 126
      %v6633 = vpop.permute.xlu0 %6632
      %v6635 = vsel %vm3811, %v6631, 0
      %v6637 = vsel %vm3815, %v6633, 0
      %6639 = vmatprep.subr.mxu0 0.0
      %6640 = vmatpush1.msra.mxu0 0.0
      %6641 = vmatprep.subr.mxu0 0.0
      %6642 = vmatpush1.msra.mxu0 0.0
      %6643 = vmatprep.subr.mxu0 0.0
      %6644 = vmatpush1.msra.mxu0 0.0
      %6645 = vmatprep.subr.mxu0 0.0
      %6646 = vmatpush1.msra.mxu0 0.0
      %6647 = vmatprep.subr.mxu0 0.0
      %6648 = vmatpush1.msra.mxu0 0.0
      %6649 = vmatprep.subr.mxu0 0.0
      %6650 = vmatpush1.msra.mxu0 0.0
      %6651 = vmatprep.subr.mxu0 0.0
      %6652 = vmatpush1.msra.mxu0 0.0
      %6653 = vmatprep.subr.mxu0 0.0
      %6654 = vmatpush1.msra.mxu0 0.0
      %6655 = vmatprep.subr.mxu0 0.0
      %6656 = vmatpush1.msra.mxu0 0.0
      %6657 = vmatprep.subr.mxu0 0.0
      %6658 = vmatpush1.msra.mxu0 0.0
      %6659 = vmatprep.subr.mxu0 0.0
      %6660 = vmatpush1.msra.mxu0 0.0
      %6661 = vmatprep.subr.mxu0 0.0
      %6662 = vmatpush1.msra.mxu0 0.0
      %6663 = vmatprep.subr.mxu0 0.0
      %6664 = vmatpush1.msra.mxu0 0.0
      %6665 = vmatprep.subr.mxu0 0.0
      %6666 = vmatpush1.msra.mxu0 0.0
      %6667 = vmatprep.subr.mxu0 0.0
      %6668 = vmatpush1.msra.mxu0 0.0
      %6669 = vmatprep.subr.mxu0 0.0
      %6670 = vmatpush1.msra.mxu0 %v6637
      %6671 = vmatprep.subr.mxu0 0.0
      %6672 = vmatpush2.msra.mxu0 0.0
      %6673 = vmatprep.subr.mxu0 0.0
      %6674 = vmatpush2.msra.mxu0 0.0
      %6675 = vmatprep.subr.mxu0 0.0
      %6676 = vmatpush2.msra.mxu0 0.0
      %6677 = vmatprep.subr.mxu0 0.0
      %6678 = vmatpush2.msra.mxu0 0.0
      %6679 = vmatprep.subr.mxu0 0.0
      %6680 = vmatpush2.msra.mxu0 0.0
      %6681 = vmatprep.subr.mxu0 0.0
      %6682 = vmatpush2.msra.mxu0 0.0
      %6683 = vmatprep.subr.mxu0 0.0
      %6684 = vmatpush2.msra.mxu0 0.0
      %6685 = vmatprep.subr.mxu0 0.0
      %6686 = vmatpush2.msra.mxu0 0.0
      %6687 = vmatprep.subr.mxu0 0.0
      %6688 = vmatpush2.msra.mxu0 0.0
      %6689 = vmatprep.subr.mxu0 0.0
      %6690 = vmatpush2.msra.mxu0 0.0
      %6691 = vmatprep.subr.mxu0 0.0
      %6692 = vmatpush2.msra.mxu0 0.0
      %6693 = vmatprep.subr.mxu0 0.0
      %6694 = vmatpush2.msra.mxu0 0.0
      %6695 = vmatprep.subr.mxu0 0.0
      %6696 = vmatpush2.msra.mxu0 0.0
      %6697 = vmatprep.subr.mxu0 0.0
      %6698 = vmatpush2.msra.mxu0 0.0
      %6699 = vmatprep.subr.mxu0 0.0
      %6700 = vmatpush2.msra.mxu0 0.0
      %6701 = vmatprep.subr.mxu0 0.0
      %6702 = vmatpush2.msra.mxu0 0.0
      %6703 = vmatprep.mubr.f32.mxu0 0.0
      %6704 = vmatmul.mubr.f32.gmra.mxu0 %v6635
      %v6705 = vpop.f32.mrf.mxu0
      %v6706 = vadd.f32 0.0, %v6705
      %v6707 = vpop.f32.mrf.mxu0
      %6708 = vdwg.mxu0
      %v6709 = vadd.f32 %v6627, %v6706
      %s6710 = scalar_lea.vmem %s31, 12
      %v6711 = vld [vmem:[%s6710] sm:$0xf]
      %6712 = vrot.lane.b32.xlu0 %v6474, 124
      %v6713 = vpop.permute.xlu0 %6712
      %v6715 = vsel %vm3811, %v6711, 0
      %v6717 = vsel %vm3815, %v6713, 0
      %6719 = vmatprep.subr.mxu0 0.0
      %6720 = vmatpush1.msra.mxu0 0.0
      %6721 = vmatprep.subr.mxu0 0.0
      %6722 = vmatpush1.msra.mxu0 0.0
      %6723 = vmatprep.subr.mxu0 0.0
      %6724 = vmatpush1.msra.mxu0 0.0
      %6725 = vmatprep.subr.mxu0 0.0
      %6726 = vmatpush1.msra.mxu0 0.0
      %6727 = vmatprep.subr.mxu0 0.0
      %6728 = vmatpush1.msra.mxu0 0.0
      %6729 = vmatprep.subr.mxu0 0.0
      %6730 = vmatpush1.msra.mxu0 0.0
      %6731 = vmatprep.subr.mxu0 0.0
      %6732 = vmatpush1.msra.mxu0 0.0
      %6733 = vmatprep.subr.mxu0 0.0
      %6734 = vmatpush1.msra.mxu0 0.0
      %6735 = vmatprep.subr.mxu0 0.0
      %6736 = vmatpush1.msra.mxu0 0.0
      %6737 = vmatprep.subr.mxu0 0.0
      %6738 = vmatpush1.msra.mxu0 0.0
      %6739 = vmatprep.subr.mxu0 0.0
      %6740 = vmatpush1.msra.mxu0 0.0
      %6741 = vmatprep.subr.mxu0 0.0
      %6742 = vmatpush1.msra.mxu0 0.0
      %6743 = vmatprep.subr.mxu0 0.0
      %6744 = vmatpush1.msra.mxu0 0.0
      %6745 = vmatprep.subr.mxu0 0.0
      %6746 = vmatpush1.msra.mxu0 0.0
      %6747 = vmatprep.subr.mxu0 0.0
      %6748 = vmatpush1.msra.mxu0 0.0
      %6749 = vmatprep.subr.mxu0 0.0
      %6750 = vmatpush1.msra.mxu0 %v6717
      %6751 = vmatprep.subr.mxu0 0.0
      %6752 = vmatpush2.msra.mxu0 0.0
      %6753 = vmatprep.subr.mxu0 0.0
      %6754 = vmatpush2.msra.mxu0 0.0
      %6755 = vmatprep.subr.mxu0 0.0
      %6756 = vmatpush2.msra.mxu0 0.0
      %6757 = vmatprep.subr.mxu0 0.0
      %6758 = vmatpush2.msra.mxu0 0.0
      %6759 = vmatprep.subr.mxu0 0.0
      %6760 = vmatpush2.msra.mxu0 0.0
      %6761 = vmatprep.subr.mxu0 0.0
      %6762 = vmatpush2.msra.mxu0 0.0
      %6763 = vmatprep.subr.mxu0 0.0
      %6764 = vmatpush2.msra.mxu0 0.0
      %6765 = vmatprep.subr.mxu0 0.0
      %6766 = vmatpush2.msra.mxu0 0.0
      %6767 = vmatprep.subr.mxu0 0.0
      %6768 = vmatpush2.msra.mxu0 0.0
      %6769 = vmatprep.subr.mxu0 0.0
      %6770 = vmatpush2.msra.mxu0 0.0
      %6771 = vmatprep.subr.mxu0 0.0
      %6772 = vmatpush2.msra.mxu0 0.0
      %6773 = vmatprep.subr.mxu0 0.0
      %6774 = vmatpush2.msra.mxu0 0.0
      %6775 = vmatprep.subr.mxu0 0.0
      %6776 = vmatpush2.msra.mxu0 0.0
      %6777 = vmatprep.subr.mxu0 0.0
      %6778 = vmatpush2.msra.mxu0 0.0
      %6779 = vmatprep.subr.mxu0 0.0
      %6780 = vmatpush2.msra.mxu0 0.0
      %6781 = vmatprep.subr.mxu0 0.0
      %6782 = vmatpush2.msra.mxu0 0.0
      %6783 = vmatprep.mubr.f32.mxu0 0.0
      %6784 = vmatmul.mubr.f32.gmra.mxu0 %v6715
      %v6785 = vpop.f32.mrf.mxu0
      %v6786 = vadd.f32 0.0, %v6785
      %v6787 = vpop.f32.mrf.mxu0
      %6788 = vdwg.mxu0
      %v6789 = vadd.f32 %v6709, %v6786
      %s6790 = scalar_lea.vmem %s31, 16
      %v6791 = vld [vmem:[%s6790] sm:$0xf]
      %6792 = vrot.lane.b32.xlu0 %v6474, 123
      %v6793 = vpop.permute.xlu0 %6792
      %v6795 = vsel %vm3811, %v6791, 0
      %v6797 = vsel %vm3815, %v6793, 0
      %6799 = vmatprep.subr.mxu0 0.0
      %6800 = vmatpush1.msra.mxu0 0.0
      %6801 = vmatprep.subr.mxu0 0.0
      %6802 = vmatpush1.msra.mxu0 0.0
      %6803 = vmatprep.subr.mxu0 0.0
      %6804 = vmatpush1.msra.mxu0 0.0
      %6805 = vmatprep.subr.mxu0 0.0
      %6806 = vmatpush1.msra.mxu0 0.0
      %6807 = vmatprep.subr.mxu0 0.0
      %6808 = vmatpush1.msra.mxu0 0.0
      %6809 = vmatprep.subr.mxu0 0.0
      %6810 = vmatpush1.msra.mxu0 0.0
      %6811 = vmatprep.subr.mxu0 0.0
      %6812 = vmatpush1.msra.mxu0 0.0
      %6813 = vmatprep.subr.mxu0 0.0
      %6814 = vmatpush1.msra.mxu0 0.0
      %6815 = vmatprep.subr.mxu0 0.0
      %6816 = vmatpush1.msra.mxu0 0.0
      %6817 = vmatprep.subr.mxu0 0.0
      %6818 = vmatpush1.msra.mxu0 0.0
      %6819 = vmatprep.subr.mxu0 0.0
      %6820 = vmatpush1.msra.mxu0 0.0
      %6821 = vmatprep.subr.mxu0 0.0
      %6822 = vmatpush1.msra.mxu0 0.0
      %6823 = vmatprep.subr.mxu0 0.0
      %6824 = vmatpush1.msra.mxu0 0.0
      %6825 = vmatprep.subr.mxu0 0.0
      %6826 = vmatpush1.msra.mxu0 0.0
      %6827 = vmatprep.subr.mxu0 0.0
      %6828 = vmatpush1.msra.mxu0 0.0
      %6829 = vmatprep.subr.mxu0 0.0
      %6830 = vmatpush1.msra.mxu0 %v6797
      %6831 = vmatprep.subr.mxu0 0.0
      %6832 = vmatpush2.msra.mxu0 0.0
      %6833 = vmatprep.subr.mxu0 0.0
      %6834 = vmatpush2.msra.mxu0 0.0
      %6835 = vmatprep.subr.mxu0 0.0
      %6836 = vmatpush2.msra.mxu0 0.0
      %6837 = vmatprep.subr.mxu0 0.0
      %6838 = vmatpush2.msra.mxu0 0.0
      %6839 = vmatprep.subr.mxu0 0.0
      %6840 = vmatpush2.msra.mxu0 0.0
      %6841 = vmatprep.subr.mxu0 0.0
      %6842 = vmatpush2.msra.mxu0 0.0
      %6843 = vmatprep.subr.mxu0 0.0
      %6844 = vmatpush2.msra.mxu0 0.0
      %6845 = vmatprep.subr.mxu0 0.0
      %6846 = vmatpush2.msra.mxu0 0.0
      %6847 = vmatprep.subr.mxu0 0.0
      %6848 = vmatpush2.msra.mxu0 0.0
      %6849 = vmatprep.subr.mxu0 0.0
      %6850 = vmatpush2.msra.mxu0 0.0
      %6851 = vmatprep.subr.mxu0 0.0
      %6852 = vmatpush2.msra.mxu0 0.0
      %6853 = vmatprep.subr.mxu0 0.0
      %6854 = vmatpush2.msra.mxu0 0.0
      %6855 = vmatprep.subr.mxu0 0.0
      %6856 = vmatpush2.msra.mxu0 0.0
      %6857 = vmatprep.subr.mxu0 0.0
      %6858 = vmatpush2.msra.mxu0 0.0
      %6859 = vmatprep.subr.mxu0 0.0
      %6860 = vmatpush2.msra.mxu0 0.0
      %6861 = vmatprep.subr.mxu0 0.0
      %6862 = vmatpush2.msra.mxu0 0.0
      %6863 = vmatprep.mubr.f32.mxu0 0.0
      %6864 = vmatmul.mubr.f32.gmra.mxu0 %v6795
      %v6865 = vpop.f32.mrf.mxu0
      %v6866 = vadd.f32 0.0, %v6865
      %v6867 = vpop.f32.mrf.mxu0
      %6868 = vdwg.mxu0
      %v6869 = vadd.f32 %v6789, %v6866
      %s6870 = scalar_lea.vmem %s31, 20
      %v6871 = vld [vmem:[%s6870] sm:$0xf]
      %6872 = vrot.lane.b32.xlu0 %v6474, 122
      %v6873 = vpop.permute.xlu0 %6872
      %v6875 = vsel %vm3811, %v6871, 0
      %v6877 = vsel %vm3815, %v6873, 0
      %6879 = vmatprep.subr.mxu0 0.0
      %6880 = vmatpush1.msra.mxu0 0.0
      %6881 = vmatprep.subr.mxu0 0.0
      %6882 = vmatpush1.msra.mxu0 0.0
      %6883 = vmatprep.subr.mxu0 0.0
      %6884 = vmatpush1.msra.mxu0 0.0
      %6885 = vmatprep.subr.mxu0 0.0
      %6886 = vmatpush1.msra.mxu0 0.0
      %6887 = vmatprep.subr.mxu0 0.0
      %6888 = vmatpush1.msra.mxu0 0.0
      %6889 = vmatprep.subr.mxu0 0.0
      %6890 = vmatpush1.msra.mxu0 0.0
      %6891 = vmatprep.subr.mxu0 0.0
      %6892 = vmatpush1.msra.mxu0 0.0
      %6893 = vmatprep.subr.mxu0 0.0
      %6894 = vmatpush1.msra.mxu0 0.0
      %6895 = vmatprep.subr.mxu0 0.0
      %6896 = vmatpush1.msra.mxu0 0.0
      %6897 = vmatprep.subr.mxu0 0.0
      %6898 = vmatpush1.msra.mxu0 0.0
      %6899 = vmatprep.subr.mxu0 0.0
      %6900 = vmatpush1.msra.mxu0 0.0
      %6901 = vmatprep.subr.mxu0 0.0
      %6902 = vmatpush1.msra.mxu0 0.0
      %6903 = vmatprep.subr.mxu0 0.0
      %6904 = vmatpush1.msra.mxu0 0.0
      %6905 = vmatprep.subr.mxu0 0.0
      %6906 = vmatpush1.msra.mxu0 0.0
      %6907 = vmatprep.subr.mxu0 0.0
      %6908 = vmatpush1.msra.mxu0 0.0
      %6909 = vmatprep.subr.mxu0 0.0
      %6910 = vmatpush1.msra.mxu0 %v6877
      %6911 = vmatprep.subr.mxu0 0.0
      %6912 = vmatpush2.msra.mxu0 0.0
      %6913 = vmatprep.subr.mxu0 0.0
      %6914 = vmatpush2.msra.mxu0 0.0
      %6915 = vmatprep.subr.mxu0 0.0
      %6916 = vmatpush2.msra.mxu0 0.0
      %6917 = vmatprep.subr.mxu0 0.0
      %6918 = vmatpush2.msra.mxu0 0.0
      %6919 = vmatprep.subr.mxu0 0.0
      %6920 = vmatpush2.msra.mxu0 0.0
      %6921 = vmatprep.subr.mxu0 0.0
      %6922 = vmatpush2.msra.mxu0 0.0
      %6923 = vmatprep.subr.mxu0 0.0
      %6924 = vmatpush2.msra.mxu0 0.0
      %6925 = vmatprep.subr.mxu0 0.0
      %6926 = vmatpush2.msra.mxu0 0.0
      %6927 = vmatprep.subr.mxu0 0.0
      %6928 = vmatpush2.msra.mxu0 0.0
      %6929 = vmatprep.subr.mxu0 0.0
      %6930 = vmatpush2.msra.mxu0 0.0
      %6931 = vmatprep.subr.mxu0 0.0
      %6932 = vmatpush2.msra.mxu0 0.0
      %6933 = vmatprep.subr.mxu0 0.0
      %6934 = vmatpush2.msra.mxu0 0.0
      %6935 = vmatprep.subr.mxu0 0.0
      %6936 = vmatpush2.msra.mxu0 0.0
      %6937 = vmatprep.subr.mxu0 0.0
      %6938 = vmatpush2.msra.mxu0 0.0
      %6939 = vmatprep.subr.mxu0 0.0
      %6940 = vmatpush2.msra.mxu0 0.0
      %6941 = vmatprep.subr.mxu0 0.0
      %6942 = vmatpush2.msra.mxu0 0.0
      %6943 = vmatprep.mubr.f32.mxu0 0.0
      %6944 = vmatmul.mubr.f32.gmra.mxu0 %v6875
      %v6945 = vpop.f32.mrf.mxu0
      %v6946 = vadd.f32 0.0, %v6945
      %v6947 = vpop.f32.mrf.mxu0
      %6948 = vdwg.mxu0
      %v6949 = vadd.f32 %v6869, %v6946
      %s6950 = scalar_lea.vmem %s31, 24
      %v6951 = vld [vmem:[%s6950] sm:$0xf]
      %6952 = vrot.lane.b32.xlu0 %v6474, 120
      %v6953 = vpop.permute.xlu0 %6952
      %v6955 = vsel %vm3811, %v6951, 0
      %v6957 = vsel %vm3815, %v6953, 0
      %6959 = vmatprep.subr.mxu0 0.0
      %6960 = vmatpush1.msra.mxu0 0.0
      %6961 = vmatprep.subr.mxu0 0.0
      %6962 = vmatpush1.msra.mxu0 0.0
      %6963 = vmatprep.subr.mxu0 0.0
      %6964 = vmatpush1.msra.mxu0 0.0
      %6965 = vmatprep.subr.mxu0 0.0
      %6966 = vmatpush1.msra.mxu0 0.0
      %6967 = vmatprep.subr.mxu0 0.0
      %6968 = vmatpush1.msra.mxu0 0.0
      %6969 = vmatprep.subr.mxu0 0.0
      %6970 = vmatpush1.msra.mxu0 0.0
      %6971 = vmatprep.subr.mxu0 0.0
      %6972 = vmatpush1.msra.mxu0 0.0
      %6973 = vmatprep.subr.mxu0 0.0
      %6974 = vmatpush1.msra.mxu0 0.0
      %6975 = vmatprep.subr.mxu0 0.0
      %6976 = vmatpush1.msra.mxu0 0.0
      %6977 = vmatprep.subr.mxu0 0.0
      %6978 = vmatpush1.msra.mxu0 0.0
      %6979 = vmatprep.subr.mxu0 0.0
      %6980 = vmatpush1.msra.mxu0 0.0
      %6981 = vmatprep.subr.mxu0 0.0
      %6982 = vmatpush1.msra.mxu0 0.0
      %6983 = vmatprep.subr.mxu0 0.0
      %6984 = vmatpush1.msra.mxu0 0.0
      %6985 = vmatprep.subr.mxu0 0.0
      %6986 = vmatpush1.msra.mxu0 0.0
      %6987 = vmatprep.subr.mxu0 0.0
      %6988 = vmatpush1.msra.mxu0 0.0
      %6989 = vmatprep.subr.mxu0 0.0
      %6990 = vmatpush1.msra.mxu0 %v6957
      %6991 = vmatprep.subr.mxu0 0.0
      %6992 = vmatpush2.msra.mxu0 0.0
      %6993 = vmatprep.subr.mxu0 0.0
      %6994 = vmatpush2.msra.mxu0 0.0
      %6995 = vmatprep.subr.mxu0 0.0
      %6996 = vmatpush2.msra.mxu0 0.0
      %6997 = vmatprep.subr.mxu0 0.0
      %6998 = vmatpush2.msra.mxu0 0.0
      %6999 = vmatprep.subr.mxu0 0.0
      %7000 = vmatpush2.msra.mxu0 0.0
      %7001 = vmatprep.subr.mxu0 0.0
      %7002 = vmatpush2.msra.mxu0 0.0
      %7003 = vmatprep.subr.mxu0 0.0
      %7004 = vmatpush2.msra.mxu0 0.0
      %7005 = vmatprep.subr.mxu0 0.0
      %7006 = vmatpush2.msra.mxu0 0.0
      %7007 = vmatprep.subr.mxu0 0.0
      %7008 = vmatpush2.msra.mxu0 0.0
      %7009 = vmatprep.subr.mxu0 0.0
      %7010 = vmatpush2.msra.mxu0 0.0
      %7011 = vmatprep.subr.mxu0 0.0
      %7012 = vmatpush2.msra.mxu0 0.0
      %7013 = vmatprep.subr.mxu0 0.0
      %7014 = vmatpush2.msra.mxu0 0.0
      %7015 = vmatprep.subr.mxu0 0.0
      %7016 = vmatpush2.msra.mxu0 0.0
      %7017 = vmatprep.subr.mxu0 0.0
      %7018 = vmatpush2.msra.mxu0 0.0
      %7019 = vmatprep.subr.mxu0 0.0
      %7020 = vmatpush2.msra.mxu0 0.0
      %7021 = vmatprep.subr.mxu0 0.0
      %7022 = vmatpush2.msra.mxu0 0.0
      %7023 = vmatprep.mubr.f32.mxu0 0.0
      %7024 = vmatmul.mubr.f32.gmra.mxu0 %v6955
      %v7025 = vpop.f32.mrf.mxu0
      %v7026 = vadd.f32 0.0, %v7025
      %v7027 = vpop.f32.mrf.mxu0
      %7028 = vdwg.mxu0
      %v7029 = vadd.f32 %v6949, %v7026
      %s7030 = scalar_lea.vmem %s31, 28
      %v7031 = vld [vmem:[%s7030] sm:$0xf]
      %7032 = vrot.lane.b32.xlu0 %v6474, 119
      %v7033 = vpop.permute.xlu0 %7032
      %v7035 = vsel %vm3811, %v7031, 0
      %v7037 = vsel %vm3815, %v7033, 0
      %7039 = vmatprep.subr.mxu0 0.0
      %7040 = vmatpush1.msra.mxu0 0.0
      %7041 = vmatprep.subr.mxu0 0.0
      %7042 = vmatpush1.msra.mxu0 0.0
      %7043 = vmatprep.subr.mxu0 0.0
      %7044 = vmatpush1.msra.mxu0 0.0
      %7045 = vmatprep.subr.mxu0 0.0
      %7046 = vmatpush1.msra.mxu0 0.0
      %7047 = vmatprep.subr.mxu0 0.0
      %7048 = vmatpush1.msra.mxu0 0.0
      %7049 = vmatprep.subr.mxu0 0.0
      %7050 = vmatpush1.msra.mxu0 0.0
      %7051 = vmatprep.subr.mxu0 0.0
      %7052 = vmatpush1.msra.mxu0 0.0
      %7053 = vmatprep.subr.mxu0 0.0
      %7054 = vmatpush1.msra.mxu0 0.0
      %7055 = vmatprep.subr.mxu0 0.0
      %7056 = vmatpush1.msra.mxu0 0.0
      %7057 = vmatprep.subr.mxu0 0.0
      %7058 = vmatpush1.msra.mxu0 0.0
      %7059 = vmatprep.subr.mxu0 0.0
      %7060 = vmatpush1.msra.mxu0 0.0
      %7061 = vmatprep.subr.mxu0 0.0
      %7062 = vmatpush1.msra.mxu0 0.0
      %7063 = vmatprep.subr.mxu0 0.0
      %7064 = vmatpush1.msra.mxu0 0.0
      %7065 = vmatprep.subr.mxu0 0.0
      %7066 = vmatpush1.msra.mxu0 0.0
      %7067 = vmatprep.subr.mxu0 0.0
      %7068 = vmatpush1.msra.mxu0 0.0
      %7069 = vmatprep.subr.mxu0 0.0
      %7070 = vmatpush1.msra.mxu0 %v7037
      %7071 = vmatprep.subr.mxu0 0.0
      %7072 = vmatpush2.msra.mxu0 0.0
      %7073 = vmatprep.subr.mxu0 0.0
      %7074 = vmatpush2.msra.mxu0 0.0
      %7075 = vmatprep.subr.mxu0 0.0
      %7076 = vmatpush2.msra.mxu0 0.0
      %7077 = vmatprep.subr.mxu0 0.0
      %7078 = vmatpush2.msra.mxu0 0.0
      %7079 = vmatprep.subr.mxu0 0.0
      %7080 = vmatpush2.msra.mxu0 0.0
      %7081 = vmatprep.subr.mxu0 0.0
      %7082 = vmatpush2.msra.mxu0 0.0
      %7083 = vmatprep.subr.mxu0 0.0
      %7084 = vmatpush2.msra.mxu0 0.0
      %7085 = vmatprep.subr.mxu0 0.0
      %7086 = vmatpush2.msra.mxu0 0.0
      %7087 = vmatprep.subr.mxu0 0.0
      %7088 = vmatpush2.msra.mxu0 0.0
      %7089 = vmatprep.subr.mxu0 0.0
      %7090 = vmatpush2.msra.mxu0 0.0
      %7091 = vmatprep.subr.mxu0 0.0
      %7092 = vmatpush2.msra.mxu0 0.0
      %7093 = vmatprep.subr.mxu0 0.0
      %7094 = vmatpush2.msra.mxu0 0.0
      %7095 = vmatprep.subr.mxu0 0.0
      %7096 = vmatpush2.msra.mxu0 0.0
      %7097 = vmatprep.subr.mxu0 0.0
      %7098 = vmatpush2.msra.mxu0 0.0
      %7099 = vmatprep.subr.mxu0 0.0
      %7100 = vmatpush2.msra.mxu0 0.0
      %7101 = vmatprep.subr.mxu0 0.0
      %7102 = vmatpush2.msra.mxu0 0.0
      %7103 = vmatprep.mubr.f32.mxu0 0.0
      %7104 = vmatmul.mubr.f32.gmra.mxu0 %v7035
      %v7105 = vpop.f32.mrf.mxu0
      %v7106 = vadd.f32 0.0, %v7105
      %v7107 = vpop.f32.mrf.mxu0
      %7108 = vdwg.mxu0
      %v7109 = vadd.f32 %v7029, %v7106
      %s7110 = scalar_lea.vmem %s31, 32
      %v7111 = vld [vmem:[%s7110] sm:$0xf]
      %7112 = vrot.lane.b32.xlu0 %v6474, 118
      %v7113 = vpop.permute.xlu0 %7112
      %v7115 = vsel %vm3811, %v7111, 0
      %v7117 = vsel %vm3815, %v7113, 0
      %7119 = vmatprep.subr.mxu0 0.0
      %7120 = vmatpush1.msra.mxu0 0.0
      %7121 = vmatprep.subr.mxu0 0.0
      %7122 = vmatpush1.msra.mxu0 0.0
      %7123 = vmatprep.subr.mxu0 0.0
      %7124 = vmatpush1.msra.mxu0 0.0
      %7125 = vmatprep.subr.mxu0 0.0
      %7126 = vmatpush1.msra.mxu0 0.0
      %7127 = vmatprep.subr.mxu0 0.0
      %7128 = vmatpush1.msra.mxu0 0.0
      %7129 = vmatprep.subr.mxu0 0.0
      %7130 = vmatpush1.msra.mxu0 0.0
      %7131 = vmatprep.subr.mxu0 0.0
      %7132 = vmatpush1.msra.mxu0 0.0
      %7133 = vmatprep.subr.mxu0 0.0
      %7134 = vmatpush1.msra.mxu0 0.0
      %7135 = vmatprep.subr.mxu0 0.0
      %7136 = vmatpush1.msra.mxu0 0.0
      %7137 = vmatprep.subr.mxu0 0.0
      %7138 = vmatpush1.msra.mxu0 0.0
      %7139 = vmatprep.subr.mxu0 0.0
      %7140 = vmatpush1.msra.mxu0 0.0
      %7141 = vmatprep.subr.mxu0 0.0
      %7142 = vmatpush1.msra.mxu0 0.0
      %7143 = vmatprep.subr.mxu0 0.0
      %7144 = vmatpush1.msra.mxu0 0.0
      %7145 = vmatprep.subr.mxu0 0.0
      %7146 = vmatpush1.msra.mxu0 0.0
      %7147 = vmatprep.subr.mxu0 0.0
      %7148 = vmatpush1.msra.mxu0 0.0
      %7149 = vmatprep.subr.mxu0 0.0
      %7150 = vmatpush1.msra.mxu0 %v7117
      %7151 = vmatprep.subr.mxu0 0.0
      %7152 = vmatpush2.msra.mxu0 0.0
      %7153 = vmatprep.subr.mxu0 0.0
      %7154 = vmatpush2.msra.mxu0 0.0
      %7155 = vmatprep.subr.mxu0 0.0
      %7156 = vmatpush2.msra.mxu0 0.0
      %7157 = vmatprep.subr.mxu0 0.0
      %7158 = vmatpush2.msra.mxu0 0.0
      %7159 = vmatprep.subr.mxu0 0.0
      %7160 = vmatpush2.msra.mxu0 0.0
      %7161 = vmatprep.subr.mxu0 0.0
      %7162 = vmatpush2.msra.mxu0 0.0
      %7163 = vmatprep.subr.mxu0 0.0
      %7164 = vmatpush2.msra.mxu0 0.0
      %7165 = vmatprep.subr.mxu0 0.0
      %7166 = vmatpush2.msra.mxu0 0.0
      %7167 = vmatprep.subr.mxu0 0.0
      %7168 = vmatpush2.msra.mxu0 0.0
      %7169 = vmatprep.subr.mxu0 0.0
      %7170 = vmatpush2.msra.mxu0 0.0
      %7171 = vmatprep.subr.mxu0 0.0
      %7172 = vmatpush2.msra.mxu0 0.0
      %7173 = vmatprep.subr.mxu0 0.0
      %7174 = vmatpush2.msra.mxu0 0.0
      %7175 = vmatprep.subr.mxu0 0.0
      %7176 = vmatpush2.msra.mxu0 0.0
      %7177 = vmatprep.subr.mxu0 0.0
      %7178 = vmatpush2.msra.mxu0 0.0
      %7179 = vmatprep.subr.mxu0 0.0
      %7180 = vmatpush2.msra.mxu0 0.0
      %7181 = vmatprep.subr.mxu0 0.0
      %7182 = vmatpush2.msra.mxu0 0.0
      %7183 = vmatprep.mubr.f32.mxu0 0.0
      %7184 = vmatmul.mubr.f32.gmra.mxu0 %v7115
      %v7185 = vpop.f32.mrf.mxu0
      %v7186 = vadd.f32 0.0, %v7185
      %v7187 = vpop.f32.mrf.mxu0
      %7188 = vdwg.mxu0
      %v7189 = vadd.f32 %v7109, %v7186
      %v7190 = vld [vmem:[%s33] sm:$0xf]
      %7192 = vset.pattern.permute.xlu0 0
      %7193 = vperm.xlu0 %7192, %v7190
      %v7194 = vpop.permute.xlu0 %7193
      %v7196 = vadd.f32 %v7189, %v7194
      %v7197 = vmax.f32 %v7196, 0.0
      %v7198 = vld [vmem:[%s45] sm:$0xff]
      %vm7199 = vcmask 64512
      %v7201 = vsel %vm7199, %v7197, 0
      %7203 = vmatprep.subr.mxu0 0.0
      %7204 = vmatpush1.msra.mxu0 0.0
      %7205 = vmatprep.subr.mxu0 0.0
      %7206 = vmatpush1.msra.mxu0 0.0
      %7207 = vmatprep.subr.mxu0 0.0
      %7208 = vmatpush1.msra.mxu0 0.0
      %7209 = vmatprep.subr.mxu0 0.0
      %7210 = vmatpush1.msra.mxu0 0.0
      %7211 = vmatprep.subr.mxu0 0.0
      %7212 = vmatpush1.msra.mxu0 0.0
      %7213 = vmatprep.subr.mxu0 0.0
      %7214 = vmatpush1.msra.mxu0 0.0
      %7215 = vmatprep.subr.mxu0 0.0
      %7216 = vmatpush1.msra.mxu0 0.0
      %7217 = vmatprep.subr.mxu0 0.0
      %7218 = vmatpush1.msra.mxu0 0.0
      %7219 = vmatprep.subr.mxu0 0.0
      %7220 = vmatpush1.msra.mxu0 0.0
      %7221 = vmatprep.subr.mxu0 0.0
      %7222 = vmatpush1.msra.mxu0 0.0
      %7223 = vmatprep.subr.mxu0 0.0
      %7224 = vmatpush1.msra.mxu0 0.0
      %7225 = vmatprep.subr.mxu0 0.0
      %7226 = vmatpush1.msra.mxu0 0.0
      %7227 = vmatprep.subr.mxu0 0.0
      %7228 = vmatpush1.msra.mxu0 0.0
      %7229 = vmatprep.subr.mxu0 0.0
      %7230 = vmatpush1.msra.mxu0 0.0
      %7231 = vmatprep.subr.mxu0 0.0
      %7232 = vmatpush1.msra.mxu0 0.0
      %7233 = vmatprep.subr.mxu0 0.0
      %7234 = vmatpush1.msra.mxu0 %v7198
      %7235 = vmatprep.subr.mxu0 0.0
      %7236 = vmatpush2.msra.mxu0 0.0
      %7237 = vmatprep.subr.mxu0 0.0
      %7238 = vmatpush2.msra.mxu0 0.0
      %7239 = vmatprep.subr.mxu0 0.0
      %7240 = vmatpush2.msra.mxu0 0.0
      %7241 = vmatprep.subr.mxu0 0.0
      %7242 = vmatpush2.msra.mxu0 0.0
      %7243 = vmatprep.subr.mxu0 0.0
      %7244 = vmatpush2.msra.mxu0 0.0
      %7245 = vmatprep.subr.mxu0 0.0
      %7246 = vmatpush2.msra.mxu0 0.0
      %7247 = vmatprep.subr.mxu0 0.0
      %7248 = vmatpush2.msra.mxu0 0.0
      %7249 = vmatprep.subr.mxu0 0.0
      %7250 = vmatpush2.msra.mxu0 0.0
      %7251 = vmatprep.subr.mxu0 0.0
      %7252 = vmatpush2.msra.mxu0 0.0
      %7253 = vmatprep.subr.mxu0 0.0
      %7254 = vmatpush2.msra.mxu0 0.0
      %7255 = vmatprep.subr.mxu0 0.0
      %7256 = vmatpush2.msra.mxu0 0.0
      %7257 = vmatprep.subr.mxu0 0.0
      %7258 = vmatpush2.msra.mxu0 0.0
      %7259 = vmatprep.subr.mxu0 0.0
      %7260 = vmatpush2.msra.mxu0 0.0
      %7261 = vmatprep.subr.mxu0 0.0
      %7262 = vmatpush2.msra.mxu0 0.0
      %7263 = vmatprep.subr.mxu0 0.0
      %7264 = vmatpush2.msra.mxu0 0.0
      %7265 = vmatprep.subr.mxu0 0.0
      %7266 = vmatpush2.msra.mxu0 0.0
      %7267 = vmatprep.mubr.f32.mxu0 0.0
      %7268 = vmatmul.mubr.f32.gmra.mxu0 %v7201
      %v7269 = vpop.f32.mrf.mxu0
      %v7270 = vadd.f32 0.0, %v7269
      %v7271 = vpop.f32.mrf.mxu0
      %7272 = vdwg.mxu0
      %7273 = vst.msk [vmem:[#allocation6] sm:$0xf] %vm6471, %v7270
      %v7274 = vld [vmem:[%s35] sm:$0xf]
      %v7275 = vld [vmem:[#allocation6] sm:$0xf]
      %s7276 = scalar_lea.vmem %s35, 4
      %v7277 = vld [vmem:[%s7276] sm:$0xf]
      %7279 = vrot.lane.b32.xlu0 %v7275, 127
      %v7280 = vpop.permute.xlu0 %7279
      %v7282 = vsel %vm3811, %v7277, 0
      %v7284 = vsel %vm3815, %v7280, 0
      %7286 = vmatprep.subr.mxu0 0.0
      %7287 = vmatpush1.msra.mxu0 0.0
      %7288 = vmatprep.subr.mxu0 0.0
      %7289 = vmatpush1.msra.mxu0 0.0
      %7290 = vmatprep.subr.mxu0 0.0
      %7291 = vmatpush1.msra.mxu0 0.0
      %7292 = vmatprep.subr.mxu0 0.0
      %7293 = vmatpush1.msra.mxu0 0.0
      %7294 = vmatprep.subr.mxu0 0.0
      %7295 = vmatpush1.msra.mxu0 0.0
      %7296 = vmatprep.subr.mxu0 0.0
      %7297 = vmatpush1.msra.mxu0 0.0
      %7298 = vmatprep.subr.mxu0 0.0
      %7299 = vmatpush1.msra.mxu0 0.0
      %7300 = vmatprep.subr.mxu0 0.0
      %7301 = vmatpush1.msra.mxu0 0.0
      %7302 = vmatprep.subr.mxu0 0.0
      %7303 = vmatpush1.msra.mxu0 0.0
      %7304 = vmatprep.subr.mxu0 0.0
      %7305 = vmatpush1.msra.mxu0 0.0
      %7306 = vmatprep.subr.mxu0 0.0
      %7307 = vmatpush1.msra.mxu0 0.0
      %7308 = vmatprep.subr.mxu0 0.0
      %7309 = vmatpush1.msra.mxu0 0.0
      %7310 = vmatprep.subr.mxu0 0.0
      %7311 = vmatpush1.msra.mxu0 0.0
      %7312 = vmatprep.subr.mxu0 0.0
      %7313 = vmatpush1.msra.mxu0 0.0
      %7314 = vmatprep.subr.mxu0 0.0
      %7315 = vmatpush1.msra.mxu0 0.0
      %7316 = vmatprep.subr.mxu0 0.0
      %7317 = vmatpush1.msra.mxu0 %v7284
      %7318 = vmatprep.subr.mxu0 0.0
      %7319 = vmatpush2.msra.mxu0 0.0
      %7320 = vmatprep.subr.mxu0 0.0
      %7321 = vmatpush2.msra.mxu0 0.0
      %7322 = vmatprep.subr.mxu0 0.0
      %7323 = vmatpush2.msra.mxu0 0.0
      %7324 = vmatprep.subr.mxu0 0.0
      %7325 = vmatpush2.msra.mxu0 0.0
      %7326 = vmatprep.subr.mxu0 0.0
      %7327 = vmatpush2.msra.mxu0 0.0
      %7328 = vmatprep.subr.mxu0 0.0
      %7329 = vmatpush2.msra.mxu0 0.0
      %7330 = vmatprep.subr.mxu0 0.0
      %7331 = vmatpush2.msra.mxu0 0.0
      %7332 = vmatprep.subr.mxu0 0.0
      %7333 = vmatpush2.msra.mxu0 0.0
      %7334 = vmatprep.subr.mxu0 0.0
      %7335 = vmatpush2.msra.mxu0 0.0
      %7336 = vmatprep.subr.mxu0 0.0
      %7337 = vmatpush2.msra.mxu0 0.0
      %7338 = vmatprep.subr.mxu0 0.0
      %7339 = vmatpush2.msra.mxu0 0.0
      %7340 = vmatprep.subr.mxu0 0.0
      %7341 = vmatpush2.msra.mxu0 0.0
      %7342 = vmatprep.subr.mxu0 0.0
      %7343 = vmatpush2.msra.mxu0 0.0
      %7344 = vmatprep.subr.mxu0 0.0
      %7345 = vmatpush2.msra.mxu0 0.0
      %7346 = vmatprep.subr.mxu0 0.0
      %7347 = vmatpush2.msra.mxu0 0.0
      %7348 = vmatprep.subr.mxu0 0.0
      %7349 = vmatpush2.msra.mxu0 0.0
      %7350 = vmatprep.mubr.f32.mxu0 0.0
      %7351 = vmatmul.mubr.f32.gmra.mxu0 %v7282
      %v7352 = vpop.f32.mrf.mxu0
      %v7353 = vadd.f32 0.0, %v7352
      %v7354 = vpop.f32.mrf.mxu0
      %7355 = vdwg.mxu0
      %v7357 = vsel %vm3811, %v7274, 0
      %v7359 = vsel %vm3815, %v7275, 0
      %7361 = vmatprep.subr.mxu0 0.0
      %7362 = vmatpush1.msra.mxu0 0.0
      %7363 = vmatprep.subr.mxu0 0.0
      %7364 = vmatpush1.msra.mxu0 0.0
      %7365 = vmatprep.subr.mxu0 0.0
      %7366 = vmatpush1.msra.mxu0 0.0
      %7367 = vmatprep.subr.mxu0 0.0
      %7368 = vmatpush1.msra.mxu0 0.0
      %7369 = vmatprep.subr.mxu0 0.0
      %7370 = vmatpush1.msra.mxu0 0.0
      %7371 = vmatprep.subr.mxu0 0.0
      %7372 = vmatpush1.msra.mxu0 0.0
      %7373 = vmatprep.subr.mxu0 0.0
      %7374 = vmatpush1.msra.mxu0 0.0
      %7375 = vmatprep.subr.mxu0 0.0
      %7376 = vmatpush1.msra.mxu0 0.0
      %7377 = vmatprep.subr.mxu0 0.0
      %7378 = vmatpush1.msra.mxu0 0.0
      %7379 = vmatprep.subr.mxu0 0.0
      %7380 = vmatpush1.msra.mxu0 0.0
      %7381 = vmatprep.subr.mxu0 0.0
      %7382 = vmatpush1.msra.mxu0 0.0
      %7383 = vmatprep.subr.mxu0 0.0
      %7384 = vmatpush1.msra.mxu0 0.0
      %7385 = vmatprep.subr.mxu0 0.0
      %7386 = vmatpush1.msra.mxu0 0.0
      %7387 = vmatprep.subr.mxu0 0.0
      %7388 = vmatpush1.msra.mxu0 0.0
      %7389 = vmatprep.subr.mxu0 0.0
      %7390 = vmatpush1.msra.mxu0 0.0
      %7391 = vmatprep.subr.mxu0 0.0
      %7392 = vmatpush1.msra.mxu0 %v7359
      %7393 = vmatprep.subr.mxu0 0.0
      %7394 = vmatpush2.msra.mxu0 0.0
      %7395 = vmatprep.subr.mxu0 0.0
      %7396 = vmatpush2.msra.mxu0 0.0
      %7397 = vmatprep.subr.mxu0 0.0
      %7398 = vmatpush2.msra.mxu0 0.0
      %7399 = vmatprep.subr.mxu0 0.0
      %7400 = vmatpush2.msra.mxu0 0.0
      %7401 = vmatprep.subr.mxu0 0.0
      %7402 = vmatpush2.msra.mxu0 0.0
      %7403 = vmatprep.subr.mxu0 0.0
      %7404 = vmatpush2.msra.mxu0 0.0
      %7405 = vmatprep.subr.mxu0 0.0
      %7406 = vmatpush2.msra.mxu0 0.0
      %7407 = vmatprep.subr.mxu0 0.0
      %7408 = vmatpush2.msra.mxu0 0.0
      %7409 = vmatprep.subr.mxu0 0.0
      %7410 = vmatpush2.msra.mxu0 0.0
      %7411 = vmatprep.subr.mxu0 0.0
      %7412 = vmatpush2.msra.mxu0 0.0
      %7413 = vmatprep.subr.mxu0 0.0
      %7414 = vmatpush2.msra.mxu0 0.0
      %7415 = vmatprep.subr.mxu0 0.0
      %7416 = vmatpush2.msra.mxu0 0.0
      %7417 = vmatprep.subr.mxu0 0.0
      %7418 = vmatpush2.msra.mxu0 0.0
      %7419 = vmatprep.subr.mxu0 0.0
      %7420 = vmatpush2.msra.mxu0 0.0
      %7421 = vmatprep.subr.mxu0 0.0
      %7422 = vmatpush2.msra.mxu0 0.0
      %7423 = vmatprep.subr.mxu0 0.0
      %7424 = vmatpush2.msra.mxu0 0.0
      %7425 = vmatprep.mubr.f32.mxu0 0.0
      %7426 = vmatmul.mubr.f32.gmra.mxu0 %v7357
      %v7427 = vpop.f32.mrf.mxu0
      %v7428 = vadd.f32 %v7353, %v7427
      %v7429 = vpop.f32.mrf.mxu0
      %7430 = vdwg.mxu0
      %s7431 = scalar_lea.vmem %s35, 8
      %v7432 = vld [vmem:[%s7431] sm:$0xf]
      %7433 = vrot.lane.b32.xlu0 %v7275, 126
      %v7434 = vpop.permute.xlu0 %7433
      %v7436 = vsel %vm3811, %v7432, 0
      %v7438 = vsel %vm3815, %v7434, 0
      %7440 = vmatprep.subr.mxu0 0.0
      %7441 = vmatpush1.msra.mxu0 0.0
      %7442 = vmatprep.subr.mxu0 0.0
      %7443 = vmatpush1.msra.mxu0 0.0
      %7444 = vmatprep.subr.mxu0 0.0
      %7445 = vmatpush1.msra.mxu0 0.0
      %7446 = vmatprep.subr.mxu0 0.0
      %7447 = vmatpush1.msra.mxu0 0.0
      %7448 = vmatprep.subr.mxu0 0.0
      %7449 = vmatpush1.msra.mxu0 0.0
      %7450 = vmatprep.subr.mxu0 0.0
      %7451 = vmatpush1.msra.mxu0 0.0
      %7452 = vmatprep.subr.mxu0 0.0
      %7453 = vmatpush1.msra.mxu0 0.0
      %7454 = vmatprep.subr.mxu0 0.0
      %7455 = vmatpush1.msra.mxu0 0.0
      %7456 = vmatprep.subr.mxu0 0.0
      %7457 = vmatpush1.msra.mxu0 0.0
      %7458 = vmatprep.subr.mxu0 0.0
      %7459 = vmatpush1.msra.mxu0 0.0
      %7460 = vmatprep.subr.mxu0 0.0
      %7461 = vmatpush1.msra.mxu0 0.0
      %7462 = vmatprep.subr.mxu0 0.0
      %7463 = vmatpush1.msra.mxu0 0.0
      %7464 = vmatprep.subr.mxu0 0.0
      %7465 = vmatpush1.msra.mxu0 0.0
      %7466 = vmatprep.subr.mxu0 0.0
      %7467 = vmatpush1.msra.mxu0 0.0
      %7468 = vmatprep.subr.mxu0 0.0
      %7469 = vmatpush1.msra.mxu0 0.0
      %7470 = vmatprep.subr.mxu0 0.0
      %7471 = vmatpush1.msra.mxu0 %v7438
      %7472 = vmatprep.subr.mxu0 0.0
      %7473 = vmatpush2.msra.mxu0 0.0
      %7474 = vmatprep.subr.mxu0 0.0
      %7475 = vmatpush2.msra.mxu0 0.0
      %7476 = vmatprep.subr.mxu0 0.0
      %7477 = vmatpush2.msra.mxu0 0.0
      %7478 = vmatprep.subr.mxu0 0.0
      %7479 = vmatpush2.msra.mxu0 0.0
      %7480 = vmatprep.subr.mxu0 0.0
      %7481 = vmatpush2.msra.mxu0 0.0
      %7482 = vmatprep.subr.mxu0 0.0
      %7483 = vmatpush2.msra.mxu0 0.0
      %7484 = vmatprep.subr.mxu0 0.0
      %7485 = vmatpush2.msra.mxu0 0.0
      %7486 = vmatprep.subr.mxu0 0.0
      %7487 = vmatpush2.msra.mxu0 0.0
      %7488 = vmatprep.subr.mxu0 0.0
      %7489 = vmatpush2.msra.mxu0 0.0
      %7490 = vmatprep.subr.mxu0 0.0
      %7491 = vmatpush2.msra.mxu0 0.0
      %7492 = vmatprep.subr.mxu0 0.0
      %7493 = vmatpush2.msra.mxu0 0.0
      %7494 = vmatprep.subr.mxu0 0.0
      %7495 = vmatpush2.msra.mxu0 0.0
      %7496 = vmatprep.subr.mxu0 0.0
      %7497 = vmatpush2.msra.mxu0 0.0
      %7498 = vmatprep.subr.mxu0 0.0
      %7499 = vmatpush2.msra.mxu0 0.0
      %7500 = vmatprep.subr.mxu0 0.0
      %7501 = vmatpush2.msra.mxu0 0.0
      %7502 = vmatprep.subr.mxu0 0.0
      %7503 = vmatpush2.msra.mxu0 0.0
      %7504 = vmatprep.mubr.f32.mxu0 0.0
      %7505 = vmatmul.mubr.f32.gmra.mxu0 %v7436
      %v7506 = vpop.f32.mrf.mxu0
      %v7507 = vadd.f32 0.0, %v7506
      %v7508 = vpop.f32.mrf.mxu0
      %7509 = vdwg.mxu0
      %v7510 = vadd.f32 %v7428, %v7507
      %s7511 = scalar_lea.vmem %s35, 12
      %v7512 = vld [vmem:[%s7511] sm:$0xf]
      %7513 = vrot.lane.b32.xlu0 %v7275, 124
      %v7514 = vpop.permute.xlu0 %7513
      %v7516 = vsel %vm3811, %v7512, 0
      %v7518 = vsel %vm3815, %v7514, 0
      %7520 = vmatprep.subr.mxu0 0.0
      %7521 = vmatpush1.msra.mxu0 0.0
      %7522 = vmatprep.subr.mxu0 0.0
      %7523 = vmatpush1.msra.mxu0 0.0
      %7524 = vmatprep.subr.mxu0 0.0
      %7525 = vmatpush1.msra.mxu0 0.0
      %7526 = vmatprep.subr.mxu0 0.0
      %7527 = vmatpush1.msra.mxu0 0.0
      %7528 = vmatprep.subr.mxu0 0.0
      %7529 = vmatpush1.msra.mxu0 0.0
      %7530 = vmatprep.subr.mxu0 0.0
      %7531 = vmatpush1.msra.mxu0 0.0
      %7532 = vmatprep.subr.mxu0 0.0
      %7533 = vmatpush1.msra.mxu0 0.0
      %7534 = vmatprep.subr.mxu0 0.0
      %7535 = vmatpush1.msra.mxu0 0.0
      %7536 = vmatprep.subr.mxu0 0.0
      %7537 = vmatpush1.msra.mxu0 0.0
      %7538 = vmatprep.subr.mxu0 0.0
      %7539 = vmatpush1.msra.mxu0 0.0
      %7540 = vmatprep.subr.mxu0 0.0
      %7541 = vmatpush1.msra.mxu0 0.0
      %7542 = vmatprep.subr.mxu0 0.0
      %7543 = vmatpush1.msra.mxu0 0.0
      %7544 = vmatprep.subr.mxu0 0.0
      %7545 = vmatpush1.msra.mxu0 0.0
      %7546 = vmatprep.subr.mxu0 0.0
      %7547 = vmatpush1.msra.mxu0 0.0
      %7548 = vmatprep.subr.mxu0 0.0
      %7549 = vmatpush1.msra.mxu0 0.0
      %7550 = vmatprep.subr.mxu0 0.0
      %7551 = vmatpush1.msra.mxu0 %v7518
      %7552 = vmatprep.subr.mxu0 0.0
      %7553 = vmatpush2.msra.mxu0 0.0
      %7554 = vmatprep.subr.mxu0 0.0
      %7555 = vmatpush2.msra.mxu0 0.0
      %7556 = vmatprep.subr.mxu0 0.0
      %7557 = vmatpush2.msra.mxu0 0.0
      %7558 = vmatprep.subr.mxu0 0.0
      %7559 = vmatpush2.msra.mxu0 0.0
      %7560 = vmatprep.subr.mxu0 0.0
      %7561 = vmatpush2.msra.mxu0 0.0
      %7562 = vmatprep.subr.mxu0 0.0
      %7563 = vmatpush2.msra.mxu0 0.0
      %7564 = vmatprep.subr.mxu0 0.0
      %7565 = vmatpush2.msra.mxu0 0.0
      %7566 = vmatprep.subr.mxu0 0.0
      %7567 = vmatpush2.msra.mxu0 0.0
      %7568 = vmatprep.subr.mxu0 0.0
      %7569 = vmatpush2.msra.mxu0 0.0
      %7570 = vmatprep.subr.mxu0 0.0
      %7571 = vmatpush2.msra.mxu0 0.0
      %7572 = vmatprep.subr.mxu0 0.0
      %7573 = vmatpush2.msra.mxu0 0.0
      %7574 = vmatprep.subr.mxu0 0.0
      %7575 = vmatpush2.msra.mxu0 0.0
      %7576 = vmatprep.subr.mxu0 0.0
      %7577 = vmatpush2.msra.mxu0 0.0
      %7578 = vmatprep.subr.mxu0 0.0
      %7579 = vmatpush2.msra.mxu0 0.0
      %7580 = vmatprep.subr.mxu0 0.0
      %7581 = vmatpush2.msra.mxu0 0.0
      %7582 = vmatprep.subr.mxu0 0.0
      %7583 = vmatpush2.msra.mxu0 0.0
      %7584 = vmatprep.mubr.f32.mxu0 0.0
      %7585 = vmatmul.mubr.f32.gmra.mxu0 %v7516
      %v7586 = vpop.f32.mrf.mxu0
      %v7587 = vadd.f32 0.0, %v7586
      %v7588 = vpop.f32.mrf.mxu0
      %7589 = vdwg.mxu0
      %v7590 = vadd.f32 %v7510, %v7587
      %s7591 = scalar_lea.vmem %s35, 16
      %v7592 = vld [vmem:[%s7591] sm:$0xf]
      %7593 = vrot.lane.b32.xlu0 %v7275, 123
      %v7594 = vpop.permute.xlu0 %7593
      %v7596 = vsel %vm3811, %v7592, 0
      %v7598 = vsel %vm3815, %v7594, 0
      %7600 = vmatprep.subr.mxu0 0.0
      %7601 = vmatpush1.msra.mxu0 0.0
      %7602 = vmatprep.subr.mxu0 0.0
      %7603 = vmatpush1.msra.mxu0 0.0
      %7604 = vmatprep.subr.mxu0 0.0
      %7605 = vmatpush1.msra.mxu0 0.0
      %7606 = vmatprep.subr.mxu0 0.0
      %7607 = vmatpush1.msra.mxu0 0.0
      %7608 = vmatprep.subr.mxu0 0.0
      %7609 = vmatpush1.msra.mxu0 0.0
      %7610 = vmatprep.subr.mxu0 0.0
      %7611 = vmatpush1.msra.mxu0 0.0
      %7612 = vmatprep.subr.mxu0 0.0
      %7613 = vmatpush1.msra.mxu0 0.0
      %7614 = vmatprep.subr.mxu0 0.0
      %7615 = vmatpush1.msra.mxu0 0.0
      %7616 = vmatprep.subr.mxu0 0.0
      %7617 = vmatpush1.msra.mxu0 0.0
      %7618 = vmatprep.subr.mxu0 0.0
      %7619 = vmatpush1.msra.mxu0 0.0
      %7620 = vmatprep.subr.mxu0 0.0
      %7621 = vmatpush1.msra.mxu0 0.0
      %7622 = vmatprep.subr.mxu0 0.0
      %7623 = vmatpush1.msra.mxu0 0.0
      %7624 = vmatprep.subr.mxu0 0.0
      %7625 = vmatpush1.msra.mxu0 0.0
      %7626 = vmatprep.subr.mxu0 0.0
      %7627 = vmatpush1.msra.mxu0 0.0
      %7628 = vmatprep.subr.mxu0 0.0
      %7629 = vmatpush1.msra.mxu0 0.0
      %7630 = vmatprep.subr.mxu0 0.0
      %7631 = vmatpush1.msra.mxu0 %v7598
      %7632 = vmatprep.subr.mxu0 0.0
      %7633 = vmatpush2.msra.mxu0 0.0
      %7634 = vmatprep.subr.mxu0 0.0
      %7635 = vmatpush2.msra.mxu0 0.0
      %7636 = vmatprep.subr.mxu0 0.0
      %7637 = vmatpush2.msra.mxu0 0.0
      %7638 = vmatprep.subr.mxu0 0.0
      %7639 = vmatpush2.msra.mxu0 0.0
      %7640 = vmatprep.subr.mxu0 0.0
      %7641 = vmatpush2.msra.mxu0 0.0
      %7642 = vmatprep.subr.mxu0 0.0
      %7643 = vmatpush2.msra.mxu0 0.0
      %7644 = vmatprep.subr.mxu0 0.0
      %7645 = vmatpush2.msra.mxu0 0.0
      %7646 = vmatprep.subr.mxu0 0.0
      %7647 = vmatpush2.msra.mxu0 0.0
      %7648 = vmatprep.subr.mxu0 0.0
      %7649 = vmatpush2.msra.mxu0 0.0
      %7650 = vmatprep.subr.mxu0 0.0
      %7651 = vmatpush2.msra.mxu0 0.0
      %7652 = vmatprep.subr.mxu0 0.0
      %7653 = vmatpush2.msra.mxu0 0.0
      %7654 = vmatprep.subr.mxu0 0.0
      %7655 = vmatpush2.msra.mxu0 0.0
      %7656 = vmatprep.subr.mxu0 0.0
      %7657 = vmatpush2.msra.mxu0 0.0
      %7658 = vmatprep.subr.mxu0 0.0
      %7659 = vmatpush2.msra.mxu0 0.0
      %7660 = vmatprep.subr.mxu0 0.0
      %7661 = vmatpush2.msra.mxu0 0.0
      %7662 = vmatprep.subr.mxu0 0.0
      %7663 = vmatpush2.msra.mxu0 0.0
      %7664 = vmatprep.mubr.f32.mxu0 0.0
      %7665 = vmatmul.mubr.f32.gmra.mxu0 %v7596
      %v7666 = vpop.f32.mrf.mxu0
      %v7667 = vadd.f32 0.0, %v7666
      %v7668 = vpop.f32.mrf.mxu0
      %7669 = vdwg.mxu0
      %v7670 = vadd.f32 %v7590, %v7667
      %s7671 = scalar_lea.vmem %s35, 20
      %v7672 = vld [vmem:[%s7671] sm:$0xf]
      %7673 = vrot.lane.b32.xlu0 %v7275, 122
      %v7674 = vpop.permute.xlu0 %7673
      %v7676 = vsel %vm3811, %v7672, 0
      %v7678 = vsel %vm3815, %v7674, 0
      %7680 = vmatprep.subr.mxu0 0.0
      %7681 = vmatpush1.msra.mxu0 0.0
      %7682 = vmatprep.subr.mxu0 0.0
      %7683 = vmatpush1.msra.mxu0 0.0
      %7684 = vmatprep.subr.mxu0 0.0
      %7685 = vmatpush1.msra.mxu0 0.0
      %7686 = vmatprep.subr.mxu0 0.0
      %7687 = vmatpush1.msra.mxu0 0.0
      %7688 = vmatprep.subr.mxu0 0.0
      %7689 = vmatpush1.msra.mxu0 0.0
      %7690 = vmatprep.subr.mxu0 0.0
      %7691 = vmatpush1.msra.mxu0 0.0
      %7692 = vmatprep.subr.mxu0 0.0
      %7693 = vmatpush1.msra.mxu0 0.0
      %7694 = vmatprep.subr.mxu0 0.0
      %7695 = vmatpush1.msra.mxu0 0.0
      %7696 = vmatprep.subr.mxu0 0.0
      %7697 = vmatpush1.msra.mxu0 0.0
      %7698 = vmatprep.subr.mxu0 0.0
      %7699 = vmatpush1.msra.mxu0 0.0
      %7700 = vmatprep.subr.mxu0 0.0
      %7701 = vmatpush1.msra.mxu0 0.0
      %7702 = vmatprep.subr.mxu0 0.0
      %7703 = vmatpush1.msra.mxu0 0.0
      %7704 = vmatprep.subr.mxu0 0.0
      %7705 = vmatpush1.msra.mxu0 0.0
      %7706 = vmatprep.subr.mxu0 0.0
      %7707 = vmatpush1.msra.mxu0 0.0
      %7708 = vmatprep.subr.mxu0 0.0
      %7709 = vmatpush1.msra.mxu0 0.0
      %7710 = vmatprep.subr.mxu0 0.0
      %7711 = vmatpush1.msra.mxu0 %v7678
      %7712 = vmatprep.subr.mxu0 0.0
      %7713 = vmatpush2.msra.mxu0 0.0
      %7714 = vmatprep.subr.mxu0 0.0
      %7715 = vmatpush2.msra.mxu0 0.0
      %7716 = vmatprep.subr.mxu0 0.0
      %7717 = vmatpush2.msra.mxu0 0.0
      %7718 = vmatprep.subr.mxu0 0.0
      %7719 = vmatpush2.msra.mxu0 0.0
      %7720 = vmatprep.subr.mxu0 0.0
      %7721 = vmatpush2.msra.mxu0 0.0
      %7722 = vmatprep.subr.mxu0 0.0
      %7723 = vmatpush2.msra.mxu0 0.0
      %7724 = vmatprep.subr.mxu0 0.0
      %7725 = vmatpush2.msra.mxu0 0.0
      %7726 = vmatprep.subr.mxu0 0.0
      %7727 = vmatpush2.msra.mxu0 0.0
      %7728 = vmatprep.subr.mxu0 0.0
      %7729 = vmatpush2.msra.mxu0 0.0
      %7730 = vmatprep.subr.mxu0 0.0
      %7731 = vmatpush2.msra.mxu0 0.0
      %7732 = vmatprep.subr.mxu0 0.0
      %7733 = vmatpush2.msra.mxu0 0.0
      %7734 = vmatprep.subr.mxu0 0.0
      %7735 = vmatpush2.msra.mxu0 0.0
      %7736 = vmatprep.subr.mxu0 0.0
      %7737 = vmatpush2.msra.mxu0 0.0
      %7738 = vmatprep.subr.mxu0 0.0
      %7739 = vmatpush2.msra.mxu0 0.0
      %7740 = vmatprep.subr.mxu0 0.0
      %7741 = vmatpush2.msra.mxu0 0.0
      %7742 = vmatprep.subr.mxu0 0.0
      %7743 = vmatpush2.msra.mxu0 0.0
      %7744 = vmatprep.mubr.f32.mxu0 0.0
      %7745 = vmatmul.mubr.f32.gmra.mxu0 %v7676
      %v7746 = vpop.f32.mrf.mxu0
      %v7747 = vadd.f32 0.0, %v7746
      %v7748 = vpop.f32.mrf.mxu0
      %7749 = vdwg.mxu0
      %v7750 = vadd.f32 %v7670, %v7747
      %s7751 = scalar_lea.vmem %s35, 24
      %v7752 = vld [vmem:[%s7751] sm:$0xf]
      %7753 = vrot.lane.b32.xlu0 %v7275, 120
      %v7754 = vpop.permute.xlu0 %7753
      %v7756 = vsel %vm3811, %v7752, 0
      %v7758 = vsel %vm3815, %v7754, 0
      %7760 = vmatprep.subr.mxu0 0.0
      %7761 = vmatpush1.msra.mxu0 0.0
      %7762 = vmatprep.subr.mxu0 0.0
      %7763 = vmatpush1.msra.mxu0 0.0
      %7764 = vmatprep.subr.mxu0 0.0
      %7765 = vmatpush1.msra.mxu0 0.0
      %7766 = vmatprep.subr.mxu0 0.0
      %7767 = vmatpush1.msra.mxu0 0.0
      %7768 = vmatprep.subr.mxu0 0.0
      %7769 = vmatpush1.msra.mxu0 0.0
      %7770 = vmatprep.subr.mxu0 0.0
      %7771 = vmatpush1.msra.mxu0 0.0
      %7772 = vmatprep.subr.mxu0 0.0
      %7773 = vmatpush1.msra.mxu0 0.0
      %7774 = vmatprep.subr.mxu0 0.0
      %7775 = vmatpush1.msra.mxu0 0.0
      %7776 = vmatprep.subr.mxu0 0.0
      %7777 = vmatpush1.msra.mxu0 0.0
      %7778 = vmatprep.subr.mxu0 0.0
      %7779 = vmatpush1.msra.mxu0 0.0
      %7780 = vmatprep.subr.mxu0 0.0
      %7781 = vmatpush1.msra.mxu0 0.0
      %7782 = vmatprep.subr.mxu0 0.0
      %7783 = vmatpush1.msra.mxu0 0.0
      %7784 = vmatprep.subr.mxu0 0.0
      %7785 = vmatpush1.msra.mxu0 0.0
      %7786 = vmatprep.subr.mxu0 0.0
      %7787 = vmatpush1.msra.mxu0 0.0
      %7788 = vmatprep.subr.mxu0 0.0
      %7789 = vmatpush1.msra.mxu0 0.0
      %7790 = vmatprep.subr.mxu0 0.0
      %7791 = vmatpush1.msra.mxu0 %v7758
      %7792 = vmatprep.subr.mxu0 0.0
      %7793 = vmatpush2.msra.mxu0 0.0
      %7794 = vmatprep.subr.mxu0 0.0
      %7795 = vmatpush2.msra.mxu0 0.0
      %7796 = vmatprep.subr.mxu0 0.0
      %7797 = vmatpush2.msra.mxu0 0.0
      %7798 = vmatprep.subr.mxu0 0.0
      %7799 = vmatpush2.msra.mxu0 0.0
      %7800 = vmatprep.subr.mxu0 0.0
      %7801 = vmatpush2.msra.mxu0 0.0
      %7802 = vmatprep.subr.mxu0 0.0
      %7803 = vmatpush2.msra.mxu0 0.0
      %7804 = vmatprep.subr.mxu0 0.0
      %7805 = vmatpush2.msra.mxu0 0.0
      %7806 = vmatprep.subr.mxu0 0.0
      %7807 = vmatpush2.msra.mxu0 0.0
      %7808 = vmatprep.subr.mxu0 0.0
      %7809 = vmatpush2.msra.mxu0 0.0
      %7810 = vmatprep.subr.mxu0 0.0
      %7811 = vmatpush2.msra.mxu0 0.0
      %7812 = vmatprep.subr.mxu0 0.0
      %7813 = vmatpush2.msra.mxu0 0.0
      %7814 = vmatprep.subr.mxu0 0.0
      %7815 = vmatpush2.msra.mxu0 0.0
      %7816 = vmatprep.subr.mxu0 0.0
      %7817 = vmatpush2.msra.mxu0 0.0
      %7818 = vmatprep.subr.mxu0 0.0
      %7819 = vmatpush2.msra.mxu0 0.0
      %7820 = vmatprep.subr.mxu0 0.0
      %7821 = vmatpush2.msra.mxu0 0.0
      %7822 = vmatprep.subr.mxu0 0.0
      %7823 = vmatpush2.msra.mxu0 0.0
      %7824 = vmatprep.mubr.f32.mxu0 0.0
      %7825 = vmatmul.mubr.f32.gmra.mxu0 %v7756
      %v7826 = vpop.f32.mrf.mxu0
      %v7827 = vadd.f32 0.0, %v7826
      %v7828 = vpop.f32.mrf.mxu0
      %7829 = vdwg.mxu0
      %v7830 = vadd.f32 %v7750, %v7827
      %s7831 = scalar_lea.vmem %s35, 28
      %v7832 = vld [vmem:[%s7831] sm:$0xf]
      %7833 = vrot.lane.b32.xlu0 %v7275, 119
      %v7834 = vpop.permute.xlu0 %7833
      %v7836 = vsel %vm3811, %v7832, 0
      %v7838 = vsel %vm3815, %v7834, 0
      %7840 = vmatprep.subr.mxu0 0.0
      %7841 = vmatpush1.msra.mxu0 0.0
      %7842 = vmatprep.subr.mxu0 0.0
      %7843 = vmatpush1.msra.mxu0 0.0
      %7844 = vmatprep.subr.mxu0 0.0
      %7845 = vmatpush1.msra.mxu0 0.0
      %7846 = vmatprep.subr.mxu0 0.0
      %7847 = vmatpush1.msra.mxu0 0.0
      %7848 = vmatprep.subr.mxu0 0.0
      %7849 = vmatpush1.msra.mxu0 0.0
      %7850 = vmatprep.subr.mxu0 0.0
      %7851 = vmatpush1.msra.mxu0 0.0
      %7852 = vmatprep.subr.mxu0 0.0
      %7853 = vmatpush1.msra.mxu0 0.0
      %7854 = vmatprep.subr.mxu0 0.0
      %7855 = vmatpush1.msra.mxu0 0.0
      %7856 = vmatprep.subr.mxu0 0.0
      %7857 = vmatpush1.msra.mxu0 0.0
      %7858 = vmatprep.subr.mxu0 0.0
      %7859 = vmatpush1.msra.mxu0 0.0
      %7860 = vmatprep.subr.mxu0 0.0
      %7861 = vmatpush1.msra.mxu0 0.0
      %7862 = vmatprep.subr.mxu0 0.0
      %7863 = vmatpush1.msra.mxu0 0.0
      %7864 = vmatprep.subr.mxu0 0.0
      %7865 = vmatpush1.msra.mxu0 0.0
      %7866 = vmatprep.subr.mxu0 0.0
      %7867 = vmatpush1.msra.mxu0 0.0
      %7868 = vmatprep.subr.mxu0 0.0
      %7869 = vmatpush1.msra.mxu0 0.0
      %7870 = vmatprep.subr.mxu0 0.0
      %7871 = vmatpush1.msra.mxu0 %v7838
      %7872 = vmatprep.subr.mxu0 0.0
      %7873 = vmatpush2.msra.mxu0 0.0
      %7874 = vmatprep.subr.mxu0 0.0
      %7875 = vmatpush2.msra.mxu0 0.0
      %7876 = vmatprep.subr.mxu0 0.0
      %7877 = vmatpush2.msra.mxu0 0.0
      %7878 = vmatprep.subr.mxu0 0.0
      %7879 = vmatpush2.msra.mxu0 0.0
      %7880 = vmatprep.subr.mxu0 0.0
      %7881 = vmatpush2.msra.mxu0 0.0
      %7882 = vmatprep.subr.mxu0 0.0
      %7883 = vmatpush2.msra.mxu0 0.0
      %7884 = vmatprep.subr.mxu0 0.0
      %7885 = vmatpush2.msra.mxu0 0.0
      %7886 = vmatprep.subr.mxu0 0.0
      %7887 = vmatpush2.msra.mxu0 0.0
      %7888 = vmatprep.subr.mxu0 0.0
      %7889 = vmatpush2.msra.mxu0 0.0
      %7890 = vmatprep.subr.mxu0 0.0
      %7891 = vmatpush2.msra.mxu0 0.0
      %7892 = vmatprep.subr.mxu0 0.0
      %7893 = vmatpush2.msra.mxu0 0.0
      %7894 = vmatprep.subr.mxu0 0.0
      %7895 = vmatpush2.msra.mxu0 0.0
      %7896 = vmatprep.subr.mxu0 0.0
      %7897 = vmatpush2.msra.mxu0 0.0
      %7898 = vmatprep.subr.mxu0 0.0
      %7899 = vmatpush2.msra.mxu0 0.0
      %7900 = vmatprep.subr.mxu0 0.0
      %7901 = vmatpush2.msra.mxu0 0.0
      %7902 = vmatprep.subr.mxu0 0.0
      %7903 = vmatpush2.msra.mxu0 0.0
      %7904 = vmatprep.mubr.f32.mxu0 0.0
      %7905 = vmatmul.mubr.f32.gmra.mxu0 %v7836
      %v7906 = vpop.f32.mrf.mxu0
      %v7907 = vadd.f32 0.0, %v7906
      %v7908 = vpop.f32.mrf.mxu0
      %7909 = vdwg.mxu0
      %v7910 = vadd.f32 %v7830, %v7907
      %s7911 = scalar_lea.vmem %s35, 32
      %v7912 = vld [vmem:[%s7911] sm:$0xf]
      %7913 = vrot.lane.b32.xlu0 %v7275, 118
      %v7914 = vpop.permute.xlu0 %7913
      %v7916 = vsel %vm3811, %v7912, 0
      %v7918 = vsel %vm3815, %v7914, 0
      %7920 = vmatprep.subr.mxu0 0.0
      %7921 = vmatpush1.msra.mxu0 0.0
      %7922 = vmatprep.subr.mxu0 0.0
      %7923 = vmatpush1.msra.mxu0 0.0
      %7924 = vmatprep.subr.mxu0 0.0
      %7925 = vmatpush1.msra.mxu0 0.0
      %7926 = vmatprep.subr.mxu0 0.0
      %7927 = vmatpush1.msra.mxu0 0.0
      %7928 = vmatprep.subr.mxu0 0.0
      %7929 = vmatpush1.msra.mxu0 0.0
      %7930 = vmatprep.subr.mxu0 0.0
      %7931 = vmatpush1.msra.mxu0 0.0
      %7932 = vmatprep.subr.mxu0 0.0
      %7933 = vmatpush1.msra.mxu0 0.0
      %7934 = vmatprep.subr.mxu0 0.0
      %7935 = vmatpush1.msra.mxu0 0.0
      %7936 = vmatprep.subr.mxu0 0.0
      %7937 = vmatpush1.msra.mxu0 0.0
      %7938 = vmatprep.subr.mxu0 0.0
      %7939 = vmatpush1.msra.mxu0 0.0
      %7940 = vmatprep.subr.mxu0 0.0
      %7941 = vmatpush1.msra.mxu0 0.0
      %7942 = vmatprep.subr.mxu0 0.0
      %7943 = vmatpush1.msra.mxu0 0.0
      %7944 = vmatprep.subr.mxu0 0.0
      %7945 = vmatpush1.msra.mxu0 0.0
      %7946 = vmatprep.subr.mxu0 0.0
      %7947 = vmatpush1.msra.mxu0 0.0
      %7948 = vmatprep.subr.mxu0 0.0
      %7949 = vmatpush1.msra.mxu0 0.0
      %7950 = vmatprep.subr.mxu0 0.0
      %7951 = vmatpush1.msra.mxu0 %v7918
      %7952 = vmatprep.subr.mxu0 0.0
      %7953 = vmatpush2.msra.mxu0 0.0
      %7954 = vmatprep.subr.mxu0 0.0
      %7955 = vmatpush2.msra.mxu0 0.0
      %7956 = vmatprep.subr.mxu0 0.0
      %7957 = vmatpush2.msra.mxu0 0.0
      %7958 = vmatprep.subr.mxu0 0.0
      %7959 = vmatpush2.msra.mxu0 0.0
      %7960 = vmatprep.subr.mxu0 0.0
      %7961 = vmatpush2.msra.mxu0 0.0
      %7962 = vmatprep.subr.mxu0 0.0
      %7963 = vmatpush2.msra.mxu0 0.0
      %7964 = vmatprep.subr.mxu0 0.0
      %7965 = vmatpush2.msra.mxu0 0.0
      %7966 = vmatprep.subr.mxu0 0.0
      %7967 = vmatpush2.msra.mxu0 0.0
      %7968 = vmatprep.subr.mxu0 0.0
      %7969 = vmatpush2.msra.mxu0 0.0
      %7970 = vmatprep.subr.mxu0 0.0
      %7971 = vmatpush2.msra.mxu0 0.0
      %7972 = vmatprep.subr.mxu0 0.0
      %7973 = vmatpush2.msra.mxu0 0.0
      %7974 = vmatprep.subr.mxu0 0.0
      %7975 = vmatpush2.msra.mxu0 0.0
      %7976 = vmatprep.subr.mxu0 0.0
      %7977 = vmatpush2.msra.mxu0 0.0
      %7978 = vmatprep.subr.mxu0 0.0
      %7979 = vmatpush2.msra.mxu0 0.0
      %7980 = vmatprep.subr.mxu0 0.0
      %7981 = vmatpush2.msra.mxu0 0.0
      %7982 = vmatprep.subr.mxu0 0.0
      %7983 = vmatpush2.msra.mxu0 0.0
      %7984 = vmatprep.mubr.f32.mxu0 0.0
      %7985 = vmatmul.mubr.f32.gmra.mxu0 %v7916
      %v7986 = vpop.f32.mrf.mxu0
      %v7987 = vadd.f32 0.0, %v7986
      %v7988 = vpop.f32.mrf.mxu0
      %7989 = vdwg.mxu0
      %v7990 = vadd.f32 %v7910, %v7987
      %v7991 = vld [vmem:[%s37] sm:$0xf]
      %7993 = vset.pattern.permute.xlu0 0
      %7994 = vperm.xlu0 %7993, %v7991
      %v7995 = vpop.permute.xlu0 %7994
      %v7997 = vadd.f32 %v7990, %v7995
      %v7998 = vmax.f32 %v7997, 0.0
      %v7999 = vld [vmem:[%s45] sm:$0xff]
      %v8001 = vsel %vm7199, %v7998, 0
      %8003 = vmatprep.subr.mxu0 0.0
      %8004 = vmatpush1.msra.mxu0 0.0
      %8005 = vmatprep.subr.mxu0 0.0
      %8006 = vmatpush1.msra.mxu0 0.0
      %8007 = vmatprep.subr.mxu0 0.0
      %8008 = vmatpush1.msra.mxu0 0.0
      %8009 = vmatprep.subr.mxu0 0.0
      %8010 = vmatpush1.msra.mxu0 0.0
      %8011 = vmatprep.subr.mxu0 0.0
      %8012 = vmatpush1.msra.mxu0 0.0
      %8013 = vmatprep.subr.mxu0 0.0
      %8014 = vmatpush1.msra.mxu0 0.0
      %8015 = vmatprep.subr.mxu0 0.0
      %8016 = vmatpush1.msra.mxu0 0.0
      %8017 = vmatprep.subr.mxu0 0.0
      %8018 = vmatpush1.msra.mxu0 0.0
      %8019 = vmatprep.subr.mxu0 0.0
      %8020 = vmatpush1.msra.mxu0 0.0
      %8021 = vmatprep.subr.mxu0 0.0
      %8022 = vmatpush1.msra.mxu0 0.0
      %8023 = vmatprep.subr.mxu0 0.0
      %8024 = vmatpush1.msra.mxu0 0.0
      %8025 = vmatprep.subr.mxu0 0.0
      %8026 = vmatpush1.msra.mxu0 0.0
      %8027 = vmatprep.subr.mxu0 0.0
      %8028 = vmatpush1.msra.mxu0 0.0
      %8029 = vmatprep.subr.mxu0 0.0
      %8030 = vmatpush1.msra.mxu0 0.0
      %8031 = vmatprep.subr.mxu0 0.0
      %8032 = vmatpush1.msra.mxu0 0.0
      %8033 = vmatprep.subr.mxu0 0.0
      %8034 = vmatpush1.msra.mxu0 %v7999
      %8035 = vmatprep.subr.mxu0 0.0
      %8036 = vmatpush2.msra.mxu0 0.0
      %8037 = vmatprep.subr.mxu0 0.0
      %8038 = vmatpush2.msra.mxu0 0.0
      %8039 = vmatprep.subr.mxu0 0.0
      %8040 = vmatpush2.msra.mxu0 0.0
      %8041 = vmatprep.subr.mxu0 0.0
      %8042 = vmatpush2.msra.mxu0 0.0
      %8043 = vmatprep.subr.mxu0 0.0
      %8044 = vmatpush2.msra.mxu0 0.0
      %8045 = vmatprep.subr.mxu0 0.0
      %8046 = vmatpush2.msra.mxu0 0.0
      %8047 = vmatprep.subr.mxu0 0.0
      %8048 = vmatpush2.msra.mxu0 0.0
      %8049 = vmatprep.subr.mxu0 0.0
      %8050 = vmatpush2.msra.mxu0 0.0
      %8051 = vmatprep.subr.mxu0 0.0
      %8052 = vmatpush2.msra.mxu0 0.0
      %8053 = vmatprep.subr.mxu0 0.0
      %8054 = vmatpush2.msra.mxu0 0.0
      %8055 = vmatprep.subr.mxu0 0.0
      %8056 = vmatpush2.msra.mxu0 0.0
      %8057 = vmatprep.subr.mxu0 0.0
      %8058 = vmatpush2.msra.mxu0 0.0
      %8059 = vmatprep.subr.mxu0 0.0
      %8060 = vmatpush2.msra.mxu0 0.0
      %8061 = vmatprep.subr.mxu0 0.0
      %8062 = vmatpush2.msra.mxu0 0.0
      %8063 = vmatprep.subr.mxu0 0.0
      %8064 = vmatpush2.msra.mxu0 0.0
      %8065 = vmatprep.subr.mxu0 0.0
      %8066 = vmatpush2.msra.mxu0 0.0
      %8067 = vmatprep.mubr.f32.mxu0 0.0
      %8068 = vmatmul.mubr.f32.gmra.mxu0 %v8001
      %v8069 = vpop.f32.mrf.mxu0
      %v8070 = vadd.f32 0.0, %v8069
      %v8071 = vpop.f32.mrf.mxu0
      %8072 = vdwg.mxu0
      %8073 = vst.msk [vmem:[#allocation6] sm:$0xf] %vm6471, %v8070
      %v8074 = vld [vmem:[%s39] sm:$0xf]
      %v8075 = vld [vmem:[#allocation6] sm:$0xf]
      %s8076 = scalar_lea.vmem %s39, 4
      %v8077 = vld [vmem:[%s8076] sm:$0xf]
      %8079 = vrot.lane.b32.xlu0 %v8075, 127
      %v8080 = vpop.permute.xlu0 %8079
      %v8082 = vsel %vm3811, %v8077, 0
      %v8084 = vsel %vm3815, %v8080, 0
      %8086 = vmatprep.subr.mxu0 0.0
      %8087 = vmatpush1.msra.mxu0 0.0
      %8088 = vmatprep.subr.mxu0 0.0
      %8089 = vmatpush1.msra.mxu0 0.0
      %8090 = vmatprep.subr.mxu0 0.0
      %8091 = vmatpush1.msra.mxu0 0.0
      %8092 = vmatprep.subr.mxu0 0.0
      %8093 = vmatpush1.msra.mxu0 0.0
      %8094 = vmatprep.subr.mxu0 0.0
      %8095 = vmatpush1.msra.mxu0 0.0
      %8096 = vmatprep.subr.mxu0 0.0
      %8097 = vmatpush1.msra.mxu0 0.0
      %8098 = vmatprep.subr.mxu0 0.0
      %8099 = vmatpush1.msra.mxu0 0.0
      %8100 = vmatprep.subr.mxu0 0.0
      %8101 = vmatpush1.msra.mxu0 0.0
      %8102 = vmatprep.subr.mxu0 0.0
      %8103 = vmatpush1.msra.mxu0 0.0
      %8104 = vmatprep.subr.mxu0 0.0
      %8105 = vmatpush1.msra.mxu0 0.0
      %8106 = vmatprep.subr.mxu0 0.0
      %8107 = vmatpush1.msra.mxu0 0.0
      %8108 = vmatprep.subr.mxu0 0.0
      %8109 = vmatpush1.msra.mxu0 0.0
      %8110 = vmatprep.subr.mxu0 0.0
      %8111 = vmatpush1.msra.mxu0 0.0
      %8112 = vmatprep.subr.mxu0 0.0
      %8113 = vmatpush1.msra.mxu0 0.0
      %8114 = vmatprep.subr.mxu0 0.0
      %8115 = vmatpush1.msra.mxu0 0.0
      %8116 = vmatprep.subr.mxu0 0.0
      %8117 = vmatpush1.msra.mxu0 %v8084
      %8118 = vmatprep.subr.mxu0 0.0
      %8119 = vmatpush2.msra.mxu0 0.0
      %8120 = vmatprep.subr.mxu0 0.0
      %8121 = vmatpush2.msra.mxu0 0.0
      %8122 = vmatprep.subr.mxu0 0.0
      %8123 = vmatpush2.msra.mxu0 0.0
      %8124 = vmatprep.subr.mxu0 0.0
      %8125 = vmatpush2.msra.mxu0 0.0
      %8126 = vmatprep.subr.mxu0 0.0
      %8127 = vmatpush2.msra.mxu0 0.0
      %8128 = vmatprep.subr.mxu0 0.0
      %8129 = vmatpush2.msra.mxu0 0.0
      %8130 = vmatprep.subr.mxu0 0.0
      %8131 = vmatpush2.msra.mxu0 0.0
      %8132 = vmatprep.subr.mxu0 0.0
      %8133 = vmatpush2.msra.mxu0 0.0
      %8134 = vmatprep.subr.mxu0 0.0
      %8135 = vmatpush2.msra.mxu0 0.0
      %8136 = vmatprep.subr.mxu0 0.0
      %8137 = vmatpush2.msra.mxu0 0.0
      %8138 = vmatprep.subr.mxu0 0.0
      %8139 = vmatpush2.msra.mxu0 0.0
      %8140 = vmatprep.subr.mxu0 0.0
      %8141 = vmatpush2.msra.mxu0 0.0
      %8142 = vmatprep.subr.mxu0 0.0
      %8143 = vmatpush2.msra.mxu0 0.0
      %8144 = vmatprep.subr.mxu0 0.0
      %8145 = vmatpush2.msra.mxu0 0.0
      %8146 = vmatprep.subr.mxu0 0.0
      %8147 = vmatpush2.msra.mxu0 0.0
      %8148 = vmatprep.subr.mxu0 0.0
      %8149 = vmatpush2.msra.mxu0 0.0
      %8150 = vmatprep.mubr.f32.mxu0 0.0
      %8151 = vmatmul.mubr.f32.gmra.mxu0 %v8082
      %v8152 = vpop.f32.mrf.mxu0
      %v8153 = vadd.f32 0.0, %v8152
      %v8154 = vpop.f32.mrf.mxu0
      %8155 = vdwg.mxu0
      %v8157 = vsel %vm3811, %v8074, 0
      %v8159 = vsel %vm3815, %v8075, 0
      %8161 = vmatprep.subr.mxu0 0.0
      %8162 = vmatpush1.msra.mxu0 0.0
      %8163 = vmatprep.subr.mxu0 0.0
      %8164 = vmatpush1.msra.mxu0 0.0
      %8165 = vmatprep.subr.mxu0 0.0
      %8166 = vmatpush1.msra.mxu0 0.0
      %8167 = vmatprep.subr.mxu0 0.0
      %8168 = vmatpush1.msra.mxu0 0.0
      %8169 = vmatprep.subr.mxu0 0.0
      %8170 = vmatpush1.msra.mxu0 0.0
      %8171 = vmatprep.subr.mxu0 0.0
      %8172 = vmatpush1.msra.mxu0 0.0
      %8173 = vmatprep.subr.mxu0 0.0
      %8174 = vmatpush1.msra.mxu0 0.0
      %8175 = vmatprep.subr.mxu0 0.0
      %8176 = vmatpush1.msra.mxu0 0.0
      %8177 = vmatprep.subr.mxu0 0.0
      %8178 = vmatpush1.msra.mxu0 0.0
      %8179 = vmatprep.subr.mxu0 0.0
      %8180 = vmatpush1.msra.mxu0 0.0
      %8181 = vmatprep.subr.mxu0 0.0
      %8182 = vmatpush1.msra.mxu0 0.0
      %8183 = vmatprep.subr.mxu0 0.0
      %8184 = vmatpush1.msra.mxu0 0.0
      %8185 = vmatprep.subr.mxu0 0.0
      %8186 = vmatpush1.msra.mxu0 0.0
      %8187 = vmatprep.subr.mxu0 0.0
      %8188 = vmatpush1.msra.mxu0 0.0
      %8189 = vmatprep.subr.mxu0 0.0
      %8190 = vmatpush1.msra.mxu0 0.0
      %8191 = vmatprep.subr.mxu0 0.0
      %8192 = vmatpush1.msra.mxu0 %v8159
      %8193 = vmatprep.subr.mxu0 0.0
      %8194 = vmatpush2.msra.mxu0 0.0
      %8195 = vmatprep.subr.mxu0 0.0
      %8196 = vmatpush2.msra.mxu0 0.0
      %8197 = vmatprep.subr.mxu0 0.0
      %8198 = vmatpush2.msra.mxu0 0.0
      %8199 = vmatprep.subr.mxu0 0.0
      %8200 = vmatpush2.msra.mxu0 0.0
      %8201 = vmatprep.subr.mxu0 0.0
      %8202 = vmatpush2.msra.mxu0 0.0
      %8203 = vmatprep.subr.mxu0 0.0
      %8204 = vmatpush2.msra.mxu0 0.0
      %8205 = vmatprep.subr.mxu0 0.0
      %8206 = vmatpush2.msra.mxu0 0.0
      %8207 = vmatprep.subr.mxu0 0.0
      %8208 = vmatpush2.msra.mxu0 0.0
      %8209 = vmatprep.subr.mxu0 0.0
      %8210 = vmatpush2.msra.mxu0 0.0
      %8211 = vmatprep.subr.mxu0 0.0
      %8212 = vmatpush2.msra.mxu0 0.0
      %8213 = vmatprep.subr.mxu0 0.0
      %8214 = vmatpush2.msra.mxu0 0.0
      %8215 = vmatprep.subr.mxu0 0.0
      %8216 = vmatpush2.msra.mxu0 0.0
      %8217 = vmatprep.subr.mxu0 0.0
      %8218 = vmatpush2.msra.mxu0 0.0
      %8219 = vmatprep.subr.mxu0 0.0
      %8220 = vmatpush2.msra.mxu0 0.0
      %8221 = vmatprep.subr.mxu0 0.0
      %8222 = vmatpush2.msra.mxu0 0.0
      %8223 = vmatprep.subr.mxu0 0.0
      %8224 = vmatpush2.msra.mxu0 0.0
      %8225 = vmatprep.mubr.f32.mxu0 0.0
      %8226 = vmatmul.mubr.f32.gmra.mxu0 %v8157
      %v8227 = vpop.f32.mrf.mxu0
      %v8228 = vadd.f32 %v8153, %v8227
      %v8229 = vpop.f32.mrf.mxu0
      %8230 = vdwg.mxu0
      %s8231 = scalar_lea.vmem %s39, 8
      %v8232 = vld [vmem:[%s8231] sm:$0xf]
      %8233 = vrot.lane.b32.xlu0 %v8075, 126
      %v8234 = vpop.permute.xlu0 %8233
      %v8236 = vsel %vm3811, %v8232, 0
      %v8238 = vsel %vm3815, %v8234, 0
      %8240 = vmatprep.subr.mxu0 0.0
      %8241 = vmatpush1.msra.mxu0 0.0
      %8242 = vmatprep.subr.mxu0 0.0
      %8243 = vmatpush1.msra.mxu0 0.0
      %8244 = vmatprep.subr.mxu0 0.0
      %8245 = vmatpush1.msra.mxu0 0.0
      %8246 = vmatprep.subr.mxu0 0.0
      %8247 = vmatpush1.msra.mxu0 0.0
      %8248 = vmatprep.subr.mxu0 0.0
      %8249 = vmatpush1.msra.mxu0 0.0
      %8250 = vmatprep.subr.mxu0 0.0
      %8251 = vmatpush1.msra.mxu0 0.0
      %8252 = vmatprep.subr.mxu0 0.0
      %8253 = vmatpush1.msra.mxu0 0.0
      %8254 = vmatprep.subr.mxu0 0.0
      %8255 = vmatpush1.msra.mxu0 0.0
      %8256 = vmatprep.subr.mxu0 0.0
      %8257 = vmatpush1.msra.mxu0 0.0
      %8258 = vmatprep.subr.mxu0 0.0
      %8259 = vmatpush1.msra.mxu0 0.0
      %8260 = vmatprep.subr.mxu0 0.0
      %8261 = vmatpush1.msra.mxu0 0.0
      %8262 = vmatprep.subr.mxu0 0.0
      %8263 = vmatpush1.msra.mxu0 0.0
      %8264 = vmatprep.subr.mxu0 0.0
      %8265 = vmatpush1.msra.mxu0 0.0
      %8266 = vmatprep.subr.mxu0 0.0
      %8267 = vmatpush1.msra.mxu0 0.0
      %8268 = vmatprep.subr.mxu0 0.0
      %8269 = vmatpush1.msra.mxu0 0.0
      %8270 = vmatprep.subr.mxu0 0.0
      %8271 = vmatpush1.msra.mxu0 %v8238
      %8272 = vmatprep.subr.mxu0 0.0
      %8273 = vmatpush2.msra.mxu0 0.0
      %8274 = vmatprep.subr.mxu0 0.0
      %8275 = vmatpush2.msra.mxu0 0.0
      %8276 = vmatprep.subr.mxu0 0.0
      %8277 = vmatpush2.msra.mxu0 0.0
      %8278 = vmatprep.subr.mxu0 0.0
      %8279 = vmatpush2.msra.mxu0 0.0
      %8280 = vmatprep.subr.mxu0 0.0
      %8281 = vmatpush2.msra.mxu0 0.0
      %8282 = vmatprep.subr.mxu0 0.0
      %8283 = vmatpush2.msra.mxu0 0.0
      %8284 = vmatprep.subr.mxu0 0.0
      %8285 = vmatpush2.msra.mxu0 0.0
      %8286 = vmatprep.subr.mxu0 0.0
      %8287 = vmatpush2.msra.mxu0 0.0
      %8288 = vmatprep.subr.mxu0 0.0
      %8289 = vmatpush2.msra.mxu0 0.0
      %8290 = vmatprep.subr.mxu0 0.0
      %8291 = vmatpush2.msra.mxu0 0.0
      %8292 = vmatprep.subr.mxu0 0.0
      %8293 = vmatpush2.msra.mxu0 0.0
      %8294 = vmatprep.subr.mxu0 0.0
      %8295 = vmatpush2.msra.mxu0 0.0
      %8296 = vmatprep.subr.mxu0 0.0
      %8297 = vmatpush2.msra.mxu0 0.0
      %8298 = vmatprep.subr.mxu0 0.0
      %8299 = vmatpush2.msra.mxu0 0.0
      %8300 = vmatprep.subr.mxu0 0.0
      %8301 = vmatpush2.msra.mxu0 0.0
      %8302 = vmatprep.subr.mxu0 0.0
      %8303 = vmatpush2.msra.mxu0 0.0
      %8304 = vmatprep.mubr.f32.mxu0 0.0
      %8305 = vmatmul.mubr.f32.gmra.mxu0 %v8236
      %v8306 = vpop.f32.mrf.mxu0
      %v8307 = vadd.f32 0.0, %v8306
      %v8308 = vpop.f32.mrf.mxu0
      %8309 = vdwg.mxu0
      %v8310 = vadd.f32 %v8228, %v8307
      %s8311 = scalar_lea.vmem %s39, 12
      %v8312 = vld [vmem:[%s8311] sm:$0xf]
      %8313 = vrot.lane.b32.xlu0 %v8075, 124
      %v8314 = vpop.permute.xlu0 %8313
      %v8316 = vsel %vm3811, %v8312, 0
      %v8318 = vsel %vm3815, %v8314, 0
      %8320 = vmatprep.subr.mxu0 0.0
      %8321 = vmatpush1.msra.mxu0 0.0
      %8322 = vmatprep.subr.mxu0 0.0
      %8323 = vmatpush1.msra.mxu0 0.0
      %8324 = vmatprep.subr.mxu0 0.0
      %8325 = vmatpush1.msra.mxu0 0.0
      %8326 = vmatprep.subr.mxu0 0.0
      %8327 = vmatpush1.msra.mxu0 0.0
      %8328 = vmatprep.subr.mxu0 0.0
      %8329 = vmatpush1.msra.mxu0 0.0
      %8330 = vmatprep.subr.mxu0 0.0
      %8331 = vmatpush1.msra.mxu0 0.0
      %8332 = vmatprep.subr.mxu0 0.0
      %8333 = vmatpush1.msra.mxu0 0.0
      %8334 = vmatprep.subr.mxu0 0.0
      %8335 = vmatpush1.msra.mxu0 0.0
      %8336 = vmatprep.subr.mxu0 0.0
      %8337 = vmatpush1.msra.mxu0 0.0
      %8338 = vmatprep.subr.mxu0 0.0
      %8339 = vmatpush1.msra.mxu0 0.0
      %8340 = vmatprep.subr.mxu0 0.0
      %8341 = vmatpush1.msra.mxu0 0.0
      %8342 = vmatprep.subr.mxu0 0.0
      %8343 = vmatpush1.msra.mxu0 0.0
      %8344 = vmatprep.subr.mxu0 0.0
      %8345 = vmatpush1.msra.mxu0 0.0
      %8346 = vmatprep.subr.mxu0 0.0
      %8347 = vmatpush1.msra.mxu0 0.0
      %8348 = vmatprep.subr.mxu0 0.0
      %8349 = vmatpush1.msra.mxu0 0.0
      %8350 = vmatprep.subr.mxu0 0.0
      %8351 = vmatpush1.msra.mxu0 %v8318
      %8352 = vmatprep.subr.mxu0 0.0
      %8353 = vmatpush2.msra.mxu0 0.0
      %8354 = vmatprep.subr.mxu0 0.0
      %8355 = vmatpush2.msra.mxu0 0.0
      %8356 = vmatprep.subr.mxu0 0.0
      %8357 = vmatpush2.msra.mxu0 0.0
      %8358 = vmatprep.subr.mxu0 0.0
      %8359 = vmatpush2.msra.mxu0 0.0
      %8360 = vmatprep.subr.mxu0 0.0
      %8361 = vmatpush2.msra.mxu0 0.0
      %8362 = vmatprep.subr.mxu0 0.0
      %8363 = vmatpush2.msra.mxu0 0.0
      %8364 = vmatprep.subr.mxu0 0.0
      %8365 = vmatpush2.msra.mxu0 0.0
      %8366 = vmatprep.subr.mxu0 0.0
      %8367 = vmatpush2.msra.mxu0 0.0
      %8368 = vmatprep.subr.mxu0 0.0
      %8369 = vmatpush2.msra.mxu0 0.0
      %8370 = vmatprep.subr.mxu0 0.0
      %8371 = vmatpush2.msra.mxu0 0.0
      %8372 = vmatprep.subr.mxu0 0.0
      %8373 = vmatpush2.msra.mxu0 0.0
      %8374 = vmatprep.subr.mxu0 0.0
      %8375 = vmatpush2.msra.mxu0 0.0
      %8376 = vmatprep.subr.mxu0 0.0
      %8377 = vmatpush2.msra.mxu0 0.0
      %8378 = vmatprep.subr.mxu0 0.0
      %8379 = vmatpush2.msra.mxu0 0.0
      %8380 = vmatprep.subr.mxu0 0.0
      %8381 = vmatpush2.msra.mxu0 0.0
      %8382 = vmatprep.subr.mxu0 0.0
      %8383 = vmatpush2.msra.mxu0 0.0
      %8384 = vmatprep.mubr.f32.mxu0 0.0
      %8385 = vmatmul.mubr.f32.gmra.mxu0 %v8316
      %v8386 = vpop.f32.mrf.mxu0
      %v8387 = vadd.f32 0.0, %v8386
      %v8388 = vpop.f32.mrf.mxu0
      %8389 = vdwg.mxu0
      %v8390 = vadd.f32 %v8310, %v8387
      %s8391 = scalar_lea.vmem %s39, 16
      %v8392 = vld [vmem:[%s8391] sm:$0xf]
      %8393 = vrot.lane.b32.xlu0 %v8075, 123
      %v8394 = vpop.permute.xlu0 %8393
      %v8396 = vsel %vm3811, %v8392, 0
      %v8398 = vsel %vm3815, %v8394, 0
      %8400 = vmatprep.subr.mxu0 0.0
      %8401 = vmatpush1.msra.mxu0 0.0
      %8402 = vmatprep.subr.mxu0 0.0
      %8403 = vmatpush1.msra.mxu0 0.0
      %8404 = vmatprep.subr.mxu0 0.0
      %8405 = vmatpush1.msra.mxu0 0.0
      %8406 = vmatprep.subr.mxu0 0.0
      %8407 = vmatpush1.msra.mxu0 0.0
      %8408 = vmatprep.subr.mxu0 0.0
      %8409 = vmatpush1.msra.mxu0 0.0
      %8410 = vmatprep.subr.mxu0 0.0
      %8411 = vmatpush1.msra.mxu0 0.0
      %8412 = vmatprep.subr.mxu0 0.0
      %8413 = vmatpush1.msra.mxu0 0.0
      %8414 = vmatprep.subr.mxu0 0.0
      %8415 = vmatpush1.msra.mxu0 0.0
      %8416 = vmatprep.subr.mxu0 0.0
      %8417 = vmatpush1.msra.mxu0 0.0
      %8418 = vmatprep.subr.mxu0 0.0
      %8419 = vmatpush1.msra.mxu0 0.0
      %8420 = vmatprep.subr.mxu0 0.0
      %8421 = vmatpush1.msra.mxu0 0.0
      %8422 = vmatprep.subr.mxu0 0.0
      %8423 = vmatpush1.msra.mxu0 0.0
      %8424 = vmatprep.subr.mxu0 0.0
      %8425 = vmatpush1.msra.mxu0 0.0
      %8426 = vmatprep.subr.mxu0 0.0
      %8427 = vmatpush1.msra.mxu0 0.0
      %8428 = vmatprep.subr.mxu0 0.0
      %8429 = vmatpush1.msra.mxu0 0.0
      %8430 = vmatprep.subr.mxu0 0.0
      %8431 = vmatpush1.msra.mxu0 %v8398
      %8432 = vmatprep.subr.mxu0 0.0
      %8433 = vmatpush2.msra.mxu0 0.0
      %8434 = vmatprep.subr.mxu0 0.0
      %8435 = vmatpush2.msra.mxu0 0.0
      %8436 = vmatprep.subr.mxu0 0.0
      %8437 = vmatpush2.msra.mxu0 0.0
      %8438 = vmatprep.subr.mxu0 0.0
      %8439 = vmatpush2.msra.mxu0 0.0
      %8440 = vmatprep.subr.mxu0 0.0
      %8441 = vmatpush2.msra.mxu0 0.0
      %8442 = vmatprep.subr.mxu0 0.0
      %8443 = vmatpush2.msra.mxu0 0.0
      %8444 = vmatprep.subr.mxu0 0.0
      %8445 = vmatpush2.msra.mxu0 0.0
      %8446 = vmatprep.subr.mxu0 0.0
      %8447 = vmatpush2.msra.mxu0 0.0
      %8448 = vmatprep.subr.mxu0 0.0
      %8449 = vmatpush2.msra.mxu0 0.0
      %8450 = vmatprep.subr.mxu0 0.0
      %8451 = vmatpush2.msra.mxu0 0.0
      %8452 = vmatprep.subr.mxu0 0.0
      %8453 = vmatpush2.msra.mxu0 0.0
      %8454 = vmatprep.subr.mxu0 0.0
      %8455 = vmatpush2.msra.mxu0 0.0
      %8456 = vmatprep.subr.mxu0 0.0
      %8457 = vmatpush2.msra.mxu0 0.0
      %8458 = vmatprep.subr.mxu0 0.0
      %8459 = vmatpush2.msra.mxu0 0.0
      %8460 = vmatprep.subr.mxu0 0.0
      %8461 = vmatpush2.msra.mxu0 0.0
      %8462 = vmatprep.subr.mxu0 0.0
      %8463 = vmatpush2.msra.mxu0 0.0
      %8464 = vmatprep.mubr.f32.mxu0 0.0
      %8465 = vmatmul.mubr.f32.gmra.mxu0 %v8396
      %v8466 = vpop.f32.mrf.mxu0
      %v8467 = vadd.f32 0.0, %v8466
      %v8468 = vpop.f32.mrf.mxu0
      %8469 = vdwg.mxu0
      %v8470 = vadd.f32 %v8390, %v8467
      %s8471 = scalar_lea.vmem %s39, 20
      %v8472 = vld [vmem:[%s8471] sm:$0xf]
      %8473 = vrot.lane.b32.xlu0 %v8075, 122
      %v8474 = vpop.permute.xlu0 %8473
      %v8476 = vsel %vm3811, %v8472, 0
      %v8478 = vsel %vm3815, %v8474, 0
      %8480 = vmatprep.subr.mxu0 0.0
      %8481 = vmatpush1.msra.mxu0 0.0
      %8482 = vmatprep.subr.mxu0 0.0
      %8483 = vmatpush1.msra.mxu0 0.0
      %8484 = vmatprep.subr.mxu0 0.0
      %8485 = vmatpush1.msra.mxu0 0.0
      %8486 = vmatprep.subr.mxu0 0.0
      %8487 = vmatpush1.msra.mxu0 0.0
      %8488 = vmatprep.subr.mxu0 0.0
      %8489 = vmatpush1.msra.mxu0 0.0
      %8490 = vmatprep.subr.mxu0 0.0
      %8491 = vmatpush1.msra.mxu0 0.0
      %8492 = vmatprep.subr.mxu0 0.0
      %8493 = vmatpush1.msra.mxu0 0.0
      %8494 = vmatprep.subr.mxu0 0.0
      %8495 = vmatpush1.msra.mxu0 0.0
      %8496 = vmatprep.subr.mxu0 0.0
      %8497 = vmatpush1.msra.mxu0 0.0
      %8498 = vmatprep.subr.mxu0 0.0
      %8499 = vmatpush1.msra.mxu0 0.0
      %8500 = vmatprep.subr.mxu0 0.0
      %8501 = vmatpush1.msra.mxu0 0.0
      %8502 = vmatprep.subr.mxu0 0.0
      %8503 = vmatpush1.msra.mxu0 0.0
      %8504 = vmatprep.subr.mxu0 0.0
      %8505 = vmatpush1.msra.mxu0 0.0
      %8506 = vmatprep.subr.mxu0 0.0
      %8507 = vmatpush1.msra.mxu0 0.0
      %8508 = vmatprep.subr.mxu0 0.0
      %8509 = vmatpush1.msra.mxu0 0.0
      %8510 = vmatprep.subr.mxu0 0.0
      %8511 = vmatpush1.msra.mxu0 %v8478
      %8512 = vmatprep.subr.mxu0 0.0
      %8513 = vmatpush2.msra.mxu0 0.0
      %8514 = vmatprep.subr.mxu0 0.0
      %8515 = vmatpush2.msra.mxu0 0.0
      %8516 = vmatprep.subr.mxu0 0.0
      %8517 = vmatpush2.msra.mxu0 0.0
      %8518 = vmatprep.subr.mxu0 0.0
      %8519 = vmatpush2.msra.mxu0 0.0
      %8520 = vmatprep.subr.mxu0 0.0
      %8521 = vmatpush2.msra.mxu0 0.0
      %8522 = vmatprep.subr.mxu0 0.0
      %8523 = vmatpush2.msra.mxu0 0.0
      %8524 = vmatprep.subr.mxu0 0.0
      %8525 = vmatpush2.msra.mxu0 0.0
      %8526 = vmatprep.subr.mxu0 0.0
      %8527 = vmatpush2.msra.mxu0 0.0
      %8528 = vmatprep.subr.mxu0 0.0
      %8529 = vmatpush2.msra.mxu0 0.0
      %8530 = vmatprep.subr.mxu0 0.0
      %8531 = vmatpush2.msra.mxu0 0.0
      %8532 = vmatprep.subr.mxu0 0.0
      %8533 = vmatpush2.msra.mxu0 0.0
      %8534 = vmatprep.subr.mxu0 0.0
      %8535 = vmatpush2.msra.mxu0 0.0
      %8536 = vmatprep.subr.mxu0 0.0
      %8537 = vmatpush2.msra.mxu0 0.0
      %8538 = vmatprep.subr.mxu0 0.0
      %8539 = vmatpush2.msra.mxu0 0.0
      %8540 = vmatprep.subr.mxu0 0.0
      %8541 = vmatpush2.msra.mxu0 0.0
      %8542 = vmatprep.subr.mxu0 0.0
      %8543 = vmatpush2.msra.mxu0 0.0
      %8544 = vmatprep.mubr.f32.mxu0 0.0
      %8545 = vmatmul.mubr.f32.gmra.mxu0 %v8476
      %v8546 = vpop.f32.mrf.mxu0
      %v8547 = vadd.f32 0.0, %v8546
      %v8548 = vpop.f32.mrf.mxu0
      %8549 = vdwg.mxu0
      %v8550 = vadd.f32 %v8470, %v8547
      %s8551 = scalar_lea.vmem %s39, 24
      %v8552 = vld [vmem:[%s8551] sm:$0xf]
      %8553 = vrot.lane.b32.xlu0 %v8075, 120
      %v8554 = vpop.permute.xlu0 %8553
      %v8556 = vsel %vm3811, %v8552, 0
      %v8558 = vsel %vm3815, %v8554, 0
      %8560 = vmatprep.subr.mxu0 0.0
      %8561 = vmatpush1.msra.mxu0 0.0
      %8562 = vmatprep.subr.mxu0 0.0
      %8563 = vmatpush1.msra.mxu0 0.0
      %8564 = vmatprep.subr.mxu0 0.0
      %8565 = vmatpush1.msra.mxu0 0.0
      %8566 = vmatprep.subr.mxu0 0.0
      %8567 = vmatpush1.msra.mxu0 0.0
      %8568 = vmatprep.subr.mxu0 0.0
      %8569 = vmatpush1.msra.mxu0 0.0
      %8570 = vmatprep.subr.mxu0 0.0
      %8571 = vmatpush1.msra.mxu0 0.0
      %8572 = vmatprep.subr.mxu0 0.0
      %8573 = vmatpush1.msra.mxu0 0.0
      %8574 = vmatprep.subr.mxu0 0.0
      %8575 = vmatpush1.msra.mxu0 0.0
      %8576 = vmatprep.subr.mxu0 0.0
      %8577 = vmatpush1.msra.mxu0 0.0
      %8578 = vmatprep.subr.mxu0 0.0
      %8579 = vmatpush1.msra.mxu0 0.0
      %8580 = vmatprep.subr.mxu0 0.0
      %8581 = vmatpush1.msra.mxu0 0.0
      %8582 = vmatprep.subr.mxu0 0.0
      %8583 = vmatpush1.msra.mxu0 0.0
      %8584 = vmatprep.subr.mxu0 0.0
      %8585 = vmatpush1.msra.mxu0 0.0
      %8586 = vmatprep.subr.mxu0 0.0
      %8587 = vmatpush1.msra.mxu0 0.0
      %8588 = vmatprep.subr.mxu0 0.0
      %8589 = vmatpush1.msra.mxu0 0.0
      %8590 = vmatprep.subr.mxu0 0.0
      %8591 = vmatpush1.msra.mxu0 %v8558
      %8592 = vmatprep.subr.mxu0 0.0
      %8593 = vmatpush2.msra.mxu0 0.0
      %8594 = vmatprep.subr.mxu0 0.0
      %8595 = vmatpush2.msra.mxu0 0.0
      %8596 = vmatprep.subr.mxu0 0.0
      %8597 = vmatpush2.msra.mxu0 0.0
      %8598 = vmatprep.subr.mxu0 0.0
      %8599 = vmatpush2.msra.mxu0 0.0
      %8600 = vmatprep.subr.mxu0 0.0
      %8601 = vmatpush2.msra.mxu0 0.0
      %8602 = vmatprep.subr.mxu0 0.0
      %8603 = vmatpush2.msra.mxu0 0.0
      %8604 = vmatprep.subr.mxu0 0.0
      %8605 = vmatpush2.msra.mxu0 0.0
      %8606 = vmatprep.subr.mxu0 0.0
      %8607 = vmatpush2.msra.mxu0 0.0
      %8608 = vmatprep.subr.mxu0 0.0
      %8609 = vmatpush2.msra.mxu0 0.0
      %8610 = vmatprep.subr.mxu0 0.0
      %8611 = vmatpush2.msra.mxu0 0.0
      %8612 = vmatprep.subr.mxu0 0.0
      %8613 = vmatpush2.msra.mxu0 0.0
      %8614 = vmatprep.subr.mxu0 0.0
      %8615 = vmatpush2.msra.mxu0 0.0
      %8616 = vmatprep.subr.mxu0 0.0
      %8617 = vmatpush2.msra.mxu0 0.0
      %8618 = vmatprep.subr.mxu0 0.0
      %8619 = vmatpush2.msra.mxu0 0.0
      %8620 = vmatprep.subr.mxu0 0.0
      %8621 = vmatpush2.msra.mxu0 0.0
      %8622 = vmatprep.subr.mxu0 0.0
      %8623 = vmatpush2.msra.mxu0 0.0
      %8624 = vmatprep.mubr.f32.mxu0 0.0
      %8625 = vmatmul.mubr.f32.gmra.mxu0 %v8556
      %v8626 = vpop.f32.mrf.mxu0
      %v8627 = vadd.f32 0.0, %v8626
      %v8628 = vpop.f32.mrf.mxu0
      %8629 = vdwg.mxu0
      %v8630 = vadd.f32 %v8550, %v8627
      %s8631 = scalar_lea.vmem %s39, 28
      %v8632 = vld [vmem:[%s8631] sm:$0xf]
      %8633 = vrot.lane.b32.xlu0 %v8075, 119
      %v8634 = vpop.permute.xlu0 %8633
      %v8636 = vsel %vm3811, %v8632, 0
      %v8638 = vsel %vm3815, %v8634, 0
      %8640 = vmatprep.subr.mxu0 0.0
      %8641 = vmatpush1.msra.mxu0 0.0
      %8642 = vmatprep.subr.mxu0 0.0
      %8643 = vmatpush1.msra.mxu0 0.0
      %8644 = vmatprep.subr.mxu0 0.0
      %8645 = vmatpush1.msra.mxu0 0.0
      %8646 = vmatprep.subr.mxu0 0.0
      %8647 = vmatpush1.msra.mxu0 0.0
      %8648 = vmatprep.subr.mxu0 0.0
      %8649 = vmatpush1.msra.mxu0 0.0
      %8650 = vmatprep.subr.mxu0 0.0
      %8651 = vmatpush1.msra.mxu0 0.0
      %8652 = vmatprep.subr.mxu0 0.0
      %8653 = vmatpush1.msra.mxu0 0.0
      %8654 = vmatprep.subr.mxu0 0.0
      %8655 = vmatpush1.msra.mxu0 0.0
      %8656 = vmatprep.subr.mxu0 0.0
      %8657 = vmatpush1.msra.mxu0 0.0
      %8658 = vmatprep.subr.mxu0 0.0
      %8659 = vmatpush1.msra.mxu0 0.0
      %8660 = vmatprep.subr.mxu0 0.0
      %8661 = vmatpush1.msra.mxu0 0.0
      %8662 = vmatprep.subr.mxu0 0.0
      %8663 = vmatpush1.msra.mxu0 0.0
      %8664 = vmatprep.subr.mxu0 0.0
      %8665 = vmatpush1.msra.mxu0 0.0
      %8666 = vmatprep.subr.mxu0 0.0
      %8667 = vmatpush1.msra.mxu0 0.0
      %8668 = vmatprep.subr.mxu0 0.0
      %8669 = vmatpush1.msra.mxu0 0.0
      %8670 = vmatprep.subr.mxu0 0.0
      %8671 = vmatpush1.msra.mxu0 %v8638
      %8672 = vmatprep.subr.mxu0 0.0
      %8673 = vmatpush2.msra.mxu0 0.0
      %8674 = vmatprep.subr.mxu0 0.0
      %8675 = vmatpush2.msra.mxu0 0.0
      %8676 = vmatprep.subr.mxu0 0.0
      %8677 = vmatpush2.msra.mxu0 0.0
      %8678 = vmatprep.subr.mxu0 0.0
      %8679 = vmatpush2.msra.mxu0 0.0
      %8680 = vmatprep.subr.mxu0 0.0
      %8681 = vmatpush2.msra.mxu0 0.0
      %8682 = vmatprep.subr.mxu0 0.0
      %8683 = vmatpush2.msra.mxu0 0.0
      %8684 = vmatprep.subr.mxu0 0.0
      %8685 = vmatpush2.msra.mxu0 0.0
      %8686 = vmatprep.subr.mxu0 0.0
      %8687 = vmatpush2.msra.mxu0 0.0
      %8688 = vmatprep.subr.mxu0 0.0
      %8689 = vmatpush2.msra.mxu0 0.0
      %8690 = vmatprep.subr.mxu0 0.0
      %8691 = vmatpush2.msra.mxu0 0.0
      %8692 = vmatprep.subr.mxu0 0.0
      %8693 = vmatpush2.msra.mxu0 0.0
      %8694 = vmatprep.subr.mxu0 0.0
      %8695 = vmatpush2.msra.mxu0 0.0
      %8696 = vmatprep.subr.mxu0 0.0
      %8697 = vmatpush2.msra.mxu0 0.0
      %8698 = vmatprep.subr.mxu0 0.0
      %8699 = vmatpush2.msra.mxu0 0.0
      %8700 = vmatprep.subr.mxu0 0.0
      %8701 = vmatpush2.msra.mxu0 0.0
      %8702 = vmatprep.subr.mxu0 0.0
      %8703 = vmatpush2.msra.mxu0 0.0
      %8704 = vmatprep.mubr.f32.mxu0 0.0
      %8705 = vmatmul.mubr.f32.gmra.mxu0 %v8636
      %v8706 = vpop.f32.mrf.mxu0
      %v8707 = vadd.f32 0.0, %v8706
      %v8708 = vpop.f32.mrf.mxu0
      %8709 = vdwg.mxu0
      %v8710 = vadd.f32 %v8630, %v8707
      %s8711 = scalar_lea.vmem %s39, 32
      %v8712 = vld [vmem:[%s8711] sm:$0xf]
      %8713 = vrot.lane.b32.xlu0 %v8075, 118
      %v8714 = vpop.permute.xlu0 %8713
      %v8716 = vsel %vm3811, %v8712, 0
      %v8718 = vsel %vm3815, %v8714, 0
      %8720 = vmatprep.subr.mxu0 0.0
      %8721 = vmatpush1.msra.mxu0 0.0
      %8722 = vmatprep.subr.mxu0 0.0
      %8723 = vmatpush1.msra.mxu0 0.0
      %8724 = vmatprep.subr.mxu0 0.0
      %8725 = vmatpush1.msra.mxu0 0.0
      %8726 = vmatprep.subr.mxu0 0.0
      %8727 = vmatpush1.msra.mxu0 0.0
      %8728 = vmatprep.subr.mxu0 0.0
      %8729 = vmatpush1.msra.mxu0 0.0
      %8730 = vmatprep.subr.mxu0 0.0
      %8731 = vmatpush1.msra.mxu0 0.0
      %8732 = vmatprep.subr.mxu0 0.0
      %8733 = vmatpush1.msra.mxu0 0.0
      %8734 = vmatprep.subr.mxu0 0.0
      %8735 = vmatpush1.msra.mxu0 0.0
      %8736 = vmatprep.subr.mxu0 0.0
      %8737 = vmatpush1.msra.mxu0 0.0
      %8738 = vmatprep.subr.mxu0 0.0
      %8739 = vmatpush1.msra.mxu0 0.0
      %8740 = vmatprep.subr.mxu0 0.0
      %8741 = vmatpush1.msra.mxu0 0.0
      %8742 = vmatprep.subr.mxu0 0.0
      %8743 = vmatpush1.msra.mxu0 0.0
      %8744 = vmatprep.subr.mxu0 0.0
      %8745 = vmatpush1.msra.mxu0 0.0
      %8746 = vmatprep.subr.mxu0 0.0
      %8747 = vmatpush1.msra.mxu0 0.0
      %8748 = vmatprep.subr.mxu0 0.0
      %8749 = vmatpush1.msra.mxu0 0.0
      %8750 = vmatprep.subr.mxu0 0.0
      %8751 = vmatpush1.msra.mxu0 %v8718
      %8752 = vmatprep.subr.mxu0 0.0
      %8753 = vmatpush2.msra.mxu0 0.0
      %8754 = vmatprep.subr.mxu0 0.0
      %8755 = vmatpush2.msra.mxu0 0.0
      %8756 = vmatprep.subr.mxu0 0.0
      %8757 = vmatpush2.msra.mxu0 0.0
      %8758 = vmatprep.subr.mxu0 0.0
      %8759 = vmatpush2.msra.mxu0 0.0
      %8760 = vmatprep.subr.mxu0 0.0
      %8761 = vmatpush2.msra.mxu0 0.0
      %8762 = vmatprep.subr.mxu0 0.0
      %8763 = vmatpush2.msra.mxu0 0.0
      %8764 = vmatprep.subr.mxu0 0.0
      %8765 = vmatpush2.msra.mxu0 0.0
      %8766 = vmatprep.subr.mxu0 0.0
      %8767 = vmatpush2.msra.mxu0 0.0
      %8768 = vmatprep.subr.mxu0 0.0
      %8769 = vmatpush2.msra.mxu0 0.0
      %8770 = vmatprep.subr.mxu0 0.0
      %8771 = vmatpush2.msra.mxu0 0.0
      %8772 = vmatprep.subr.mxu0 0.0
      %8773 = vmatpush2.msra.mxu0 0.0
      %8774 = vmatprep.subr.mxu0 0.0
      %8775 = vmatpush2.msra.mxu0 0.0
      %8776 = vmatprep.subr.mxu0 0.0
      %8777 = vmatpush2.msra.mxu0 0.0
      %8778 = vmatprep.subr.mxu0 0.0
      %8779 = vmatpush2.msra.mxu0 0.0
      %8780 = vmatprep.subr.mxu0 0.0
      %8781 = vmatpush2.msra.mxu0 0.0
      %8782 = vmatprep.subr.mxu0 0.0
      %8783 = vmatpush2.msra.mxu0 0.0
      %8784 = vmatprep.mubr.f32.mxu0 0.0
      %8785 = vmatmul.mubr.f32.gmra.mxu0 %v8716
      %v8786 = vpop.f32.mrf.mxu0
      %v8787 = vadd.f32 0.0, %v8786
      %v8788 = vpop.f32.mrf.mxu0
      %8789 = vdwg.mxu0
      %v8790 = vadd.f32 %v8710, %v8787
      %v8791 = vld [vmem:[%s41] sm:$0xf]
      %8793 = vset.pattern.permute.xlu0 0
      %8794 = vperm.xlu0 %8793, %v8791
      %v8795 = vpop.permute.xlu0 %8794
      %v8797 = vadd.f32 %v8790, %v8795
      %v8798 = vld [vmem:[%s47] sm:$0xff]
      %v8799 = vld [vmem:[%s47 + $0x8] sm:$0xff]
      %v8800 = vld [vmem:[%s47 + $0x10] sm:$0xff]
      %v8801 = vld [vmem:[%s47 + $0x18] sm:$0xff]
      %v8802 = vld [vmem:[%s47 + $0x20] sm:$0xff]
      %v8803 = vld [vmem:[%s49] sm:$0x3]
      %v8804 = vpack.c.bf16 %v3687, %v3687
      %v8805 = vpack.c.bf16 %v3689, %v3689
      %v8806 = vpack.c.bf16 %v3728, %v3728
      %v8807 = vpack.c.bf16 %v3730, %v3730
      %v8808 = vpack.c.bf16 %v3769, %v3769
      %v8809 = vld [vmem:[%s51] sm:$0xf]
      %8811 = vset.pattern.permute.xlu0 0
      %8812 = vperm.xlu0 %8811, %v8809
      %v8813 = vpop.permute.xlu0 %8812
      %v8816 = vsel %vm3811, %v8803, 0
      %v8819 = vsel %vm1094, %v8804, 0
      %v8822 = vsel %vm1094, %v8805, 0
      %v8825 = vsel %vm1094, %v8806, 0
      %v8828 = vsel %vm1094, %v8807, 0
      %v8831 = vsel %vm1094, %v8808, 0
      %8833 = vmatprep.subr.bf16.mxu0 0
      %8834 = vmatpush1.bf16.msra.mxu0 0
      %8835 = vmatprep.subr.bf16.mxu0 0
      %8836 = vmatpush1.bf16.msra.mxu0 0
      %8837 = vmatprep.subr.bf16.mxu0 0
      %8838 = vmatpush1.bf16.msra.mxu0 0
      %8839 = vmatprep.subr.bf16.mxu0 0
      %8840 = vmatpush1.bf16.msra.mxu0 0
      %8841 = vmatprep.subr.bf16.mxu0 0
      %8842 = vmatpush1.bf16.msra.mxu0 0
      %8843 = vmatprep.subr.bf16.mxu0 0
      %8844 = vmatpush1.bf16.msra.mxu0 0
      %8845 = vmatprep.subr.bf16.mxu0 0
      %8846 = vmatpush1.bf16.msra.mxu0 0
      %8847 = vmatprep.subr.bf16.mxu0 %v8822
      %8848 = vmatpush1.bf16.msra.mxu0 %v8819
      %8849 = vmatprep.subr.bf16.mxu0 0
      %8850 = vmatpush2.bf16.msra.mxu0 0
      %8851 = vmatprep.subr.bf16.mxu0 0
      %8852 = vmatpush2.bf16.msra.mxu0 0
      %8853 = vmatprep.subr.bf16.mxu0 0
      %8854 = vmatpush2.bf16.msra.mxu0 0
      %8855 = vmatprep.subr.bf16.mxu0 0
      %8856 = vmatpush2.bf16.msra.mxu0 0
      %8857 = vmatprep.subr.bf16.mxu0 0
      %8858 = vmatpush2.bf16.msra.mxu0 0
      %8859 = vmatprep.subr.bf16.mxu0 0
      %8860 = vmatpush2.bf16.msra.mxu0 0
      %8861 = vmatprep.subr.bf16.mxu0 0
      %8862 = vmatpush2.bf16.msra.mxu0 0
      %8863 = vmatprep.subr.bf16.mxu0 0
      %8864 = vmatpush2.bf16.msra.mxu0 0
      %8865 = vmatprep.mubr.bf16.mxu0 0
      %8866 = vmatmul.mubr.bf16.gmra.mxu0 %v8816
      %v8867 = vpop.f32.mrf.mxu0
      %v8868 = vadd.f32 %v8813, %v8867
      %v8869 = vpop.f32.mrf.mxu0
      %v8870 = vadd.f32 %v8813, %v8869
      %v8871 = vpop.f32.mrf.mxu0
      %v8872 = vpop.f32.mrf.mxu0
      %8873 = vdwg.mxu0
      %8874 = vmatprep.subr.bf16.mxu0 0
      %8875 = vmatpush1.bf16.msra.mxu0 0
      %8876 = vmatprep.subr.bf16.mxu0 0
      %8877 = vmatpush1.bf16.msra.mxu0 0
      %8878 = vmatprep.subr.bf16.mxu0 0
      %8879 = vmatpush1.bf16.msra.mxu0 0
      %8880 = vmatprep.subr.bf16.mxu0 0
      %8881 = vmatpush1.bf16.msra.mxu0 0
      %8882 = vmatprep.subr.bf16.mxu0 0
      %8883 = vmatpush1.bf16.msra.mxu0 0
      %8884 = vmatprep.subr.bf16.mxu0 0
      %8885 = vmatpush1.bf16.msra.mxu0 0
      %8886 = vmatprep.subr.bf16.mxu0 0
      %8887 = vmatpush1.bf16.msra.mxu0 0
      %8888 = vmatprep.subr.bf16.mxu0 %v8828
      %8889 = vmatpush1.bf16.msra.mxu0 %v8825
      %8890 = vmatprep.subr.bf16.mxu0 0
      %8891 = vmatpush2.bf16.msra.mxu0 0
      %8892 = vmatprep.subr.bf16.mxu0 0
      %8893 = vmatpush2.bf16.msra.mxu0 0
      %8894 = vmatprep.subr.bf16.mxu0 0
      %8895 = vmatpush2.bf16.msra.mxu0 0
      %8896 = vmatprep.subr.bf16.mxu0 0
      %8897 = vmatpush2.bf16.msra.mxu0 0
      %8898 = vmatprep.subr.bf16.mxu0 0
      %8899 = vmatpush2.bf16.msra.mxu0 0
      %8900 = vmatprep.subr.bf16.mxu0 0
      %8901 = vmatpush2.bf16.msra.mxu0 0
      %8902 = vmatprep.subr.bf16.mxu0 0
      %8903 = vmatpush2.bf16.msra.mxu0 0
      %8904 = vmatprep.subr.bf16.mxu0 0
      %8905 = vmatpush2.bf16.msra.mxu0 0
      %8906 = vmatprep.mubr.bf16.mxu0 0
      %8907 = vmatmul.mubr.bf16.gmra.mxu0 %v8816
      %v8908 = vpop.f32.mrf.mxu0
      %v8909 = vadd.f32 %v8813, %v8908
      %v8910 = vpop.f32.mrf.mxu0
      %v8911 = vadd.f32 %v8813, %v8910
      %v8912 = vpop.f32.mrf.mxu0
      %v8913 = vpop.f32.mrf.mxu0
      %8914 = vdwg.mxu0
      %8915 = vmatprep.subr.bf16.mxu0 0
      %8916 = vmatpush1.bf16.msra.mxu0 0
      %8917 = vmatprep.subr.bf16.mxu0 0
      %8918 = vmatpush1.bf16.msra.mxu0 0
      %8919 = vmatprep.subr.bf16.mxu0 0
      %8920 = vmatpush1.bf16.msra.mxu0 0
      %8921 = vmatprep.subr.bf16.mxu0 0
      %8922 = vmatpush1.bf16.msra.mxu0 0
      %8923 = vmatprep.subr.bf16.mxu0 0
      %8924 = vmatpush1.bf16.msra.mxu0 0
      %8925 = vmatprep.subr.bf16.mxu0 0
      %8926 = vmatpush1.bf16.msra.mxu0 0
      %8927 = vmatprep.subr.bf16.mxu0 0
      %8928 = vmatpush1.bf16.msra.mxu0 0
      %8929 = vmatprep.subr.bf16.mxu0 0
      %8930 = vmatpush1.bf16.msra.mxu0 %v8831
      %8931 = vmatprep.subr.bf16.mxu0 0
      %8932 = vmatpush2.bf16.msra.mxu0 0
      %8933 = vmatprep.subr.bf16.mxu0 0
      %8934 = vmatpush2.bf16.msra.mxu0 0
      %8935 = vmatprep.subr.bf16.mxu0 0
      %8936 = vmatpush2.bf16.msra.mxu0 0
      %8937 = vmatprep.subr.bf16.mxu0 0
      %8938 = vmatpush2.bf16.msra.mxu0 0
      %8939 = vmatprep.subr.bf16.mxu0 0
      %8940 = vmatpush2.bf16.msra.mxu0 0
      %8941 = vmatprep.subr.bf16.mxu0 0
      %8942 = vmatpush2.bf16.msra.mxu0 0
      %8943 = vmatprep.subr.bf16.mxu0 0
      %8944 = vmatpush2.bf16.msra.mxu0 0
      %8945 = vmatprep.subr.bf16.mxu0 0
      %8946 = vmatpush2.bf16.msra.mxu0 0
      %8947 = vmatprep.mubr.bf16.mxu0 0
      %8948 = vmatmul.mubr.bf16.gmra.mxu0 %v8816
      %v8949 = vpop.f32.mrf.mxu0
      %v8950 = vadd.f32 %v8813, %v8949
      %v8951 = vpop.f32.mrf.mxu0
      %v8952 = vpop.f32.mrf.mxu0
      %v8953 = vpop.f32.mrf.mxu0
      %8954 = vdwg.mxu0
      %v8955 = vld [vmem:[%s53] sm:$0xf]
      %v8956 = vld [vmem:[%s53 + $0x4] sm:$0xf]
      %v8958 = vsel %vm7199, %v8797, 0
      %8960 = vmatprep.subr.mxu0 0.0
      %8961 = vmatpush1.msra.mxu0 0.0
      %8962 = vmatprep.subr.mxu0 0.0
      %8963 = vmatpush1.msra.mxu0 0.0
      %8964 = vmatprep.subr.mxu0 0.0
      %8965 = vmatpush1.msra.mxu0 0.0
      %8966 = vmatprep.subr.mxu0 0.0
      %8967 = vmatpush1.msra.mxu0 0.0
      %8968 = vmatprep.subr.mxu0 0.0
      %8969 = vmatpush1.msra.mxu0 0.0
      %8970 = vmatprep.subr.mxu0 0.0
      %8971 = vmatpush1.msra.mxu0 0.0
      %8972 = vmatprep.subr.mxu0 0.0
      %8973 = vmatpush1.msra.mxu0 0.0
      %8974 = vmatprep.subr.mxu0 0.0
      %8975 = vmatpush1.msra.mxu0 0.0
      %8976 = vmatprep.subr.mxu0 0.0
      %8977 = vmatpush1.msra.mxu0 0.0
      %8978 = vmatprep.subr.mxu0 0.0
      %8979 = vmatpush1.msra.mxu0 0.0
      %8980 = vmatprep.subr.mxu0 0.0
      %8981 = vmatpush1.msra.mxu0 0.0
      %8982 = vmatprep.subr.mxu0 0.0
      %8983 = vmatpush1.msra.mxu0 0.0
      %8984 = vmatprep.subr.mxu0 0.0
      %8985 = vmatpush1.msra.mxu0 0.0
      %8986 = vmatprep.subr.mxu0 0.0
      %8987 = vmatpush1.msra.mxu0 0.0
      %8988 = vmatprep.subr.mxu0 0.0
      %8989 = vmatpush1.msra.mxu0 0.0
      %8990 = vmatprep.subr.mxu0 %v8799
      %8991 = vmatpush1.msra.mxu0 %v8798
      %8992 = vmatprep.subr.mxu0 0.0
      %8993 = vmatpush2.msra.mxu0 0.0
      %8994 = vmatprep.subr.mxu0 0.0
      %8995 = vmatpush2.msra.mxu0 0.0
      %8996 = vmatprep.subr.mxu0 0.0
      %8997 = vmatpush2.msra.mxu0 0.0
      %8998 = vmatprep.subr.mxu0 0.0
      %8999 = vmatpush2.msra.mxu0 0.0
      %9000 = vmatprep.subr.mxu0 0.0
      %9001 = vmatpush2.msra.mxu0 0.0
      %9002 = vmatprep.subr.mxu0 0.0
      %9003 = vmatpush2.msra.mxu0 0.0
      %9004 = vmatprep.subr.mxu0 0.0
      %9005 = vmatpush2.msra.mxu0 0.0
      %9006 = vmatprep.subr.mxu0 0.0
      %9007 = vmatpush2.msra.mxu0 0.0
      %9008 = vmatprep.subr.mxu0 0.0
      %9009 = vmatpush2.msra.mxu0 0.0
      %9010 = vmatprep.subr.mxu0 0.0
      %9011 = vmatpush2.msra.mxu0 0.0
      %9012 = vmatprep.subr.mxu0 0.0
      %9013 = vmatpush2.msra.mxu0 0.0
      %9014 = vmatprep.subr.mxu0 0.0
      %9015 = vmatpush2.msra.mxu0 0.0
      %9016 = vmatprep.subr.mxu0 0.0
      %9017 = vmatpush2.msra.mxu0 0.0
      %9018 = vmatprep.subr.mxu0 0.0
      %9019 = vmatpush2.msra.mxu0 0.0
      %9020 = vmatprep.subr.mxu0 0.0
      %9021 = vmatpush2.msra.mxu0 0.0
      %9022 = vmatprep.subr.mxu0 0.0
      %9023 = vmatpush2.msra.mxu0 0.0
      %9024 = vmatprep.mubr.f32.mxu0 0.0
      %9025 = vmatmul.mubr.f32.gmra.mxu0 %v8958
      %v9026 = vpop.f32.mrf.mxu0
      %v9027 = vadd.f32 %v8868, %v9026
      %v9028 = vpop.f32.mrf.mxu0
      %v9029 = vadd.f32 %v8870, %v9028
      %9030 = vdwg.mxu0
      %9031 = vmatprep.subr.mxu0 0.0
      %9032 = vmatpush1.msra.mxu0 0.0
      %9033 = vmatprep.subr.mxu0 0.0
      %9034 = vmatpush1.msra.mxu0 0.0
      %9035 = vmatprep.subr.mxu0 0.0
      %9036 = vmatpush1.msra.mxu0 0.0
      %9037 = vmatprep.subr.mxu0 0.0
      %9038 = vmatpush1.msra.mxu0 0.0
      %9039 = vmatprep.subr.mxu0 0.0
      %9040 = vmatpush1.msra.mxu0 0.0
      %9041 = vmatprep.subr.mxu0 0.0
      %9042 = vmatpush1.msra.mxu0 0.0
      %9043 = vmatprep.subr.mxu0 0.0
      %9044 = vmatpush1.msra.mxu0 0.0
      %9045 = vmatprep.subr.mxu0 0.0
      %9046 = vmatpush1.msra.mxu0 0.0
      %9047 = vmatprep.subr.mxu0 0.0
      %9048 = vmatpush1.msra.mxu0 0.0
      %9049 = vmatprep.subr.mxu0 0.0
      %9050 = vmatpush1.msra.mxu0 0.0
      %9051 = vmatprep.subr.mxu0 0.0
      %9052 = vmatpush1.msra.mxu0 0.0
      %9053 = vmatprep.subr.mxu0 0.0
      %9054 = vmatpush1.msra.mxu0 0.0
      %9055 = vmatprep.subr.mxu0 0.0
      %9056 = vmatpush1.msra.mxu0 0.0
      %9057 = vmatprep.subr.mxu0 0.0
      %9058 = vmatpush1.msra.mxu0 0.0
      %9059 = vmatprep.subr.mxu0 0.0
      %9060 = vmatpush1.msra.mxu0 0.0
      %9061 = vmatprep.subr.mxu0 %v8801
      %9062 = vmatpush1.msra.mxu0 %v8800
      %9063 = vmatprep.subr.mxu0 0.0
      %9064 = vmatpush2.msra.mxu0 0.0
      %9065 = vmatprep.subr.mxu0 0.0
      %9066 = vmatpush2.msra.mxu0 0.0
      %9067 = vmatprep.subr.mxu0 0.0
      %9068 = vmatpush2.msra.mxu0 0.0
      %9069 = vmatprep.subr.mxu0 0.0
      %9070 = vmatpush2.msra.mxu0 0.0
      %9071 = vmatprep.subr.mxu0 0.0
      %9072 = vmatpush2.msra.mxu0 0.0
      %9073 = vmatprep.subr.mxu0 0.0
      %9074 = vmatpush2.msra.mxu0 0.0
      %9075 = vmatprep.subr.mxu0 0.0
      %9076 = vmatpush2.msra.mxu0 0.0
      %9077 = vmatprep.subr.mxu0 0.0
      %9078 = vmatpush2.msra.mxu0 0.0
      %9079 = vmatprep.subr.mxu0 0.0
      %9080 = vmatpush2.msra.mxu0 0.0
      %9081 = vmatprep.subr.mxu0 0.0
      %9082 = vmatpush2.msra.mxu0 0.0
      %9083 = vmatprep.subr.mxu0 0.0
      %9084 = vmatpush2.msra.mxu0 0.0
      %9085 = vmatprep.subr.mxu0 0.0
      %9086 = vmatpush2.msra.mxu0 0.0
      %9087 = vmatprep.subr.mxu0 0.0
      %9088 = vmatpush2.msra.mxu0 0.0
      %9089 = vmatprep.subr.mxu0 0.0
      %9090 = vmatpush2.msra.mxu0 0.0
      %9091 = vmatprep.subr.mxu0 0.0
      %9092 = vmatpush2.msra.mxu0 0.0
      %9093 = vmatprep.subr.mxu0 0.0
      %9094 = vmatpush2.msra.mxu0 0.0
      %9095 = vmatprep.mubr.f32.mxu0 0.0
      %9096 = vmatmul.mubr.f32.gmra.mxu0 %v8958
      %v9097 = vpop.f32.mrf.mxu0
      %v9098 = vadd.f32 %v8909, %v9097
      %v9099 = vpop.f32.mrf.mxu0
      %v9100 = vadd.f32 %v8911, %v9099
      %9101 = vdwg.mxu0
      %9102 = vmatprep.subr.mxu0 0.0
      %9103 = vmatpush1.msra.mxu0 0.0
      %9104 = vmatprep.subr.mxu0 0.0
      %9105 = vmatpush1.msra.mxu0 0.0
      %9106 = vmatprep.subr.mxu0 0.0
      %9107 = vmatpush1.msra.mxu0 0.0
      %9108 = vmatprep.subr.mxu0 0.0
      %9109 = vmatpush1.msra.mxu0 0.0
      %9110 = vmatprep.subr.mxu0 0.0
      %9111 = vmatpush1.msra.mxu0 0.0
      %9112 = vmatprep.subr.mxu0 0.0
      %9113 = vmatpush1.msra.mxu0 0.0
      %9114 = vmatprep.subr.mxu0 0.0
      %9115 = vmatpush1.msra.mxu0 0.0
      %9116 = vmatprep.subr.mxu0 0.0
      %9117 = vmatpush1.msra.mxu0 0.0
      %9118 = vmatprep.subr.mxu0 0.0
      %9119 = vmatpush1.msra.mxu0 0.0
      %9120 = vmatprep.subr.mxu0 0.0
      %9121 = vmatpush1.msra.mxu0 0.0
      %9122 = vmatprep.subr.mxu0 0.0
      %9123 = vmatpush1.msra.mxu0 0.0
      %9124 = vmatprep.subr.mxu0 0.0
      %9125 = vmatpush1.msra.mxu0 0.0
      %9126 = vmatprep.subr.mxu0 0.0
      %9127 = vmatpush1.msra.mxu0 0.0
      %9128 = vmatprep.subr.mxu0 0.0
      %9129 = vmatpush1.msra.mxu0 0.0
      %9130 = vmatprep.subr.mxu0 0.0
      %9131 = vmatpush1.msra.mxu0 0.0
      %9132 = vmatprep.subr.mxu0 0.0
      %9133 = vmatpush1.msra.mxu0 %v8802
      %9134 = vmatprep.subr.mxu0 0.0
      %9135 = vmatpush2.msra.mxu0 0.0
      %9136 = vmatprep.subr.mxu0 0.0
      %9137 = vmatpush2.msra.mxu0 0.0
      %9138 = vmatprep.subr.mxu0 0.0
      %9139 = vmatpush2.msra.mxu0 0.0
      %9140 = vmatprep.subr.mxu0 0.0
      %9141 = vmatpush2.msra.mxu0 0.0
      %9142 = vmatprep.subr.mxu0 0.0
      %9143 = vmatpush2.msra.mxu0 0.0
      %9144 = vmatprep.subr.mxu0 0.0
      %9145 = vmatpush2.msra.mxu0 0.0
      %9146 = vmatprep.subr.mxu0 0.0
      %9147 = vmatpush2.msra.mxu0 0.0
      %9148 = vmatprep.subr.mxu0 0.0
      %9149 = vmatpush2.msra.mxu0 0.0
      %9150 = vmatprep.subr.mxu0 0.0
      %9151 = vmatpush2.msra.mxu0 0.0
      %9152 = vmatprep.subr.mxu0 0.0
      %9153 = vmatpush2.msra.mxu0 0.0
      %9154 = vmatprep.subr.mxu0 0.0
      %9155 = vmatpush2.msra.mxu0 0.0
      %9156 = vmatprep.subr.mxu0 0.0
      %9157 = vmatpush2.msra.mxu0 0.0
      %9158 = vmatprep.subr.mxu0 0.0
      %9159 = vmatpush2.msra.mxu0 0.0
      %9160 = vmatprep.subr.mxu0 0.0
      %9161 = vmatpush2.msra.mxu0 0.0
      %9162 = vmatprep.subr.mxu0 0.0
      %9163 = vmatpush2.msra.mxu0 0.0
      %9164 = vmatprep.subr.mxu0 0.0
      %9165 = vmatpush2.msra.mxu0 0.0
      %9166 = vmatprep.mubr.f32.mxu0 0.0
      %9167 = vmatmul.mubr.f32.gmra.mxu0 %v8958
      %v9168 = vpop.f32.mrf.mxu0
      %v9169 = vadd.f32 %v8950, %v9168
      %v9170 = vpop.f32.mrf.mxu0
      %9171 = vdwg.mxu0
      %v9172 = vpack.c.bf16 %v9027, %v9027
      %v9173 = vpack.c.bf16 %v9029, %v9029
      %v9174 = vpack.c.bf16 %v9098, %v9098
      %v9175 = vpack.c.bf16 %v9100, %v9100
      %v9176 = vpack.c.bf16 %v9169, %v9169
      %v9177 = vld [vmem:[%s55] sm:$0xff]
      %v9178 = vld [vmem:[%s55 + $0x8] sm:$0xff]
      %9180 = vset.pattern.permute.xlu0 0
      %9181 = vperm.xlu0 %9180, %v9177
      %v9182 = vpop.permute.xlu0 %9181
      %9185 = vset.pattern.permute.xlu0 0
      %9186 = vperm.xlu0 %9185, %v9178
      %v9187 = vpop.permute.xlu0 %9186
      %v9191 = vunpack.c.l.b16 %v8955
      %v9192 = vunpack.c.l.b16 %v8956
      %v9193 = vpack.c.b16 %v9192, %v9191
      %v9195 = vsel %vm3811, %v9193, 0
      %v9198 = vsel %vm1094, %v9172, 0
      %v9201 = vsel %vm1094, %v9173, 0
      %v9204 = vsel %vm1094, %v9174, 0
      %v9207 = vsel %vm1094, %v9175, 0
      %v9210 = vsel %vm1094, %v9176, 0
      %9212 = vmatprep.subr.bf16.mxu0 0
      %9213 = vmatpush1.bf16.msra.mxu0 0
      %9214 = vmatprep.subr.bf16.mxu0 0
      %9215 = vmatpush1.bf16.msra.mxu0 0
      %9216 = vmatprep.subr.bf16.mxu0 0
      %9217 = vmatpush1.bf16.msra.mxu0 0
      %9218 = vmatprep.subr.bf16.mxu0 0
      %9219 = vmatpush1.bf16.msra.mxu0 0
      %9220 = vmatprep.subr.bf16.mxu0 0
      %9221 = vmatpush1.bf16.msra.mxu0 0
      %9222 = vmatprep.subr.bf16.mxu0 0
      %9223 = vmatpush1.bf16.msra.mxu0 0
      %9224 = vmatprep.subr.bf16.mxu0 0
      %9225 = vmatpush1.bf16.msra.mxu0 0
      %9226 = vmatprep.subr.bf16.mxu0 %v9201
      %9227 = vmatpush1.bf16.msra.mxu0 %v9198
      %9228 = vmatprep.subr.bf16.mxu0 0
      %9229 = vmatpush2.bf16.msra.mxu0 0
      %9230 = vmatprep.subr.bf16.mxu0 0
      %9231 = vmatpush2.bf16.msra.mxu0 0
      %9232 = vmatprep.subr.bf16.mxu0 0
      %9233 = vmatpush2.bf16.msra.mxu0 0
      %9234 = vmatprep.subr.bf16.mxu0 0
      %9235 = vmatpush2.bf16.msra.mxu0 0
      %9236 = vmatprep.subr.bf16.mxu0 0
      %9237 = vmatpush2.bf16.msra.mxu0 0
      %9238 = vmatprep.subr.bf16.mxu0 0
      %9239 = vmatpush2.bf16.msra.mxu0 0
      %9240 = vmatprep.subr.bf16.mxu0 0
      %9241 = vmatpush2.bf16.msra.mxu0 0
      %9242 = vmatprep.subr.bf16.mxu0 0
      %9243 = vmatpush2.bf16.msra.mxu0 0
      %9244 = vmatprep.mubr.bf16.mxu0 0
      %9245 = vmatmul.mubr.bf16.gmra.mxu0 %v9195
      %v9246 = vpop.f32.mrf.mxu0
      %v9247 = vadd.f32 %v9182, %v9246
      %v9248 = vpop.f32.mrf.mxu0
      %v9249 = vadd.f32 %v9182, %v9248
      %v9250 = vpop.f32.mrf.mxu0
      %v9251 = vadd.f32 %v9187, %v9250
      %v9252 = vpop.f32.mrf.mxu0
      %v9253 = vadd.f32 %v9187, %v9252
      %9254 = vdwg.mxu0
      %9255 = vmatprep.subr.bf16.mxu0 0
      %9256 = vmatpush1.bf16.msra.mxu0 0
      %9257 = vmatprep.subr.bf16.mxu0 0
      %9258 = vmatpush1.bf16.msra.mxu0 0
      %9259 = vmatprep.subr.bf16.mxu0 0
      %9260 = vmatpush1.bf16.msra.mxu0 0
      %9261 = vmatprep.subr.bf16.mxu0 0
      %9262 = vmatpush1.bf16.msra.mxu0 0
      %9263 = vmatprep.subr.bf16.mxu0 0
      %9264 = vmatpush1.bf16.msra.mxu0 0
      %9265 = vmatprep.subr.bf16.mxu0 0
      %9266 = vmatpush1.bf16.msra.mxu0 0
      %9267 = vmatprep.subr.bf16.mxu0 0
      %9268 = vmatpush1.bf16.msra.mxu0 0
      %9269 = vmatprep.subr.bf16.mxu0 %v9207
      %9270 = vmatpush1.bf16.msra.mxu0 %v9204
      %9271 = vmatprep.subr.bf16.mxu0 0
      %9272 = vmatpush2.bf16.msra.mxu0 0
      %9273 = vmatprep.subr.bf16.mxu0 0
      %9274 = vmatpush2.bf16.msra.mxu0 0
      %9275 = vmatprep.subr.bf16.mxu0 0
      %9276 = vmatpush2.bf16.msra.mxu0 0
      %9277 = vmatprep.subr.bf16.mxu0 0
      %9278 = vmatpush2.bf16.msra.mxu0 0
      %9279 = vmatprep.subr.bf16.mxu0 0
      %9280 = vmatpush2.bf16.msra.mxu0 0
      %9281 = vmatprep.subr.bf16.mxu0 0
      %9282 = vmatpush2.bf16.msra.mxu0 0
      %9283 = vmatprep.subr.bf16.mxu0 0
      %9284 = vmatpush2.bf16.msra.mxu0 0
      %9285 = vmatprep.subr.bf16.mxu0 0
      %9286 = vmatpush2.bf16.msra.mxu0 0
      %9287 = vmatprep.mubr.bf16.mxu0 0
      %9288 = vmatmul.mubr.bf16.gmra.mxu0 %v9195
      %v9289 = vpop.f32.mrf.mxu0
      %v9290 = vadd.f32 %v9182, %v9289
      %v9291 = vpop.f32.mrf.mxu0
      %v9292 = vadd.f32 %v9182, %v9291
      %v9293 = vpop.f32.mrf.mxu0
      %v9294 = vadd.f32 %v9187, %v9293
      %v9295 = vpop.f32.mrf.mxu0
      %v9296 = vadd.f32 %v9187, %v9295
      %9297 = vdwg.mxu0
      %9298 = vmatprep.subr.bf16.mxu0 0
      %9299 = vmatpush1.bf16.msra.mxu0 0
      %9300 = vmatprep.subr.bf16.mxu0 0
      %9301 = vmatpush1.bf16.msra.mxu0 0
      %9302 = vmatprep.subr.bf16.mxu0 0
      %9303 = vmatpush1.bf16.msra.mxu0 0
      %9304 = vmatprep.subr.bf16.mxu0 0
      %9305 = vmatpush1.bf16.msra.mxu0 0
      %9306 = vmatprep.subr.bf16.mxu0 0
      %9307 = vmatpush1.bf16.msra.mxu0 0
      %9308 = vmatprep.subr.bf16.mxu0 0
      %9309 = vmatpush1.bf16.msra.mxu0 0
      %9310 = vmatprep.subr.bf16.mxu0 0
      %9311 = vmatpush1.bf16.msra.mxu0 0
      %9312 = vmatprep.subr.bf16.mxu0 0
      %9313 = vmatpush1.bf16.msra.mxu0 %v9210
      %9314 = vmatprep.subr.bf16.mxu0 0
      %9315 = vmatpush2.bf16.msra.mxu0 0
      %9316 = vmatprep.subr.bf16.mxu0 0
      %9317 = vmatpush2.bf16.msra.mxu0 0
      %9318 = vmatprep.subr.bf16.mxu0 0
      %9319 = vmatpush2.bf16.msra.mxu0 0
      %9320 = vmatprep.subr.bf16.mxu0 0
      %9321 = vmatpush2.bf16.msra.mxu0 0
      %9322 = vmatprep.subr.bf16.mxu0 0
      %9323 = vmatpush2.bf16.msra.mxu0 0
      %9324 = vmatprep.subr.bf16.mxu0 0
      %9325 = vmatpush2.bf16.msra.mxu0 0
      %9326 = vmatprep.subr.bf16.mxu0 0
      %9327 = vmatpush2.bf16.msra.mxu0 0
      %9328 = vmatprep.subr.bf16.mxu0 0
      %9329 = vmatpush2.bf16.msra.mxu0 0
      %9330 = vmatprep.mubr.bf16.mxu0 0
      %9331 = vmatmul.mubr.bf16.gmra.mxu0 %v9195
      %v9332 = vpop.f32.mrf.mxu0
      %v9333 = vadd.f32 %v9182, %v9332
      %v9334 = vpop.f32.mrf.mxu0
      %v9335 = vpop.f32.mrf.mxu0
      %v9336 = vadd.f32 %v9187, %v9335
      %v9337 = vpop.f32.mrf.mxu0
      %9338 = vdwg.mxu0
      %v9339 = vxor.u32 %v9247, 2147483648
      %v9340 = vxor.u32 %v9249, 2147483648
      %v9341 = vxor.u32 %v9290, 2147483648
      %v9342 = vxor.u32 %v9292, 2147483648
      %v9343 = vxor.u32 %v9333, 2147483648
      %v9344 = vxor.u32 %v9251, 2147483648
      %v9345 = vxor.u32 %v9253, 2147483648
      %v9346 = vxor.u32 %v9294, 2147483648
      %v9347 = vxor.u32 %v9296, 2147483648
      %v9348 = vxor.u32 %v9336, 2147483648
      %v9349 = vmul.f32 %v9339, 1.442695
      %v9350 = vpow.pop %v9349
      %v9351 = vmul.f32 %v9340, 1.442695
      %v9352 = vpow.pop %v9351
      %v9353 = vmul.f32 %v9341, 1.442695
      %v9354 = vpow.pop %v9353
      %v9355 = vmul.f32 %v9342, 1.442695
      %v9356 = vpow.pop %v9355
      %v9357 = vmul.f32 %v9343, 1.442695
      %v9358 = vpow.pop %v9357
      %v9359 = vmul.f32 %v9344, 1.442695
      %v9360 = vpow.pop %v9359
      %v9361 = vmul.f32 %v9345, 1.442695
      %v9362 = vpow.pop %v9361
      %v9363 = vmul.f32 %v9346, 1.442695
      %v9364 = vpow.pop %v9363
      %v9365 = vmul.f32 %v9347, 1.442695
      %v9366 = vpow.pop %v9365
      %v9367 = vmul.f32 %v9348, 1.442695
      %v9368 = vpow.pop %v9367
      %v9369 = vadd.f32 %v9350, 1.0
      %v9370 = vadd.f32 %v9352, 1.0
      %v9371 = vadd.f32 %v9354, 1.0
      %v9372 = vadd.f32 %v9356, 1.0
      %v9373 = vadd.f32 %v9358, 1.0
      %v9374 = vadd.f32 %v9360, 1.0
      %v9375 = vadd.f32 %v9362, 1.0
      %v9376 = vadd.f32 %v9364, 1.0
      %v9377 = vadd.f32 %v9366, 1.0
      %v9378 = vadd.f32 %v9368, 1.0
      %v9379 = vrcp.pop %v9369
      %v9380 = vmul.f32 1.0, %v9379
      %v9381 = vrcp.pop %v9370
      %v9382 = vmul.f32 1.0, %v9381
      %v9383 = vrcp.pop %v9371
      %v9384 = vmul.f32 1.0, %v9383
      %v9385 = vrcp.pop %v9372
      %v9386 = vmul.f32 1.0, %v9385
      %v9387 = vrcp.pop %v9373
      %v9388 = vmul.f32 1.0, %v9387
      %v9389 = vrcp.pop %v9374
      %v9390 = vmul.f32 1.0, %v9389
      %v9391 = vrcp.pop %v9375
      %v9392 = vmul.f32 1.0, %v9391
      %v9393 = vrcp.pop %v9376
      %v9394 = vmul.f32 1.0, %v9393
      %v9395 = vrcp.pop %v9377
      %v9396 = vmul.f32 1.0, %v9395
      %v9397 = vrcp.pop %v9378
      %v9398 = vmul.f32 1.0, %v9397
      %v9399 = vmul.f32 %v3627, %v9380
      %v9400 = vmul.f32 %v3628, %v9382
      %v9401 = vmul.f32 %v3629, %v9384
      %v9402 = vmul.f32 %v3630, %v9386
      %v9403 = vmul.f32 %v3631, %v9388
      %v9404 = vmul.f32 %v3632, %v9390
      %v9405 = vmul.f32 %v3633, %v9392
      %v9406 = vmul.f32 %v3634, %v9394
      %v9407 = vmul.f32 %v3635, %v9396
      %v9408 = vmul.f32 %v3636, %v9398
      %v9409 = vmul.f32 %v9399, %v1249
      %v9410 = vmul.f32 %v9400, %v1253
      %v9411 = vmul.f32 %v9401, %v1257
      %v9412 = vmul.f32 %v9402, %v1261
      %v9413 = vmul.f32 %v9403, %v1265
      %v9414 = vmul.f32 %v9404, %v1249
      %v9415 = vmul.f32 %v9405, %v1253
      %v9416 = vmul.f32 %v9406, %v1257
      %v9417 = vmul.f32 %v9407, %v1261
      %v9418 = vmul.f32 %v9408, %v1265
      %v9419 = vadd.f32 %v9409, %v9410
      %v9420 = vadd.f32 %v9419, %v9411
      %v9421 = vadd.f32 %v9420, %v9412
      %v9422 = vsel %vm1285, %v9413, 0.0
      %v9423 = vadd.f32 %v9421, %v9422
      %9424 = vadd.xlane.f32.xlu0 %v9423
      %v9425 = vpop.xlane.xlu0 %9424
      %v9426 = vadd.f32 %v9414, %v9415
      %v9427 = vadd.f32 %v9426, %v9416
      %v9428 = vadd.f32 %v9427, %v9417
      %v9429 = vsel %vm1285, %v9418, 0.0
      %v9430 = vadd.f32 %v9428, %v9429
      %9431 = vadd.xlane.f32.xlu0 %v9430
      %v9432 = vpop.xlane.xlu0 %9431
      %v9433 = vmul.f32 %v9425, 0.0017361111
      %v9434 = vmul.f32 %v9432, 0.0017361111
      %v9435 = vsub.f32 %v9399, %v9433
      %v9436 = vsub.f32 %v9400, %v9433
      %v9437 = vsub.f32 %v9401, %v9433
      %v9438 = vsub.f32 %v9402, %v9433
      %v9439 = vsub.f32 %v9403, %v9433
      %v9440 = vsub.f32 %v9404, %v9434
      %v9441 = vsub.f32 %v9405, %v9434
      %v9442 = vsub.f32 %v9406, %v9434
      %v9443 = vsub.f32 %v9407, %v9434
      %v9444 = vsub.f32 %v9408, %v9434
      %v9445 = vmul.f32 %v9435, %v1249
      %v9446 = vmul.f32 %v9436, %v1253
      %v9447 = vmul.f32 %v9437, %v1257
      %v9448 = vmul.f32 %v9438, %v1261
      %v9449 = vmul.f32 %v9439, %v1265
      %v9450 = vmul.f32 %v9440, %v1249
      %v9451 = vmul.f32 %v9441, %v1253
      %v9452 = vmul.f32 %v9442, %v1257
      %v9453 = vmul.f32 %v9443, %v1261
      %v9454 = vmul.f32 %v9444, %v1265
      %v9455 = vmul.f32 %v9445, %v9445
      %v9456 = vmul.f32 %v9446, %v9446
      %v9457 = vmul.f32 %v9447, %v9447
      %v9458 = vmul.f32 %v9448, %v9448
      %v9459 = vmul.f32 %v9449, %v9449
      %v9460 = vmul.f32 %v9450, %v9450
      %v9461 = vmul.f32 %v9451, %v9451
      %v9462 = vmul.f32 %v9452, %v9452
      %v9463 = vmul.f32 %v9453, %v9453
      %v9464 = vmul.f32 %v9454, %v9454
      %v9465 = vadd.f32 %v9455, %v9456
      %v9466 = vadd.f32 %v9465, %v9457
      %v9467 = vadd.f32 %v9466, %v9458
      %v9468 = vsel %vm1285, %v9459, 0.0
      %v9469 = vadd.f32 %v9467, %v9468
      %9470 = vadd.xlane.f32.xlu0 %v9469
      %v9471 = vpop.xlane.xlu0 %9470
      %v9472 = vadd.f32 %v9460, %v9461
      %v9473 = vadd.f32 %v9472, %v9462
      %v9474 = vadd.f32 %v9473, %v9463
      %v9475 = vsel %vm1285, %v9464, 0.0
      %v9476 = vadd.f32 %v9474, %v9475
      %9477 = vadd.xlane.f32.xlu0 %v9476
      %v9478 = vpop.xlane.xlu0 %9477
      %v9479 = vmul.f32 %v9471, 0.0017361111
      %v9480 = vmul.f32 %v9478, 0.0017361111
      %v9481 = vrsqrt.pop %v9479
      %v9482 = vmul.f32 %v9479, %v9481
      %vm9483 = vcmp.eq.f32.partialorder %v9479, inf
      %v9484 = vsel %vm9483, %v9479, %v9482
      %vm9485 = vcmp.eq.f32.partialorder %v9479, 0.0
      %v9486 = vand.u32 %v9479, 2147483648
      %v9487 = vsel %vm9485, %v9486, %v9484
      %v9488 = vrsqrt.pop %v9480
      %v9489 = vmul.f32 %v9480, %v9488
      %vm9490 = vcmp.eq.f32.partialorder %v9480, inf
      %v9491 = vsel %vm9490, %v9480, %v9489
      %vm9492 = vcmp.eq.f32.partialorder %v9480, 0.0
      %v9493 = vand.u32 %v9480, 2147483648
      %v9494 = vsel %vm9492, %v9493, %v9491
      %v9495 = vadd.f32 %v9487, %v9433
      %v9496 = vadd.f32 %v9494, %v9434
      %v9497 = vld [vmem:[%s57] sm:$0xff]
      %v9498 = vld [vmem:[%s57 + $0x8] sm:$0xff]
      %v9499 = vmul.f32 %v9497, %v9495
      %v9500 = vmul.f32 %v9498, %v9496
      %vm9501 = vcmask 7168
      %v9502 = vsel %vm9501, %v9499, 0.0
      %v9503 = vsel %vm9501, %v9500, 0.0
      %v9504 = vadd.f32 %v9502, %v9503
      %v9505 = vrot.slane %v9504, 4
      %v9506 = vadd.f32 %v9504, %v9505
      %v9507 = vrot.slane %v9506, 2
      %v9508 = vadd.f32 %v9506, %v9507
      %v9509 = vrot.slane %v9508, 1
      %v9510 = vadd.f32 %v9508, %v9509
      %v9511 = vld [vmem:[#allocation7] sm:$0x1]
      %v9512 = vadd.f32 %v9510, %v9511
      %v9513 = vmax.f32 %v9512, 0.0
      %v9514 = vld [vmem:[%s61] sm:$0xff]
      %v9515 = vld [vmem:[%s61 + $0x8] sm:$0xff]
      %v9516 = vlaneseq
      %v9517 = vshrl.u32 %v9516, 7
      %v9518 = vsub.s32 0, %v9517
      %v9519 = vrot.slane %v9513, %v9518
      %v9520 = vmul.f32 %v9514, %v9519
      %v9521 = vmul.f32 %v9515, %v9519
      %v9522 = vadd.f32 %v9520, 0.0
      %v9523 = vadd.f32 %v9521, 0.0
      %v9524 = vld [vmem:[%s63] sm:$0xff]
      %v9525 = vld [vmem:[%s63 + $0x8] sm:$0xff]
      %v9526 = vadd.f32 %v9522, %v9524
      %v9527 = vadd.f32 %v9523, %v9525
      %v9528 = vxor.u32 %v9526, 2147483648
      %v9529 = vxor.u32 %v9527, 2147483648
      %v9530 = vmul.f32 %v9528, 1.442695
      %v9531 = vpow.pop %v9530
      %v9532 = vmul.f32 %v9529, 1.442695
      %v9533 = vpow.pop %v9532
      %v9534 = vadd.f32 %v9531, 1.0
      %v9535 = vadd.f32 %v9533, 1.0
      %v9536 = vrcp.pop %v9534
      %v9537 = vmul.f32 1.0, %v9536
      %v9538 = vrcp.pop %v9535
      %v9539 = vmul.f32 1.0, %v9538
      %9541 = vset.pattern.permute.xlu0 0
      %9542 = vperm.xlu0 %9541, %v9537
      %v9543 = vpop.permute.xlu0 %9542
      %9546 = vset.pattern.permute.xlu0 0
      %9547 = vperm.xlu0 %9546, %v9539
      %v9548 = vpop.permute.xlu0 %9547
      %v9550 = vmul.f32 %v9399, %v9543
      %v9551 = vmul.f32 %v9400, %v9543
      %v9552 = vmul.f32 %v9401, %v9543
      %v9553 = vmul.f32 %v9402, %v9543
      %v9554 = vmul.f32 %v9403, %v9543
      %v9555 = vmul.f32 %v9404, %v9548
      %v9556 = vmul.f32 %v9405, %v9548
      %v9557 = vmul.f32 %v9406, %v9548
      %v9558 = vmul.f32 %v9407, %v9548
      %v9559 = vmul.f32 %v9408, %v9548
      %9560 = vst [vmem:[%s988] sm:$0xff] %v9550
      %9561 = vst [vmem:[%s988 + $0x8] sm:$0xff] %v9551
      %9562 = vst [vmem:[%s988 + $0x10] sm:$0xff] %v9552
      %9563 = vst [vmem:[%s988 + $0x18] sm:$0xff] %v9553
      %9564 = vst.msk [vmem:[%s988 + $0x20] sm:$0xff] %vm1285, %v9554
      %9565 = vst [vmem:[%s988 + $0x28] sm:$0xff] %v9555
      %9566 = vst [vmem:[%s988 + $0x30] sm:$0xff] %v9556
      %9567 = vst [vmem:[%s988 + $0x38] sm:$0xff] %v9557
      %9568 = vst [vmem:[%s988 + $0x40] sm:$0xff] %v9558
      %9569 = vst.msk [vmem:[%s988 + $0x48] sm:$0xff] %vm1285, %v9559
      %p9570 = scmp.lt.s32.totalorder %s78, 1
      %s9571 = scalar_select %p9570, %s78, 1
      %s9572 = smul.addr %s9571, 10
      %s9573 = smul.addr %s9572, 8
      %s9574 = scalar_lea.vmem %s65, %s9573
      // Predicated region
      $region149: #{blueprint_shortcut_block.1} parent=147 // pred_check
        %p9575 = pneg %p773
      $region150: #{blueprint_shortcut_block.1} parent=147 // pred_check_branch
        %9577 = sbr.rel (%p9575) target = $region152
      $region151: #{blueprint_shortcut_block.1} parent=147 // pred_region
        _
      $region152: #{blueprint_shortcut_block.1} parent=147 // pred_fallthru
        _
    $region148: #{blueprint_shortcut_block.1} parent=5 // pred_fallthru
      _
    %p9578 = scmp.le.s32.totalorder 2, %s73
    // Predicated region
    $region153: #{blueprint_shortcut_block.1} parent=5 // pred_check
      %p9579 = pneg %p9578
    $region154: #{blueprint_shortcut_block.1} parent=5 // pred_check_branch
      %9581 = sbr.rel (%p9579) target = $region156
    $region155: #{blueprint_shortcut_block.1} parent=5 // pred_region
      %s9582 = ssub.s32 %s73, 2
      // Predicated region
      $region157: #{blueprint_shortcut_block.1} parent=155 // pred_check
        %p9583 = pneg %p779
      $region158: #{blueprint_shortcut_block.1} parent=155 // pred_check_branch
        %9585 = sbr.rel (%p9583) target = $region160
      $region159: #{blueprint_shortcut_block.1} parent=155 // pred_region
        %p9586 = scmp.lt.s32.totalorder %s79, 1
        %s9587 = scalar_select %p9586, %s79, 1
        %s9588 = smul.addr %s9587, 10
        %s9589 = smul.addr %s9588, 8
        %s9590 = scalar_lea.vmem %s65, %s9589
      $region160: #{blueprint_shortcut_block.1} parent=155 // pred_fallthru
        _
    $region156: #{blueprint_shortcut_block.1} parent=5 // pred_fallthru
      _
  $region6: #{blueprint_shortcut_block.1} parent=0 // loop_footer
    %s77 = sadd.s32 1, %s73
  $region7: #{blueprint_shortcut_block.1} parent=0 // loop_footer_branch
    %72 = sbr.rel target = $region3
  $region8: #{blueprint_shortcut_block.1} parent=0 // loop_exit
    _

</llo_original>
